<compile_context>
chip_gen: v7x
topology: tpu7x:2x2x1
jax: 0.10.0
libtpu: 0.0.40
codegen_flags: <defaults>
</compile_context>

<pallas_src>
import functools

import jax
import jax.numpy as jnp
from jax.experimental import pallas as pl
from jax.experimental.pallas import tpu as pltpu

_LANE = 128


def _round_up(n, m):
    return (n + m - 1) // m * m


def _resnet_block_kernel(*refs, identity_residual):
    if identity_residual:
        (xpad_ref, ss_ref, w1_ref, b1_ref, g1_ref,
         w2_ref, b2_ref, g2_ref, o_ref) = refs
        wr_ref = br_ref = None
    else:
        (xpad_ref, ss_ref, w1_ref, b1_ref, g1_ref,
         w2_ref, b2_ref, g2_ref, wr_ref, br_ref, o_ref) = refs

    # xpad_ref : (1, H+2, W, Cin_p)  bf16 input, zero rows at 0 and H+1
    # ss_ref   : (1, 1, 2*Cout_p)    f32 precomputed (scale | shift) for this batch
    # w*_ref   : bf16 conv weights, kx folded: (3, 3*C, Cout_p); b*/g*: f32 (1, Cout_p)
    # o_ref    : (1, H, W, Cout_p)   f32 output
    H = o_ref.shape[1]
    W = o_ref.shape[2]
    Cout = o_ref.shape[3]

    def silu(v):
        return v * jax.nn.sigmoid(v)

    def w_taps(h):
        # h: (R, W, C) -> (R, W, 3*C): columns x-1, x, x+1 (zero at image edges),
        # lane-concatenated (C is a 128-multiple, so the concat is lane-aligned).
        # TODO(synk): pltpu.roll(h, +-1, axis=1) + an edge mask would realize the
        # two column shifts on the XLU instead of shifted sublane copies.
        R, Wd, C = h.shape
        zcol = jnp.zeros((R, 1, C), h.dtype)
        left = jnp.concatenate([zcol, h[:, :Wd - 1, :]], axis=1)   # column x-1
        right = jnp.concatenate([h[:, 1:, :], zcol], axis=1)       # column x+1
        return jnp.concatenate([left, h, right], axis=-1)

    def conv3x3(xcat, w_ref, b_ref):
        # SAME 3x3 cross-correlation as 3 MXU matmuls with K = 3*C; the ky taps
        # are leading-dim slices (free), f32 accumulation with only 2 f32 adds.
        K = xcat.shape[-1]
        acc = jnp.dot(xcat[0:H].reshape(H * W, K), w_ref[0],
                      preferred_element_type=jnp.float32)
        acc = acc + jnp.dot(xcat[1:H + 1].reshape(H * W, K), w_ref[1],
                            preferred_element_type=jnp.float32)
        acc = acc + jnp.dot(xcat[2:H + 2].reshape(H * W, K), w_ref[2],
                            preferred_element_type=jnp.float32)
        return acc + b_ref[...]

    def rmsnorm(v, g_ref):
        # F.normalize(x, dim=channel) * (g * sqrt(dim)); sqrt(dim) folded into g.
        # rsqrt(max(ssq, 1e-24)) == 1 / max(||x||, 1e-12)
        ssq = jnp.sum(v * v, axis=-1, keepdims=True)
        return v * jax.lax.rsqrt(jnp.maximum(ssq, 1e-24)) * g_ref[...]

    xpad = xpad_ref[0]                     # (H+2, W, Cin_p) bf16
    scale = ss_ref[0, :, :Cout]            # (1, Cout_p) f32
    shift = ss_ref[0, :, Cout:]

    # ---- Block 1: conv3x3 -> RMSNorm -> x*(scale+1)+shift -> SiLU ----
    h1 = conv3x3(w_taps(xpad), w1_ref, b1_ref)          # (H*W, Cout_p) f32
    h1 = rmsnorm(h1, g1_ref)
    h1 = silu(h1 * (scale + 1.0) + shift)

    # Re-pad block1's output along H only (leading dim -> aligned copies), bf16.
    zrow = jnp.zeros((1, W, Cout), jnp.bfloat16)
    h1p = jnp.concatenate(
        [zrow, h1.reshape(H, W, Cout).astype(jnp.bfloat16), zrow], axis=0)

    # ---- Block 2: conv3x3 -> RMSNorm -> SiLU ----
    h2 = conv3x3(w_taps(h1p), w2_ref, b2_ref)
    h2 = rmsnorm(h2, g2_ref)
    h2 = silu(h2)

    # ---- residual: 1x1 conv on x, or identity when dim == dim_out ----
    x_in = xpad[1:H + 1].reshape(H * W, xpad.shape[-1])
    if identity_residual:
        res = x_in.astype(jnp.float32)
    else:
        res = jnp.dot(x_in, wr_ref[...],
                      preferred_element_type=jnp.float32) + br_ref[...]

    o_ref[...] = (h2 + res).reshape(1, H, W, Cout)


def resnet_block_forward(x_nchw, time_emb, params):
    """x_nchw: (B, Cin, H, W) f32, time_emb: (B, T) f32 -> (B, Cout, H, W) f32.

    Best performance when W is a multiple of 8 (sublane-aligned reshapes)."""
    B, Cin, H, W = x_nchw.shape
    Cout = params["b1"].shape[-1]
    identity_residual = params.get("wr", None) is None
    if identity_residual and Cin != Cout:
        raise ValueError("identity residual requires dim == dim_out")

    Cin_p, Cout_p = _round_up(Cin, _LANE), _round_up(Cout, _LANE)
    dCi, dCo = Cin_p - Cin, Cout_p - Cout

    # NHWC; pad H by 1 for the SAME 3x3 halo (W stays unpadded: the +-1 column
    # taps are built in-kernel); channels zero-padded to a lane multiple; bf16.
    # TODO(synk): keep activations NHWC end-to-end in the surrounding model so
    # these NCHW<->NHWC transposes (full HBM passes, dominant on v5e) disappear.
    x = jnp.transpose(x_nchw, (0, 2, 3, 1))
    xpad = jnp.pad(x, ((0, 0), (1, 1), (0, 0), (0, dCi))).astype(jnp.bfloat16)

    # Time-embedding MLP hoisted out of the kernel (one (B,T)x(T,2*Cout) matmul).
    te = jax.nn.silu(time_emb) @ params["wm"] + params["bm"]
    scale = jnp.pad(te[:, :Cout], ((0, 0), (0, dCo)))
    shift = jnp.pad(te[:, Cout:], ((0, 0), (0, dCo)))
    ss = jnp.concatenate([scale, shift], axis=1).astype(jnp.float32)
    ss = ss.reshape(B, 1, 2 * Cout_p)

    # Conv weights: pad channels, bf16, fold the kx axis into the contraction
    # (HWIO (3,3,C,O) -> (3, 3*C, O), matching the in-kernel tap concat order).
    # RMSNorm's sqrt(dim) is folded into gamma. Padded channels stay exactly zero.
    w1 = jnp.pad(params["w1"], ((0, 0), (0, 0), (0, dCi), (0, dCo)))
    w1 = w1.astype(jnp.bfloat16).reshape(3, 3 * Cin_p, Cout_p)
    w2 = jnp.pad(params["w2"], ((0, 0), (0, 0), (0, dCo), (0, dCo)))
    w2 = w2.astype(jnp.bfloat16).reshape(3, 3 * Cout_p, Cout_p)
    b1 = jnp.pad(params["b1"], ((0, 0), (0, dCo))).astype(jnp.float32)
    b2 = jnp.pad(params["b2"], ((0, 0), (0, dCo))).astype(jnp.float32)
    g1 = jnp.pad(params["g1"] * (float(Cout) ** 0.5), ((0, 0), (0, dCo))).astype(jnp.float32)
    g2 = jnp.pad(params["g2"] * (float(Cout) ** 0.5), ((0, 0), (0, dCo))).astype(jnp.float32)

    inputs = [xpad, ss, w1, b1, g1, w2, b2, g2]
    if not identity_residual:
        wr = jnp.pad(params["wr"], ((0, dCi), (0, dCo))).astype(jnp.bfloat16)
        br = jnp.pad(params["br"], ((0, 0), (0, dCo))).astype(jnp.float32)
        inputs += [wr, br]

    kernel = functools.partial(_resnet_block_kernel,
                               identity_residual=identity_residual)

    conv_flops = 2 * H * W * (9 * Cin_p * Cout_p + 9 * Cout_p * Cout_p)
    res_flops = 0 if identity_residual else 2 * H * W * Cin_p * Cout_p
    cost = pl.CostEstimate(
        flops=int(B * (conv_flops + res_flops)),
        transcendentals=int(B * H * W * (2 * Cout_p + 2)),
        bytes_accessed=int(sum(a.size * a.dtype.itemsize for a in inputs)
                           + B * H * W * Cout_p * 4),
    )

    def run(single_buffer_weights):
        def batch_spec(shape):
            return pl.BlockSpec(shape, lambda b: (b,) + (0,) * (len(shape) - 1))

        def const_spec(shape):
            # Weights never change block index across the batch grid: single-
            # buffer them to avoid wasted VMEM (double-buffering is pointless).
            kw = {"pipeline_mode": pl.Buffered(1)} if single_buffer_weights else {}
            return pl.BlockSpec(shape, lambda b: (0,) * len(shape), **kw)

        in_specs = [batch_spec((1, H + 2, W, Cin_p)),
                    batch_spec((1, 1, 2 * Cout_p)),
                    const_spec(w1.shape), const_spec(b1.shape), const_spec(g1.shape),
                    const_spec(w2.shape), const_spec(b2.shape), const_spec(g2.shape)]
        if not identity_residual:
            in_specs += [const_spec(inputs[8].shape), const_spec(inputs[9].shape)]

        out = pl.pallas_call(
            kernel,
            out_shape=jax.ShapeDtypeStruct((B, H, W, Cout_p), jnp.float32),
            grid_spec=pltpu.PrefetchScalarGridSpec(
                num_scalar_prefetch=0,
                grid=(B,),
                in_specs=in_specs,
                out_specs=pl.BlockSpec((1, H, W, Cout_p), lambda b: (b, 0, 0, 0)),
            ),
            compiler_params=pltpu.CompilerParams(
                dimension_semantics=("parallel",),       # batch steps independent
                # ~48 MiB: safe on v7x (64 MiB physical per TC), well within
                # v5e/v6e's 128 MiB.
                vmem_limit_bytes=48 * 1024 * 1024,
            ),
            cost_estimate=cost,
        )(*inputs)
        return jax.block_until_ready(out)

    # TODO(synk): for production shapes (H,W >= 64, C >= 256) add a row-tile grid
    # axis with a 2-row halo (pl.ANY input + manual make_async_copy of the slab)
    # so per-step VMEM scales with the tile instead of H.
    try:
        out_nhwc = run(True)
    except Exception:
        # pl.Buffered(1) not accepted by this jax/Mosaic build: fall back to the
        # default double-buffered constant blocks (correctness unaffected).
        out_nhwc = run(False)

    return jnp.transpose(out_nhwc[:, :, :, :Cout], (0, 3, 1, 2))        # NCHW


def reference_forward(x_nchw, time_emb, params):
    """Pure-JAX reference matching the kernel's precision policy (bf16 matmul
    operands, f32 accumulation, f32 norm/activation math)."""
    x = jnp.transpose(x_nchw, (0, 2, 3, 1))
    Cout = params["b1"].shape[-1]

    def conv3x3(v, w, b):
        y = jax.lax.conv_general_dilated(
            v.astype(jnp.bfloat16), w.astype(jnp.bfloat16), (1, 1), "SAME",
            dimension_numbers=("NHWC", "HWIO", "NHWC"),
            preferred_element_type=jnp.float32)
        return y + b.reshape(1, 1, 1, -1)

    def rmsn(v, g):
        n = jnp.sqrt(jnp.sum(v * v, axis=-1, keepdims=True))
        return v / jnp.maximum(n, 1e-12) * g.reshape(1, 1, 1, -1) * (float(Cout) ** 0.5)

    te = jax.nn.silu(time_emb) @ params["wm"] + params["bm"]
    scale, shift = te[:, :Cout], te[:, Cout:]

    h = conv3x3(x, params["w1"], params["b1"])
    h = rmsn(h, params["g1"])
    h = h * (scale[:, None, None, :] + 1.0) + shift[:, None, None, :]
    h = jax.nn.silu(h)

    h = conv3x3(h, params["w2"], params["b2"])
    h = rmsn(h, params["g2"])
    h = jax.nn.silu(h)

    if params.get("wr", None) is None:
        res = x.astype(jnp.bfloat16).astype(jnp.float32)   # matches kernel input dtype
    else:
        res = jnp.einsum("bhwc,co->bhwo", x.astype(jnp.bfloat16),
                         params["wr"].astype(jnp.bfloat16),
                         preferred_element_type=jnp.float32)
        res = res + params["br"].reshape(1, 1, 1, -1)
    return jnp.transpose(h + res, (0, 3, 1, 2))


def make_params(key, dim, dim_out, time_emb_dim):
    """Deterministic synthetic parameters matching the PyTorch module shapes.
    (Real PyTorch OIHW conv weights must be transposed to HWIO before use.)"""
    ks = jax.random.split(key, 8)
    params = dict(
        w1=jax.random.normal(ks[0], (3, 3, dim, dim_out), jnp.float32) * 0.2,
        b1=jax.random.normal(ks[1], (1, dim_out), jnp.float32) * 0.05,
        w2=jax.random.normal(ks[2], (3, 3, dim_out, dim_out), jnp.float32) * 0.2,
        b2=jax.random.normal(ks[3], (1, dim_out), jnp.float32) * 0.05,
        g1=jnp.ones((1, dim_out), jnp.float32),
        g2=jnp.ones((1, dim_out), jnp.float32),
        wm=jax.random.normal(ks[6], (time_emb_dim, 2 * dim_out), jnp.float32) * 0.2,
        bm=jax.random.normal(ks[7], (1, 2 * dim_out), jnp.float32) * 0.05,
    )
    if dim != dim_out:
        params["wr"] = jax.random.normal(ks[4], (dim, dim_out), jnp.float32) * 0.2
        params["br"] = jax.random.normal(ks[5], (1, dim_out), jnp.float32) * 0.05
    else:
        params["wr"] = None     # nn.Identity residual
        params["br"] = None
    return params


if __name__ == "__main__":
    key = jax.random.PRNGKey(0)
    k1, k2, k3, k4, k5, k6 = jax.random.split(key, 6)

    # Case 1: dim != dim_out -> 1x1 residual conv path.
    B, Cin, Cout, H, W, T = 2, 4, 8, 16, 16, 8
    x = jax.random.normal(k1, (B, Cin, H, W), jnp.float32)
    time_emb = jax.random.normal(k2, (B, T), jnp.float32)
    params = make_params(k3, Cin, Cout, T)
    out = jax.block_until_ready(resnet_block_forward(x, time_emb, params))
    ref = jax.block_until_ready(reference_forward(x, time_emb, params))
    assert out.shape == (B, Cout, H, W)
    assert jnp.allclose(out, ref, atol=5e-3, rtol=5e-3), "mismatch (proj residual)"

    # Case 2: dim == dim_out -> identity residual (no 1x1 matmul in-kernel).
    Cin2 = Cout2 = 8
    x2 = jax.random.normal(k4, (B, Cin2, H, W), jnp.float32)
    t2 = jax.random.normal(k5, (B, T), jnp.float32)
    params2 = make_params(k6, Cin2, Cout2, T)
    out2 = jax.block_until_ready(resnet_block_forward(x2, t2, params2))
    ref2 = jax.block_until_ready(reference_forward(x2, t2, params2))
    assert out2.shape == (B, Cout2, H, W)
    assert jnp.allclose(out2, ref2, atol=5e-3, rtol=5e-3), "mismatch (identity residual)"

    print("KERNEL_OK")
</pallas_src>

<mosaic_0001>
module attributes {stable_mosaic.version = 11 : i64} {
  func.func @_resnet_block_kernel(%arg0: i32, %arg1: memref<1x18x16x128xbf16, #tpu.memory_space<vmem>>, %arg2: memref<1x1x256xf32, #tpu.memory_space<vmem>>, %arg3: memref<3x384x128xbf16, #tpu.memory_space<vmem>>, %arg4: memref<1x128xf32, #tpu.memory_space<vmem>>, %arg5: memref<1x128xf32, #tpu.memory_space<vmem>>, %arg6: memref<3x384x128xbf16, #tpu.memory_space<vmem>>, %arg7: memref<1x128xf32, #tpu.memory_space<vmem>>, %arg8: memref<1x128xf32, #tpu.memory_space<vmem>>, %arg9: memref<128x128xbf16, #tpu.memory_space<vmem>>, %arg10: memref<1x128xf32, #tpu.memory_space<vmem>>, %arg11: memref<1x16x16x128xf32, #tpu.memory_space<vmem>>) attributes {dimension_semantics = [#tpu.dimension_semantics<parallel>], iteration_bounds = array<i64: 2>, scalar_prefetch = 0 : i64, scratch_operands = 0 : i64, tpu.core_type = #tpu.core_type<tc>, window_params = [{transform_indices = @transform_0, window_bounds = array<i64: 1, 18, 16, 128>}, {transform_indices = @transform_1, window_bounds = array<i64: 1, 1, 256>}, {pipeline_mode = #tpu.pipeline_mode<synchronous>, transform_indices = @transform_2, window_bounds = array<i64: 3, 384, 128>}, {pipeline_mode = #tpu.pipeline_mode<synchronous>, transform_indices = @transform_3, window_bounds = array<i64: 1, 128>}, {pipeline_mode = #tpu.pipeline_mode<synchronous>, transform_indices = @transform_4, window_bounds = array<i64: 1, 128>}, {pipeline_mode = #tpu.pipeline_mode<synchronous>, transform_indices = @transform_5, window_bounds = array<i64: 3, 384, 128>}, {pipeline_mode = #tpu.pipeline_mode<synchronous>, transform_indices = @transform_6, window_bounds = array<i64: 1, 128>}, {pipeline_mode = #tpu.pipeline_mode<synchronous>, transform_indices = @transform_7, window_bounds = array<i64: 1, 128>}, {pipeline_mode = #tpu.pipeline_mode<synchronous>, transform_indices = @transform_8, window_bounds = array<i64: 128, 128>}, {pipeline_mode = #tpu.pipeline_mode<synchronous>, transform_indices = @transform_9, window_bounds = array<i64: 1, 128>}, {transform_indices = @transform_10, window_bounds = array<i64: 1, 16, 16, 128>}]} {
    %c0 = arith.constant 0 : index
    %c0_0 = arith.constant 0 : index
    %c0_1 = arith.constant 0 : index
    %c0_2 = arith.constant 0 : index
    %0 = vector.load %arg1[%c0, %c0_0, %c0_1, %c0_2] : memref<1x18x16x128xbf16, #tpu.memory_space<vmem>>, vector<1x18x16x128xbf16>
    %1 = vector.shape_cast %0 : vector<1x18x16x128xbf16> to vector<18x16x128xbf16>
    %c0_3 = arith.constant 0 : index
    %c0_4 = arith.constant 0 : index
    %c0_5 = arith.constant 0 : index
    %2 = vector.load %arg2[%c0_3, %c0_4, %c0_5] : memref<1x1x256xf32, #tpu.memory_space<vmem>>, vector<1x1x128xf32>
    %3 = vector.shape_cast %2 : vector<1x1x128xf32> to vector<1x128xf32>
    %c0_6 = arith.constant 0 : index
    %c0_7 = arith.constant 0 : index
    %c128 = arith.constant 128 : index
    %4 = vector.load %arg2[%c0_6, %c0_7, %c128] : memref<1x1x256xf32, #tpu.memory_space<vmem>>, vector<1x1x128xf32>
    %5 = vector.shape_cast %4 : vector<1x1x128xf32> to vector<1x128xf32>
    %cst = arith.constant 0.000000e+00 : bf16
    %6 = vector.broadcast %cst : bf16 to vector<18x1x128xbf16>
    %7 = vector.extract_strided_slice %1 {offsets = [0, 0, 0], sizes = [18, 15, 128], strides = [1, 1, 1]} : vector<18x16x128xbf16> to vector<18x15x128xbf16>
    %8 = tpu.concatenate %6, %7 in 1 : vector<18x1x128xbf16>, vector<18x15x128xbf16> -> vector<18x16x128xbf16>
    %9 = vector.extract_strided_slice %1 {offsets = [0, 1, 0], sizes = [18, 15, 128], strides = [1, 1, 1]} : vector<18x16x128xbf16> to vector<18x15x128xbf16>
    %10 = tpu.concatenate %9, %6 in 1 : vector<18x15x128xbf16>, vector<18x1x128xbf16> -> vector<18x16x128xbf16>
    %11 = tpu.concatenate %8, %1, %10 in 2 : vector<18x16x128xbf16>, vector<18x16x128xbf16>, vector<18x16x128xbf16> -> vector<18x16x384xbf16>
    %12 = vector.extract_strided_slice %11 {offsets = [0, 0, 0], sizes = [16, 16, 384], strides = [1, 1, 1]} : vector<18x16x384xbf16> to vector<16x16x384xbf16>
    %13 = vector.shape_cast %12 : vector<16x16x384xbf16> to vector<256x384xbf16>
    %c0_8 = arith.constant 0 : index
    %c0_9 = arith.constant 0 : index
    %c0_10 = arith.constant 0 : index
    %14 = vector.load %arg3[%c0_8, %c0_9, %c0_10] : memref<3x384x128xbf16, #tpu.memory_space<vmem>>, vector<1x384x128xbf16>
    %15 = vector.shape_cast %14 : vector<1x384x128xbf16> to vector<384x128xbf16>
    %cst_11 = arith.constant dense<0.000000e+00> : vector<256x128xf32>
    %16 = tpu.matmul %13, %15, %cst_11 {dimension_numbers = #tpu.dot_dimension_numbers<[1], [0], [0], [1], [0, 0, 1, 1], [], []>} : vector<256x384xbf16>, vector<384x128xbf16>, vector<256x128xf32> -> vector<256x128xf32>
    %17 = vector.extract_strided_slice %11 {offsets = [1, 0, 0], sizes = [16, 16, 384], strides = [1, 1, 1]} : vector<18x16x384xbf16> to vector<16x16x384xbf16>
    %18 = vector.shape_cast %17 : vector<16x16x384xbf16> to vector<256x384xbf16>
    %c1 = arith.constant 1 : index
    %c0_12 = arith.constant 0 : index
    %c0_13 = arith.constant 0 : index
    %19 = vector.load %arg3[%c1, %c0_12, %c0_13] : memref<3x384x128xbf16, #tpu.memory_space<vmem>>, vector<1x384x128xbf16>
    %20 = vector.shape_cast %19 : vector<1x384x128xbf16> to vector<384x128xbf16>
    %cst_14 = arith.constant dense<0.000000e+00> : vector<256x128xf32>
    %21 = tpu.matmul %18, %20, %cst_14 {dimension_numbers = #tpu.dot_dimension_numbers<[1], [0], [0], [1], [0, 0, 1, 1], [], []>} : vector<256x384xbf16>, vector<384x128xbf16>, vector<256x128xf32> -> vector<256x128xf32>
    %22 = arith.addf %16, %21 : vector<256x128xf32>
    %23 = vector.extract_strided_slice %11 {offsets = [2, 0, 0], sizes = [16, 16, 384], strides = [1, 1, 1]} : vector<18x16x384xbf16> to vector<16x16x384xbf16>
    %24 = vector.shape_cast %23 : vector<16x16x384xbf16> to vector<256x384xbf16>
    %c2 = arith.constant 2 : index
    %c0_15 = arith.constant 0 : index
    %c0_16 = arith.constant 0 : index
    %25 = vector.load %arg3[%c2, %c0_15, %c0_16] : memref<3x384x128xbf16, #tpu.memory_space<vmem>>, vector<1x384x128xbf16>
    %26 = vector.shape_cast %25 : vector<1x384x128xbf16> to vector<384x128xbf16>
    %cst_17 = arith.constant dense<0.000000e+00> : vector<256x128xf32>
    %27 = tpu.matmul %24, %26, %cst_17 {dimension_numbers = #tpu.dot_dimension_numbers<[1], [0], [0], [1], [0, 0, 1, 1], [], []>} : vector<256x384xbf16>, vector<384x128xbf16>, vector<256x128xf32> -> vector<256x128xf32>
    %28 = arith.addf %22, %27 : vector<256x128xf32>
    %c0_18 = arith.constant 0 : index
    %c0_19 = arith.constant 0 : index
    %29 = vector.load %arg4[%c0_18, %c0_19] : memref<1x128xf32, #tpu.memory_space<vmem>>, vector<1x128xf32>
    %30 = vector.broadcast %29 : vector<1x128xf32> to vector<256x128xf32>
    %31 = arith.addf %28, %30 : vector<256x128xf32>
    %32 = arith.mulf %31, %31 : vector<256x128xf32>
    %cst_20 = arith.constant dense<0.000000e+00> : vector<256xf32>
    %33 = vector.multi_reduction <add>, %32, %cst_20 [1] : vector<256x128xf32> to vector<256xf32>
    %34 = vector.shape_cast %33 : vector<256xf32> to vector<256x1xf32>
    %cst_21 = arith.constant 1.000000e-24 : f32
    %35 = vector.broadcast %cst_21 : f32 to vector<256x1xf32>
    %36 = arith.maximumf %34, %35 : vector<256x1xf32>
    %37 = math.rsqrt %36 : vector<256x1xf32>
    %38 = vector.broadcast %37 : vector<256x1xf32> to vector<256x128xf32>
    %39 = arith.mulf %31, %38 : vector<256x128xf32>
    %c0_22 = arith.constant 0 : index
    %c0_23 = arith.constant 0 : index
    %40 = vector.load %arg5[%c0_22, %c0_23] : memref<1x128xf32, #tpu.memory_space<vmem>>, vector<1x128xf32>
    %41 = vector.broadcast %40 : vector<1x128xf32> to vector<256x128xf32>
    %42 = arith.mulf %39, %41 : vector<256x128xf32>
    %cst_24 = arith.constant 1.000000e+00 : f32
    %43 = vector.broadcast %cst_24 : f32 to vector<1x128xf32>
    %44 = arith.addf %3, %43 : vector<1x128xf32>
    %45 = vector.broadcast %44 : vector<1x128xf32> to vector<256x128xf32>
    %46 = arith.mulf %42, %45 : vector<256x128xf32>
    %47 = vector.broadcast %5 : vector<1x128xf32> to vector<256x128xf32>
    %48 = arith.addf %46, %47 : vector<256x128xf32>
    %49 = arith.negf %48 : vector<256x128xf32>
    %50 = math.exp %49 : vector<256x128xf32>
    %cst_25 = arith.constant 1.000000e+00 : f32
    %51 = vector.broadcast %cst_25 : f32 to vector<256x128xf32>
    %52 = arith.addf %51, %50 : vector<256x128xf32>
    %53 = arith.divf %51, %52 : vector<256x128xf32>
    %54 = arith.mulf %48, %53 : vector<256x128xf32>
    %cst_26 = arith.constant 0.000000e+00 : bf16
    %55 = vector.broadcast %cst_26 : bf16 to vector<1x16x128xbf16>
    %56 = vector.shape_cast %54 : vector<256x128xf32> to vector<16x16x128xf32>
    %57 = arith.truncf %56 : vector<16x16x128xf32> to vector<16x16x128xbf16>
    %58 = tpu.concatenate %55, %57, %55 in 0 : vector<1x16x128xbf16>, vector<16x16x128xbf16>, vector<1x16x128xbf16> -> vector<18x16x128xbf16>
    %cst_27 = arith.constant 0.000000e+00 : bf16
    %59 = vector.broadcast %cst_27 : bf16 to vector<18x1x128xbf16>
    %60 = vector.extract_strided_slice %58 {offsets = [0, 0, 0], sizes = [18, 15, 128], strides = [1, 1, 1]} : vector<18x16x128xbf16> to vector<18x15x128xbf16>
    %61 = tpu.concatenate %59, %60 in 1 : vector<18x1x128xbf16>, vector<18x15x128xbf16> -> vector<18x16x128xbf16>
    %62 = vector.extract_strided_slice %58 {offsets = [0, 1, 0], sizes = [18, 15, 128], strides = [1, 1, 1]} : vector<18x16x128xbf16> to vector<18x15x128xbf16>
    %63 = tpu.concatenate %62, %59 in 1 : vector<18x15x128xbf16>, vector<18x1x128xbf16> -> vector<18x16x128xbf16>
    %64 = tpu.concatenate %61, %58, %63 in 2 : vector<18x16x128xbf16>, vector<18x16x128xbf16>, vector<18x16x128xbf16> -> vector<18x16x384xbf16>
    %65 = vector.extract_strided_slice %64 {offsets = [0, 0, 0], sizes = [16, 16, 384], strides = [1, 1, 1]} : vector<18x16x384xbf16> to vector<16x16x384xbf16>
    %66 = vector.shape_cast %65 : vector<16x16x384xbf16> to vector<256x384xbf16>
    %c0_28 = arith.constant 0 : index
    %c0_29 = arith.constant 0 : index
    %c0_30 = arith.constant 0 : index
    %67 = vector.load %arg6[%c0_28, %c0_29, %c0_30] : memref<3x384x128xbf16, #tpu.memory_space<vmem>>, vector<1x384x128xbf16>
    %68 = vector.shape_cast %67 : vector<1x384x128xbf16> to vector<384x128xbf16>
    %cst_31 = arith.constant dense<0.000000e+00> : vector<256x128xf32>
    %69 = tpu.matmul %66, %68, %cst_31 {dimension_numbers = #tpu.dot_dimension_numbers<[1], [0], [0], [1], [0, 0, 1, 1], [], []>} : vector<256x384xbf16>, vector<384x128xbf16>, vector<256x128xf32> -> vector<256x128xf32>
    %70 = vector.extract_strided_slice %64 {offsets = [1, 0, 0], sizes = [16, 16, 384], strides = [1, 1, 1]} : vector<18x16x384xbf16> to vector<16x16x384xbf16>
    %71 = vector.shape_cast %70 : vector<16x16x384xbf16> to vector<256x384xbf16>
    %c1_32 = arith.constant 1 : index
    %c0_33 = arith.constant 0 : index
    %c0_34 = arith.constant 0 : index
    %72 = vector.load %arg6[%c1_32, %c0_33, %c0_34] : memref<3x384x128xbf16, #tpu.memory_space<vmem>>, vector<1x384x128xbf16>
    %73 = vector.shape_cast %72 : vector<1x384x128xbf16> to vector<384x128xbf16>
    %cst_35 = arith.constant dense<0.000000e+00> : vector<256x128xf32>
    %74 = tpu.matmul %71, %73, %cst_35 {dimension_numbers = #tpu.dot_dimension_numbers<[1], [0], [0], [1], [0, 0, 1, 1], [], []>} : vector<256x384xbf16>, vector<384x128xbf16>, vector<256x128xf32> -> vector<256x128xf32>
    %75 = arith.addf %69, %74 : vector<256x128xf32>
    %76 = vector.extract_strided_slice %64 {offsets = [2, 0, 0], sizes = [16, 16, 384], strides = [1, 1, 1]} : vector<18x16x384xbf16> to vector<16x16x384xbf16>
    %77 = vector.shape_cast %76 : vector<16x16x384xbf16> to vector<256x384xbf16>
    %c2_36 = arith.constant 2 : index
    %c0_37 = arith.constant 0 : index
    %c0_38 = arith.constant 0 : index
    %78 = vector.load %arg6[%c2_36, %c0_37, %c0_38] : memref<3x384x128xbf16, #tpu.memory_space<vmem>>, vector<1x384x128xbf16>
    %79 = vector.shape_cast %78 : vector<1x384x128xbf16> to vector<384x128xbf16>
    %cst_39 = arith.constant dense<0.000000e+00> : vector<256x128xf32>
    %80 = tpu.matmul %77, %79, %cst_39 {dimension_numbers = #tpu.dot_dimension_numbers<[1], [0], [0], [1], [0, 0, 1, 1], [], []>} : vector<256x384xbf16>, vector<384x128xbf16>, vector<256x128xf32> -> vector<256x128xf32>
    %81 = arith.addf %75, %80 : vector<256x128xf32>
    %c0_40 = arith.constant 0 : index
    %c0_41 = arith.constant 0 : index
    %82 = vector.load %arg7[%c0_40, %c0_41] : memref<1x128xf32, #tpu.memory_space<vmem>>, vector<1x128xf32>
    %83 = vector.broadcast %82 : vector<1x128xf32> to vector<256x128xf32>
    %84 = arith.addf %81, %83 : vector<256x128xf32>
    %85 = arith.mulf %84, %84 : vector<256x128xf32>
    %cst_42 = arith.constant dense<0.000000e+00> : vector<256xf32>
    %86 = vector.multi_reduction <add>, %85, %cst_42 [1] : vector<256x128xf32> to vector<256xf32>
    %87 = vector.shape_cast %86 : vector<256xf32> to vector<256x1xf32>
    %cst_43 = arith.constant 1.000000e-24 : f32
    %88 = vector.broadcast %cst_43 : f32 to vector<256x1xf32>
    %89 = arith.maximumf %87, %88 : vector<256x1xf32>
    %90 = math.rsqrt %89 : vector<256x1xf32>
    %91 = vector.broadcast %90 : vector<256x1xf32> to vector<256x128xf32>
    %92 = arith.mulf %84, %91 : vector<256x128xf32>
    %c0_44 = arith.constant 0 : index
    %c0_45 = arith.constant 0 : index
    %93 = vector.load %arg8[%c0_44, %c0_45] : memref<1x128xf32, #tpu.memory_space<vmem>>, vector<1x128xf32>
    %94 = vector.broadcast %93 : vector<1x128xf32> to vector<256x128xf32>
    %95 = arith.mulf %92, %94 : vector<256x128xf32>
    %96 = arith.negf %95 : vector<256x128xf32>
    %97 = math.exp %96 : vector<256x128xf32>
    %cst_46 = arith.constant 1.000000e+00 : f32
    %98 = vector.broadcast %cst_46 : f32 to vector<256x128xf32>
    %99 = arith.addf %98, %97 : vector<256x128xf32>
    %100 = arith.divf %98, %99 : vector<256x128xf32>
    %101 = arith.mulf %95, %100 : vector<256x128xf32>
    %102 = vector.extract_strided_slice %1 {offsets = [1, 0, 0], sizes = [16, 16, 128], strides = [1, 1, 1]} : vector<18x16x128xbf16> to vector<16x16x128xbf16>
    %103 = vector.shape_cast %102 : vector<16x16x128xbf16> to vector<256x128xbf16>
    %c0_47 = arith.constant 0 : index
    %c0_48 = arith.constant 0 : index
    %104 = vector.load %arg9[%c0_47, %c0_48] : memref<128x128xbf16, #tpu.memory_space<vmem>>, vector<128x128xbf16>
    %cst_49 = arith.constant dense<0.000000e+00> : vector<256x128xf32>
    %105 = tpu.matmul %103, %104, %cst_49 {dimension_numbers = #tpu.dot_dimension_numbers<[1], [0], [0], [1], [0, 0, 1, 1], [], []>} : vector<256x128xbf16>, vector<128x128xbf16>, vector<256x128xf32> -> vector<256x128xf32>
    %c0_50 = arith.constant 0 : index
    %c0_51 = arith.constant 0 : index
    %106 = vector.load %arg10[%c0_50, %c0_51] : memref<1x128xf32, #tpu.memory_space<vmem>>, vector<1x128xf32>
    %107 = vector.broadcast %106 : vector<1x128xf32> to vector<256x128xf32>
    %108 = arith.addf %105, %107 : vector<256x128xf32>
    %109 = arith.addf %101, %108 : vector<256x128xf32>
    %110 = vector.shape_cast %109 : vector<256x128xf32> to vector<1x16x16x128xf32>
    %c0_52 = arith.constant 0 : index
    %c0_53 = arith.constant 0 : index
    %c0_54 = arith.constant 0 : index
    %c0_55 = arith.constant 0 : index
    %111 = vector.load %arg11[%c0_52, %c0_53, %c0_54, %c0_55] : memref<1x16x16x128xf32, #tpu.memory_space<vmem>>, vector<1x16x16x128xf32>
    tpu.vector_store %arg11[%c0_52, %c0_53, %c0_54, %c0_55], %110 {strides = array<i32>} : memref<1x16x16x128xf32, #tpu.memory_space<vmem>>, vector<1x16x16x128xf32>,
    return
  }
  func.func @transform_0(%arg0: i32) -> (i32, i32, i32, i32) {
    %c0_i32 = arith.constant 0 : i32
    %c0_i32_0 = arith.constant 0 : i32
    %c0_i32_1 = arith.constant 0 : i32
    %c0_i32_2 = arith.constant 0 : i32
    return %arg0, %c0_i32, %c0_i32_0, %c0_i32_1 : i32, i32, i32, i32
  }
  func.func @transform_1(%arg0: i32) -> (i32, i32, i32) {
    %c0_i32 = arith.constant 0 : i32
    %c0_i32_0 = arith.constant 0 : i32
    %c0_i32_1 = arith.constant 0 : i32
    return %arg0, %c0_i32, %c0_i32_0 : i32, i32, i32
  }
  func.func @transform_2(%arg0: i32) -> (i32, i32, i32) {
    %c0_i32 = arith.constant 0 : i32
    %c0_i32_0 = arith.constant 0 : i32
    %c0_i32_1 = arith.constant 0 : i32
    %c0_i32_2 = arith.constant 0 : i32
    return %c0_i32, %c0_i32_0, %c0_i32_1 : i32, i32, i32
  }
  func.func @transform_3(%arg0: i32) -> (i32, i32) {
    %c0_i32 = arith.constant 0 : i32
    %c0_i32_0 = arith.constant 0 : i32
    %c0_i32_1 = arith.constant 0 : i32
    return %c0_i32, %c0_i32_0 : i32, i32
  }
  func.func @transform_4(%arg0: i32) -> (i32, i32) {
    %c0_i32 = arith.constant 0 : i32
    %c0_i32_0 = arith.constant 0 : i32
    %c0_i32_1 = arith.constant 0 : i32
    return %c0_i32, %c0_i32_0 : i32, i32
  }
  func.func @transform_5(%arg0: i32) -> (i32, i32, i32) {
    %c0_i32 = arith.constant 0 : i32
    %c0_i32_0 = arith.constant 0 : i32
    %c0_i32_1 = arith.constant 0 : i32
    %c0_i32_2 = arith.constant 0 : i32
    return %c0_i32, %c0_i32_0, %c0_i32_1 : i32, i32, i32
  }
  func.func @transform_6(%arg0: i32) -> (i32, i32) {
    %c0_i32 = arith.constant 0 : i32
    %c0_i32_0 = arith.constant 0 : i32
    %c0_i32_1 = arith.constant 0 : i32
    return %c0_i32, %c0_i32_0 : i32, i32
  }
  func.func @transform_7(%arg0: i32) -> (i32, i32) {
    %c0_i32 = arith.constant 0 : i32
    %c0_i32_0 = arith.constant 0 : i32
    %c0_i32_1 = arith.constant 0 : i32
    return %c0_i32, %c0_i32_0 : i32, i32
  }
  func.func @transform_8(%arg0: i32) -> (i32, i32) {
    %c0_i32 = arith.constant 0 : i32
    %c0_i32_0 = arith.constant 0 : i32
    %c0_i32_1 = arith.constant 0 : i32
    return %c0_i32, %c0_i32_0 : i32, i32
  }
  func.func @transform_9(%arg0: i32) -> (i32, i32) {
    %c0_i32 = arith.constant 0 : i32
    %c0_i32_0 = arith.constant 0 : i32
    %c0_i32_1 = arith.constant 0 : i32
    return %c0_i32, %c0_i32_0 : i32, i32
  }
  func.func @transform_10(%arg0: i32) -> (i32, i32, i32, i32) {
    %c0_i32 = arith.constant 0 : i32
    %c0_i32_0 = arith.constant 0 : i32
    %c0_i32_1 = arith.constant 0 : i32
    %c0_i32_2 = arith.constant 0 : i32
    return %arg0, %c0_i32, %c0_i32_0, %c0_i32_1 : i32, i32, i32, i32
  }
}

module attributes {stable_mosaic.version = 11 : i64} {
  func.func @_resnet_block_kernel(%arg0: i32, %arg1: memref<1x18x16x128xbf16, #tpu.memory_space<vmem>>, %arg2: memref<1x1x256xf32, #tpu.memory_space<vmem>>, %arg3: memref<3x384x128xbf16, #tpu.memory_space<vmem>>, %arg4: memref<1x128xf32, #tpu.memory_space<vmem>>, %arg5: memref<1x128xf32, #tpu.memory_space<vmem>>, %arg6: memref<3x384x128xbf16, #tpu.memory_space<vmem>>, %arg7: memref<1x128xf32, #tpu.memory_space<vmem>>, %arg8: memref<1x128xf32, #tpu.memory_space<vmem>>, %arg9: memref<128x128xbf16, #tpu.memory_space<vmem>>, %arg10: memref<1x128xf32, #tpu.memory_space<vmem>>, %arg11: memref<1x16x16x128xf32, #tpu.memory_space<vmem>>) attributes {dimension_semantics = [#tpu.dimension_semantics<parallel>], iteration_bounds = array<i64: 2>, scalar_prefetch = 0 : i64, scratch_operands = 0 : i64, tpu.core_type = #tpu.core_type<tc>, window_params = [{transform_indices = @transform_0, window_bounds = array<i64: 1, 18, 16, 128>}, {transform_indices = @transform_1, window_bounds = array<i64: 1, 1, 256>}, {pipeline_mode = #tpu.pipeline_mode<synchronous>, transform_indices = @transform_2, window_bounds = array<i64: 3, 384, 128>}, {pipeline_mode = #tpu.pipeline_mode<synchronous>, transform_indices = @transform_3, window_bounds = array<i64: 1, 128>}, {pipeline_mode = #tpu.pipeline_mode<synchronous>, transform_indices = @transform_4, window_bounds = array<i64: 1, 128>}, {pipeline_mode = #tpu.pipeline_mode<synchronous>, transform_indices = @transform_5, window_bounds = array<i64: 3, 384, 128>}, {pipeline_mode = #tpu.pipeline_mode<synchronous>, transform_indices = @transform_6, window_bounds = array<i64: 1, 128>}, {pipeline_mode = #tpu.pipeline_mode<synchronous>, transform_indices = @transform_7, window_bounds = array<i64: 1, 128>}, {pipeline_mode = #tpu.pipeline_mode<synchronous>, transform_indices = @transform_8, window_bounds = array<i64: 128, 128>}, {pipeline_mode = #tpu.pipeline_mode<synchronous>, transform_indices = @transform_9, window_bounds = array<i64: 1, 128>}, {transform_indices = @transform_10, window_bounds = array<i64: 1, 16, 16, 128>}]} {
    %c0 = arith.constant 0 : index
    %c0_0 = arith.constant 0 : index
    %c0_1 = arith.constant 0 : index
    %c0_2 = arith.constant 0 : index
    %0 = vector.load %arg1[%c0, %c0_0, %c0_1, %c0_2] : memref<1x18x16x128xbf16, #tpu.memory_space<vmem>>, vector<1x18x16x128xbf16>
    %1 = vector.shape_cast %0 : vector<1x18x16x128xbf16> to vector<18x16x128xbf16>
    %c0_3 = arith.constant 0 : index
    %c0_4 = arith.constant 0 : index
    %c0_5 = arith.constant 0 : index
    %2 = vector.load %arg2[%c0_3, %c0_4, %c0_5] : memref<1x1x256xf32, #tpu.memory_space<vmem>>, vector<1x1x128xf32>
    %3 = vector.shape_cast %2 : vector<1x1x128xf32> to vector<1x128xf32>
    %c0_6 = arith.constant 0 : index
    %c0_7 = arith.constant 0 : index
    %c128 = arith.constant 128 : index
    %4 = vector.load %arg2[%c0_6, %c0_7, %c128] : memref<1x1x256xf32, #tpu.memory_space<vmem>>, vector<1x1x128xf32>
    %5 = vector.shape_cast %4 : vector<1x1x128xf32> to vector<1x128xf32>
    %cst = arith.constant 0.000000e+00 : bf16
    %6 = vector.broadcast %cst : bf16 to vector<18x1x128xbf16>
    %7 = vector.extract_strided_slice %1 {offsets = [0, 0, 0], sizes = [18, 15, 128], strides = [1, 1, 1]} : vector<18x16x128xbf16> to vector<18x15x128xbf16>
    %8 = tpu.concatenate %6, %7 in 1 : vector<18x1x128xbf16>, vector<18x15x128xbf16> -> vector<18x16x128xbf16>
    %9 = vector.extract_strided_slice %1 {offsets = [0, 1, 0], sizes = [18, 15, 128], strides = [1, 1, 1]} : vector<18x16x128xbf16> to vector<18x15x128xbf16>
    %10 = tpu.concatenate %9, %6 in 1 : vector<18x15x128xbf16>, vector<18x1x128xbf16> -> vector<18x16x128xbf16>
    %11 = tpu.concatenate %8, %1, %10 in 2 : vector<18x16x128xbf16>, vector<18x16x128xbf16>, vector<18x16x128xbf16> -> vector<18x16x384xbf16>
    %12 = vector.extract_strided_slice %11 {offsets = [0, 0, 0], sizes = [16, 16, 384], strides = [1, 1, 1]} : vector<18x16x384xbf16> to vector<16x16x384xbf16>
    %13 = vector.shape_cast %12 : vector<16x16x384xbf16> to vector<256x384xbf16>
    %c0_8 = arith.constant 0 : index
    %c0_9 = arith.constant 0 : index
    %c0_10 = arith.constant 0 : index
    %14 = vector.load %arg3[%c0_8, %c0_9, %c0_10] : memref<3x384x128xbf16, #tpu.memory_space<vmem>>, vector<1x384x128xbf16>
    %15 = vector.shape_cast %14 : vector<1x384x128xbf16> to vector<384x128xbf16>
    %cst_11 = arith.constant dense<0.000000e+00> : vector<256x128xf32>
    %16 = tpu.matmul %13, %15, %cst_11 {dimension_numbers = #tpu.dot_dimension_numbers<[1], [0], [0], [1], [0, 0, 1, 1], [], []>} : vector<256x384xbf16>, vector<384x128xbf16>, vector<256x128xf32> -> vector<256x128xf32>
    %17 = vector.extract_strided_slice %11 {offsets = [1, 0, 0], sizes = [16, 16, 384], strides = [1, 1, 1]} : vector<18x16x384xbf16> to vector<16x16x384xbf16>
    %18 = vector.shape_cast %17 : vector<16x16x384xbf16> to vector<256x384xbf16>
    %c1 = arith.constant 1 : index
    %c0_12 = arith.constant 0 : index
    %c0_13 = arith.constant 0 : index
    %19 = vector.load %arg3[%c1, %c0_12, %c0_13] : memref<3x384x128xbf16, #tpu.memory_space<vmem>>, vector<1x384x128xbf16>
    %20 = vector.shape_cast %19 : vector<1x384x128xbf16> to vector<384x128xbf16>
    %cst_14 = arith.constant dense<0.000000e+00> : vector<256x128xf32>
    %21 = tpu.matmul %18, %20, %cst_14 {dimension_numbers = #tpu.dot_dimension_numbers<[1], [0], [0], [1], [0, 0, 1, 1], [], []>} : vector<256x384xbf16>, vector<384x128xbf16>, vector<256x128xf32> -> vector<256x128xf32>
    %22 = arith.addf %16, %21 : vector<256x128xf32>
    %23 = vector.extract_strided_slice %11 {offsets = [2, 0, 0], sizes = [16, 16, 384], strides = [1, 1, 1]} : vector<18x16x384xbf16> to vector<16x16x384xbf16>
    %24 = vector.shape_cast %23 : vector<16x16x384xbf16> to vector<256x384xbf16>
    %c2 = arith.constant 2 : index
    %c0_15 = arith.constant 0 : index
    %c0_16 = arith.constant 0 : index
    %25 = vector.load %arg3[%c2, %c0_15, %c0_16] : memref<3x384x128xbf16, #tpu.memory_space<vmem>>, vector<1x384x128xbf16>
    %26 = vector.shape_cast %25 : vector<1x384x128xbf16> to vector<384x128xbf16>
    %cst_17 = arith.constant dense<0.000000e+00> : vector<256x128xf32>
    %27 = tpu.matmul %24, %26, %cst_17 {dimension_numbers = #tpu.dot_dimension_numbers<[1], [0], [0], [1], [0, 0, 1, 1], [], []>} : vector<256x384xbf16>, vector<384x128xbf16>, vector<256x128xf32> -> vector<256x128xf32>
    %28 = arith.addf %22, %27 : vector<256x128xf32>
    %c0_18 = arith.constant 0 : index
    %c0_19 = arith.constant 0 : index
    %29 = vector.load %arg4[%c0_18, %c0_19] : memref<1x128xf32, #tpu.memory_space<vmem>>, vector<1x128xf32>
    %30 = vector.broadcast %29 : vector<1x128xf32> to vector<256x128xf32>
    %31 = arith.addf %28, %30 : vector<256x128xf32>
    %32 = arith.mulf %31, %31 : vector<256x128xf32>
    %cst_20 = arith.constant dense<0.000000e+00> : vector<256xf32>
    %33 = vector.multi_reduction <add>, %32, %cst_20 [1] : vector<256x128xf32> to vector<256xf32>
    %34 = vector.shape_cast %33 : vector<256xf32> to vector<256x1xf32>
    %cst_21 = arith.constant 1.000000e-24 : f32
    %35 = vector.broadcast %cst_21 : f32 to vector<256x1xf32>
    %36 = arith.maximumf %34, %35 : vector<256x1xf32>
    %37 = math.rsqrt %36 : vector<256x1xf32>
    %38 = vector.broadcast %37 : vector<256x1xf32> to vector<256x128xf32>
    %39 = arith.mulf %31, %38 : vector<256x128xf32>
    %c0_22 = arith.constant 0 : index
    %c0_23 = arith.constant 0 : index
    %40 = vector.load %arg5[%c0_22, %c0_23] : memref<1x128xf32, #tpu.memory_space<vmem>>, vector<1x128xf32>
    %41 = vector.broadcast %40 : vector<1x128xf32> to vector<256x128xf32>
    %42 = arith.mulf %39, %41 : vector<256x128xf32>
    %cst_24 = arith.constant 1.000000e+00 : f32
    %43 = vector.broadcast %cst_24 : f32 to vector<1x128xf32>
    %44 = arith.addf %3, %43 : vector<1x128xf32>
    %45 = vector.broadcast %44 : vector<1x128xf32> to vector<256x128xf32>
    %46 = arith.mulf %42, %45 : vector<256x128xf32>
    %47 = vector.broadcast %5 : vector<1x128xf32> to vector<256x128xf32>
    %48 = arith.addf %46, %47 : vector<256x128xf32>
    %49 = arith.negf %48 : vector<256x128xf32>
    %50 = math.exp %49 : vector<256x128xf32>
    %cst_25 = arith.constant 1.000000e+00 : f32
    %51 = vector.broadcast %cst_25 : f32 to vector<256x128xf32>
    %52 = arith.addf %51, %50 : vector<256x128xf32>
    %53 = arith.divf %51, %52 : vector<256x128xf32>
    %54 = arith.mulf %48, %53 : vector<256x128xf32>
    %cst_26 = arith.constant 0.000000e+00 : bf16
    %55 = vector.broadcast %cst_26 : bf16 to vector<1x16x128xbf16>
    %56 = vector.shape_cast %54 : vector<256x128xf32> to vector<16x16x128xf32>
    %57 = arith.truncf %56 : vector<16x16x128xf32> to vector<16x16x128xbf16>
    %58 = tpu.concatenate %55, %57, %55 in 0 : vector<1x16x128xbf16>, vector<16x16x128xbf16>, vector<1x16x128xbf16> -> vector<18x16x128xbf16>
    %cst_27 = arith.constant 0.000000e+00 : bf16
    %59 = vector.broadcast %cst_27 : bf16 to vector<18x1x128xbf16>
    %60 = vector.extract_strided_slice %58 {offsets = [0, 0, 0], sizes = [18, 15, 128], strides = [1, 1, 1]} : vector<18x16x128xbf16> to vector<18x15x128xbf16>
    %61 = tpu.concatenate %59, %60 in 1 : vector<18x1x128xbf16>, vector<18x15x128xbf16> -> vector<18x16x128xbf16>
    %62 = vector.extract_strided_slice %58 {offsets = [0, 1, 0], sizes = [18, 15, 128], strides = [1, 1, 1]} : vector<18x16x128xbf16> to vector<18x15x128xbf16>
    %63 = tpu.concatenate %62, %59 in 1 : vector<18x15x128xbf16>, vector<18x1x128xbf16> -> vector<18x16x128xbf16>
    %64 = tpu.concatenate %61, %58, %63 in 2 : vector<18x16x128xbf16>, vector<18x16x128xbf16>, vector<18x16x128xbf16> -> vector<18x16x384xbf16>
    %65 = vector.extract_strided_slice %64 {offsets = [0, 0, 0], sizes = [16, 16, 384], strides = [1, 1, 1]} : vector<18x16x384xbf16> to vector<16x16x384xbf16>
    %66 = vector.shape_cast %65 : vector<16x16x384xbf16> to vector<256x384xbf16>
    %c0_28 = arith.constant 0 : index
    %c0_29 = arith.constant 0 : index
    %c0_30 = arith.constant 0 : index
    %67 = vector.load %arg6[%c0_28, %c0_29, %c0_30] : memref<3x384x128xbf16, #tpu.memory_space<vmem>>, vector<1x384x128xbf16>
    %68 = vector.shape_cast %67 : vector<1x384x128xbf16> to vector<384x128xbf16>
    %cst_31 = arith.constant dense<0.000000e+00> : vector<256x128xf32>
    %69 = tpu.matmul %66, %68, %cst_31 {dimension_numbers = #tpu.dot_dimension_numbers<[1], [0], [0], [1], [0, 0, 1, 1], [], []>} : vector<256x384xbf16>, vector<384x128xbf16>, vector<256x128xf32> -> vector<256x128xf32>
    %70 = vector.extract_strided_slice %64 {offsets = [1, 0, 0], sizes = [16, 16, 384], strides = [1, 1, 1]} : vector<18x16x384xbf16> to vector<16x16x384xbf16>
    %71 = vector.shape_cast %70 : vector<16x16x384xbf16> to vector<256x384xbf16>
    %c1_32 = arith.constant 1 : index
    %c0_33 = arith.constant 0 : index
    %c0_34 = arith.constant 0 : index
    %72 = vector.load %arg6[%c1_32, %c0_33, %c0_34] : memref<3x384x128xbf16, #tpu.memory_space<vmem>>, vector<1x384x128xbf16>
    %73 = vector.shape_cast %72 : vector<1x384x128xbf16> to vector<384x128xbf16>
    %cst_35 = arith.constant dense<0.000000e+00> : vector<256x128xf32>
    %74 = tpu.matmul %71, %73, %cst_35 {dimension_numbers = #tpu.dot_dimension_numbers<[1], [0], [0], [1], [0, 0, 1, 1], [], []>} : vector<256x384xbf16>, vector<384x128xbf16>, vector<256x128xf32> -> vector<256x128xf32>
    %75 = arith.addf %69, %74 : vector<256x128xf32>
    %76 = vector.extract_strided_slice %64 {offsets = [2, 0, 0], sizes = [16, 16, 384], strides = [1, 1, 1]} : vector<18x16x384xbf16> to vector<16x16x384xbf16>
    %77 = vector.shape_cast %76 : vector<16x16x384xbf16> to vector<256x384xbf16>
    %c2_36 = arith.constant 2 : index
    %c0_37 = arith.constant 0 : index
    %c0_38 = arith.constant 0 : index
    %78 = vector.load %arg6[%c2_36, %c0_37, %c0_38] : memref<3x384x128xbf16, #tpu.memory_space<vmem>>, vector<1x384x128xbf16>
    %79 = vector.shape_cast %78 : vector<1x384x128xbf16> to vector<384x128xbf16>
    %cst_39 = arith.constant dense<0.000000e+00> : vector<256x128xf32>
    %80 = tpu.matmul %77, %79, %cst_39 {dimension_numbers = #tpu.dot_dimension_numbers<[1], [0], [0], [1], [0, 0, 1, 1], [], []>} : vector<256x384xbf16>, vector<384x128xbf16>, vector<256x128xf32> -> vector<256x128xf32>
    %81 = arith.addf %75, %80 : vector<256x128xf32>
    %c0_40 = arith.constant 0 : index
    %c0_41 = arith.constant 0 : index
    %82 = vector.load %arg7[%c0_40, %c0_41] : memref<1x128xf32, #tpu.memory_space<vmem>>, vector<1x128xf32>
    %83 = vector.broadcast %82 : vector<1x128xf32> to vector<256x128xf32>
    %84 = arith.addf %81, %83 : vector<256x128xf32>
    %85 = arith.mulf %84, %84 : vector<256x128xf32>
    %cst_42 = arith.constant dense<0.000000e+00> : vector<256xf32>
    %86 = vector.multi_reduction <add>, %85, %cst_42 [1] : vector<256x128xf32> to vector<256xf32>
    %87 = vector.shape_cast %86 : vector<256xf32> to vector<256x1xf32>
    %cst_43 = arith.constant 1.000000e-24 : f32
    %88 = vector.broadcast %cst_43 : f32 to vector<256x1xf32>
    %89 = arith.maximumf %87, %88 : vector<256x1xf32>
    %90 = math.rsqrt %89 : vector<256x1xf32>
    %91 = vector.broadcast %90 : vector<256x1xf32> to vector<256x128xf32>
    %92 = arith.mulf %84, %91 : vector<256x128xf32>
    %c0_44 = arith.constant 0 : index
    %c0_45 = arith.constant 0 : index
    %93 = vector.load %arg8[%c0_44, %c0_45] : memref<1x128xf32, #tpu.memory_space<vmem>>, vector<1x128xf32>
    %94 = vector.broadcast %93 : vector<1x128xf32> to vector<256x128xf32>
    %95 = arith.mulf %92, %94 : vector<256x128xf32>
    %96 = arith.negf %95 : vector<256x128xf32>
    %97 = math.exp %96 : vector<256x128xf32>
    %cst_46 = arith.constant 1.000000e+00 : f32
    %98 = vector.broadcast %cst_46 : f32 to vector<256x128xf32>
    %99 = arith.addf %98, %97 : vector<256x128xf32>
    %100 = arith.divf %98, %99 : vector<256x128xf32>
    %101 = arith.mulf %95, %100 : vector<256x128xf32>
    %102 = vector.extract_strided_slice %1 {offsets = [1, 0, 0], sizes = [16, 16, 128], strides = [1, 1, 1]} : vector<18x16x128xbf16> to vector<16x16x128xbf16>
    %103 = vector.shape_cast %102 : vector<16x16x128xbf16> to vector<256x128xbf16>
    %c0_47 = arith.constant 0 : index
    %c0_48 = arith.constant 0 : index
    %104 = vector.load %arg9[%c0_47, %c0_48] : memref<128x128xbf16, #tpu.memory_space<vmem>>, vector<128x128xbf16>
    %cst_49 = arith.constant dense<0.000000e+00> : vector<256x128xf32>
    %105 = tpu.matmul %103, %104, %cst_49 {dimension_numbers = #tpu.dot_dimension_numbers<[1], [0], [0], [1], [0, 0, 1, 1], [], []>} : vector<256x128xbf16>, vector<128x128xbf16>, vector<256x128xf32> -> vector<256x128xf32>
    %c0_50 = arith.constant 0 : index
    %c0_51 = arith.constant 0 : index
    %106 = vector.load %arg10[%c0_50, %c0_51] : memref<1x128xf32, #tpu.memory_space<vmem>>, vector<1x128xf32>
    %107 = vector.broadcast %106 : vector<1x128xf32> to vector<256x128xf32>
    %108 = arith.addf %105, %107 : vector<256x128xf32>
    %109 = arith.addf %101, %108 : vector<256x128xf32>
    %110 = vector.shape_cast %109 : vector<256x128xf32> to vector<1x16x16x128xf32>
    %c0_52 = arith.constant 0 : index
    %c0_53 = arith.constant 0 : index
    %c0_54 = arith.constant 0 : index
    %c0_55 = arith.constant 0 : index
    %111 = vector.load %arg11[%c0_52, %c0_53, %c0_54, %c0_55] : memref<1x16x16x128xf32, #tpu.memory_space<vmem>>, vector<1x16x16x128xf32>
    tpu.vector_store %arg11[%c0_52, %c0_53, %c0_54, %c0_55], %110 {strides = array<i32>} : memref<1x16x16x128xf32, #tpu.memory_space<vmem>>, vector<1x16x16x128xf32>,
    return
  }
  func.func @transform_0(%arg0: i32) -> (i32, i32, i32, i32) {
    %c0_i32 = arith.constant 0 : i32
    %c0_i32_0 = arith.constant 0 : i32
    %c0_i32_1 = arith.constant 0 : i32
    %c0_i32_2 = arith.constant 0 : i32
    return %arg0, %c0_i32, %c0_i32_0, %c0_i32_1 : i32, i32, i32, i32
  }
  func.func @transform_1(%arg0: i32) -> (i32, i32, i32) {
    %c0_i32 = arith.constant 0 : i32
    %c0_i32_0 = arith.constant 0 : i32
    %c0_i32_1 = arith.constant 0 : i32
    return %arg0, %c0_i32, %c0_i32_0 : i32, i32, i32
  }
  func.func @transform_2(%arg0: i32) -> (i32, i32, i32) {
    %c0_i32 = arith.constant 0 : i32
    %c0_i32_0 = arith.constant 0 : i32
    %c0_i32_1 = arith.constant 0 : i32
    %c0_i32_2 = arith.constant 0 : i32
    return %c0_i32, %c0_i32_0, %c0_i32_1 : i32, i32, i32
  }
  func.func @transform_3(%arg0: i32) -> (i32, i32) {
    %c0_i32 = arith.constant 0 : i32
    %c0_i32_0 = arith.constant 0 : i32
    %c0_i32_1 = arith.constant 0 : i32
    return %c0_i32, %c0_i32_0 : i32, i32
  }
  func.func @transform_4(%arg0: i32) -> (i32, i32) {
    %c0_i32 = arith.constant 0 : i32
    %c0_i32_0 = arith.constant 0 : i32
    %c0_i32_1 = arith.constant 0 : i32
    return %c0_i32, %c0_i32_0 : i32, i32
  }
  func.func @transform_5(%arg0: i32) -> (i32, i32, i32) {
    %c0_i32 = arith.constant 0 : i32
    %c0_i32_0 = arith.constant 0 : i32
    %c0_i32_1 = arith.constant 0 : i32
    %c0_i32_2 = arith.constant 0 : i32
    return %c0_i32, %c0_i32_0, %c0_i32_1 : i32, i32, i32
  }
  func.func @transform_6(%arg0: i32) -> (i32, i32) {
    %c0_i32 = arith.constant 0 : i32
    %c0_i32_0 = arith.constant 0 : i32
    %c0_i32_1 = arith.constant 0 : i32
    return %c0_i32, %c0_i32_0 : i32, i32
  }
  func.func @transform_7(%arg0: i32) -> (i32, i32) {
    %c0_i32 = arith.constant 0 : i32
    %c0_i32_0 = arith.constant 0 : i32
    %c0_i32_1 = arith.constant 0 : i32
    return %c0_i32, %c0_i32_0 : i32, i32
  }
  func.func @transform_8(%arg0: i32) -> (i32, i32) {
    %c0_i32 = arith.constant 0 : i32
    %c0_i32_0 = arith.constant 0 : i32
    %c0_i32_1 = arith.constant 0 : i32
    return %c0_i32, %c0_i32_0 : i32, i32
  }
  func.func @transform_9(%arg0: i32) -> (i32, i32) {
    %c0_i32 = arith.constant 0 : i32
    %c0_i32_0 = arith.constant 0 : i32
    %c0_i32_1 = arith.constant 0 : i32
    return %c0_i32, %c0_i32_0 : i32, i32
  }
  func.func @transform_10(%arg0: i32) -> (i32, i32, i32, i32) {
    %c0_i32 = arith.constant 0 : i32
    %c0_i32_0 = arith.constant 0 : i32
    %c0_i32_1 = arith.constant 0 : i32
    %c0_i32_2 = arith.constant 0 : i32
    return %arg0, %c0_i32, %c0_i32_0, %c0_i32_1 : i32, i32, i32, i32
  }
}

</mosaic_0001>

<llo_original>
// kernel: tpu_custom_call.1
$region0: #{tpu_custom_call.1}
  #allocation0 [shape = 'u32[]', space=smem, size = 0x4, offset = 0x4, fixed_abs, tag = 'smem constant byte address 0x4 - core index']
  #allocation1 [shape = 'u32[144,128]{1,0:T(1,128)}', space=vmem, size = 0x12000, scoped, tag = 'internal scratch']
  %s0 = inlined_call_operand.hbm [shape: bf16[2,18,16,128], index: 0, kind: input, shape index: {}]
  %s1 = inlined_call_operand.hbm [shape: f32[2,1,256], index: 1, kind: input, shape index: {}]
  %s2 = inlined_call_operand.hbm [shape: bf16[3,384,128], index: 2, kind: input, shape index: {}]
  %s3 = inlined_call_operand.vmem [shape: f32[1,128], index: 3, kind: input, shape index: {}]
  %s4 = inlined_call_operand.vmem [shape: f32[1,128], index: 4, kind: input, shape index: {}]
  %s5 = inlined_call_operand.hbm [shape: bf16[3,384,128], index: 5, kind: input, shape index: {}]
  %s6 = inlined_call_operand.vmem [shape: f32[1,128], index: 6, kind: input, shape index: {}]
  %s7 = inlined_call_operand.vmem [shape: f32[1,128], index: 7, kind: input, shape index: {}]
  %s8 = inlined_call_operand.hbm [shape: bf16[128,128], index: 8, kind: input, shape index: {}]
  %s9 = inlined_call_operand.vmem [shape: f32[1,128], index: 9, kind: input, shape index: {}]
  %s10 = inlined_call_operand.hbm [shape: f32[2,16,16,128], index: 10, kind: output, shape index: {}]
  %s11 = sld [smem:[#allocation0]]
  $region93: #{tpu_custom_call.1} parent=0
    _
  %s13 = ssub.s32 1, %s11
  %s14 = scalar_select 0, %s13, %s11
  $region1: #{tpu_custom_call.1} parent=0
    #allocation2 [shape = 'u8[147456]{0}', space=vmem, size = 0x24000, scoped, tag = 'input window, operand 0']
    #allocation3 [shape = 's32[2]{0}', space=sflag, size = 0x8, scoped, tag = 'scoped memory for tpu_custom_call.1']
    #allocation4 [shape = 's32[2]{0}', space=sflag, size = 0x8, scoped, tag = 'scoped memory for tpu_custom_call.1']
    #allocation5 [shape = 'u8[2048]{0}', space=vmem, size = 0x800, scoped, tag = 'input window, operand 1']
    #allocation6 [shape = 's32[2]{0}', space=sflag, size = 0x8, scoped, tag = 'scoped memory for tpu_custom_call.1']
    #allocation7 [shape = 'u8[294912]{0}', space=vmem, size = 0x48000, scoped, tag = 'input window, operand 2, single buffered']
    #allocation8 [shape = 'u8[294912]{0}', space=vmem, size = 0x48000, scoped, tag = 'input window, operand 5, single buffered']
    #allocation9 [shape = 's32[1]{0}', space=sflag, size = 0x4, scoped, tag = 'scoped memory for tpu_custom_call.1']
    #allocation10 [shape = 'u8[32768]{0}', space=vmem, size = 0x8000, scoped, tag = 'input window, operand 8, single buffered']
    #allocation11 [shape = 'u8[262144]{0}', space=vmem, size = 0x40000, scoped, tag = 'output window, operand 0']
    %15 = vsyncpa [#allocation3], 0
    %s16 = scalar_lea.sflag [#allocation3], 1
    %17 = vsyncpa %s16, 0
    %18 = vsyncpa [#allocation6], 0
    %s19 = scalar_lea.sflag [#allocation6], 1
    %20 = vsyncpa %s19, 0
    %21 = vsyncpa [#allocation9], 0
    %22 = vsyncpa [#allocation4], 0
    %s23 = scalar_lea.sflag [#allocation4], 1
    %24 = vsyncpa %s23, 0
    loop: start=0, step=1, limit=4
    $region2: #{tpu_custom_call.1} parent=1 // loop_pre_header
      _
    $region3: #{tpu_custom_call.1} parent=1 // loop_header
      %s26 = sphi 0, %s30
      %p27 = scmp.ge.s32.totalorder %s26, 4
      %s36 = sphi 0, %s38
      %s39 = sphi 0, %s36
      %s40 = sphi 0, %s39
      %s56 = sphi 0, %s40
      %s62 = sphi 0, %s64
      %s65 = sphi 0, %s62
      %s66 = sphi 0, %s65
      %s82 = sphi 0, %s66
      %s86 = sphi 0, %s86
      %s88 = sphi 0, %s86
      %s89 = sphi 0, %s88
      %s103 = sphi 0, %s89
      %s107 = sphi 0, %s107
      %s109 = sphi 0, %s107
      %s110 = sphi 0, %s109
      %s124 = sphi 0, %s110
      %s128 = sphi 0, %s128
      %s130 = sphi 0, %s128
      %s131 = sphi 0, %s130
      %s145 = sphi 0, %s131
      %s149 = sphi 0, %s149
      %s151 = sphi 0, %s149
      %s152 = sphi 0, %s151
      %s166 = sphi 0, %s152
      %s170 = sphi 0, %s170
      %s172 = sphi 0, %s170
      %s173 = sphi 0, %s172
      %s187 = sphi 0, %s173
      %s191 = sphi 0, %s191
      %s193 = sphi 0, %s191
      %s194 = sphi 0, %s193
      %s208 = sphi 0, %s194
      %s212 = sphi 0, %s212
      %s214 = sphi 0, %s212
      %s215 = sphi 0, %s214
      %s229 = sphi 0, %s215
      %s233 = sphi 0, %s233
      %s235 = sphi 0, %s233
      %s236 = sphi 0, %s235
      %s250 = sphi 0, %s236
      %s256 = sphi 0, %s258
      %s259 = sphi 0, %s256
      %s260 = sphi 0, %s259
      %s276 = sphi 0, %s260
    $region4: #{tpu_custom_call.1} parent=1 // loop_header_branch
      %29 = sbr.rel (%p27) target = $region8
    $region5: #{tpu_custom_call.1} parent=1 // loop_body
      %s31 = ssub.s32 %s26, 1
      %s32 = ssub.s32 %s26, 2
      %s33 = sadd.s32 %s26, 1
      %s34 = ssub.s32 %s26, %s33
      %p35 = scmp.eq.s32.totalorder %s34, 0
      %s37 = sadd.s32 %s36, 1
      %s38 = scalar_select %p35, %s36, %s37
      %p41 = pneg %p35
      %p42 = scmp.eq.s32.totalorder %s26, 1
      %p43 = por %p41, %p42
      %p44 = scmp.ne.s32.totalorder %s36, %s39
      %p45 = scmp.eq.s32.totalorder %s26, 0
      %p46 = por %p44, %p45
      %p47 = scmp.ne.s32.totalorder %s36, %s39
      %p48 = scmp.eq.s32.totalorder %s31, 1
      %p49 = por %p47, %p48
      %p50 = scmp.ne.s32.totalorder %s39, %s40
      %p51 = scmp.eq.s32.totalorder %s31, 0
      %p52 = por %p50, %p51
      %p53 = scmp.ne.s32.totalorder %s39, %s40
      %p54 = scmp.eq.s32.totalorder %s32, 1
      %p55 = por %p53, %p54
      %p57 = scmp.ne.s32.totalorder %s40, %s56
      %p58 = scmp.eq.s32.totalorder %s32, 0
      %p59 = por %p57, %p58
      %s60 = ssub.s32 %s26, %s33
      %p61 = scmp.eq.s32.totalorder %s60, 0
      %s63 = sadd.s32 %s62, 1
      %s64 = scalar_select %p61, %s62, %s63
      %p67 = pneg %p61
      %p68 = scmp.eq.s32.totalorder %s26, 1
      %p69 = por %p67, %p68
      %p70 = scmp.ne.s32.totalorder %s62, %s65
      %p71 = scmp.eq.s32.totalorder %s26, 0
      %p72 = por %p70, %p71
      %p73 = scmp.ne.s32.totalorder %s62, %s65
      %p74 = scmp.eq.s32.totalorder %s31, 1
      %p75 = por %p73, %p74
      %p76 = scmp.ne.s32.totalorder %s65, %s66
      %p77 = scmp.eq.s32.totalorder %s31, 0
      %p78 = por %p76, %p77
      %p79 = scmp.ne.s32.totalorder %s65, %s66
      %p80 = scmp.eq.s32.totalorder %s32, 1
      %p81 = por %p79, %p80
      %p83 = scmp.ne.s32.totalorder %s66, %s82
      %p84 = scmp.eq.s32.totalorder %s32, 0
      %p85 = por %p83, %p84
      %s87 = sadd.s32 %s86, 1
      %p90 = scmp.eq.s32.totalorder %s26, 1
      %p91 = scmp.ne.s32.totalorder %s86, %s88
      %p92 = scmp.eq.s32.totalorder %s26, 0
      %p93 = por %p91, %p92
      %p94 = scmp.ne.s32.totalorder %s86, %s88
      %p95 = scmp.eq.s32.totalorder %s31, 1
      %p96 = por %p94, %p95
      %p97 = scmp.ne.s32.totalorder %s88, %s89
      %p98 = scmp.eq.s32.totalorder %s31, 0
      %p99 = por %p97, %p98
      %p100 = scmp.ne.s32.totalorder %s88, %s89
      %p101 = scmp.eq.s32.totalorder %s32, 1
      %p102 = por %p100, %p101
      %p104 = scmp.ne.s32.totalorder %s89, %s103
      %p105 = scmp.eq.s32.totalorder %s32, 0
      %p106 = por %p104, %p105
      %s108 = sadd.s32 %s107, 1
      %p111 = scmp.eq.s32.totalorder %s26, 1
      %p112 = scmp.ne.s32.totalorder %s107, %s109
      %p113 = scmp.eq.s32.totalorder %s26, 0
      %p114 = por %p112, %p113
      %p115 = scmp.ne.s32.totalorder %s107, %s109
      %p116 = scmp.eq.s32.totalorder %s31, 1
      %p117 = por %p115, %p116
      %p118 = scmp.ne.s32.totalorder %s109, %s110
      %p119 = scmp.eq.s32.totalorder %s31, 0
      %p120 = por %p118, %p119
      %p121 = scmp.ne.s32.totalorder %s109, %s110
      %p122 = scmp.eq.s32.totalorder %s32, 1
      %p123 = por %p121, %p122
      %p125 = scmp.ne.s32.totalorder %s110, %s124
      %p126 = scmp.eq.s32.totalorder %s32, 0
      %p127 = por %p125, %p126
      %s129 = sadd.s32 %s128, 1
      %p132 = scmp.eq.s32.totalorder %s26, 1
      %p133 = scmp.ne.s32.totalorder %s128, %s130
      %p134 = scmp.eq.s32.totalorder %s26, 0
      %p135 = por %p133, %p134
      %p136 = scmp.ne.s32.totalorder %s128, %s130
      %p137 = scmp.eq.s32.totalorder %s31, 1
      %p138 = por %p136, %p137
      %p139 = scmp.ne.s32.totalorder %s130, %s131
      %p140 = scmp.eq.s32.totalorder %s31, 0
      %p141 = por %p139, %p140
      %p142 = scmp.ne.s32.totalorder %s130, %s131
      %p143 = scmp.eq.s32.totalorder %s32, 1
      %p144 = por %p142, %p143
      %p146 = scmp.ne.s32.totalorder %s131, %s145
      %p147 = scmp.eq.s32.totalorder %s32, 0
      %p148 = por %p146, %p147
      %s150 = sadd.s32 %s149, 1
      %p153 = scmp.eq.s32.totalorder %s26, 1
      %p154 = scmp.ne.s32.totalorder %s149, %s151
      %p155 = scmp.eq.s32.totalorder %s26, 0
      %p156 = por %p154, %p155
      %p157 = scmp.ne.s32.totalorder %s149, %s151
      %p158 = scmp.eq.s32.totalorder %s31, 1
      %p159 = por %p157, %p158
      %p160 = scmp.ne.s32.totalorder %s151, %s152
      %p161 = scmp.eq.s32.totalorder %s31, 0
      %p162 = por %p160, %p161
      %p163 = scmp.ne.s32.totalorder %s151, %s152
      %p164 = scmp.eq.s32.totalorder %s32, 1
      %p165 = por %p163, %p164
      %p167 = scmp.ne.s32.totalorder %s152, %s166
      %p168 = scmp.eq.s32.totalorder %s32, 0
      %p169 = por %p167, %p168
      %s171 = sadd.s32 %s170, 1
      %p174 = scmp.eq.s32.totalorder %s26, 1
      %p175 = scmp.ne.s32.totalorder %s170, %s172
      %p176 = scmp.eq.s32.totalorder %s26, 0
      %p177 = por %p175, %p176
      %p178 = scmp.ne.s32.totalorder %s170, %s172
      %p179 = scmp.eq.s32.totalorder %s31, 1
      %p180 = por %p178, %p179
      %p181 = scmp.ne.s32.totalorder %s172, %s173
      %p182 = scmp.eq.s32.totalorder %s31, 0
      %p183 = por %p181, %p182
      %p184 = scmp.ne.s32.totalorder %s172, %s173
      %p185 = scmp.eq.s32.totalorder %s32, 1
      %p186 = por %p184, %p185
      %p188 = scmp.ne.s32.totalorder %s173, %s187
      %p189 = scmp.eq.s32.totalorder %s32, 0
      %p190 = por %p188, %p189
      %s192 = sadd.s32 %s191, 1
      %p195 = scmp.eq.s32.totalorder %s26, 1
      %p196 = scmp.ne.s32.totalorder %s191, %s193
      %p197 = scmp.eq.s32.totalorder %s26, 0
      %p198 = por %p196, %p197
      %p199 = scmp.ne.s32.totalorder %s191, %s193
      %p200 = scmp.eq.s32.totalorder %s31, 1
      %p201 = por %p199, %p200
      %p202 = scmp.ne.s32.totalorder %s193, %s194
      %p203 = scmp.eq.s32.totalorder %s31, 0
      %p204 = por %p202, %p203
      %p205 = scmp.ne.s32.totalorder %s193, %s194
      %p206 = scmp.eq.s32.totalorder %s32, 1
      %p207 = por %p205, %p206
      %p209 = scmp.ne.s32.totalorder %s194, %s208
      %p210 = scmp.eq.s32.totalorder %s32, 0
      %p211 = por %p209, %p210
      %s213 = sadd.s32 %s212, 1
      %p216 = scmp.eq.s32.totalorder %s26, 1
      %p217 = scmp.ne.s32.totalorder %s212, %s214
      %p218 = scmp.eq.s32.totalorder %s26, 0
      %p219 = por %p217, %p218
      %p220 = scmp.ne.s32.totalorder %s212, %s214
      %p221 = scmp.eq.s32.totalorder %s31, 1
      %p222 = por %p220, %p221
      %p223 = scmp.ne.s32.totalorder %s214, %s215
      %p224 = scmp.eq.s32.totalorder %s31, 0
      %p225 = por %p223, %p224
      %p226 = scmp.ne.s32.totalorder %s214, %s215
      %p227 = scmp.eq.s32.totalorder %s32, 1
      %p228 = por %p226, %p227
      %p230 = scmp.ne.s32.totalorder %s215, %s229
      %p231 = scmp.eq.s32.totalorder %s32, 0
      %p232 = por %p230, %p231
      %s234 = sadd.s32 %s233, 1
      %p237 = scmp.eq.s32.totalorder %s26, 1
      %p238 = scmp.ne.s32.totalorder %s233, %s235
      %p239 = scmp.eq.s32.totalorder %s26, 0
      %p240 = por %p238, %p239
      %p241 = scmp.ne.s32.totalorder %s233, %s235
      %p242 = scmp.eq.s32.totalorder %s31, 1
      %p243 = por %p241, %p242
      %p244 = scmp.ne.s32.totalorder %s235, %s236
      %p245 = scmp.eq.s32.totalorder %s31, 0
      %p246 = por %p244, %p245
      %p247 = scmp.ne.s32.totalorder %s235, %s236
      %p248 = scmp.eq.s32.totalorder %s32, 1
      %p249 = por %p247, %p248
      %p251 = scmp.ne.s32.totalorder %s236, %s250
      %p252 = scmp.eq.s32.totalorder %s32, 0
      %p253 = por %p251, %p252
      %s254 = ssub.s32 %s26, %s33
      %p255 = scmp.eq.s32.totalorder %s254, 0
      %s257 = sadd.s32 %s256, 1
      %s258 = scalar_select %p255, %s256, %s257
      %p261 = pneg %p255
      %p262 = scmp.eq.s32.totalorder %s26, 1
      %p263 = por %p261, %p262
      %p264 = scmp.ne.s32.totalorder %s256, %s259
      %p265 = scmp.eq.s32.totalorder %s26, 0
      %p266 = por %p264, %p265
      %p267 = scmp.ne.s32.totalorder %s256, %s259
      %p268 = scmp.eq.s32.totalorder %s31, 1
      %p269 = por %p267, %p268
      %p270 = scmp.ne.s32.totalorder %s259, %s260
      %p271 = scmp.eq.s32.totalorder %s31, 0
      %p272 = por %p270, %p271
      %p273 = scmp.ne.s32.totalorder %s259, %s260
      %p274 = scmp.eq.s32.totalorder %s32, 1
      %p275 = por %p273, %p274
      %p277 = scmp.ne.s32.totalorder %s260, %s276
      %p278 = scmp.eq.s32.totalorder %s32, 0
      %p279 = por %p277, %p278
      %p280 = scmp.le.s32.totalorder 1, %s26
      %p281 = scmp.lt.s32.totalorder %s26, 3
      %p282 = pnand %p280, %p281
      %p283 = pneg %p282
      // Predicated region
      $region9: #{tpu_custom_call.1} parent=5 // pred_check
        _
      $region10: #{tpu_custom_call.1} parent=5 // pred_check_branch
        %285 = sbr.rel (%p282) target = $region12
      $region11: #{tpu_custom_call.1} parent=5 // pred_region
        %s286 = ssub.s32 %s26, 1
        // Predicated region
        $region13: #{tpu_custom_call.1} parent=11 // pred_check
          %p287 = pneg %p99
        $region14: #{tpu_custom_call.1} parent=11 // pred_check_branch
          %289 = sbr.rel (%p287) target = $region16
        $region15: #{tpu_custom_call.1} parent=11 // pred_region
          %s291 = ssub.s32 9216, 9216
          %292 = vsyncadd [#allocation6], %s291
          %s293 = sshll.u32 [#allocation7], 4
          %s294 = int_to_ptr.vmem [resolvable:$true] %s293
          %299 = dma.hbm_to_vmem [thread:$0]  %s2, 9216, %s294, [#allocation6], 64, 64, 4
        $region16: #{tpu_custom_call.1} parent=11 // pred_fallthru
          _
        // Predicated region
        $region17: #{tpu_custom_call.1} parent=11 // pred_check
          %p300 = pneg %p120
        $region18: #{tpu_custom_call.1} parent=11 // pred_check_branch
          %302 = sbr.rel (%p300) target = $region20
        $region19: #{tpu_custom_call.1} parent=11 // pred_region
          _
        $region20: #{tpu_custom_call.1} parent=11 // pred_fallthru
          _
        // Predicated region
        $region21: #{tpu_custom_call.1} parent=11 // pred_check
          %p303 = pneg %p141
        $region22: #{tpu_custom_call.1} parent=11 // pred_check_branch
          %305 = sbr.rel (%p303) target = $region24
        $region23: #{tpu_custom_call.1} parent=11 // pred_region
          _
        $region24: #{tpu_custom_call.1} parent=11 // pred_fallthru
          _
        // Predicated region
        $region25: #{tpu_custom_call.1} parent=11 // pred_check
          %p306 = pneg %p162
        $region26: #{tpu_custom_call.1} parent=11 // pred_check_branch
          %308 = sbr.rel (%p306) target = $region28
        $region27: #{tpu_custom_call.1} parent=11 // pred_region
          %s310 = ssub.s32 9216, 9216
          %311 = vsyncadd [#allocation9], %s310
          %s312 = sshll.u32 [#allocation8], 4
          %s313 = int_to_ptr.vmem [resolvable:$true] %s312
          %318 = dma.hbm_to_vmem [thread:$0]  %s5, 9216, %s313, [#allocation9], 64, 64, 4
        $region28: #{tpu_custom_call.1} parent=11 // pred_fallthru
          _
        // Predicated region
        $region29: #{tpu_custom_call.1} parent=11 // pred_check
          %p319 = pneg %p183
        $region30: #{tpu_custom_call.1} parent=11 // pred_check_branch
          %321 = sbr.rel (%p319) target = $region32
        $region31: #{tpu_custom_call.1} parent=11 // pred_region
          _
        $region32: #{tpu_custom_call.1} parent=11 // pred_fallthru
          _
        // Predicated region
        $region33: #{tpu_custom_call.1} parent=11 // pred_check
          %p322 = pneg %p204
        $region34: #{tpu_custom_call.1} parent=11 // pred_check_branch
          %324 = sbr.rel (%p322) target = $region36
        $region35: #{tpu_custom_call.1} parent=11 // pred_region
          _
        $region36: #{tpu_custom_call.1} parent=11 // pred_fallthru
          _
        // Predicated region
        $region37: #{tpu_custom_call.1} parent=11 // pred_check
          %p325 = pneg %p225
        $region38: #{tpu_custom_call.1} parent=11 // pred_check_branch
          %327 = sbr.rel (%p325) target = $region40
        $region39: #{tpu_custom_call.1} parent=11 // pred_region
          %s329 = ssub.s32 1024, 1024
          %330 = vsyncadd [#allocation9], %s329
          %s331 = sshll.u32 [#allocation10], 4
          %s332 = int_to_ptr.vmem [resolvable:$true] %s331
          %337 = dma.hbm_to_vmem [thread:$0]  %s8, 1024, %s332, [#allocation9], 64, 64, 4
        $region40: #{tpu_custom_call.1} parent=11 // pred_fallthru
          _
        // Predicated region
        $region41: #{tpu_custom_call.1} parent=11 // pred_check
          %p338 = pneg %p246
        $region42: #{tpu_custom_call.1} parent=11 // pred_check_branch
          %340 = sbr.rel (%p338) target = $region44
        $region43: #{tpu_custom_call.1} parent=11 // pred_region
          _
        $region44: #{tpu_custom_call.1} parent=11 // pred_fallthru
          _
      $region12: #{tpu_custom_call.1} parent=5 // pred_fallthru
        _
      %p341 = scmp.lt.s32.totalorder %s26, 2
      // Predicated region
      $region45: #{tpu_custom_call.1} parent=5 // pred_check
        %p342 = pneg %p341
      $region46: #{tpu_custom_call.1} parent=5 // pred_check_branch
        %344 = sbr.rel (%p342) target = $region48
      $region47: #{tpu_custom_call.1} parent=5 // pred_region
        // Predicated region
        $region49: #{tpu_custom_call.1} parent=47 // pred_check
          %p345 = pneg %p46
        $region50: #{tpu_custom_call.1} parent=47 // pred_check_branch
          %347 = sbr.rel (%p345) target = $region52
        $region51: #{tpu_custom_call.1} parent=47 // pred_region
          %s348 = sand.u32 %s36, 1
          %s349 = scalar_lea.sflag [#allocation3], %s348
          %s350 = sand.u32 %s36, 1
          %s351 = smul.addr %s350, 144
          %s352 = scalar_lea.vmem [#allocation2], %s351
          %s354 = ssub.s32 2304, 2304
          %355 = vsyncadd %s349, %s354
          %s356 = smul.addr %s26, 36
          %s357 = smul.addr %s356, 64
          %s358 = scalar_lea.hbm %s0, %s357
          %s359 = sshll.u32 %s352, 4
          %s360 = int_to_ptr.vmem [resolvable:$true] %s359
          %365 = dma.hbm_to_vmem [thread:$0]  %s358, 2304, %s360, %s349, 64, 64, 4
        $region52: #{tpu_custom_call.1} parent=47 // pred_fallthru
          _
        // Predicated region
        $region53: #{tpu_custom_call.1} parent=47 // pred_check
          %p366 = pneg %p72
        $region54: #{tpu_custom_call.1} parent=47 // pred_check_branch
          %368 = sbr.rel (%p366) target = $region56
        $region55: #{tpu_custom_call.1} parent=47 // pred_region
          %s369 = sand.u32 %s26, 1
          %s370 = scalar_lea.sflag [#allocation6], %s369
          %s371 = sand.u32 %s62, 1
          %s372 = smul.addr %s371, 2
          %s373 = scalar_lea.vmem [#allocation5], %s372
          %s375 = ssub.s32 32, 32
          %376 = vsyncadd %s370, %s375
          %s377 = smul.addr %s26, 2
          %s378 = smul.addr %s377, 16
          %s379 = scalar_lea.hbm %s1, %s378
          %s381 = sshll.u32 %s373, 4
          %s382 = int_to_ptr.vmem [resolvable:$true] %s381
          %384 = dma.hbm_to_vmem [thread:$0]  %s379, 32, %s382, %s370
        $region56: #{tpu_custom_call.1} parent=47 // pred_fallthru
          _
      $region48: #{tpu_custom_call.1} parent=5 // pred_fallthru
        _
      %p385 = scmp.le.s32.totalorder 1, %s26
      %p386 = scmp.lt.s32.totalorder %s26, 3
      %p387 = pnand %p385, %p386
      %p388 = pneg %p387
      // Predicated region
      $region57: #{tpu_custom_call.1} parent=5 // pred_check
        _
      $region58: #{tpu_custom_call.1} parent=5 // pred_check_branch
        %390 = sbr.rel (%p387) target = $region60
      $region59: #{tpu_custom_call.1} parent=5 // pred_region
        %s391 = ssub.s32 %s26, 1
        %s392 = sand.u32 %s39, 1
        %s393 = scalar_lea.sflag [#allocation3], %s392
        %s394 = sand.u32 %s39, 1
        %s395 = smul.addr %s394, 144
        %s396 = scalar_lea.vmem [#allocation2], %s395
        // Predicated region
        $region61: #{tpu_custom_call.1} parent=59 // pred_check
          %p397 = pneg %p52
        $region62: #{tpu_custom_call.1} parent=59 // pred_check_branch
          %399 = sbr.rel (%p397) target = $region64
        $region63: #{tpu_custom_call.1} parent=59 // pred_region
          %400 = dma.done %s393, 2304
        $region64: #{tpu_custom_call.1} parent=59 // pred_fallthru
          _
        %s401 = sand.u32 %s31, 1
        %s402 = scalar_lea.sflag [#allocation6], %s401
        %s403 = sand.u32 %s65, 1
        %s404 = smul.addr %s403, 2
        %s405 = scalar_lea.vmem [#allocation5], %s404
        // Predicated region
        $region65: #{tpu_custom_call.1} parent=59 // pred_check
          %p406 = pneg %p78
        $region66: #{tpu_custom_call.1} parent=59 // pred_check_branch
          %408 = sbr.rel (%p406) target = $region68
        $region67: #{tpu_custom_call.1} parent=59 // pred_region
          %409 = dma.done %s402, 32
        $region68: #{tpu_custom_call.1} parent=59 // pred_fallthru
          _
        // Predicated region
        $region69: #{tpu_custom_call.1} parent=59 // pred_check
          %p410 = pneg %p99
        $region70: #{tpu_custom_call.1} parent=59 // pred_check_branch
          %412 = sbr.rel (%p410) target = $region72
        $region71: #{tpu_custom_call.1} parent=59 // pred_region
          %413 = dma.done [#allocation6], 9216
        $region72: #{tpu_custom_call.1} parent=59 // pred_fallthru
          _
        // Predicated region
        $region73: #{tpu_custom_call.1} parent=59 // pred_check
          %p414 = pneg %p162
        $region74: #{tpu_custom_call.1} parent=59 // pred_check_branch
          %416 = sbr.rel (%p414) target = $region76
        $region75: #{tpu_custom_call.1} parent=59 // pred_region
          %417 = dma.done [#allocation9], 9216
        $region76: #{tpu_custom_call.1} parent=59 // pred_fallthru
          _
        // Predicated region
        $region77: #{tpu_custom_call.1} parent=59 // pred_check
          %p418 = pneg %p225
        $region78: #{tpu_custom_call.1} parent=59 // pred_check_branch
          %420 = sbr.rel (%p418) target = $region80
        $region79: #{tpu_custom_call.1} parent=59 // pred_region
          %421 = dma.done [#allocation9], 1024
        $region80: #{tpu_custom_call.1} parent=59 // pred_fallthru
          _
        %s422 = sand.u32 %s39, 1
        %s423 = scalar_lea.sflag [#allocation3], %s422
        %s424 = sand.u32 %s39, 1
        %s425 = smul.addr %s424, 144
        %s426 = scalar_lea.vmem [#allocation2], %s425
        %p427 = pneg %p52
        %p428 = pneg %p49
        %s429 = sand.u32 %s31, 1
        %s430 = scalar_lea.sflag [#allocation6], %s429
        %s431 = sand.u32 %s65, 1
        %s432 = smul.addr %s431, 2
        %s433 = scalar_lea.vmem [#allocation5], %s432
        %p434 = pneg %p78
        %p435 = pneg %p75
        %p436 = pneg %p99
        %p437 = pneg %p96
        %p438 = pneg %p120
        %p439 = pneg %p117
        %p440 = pneg %p141
        %p441 = pneg %p138
        %p442 = pneg %p162
        %p443 = pneg %p159
        %p444 = pneg %p183
        %p445 = pneg %p180
        %p446 = pneg %p204
        %p447 = pneg %p201
        %p448 = pneg %p225
        %p449 = pneg %p222
        %p450 = pneg %p246
        %p451 = pneg %p243
        %p452 = pneg %p272
        %p453 = pneg %p269
        %s454 = sand.u32 %s259, 1
        %s455 = scalar_lea.sflag [#allocation4], %s454
        %s456 = sand.u32 %s259, 1
        %s457 = smul.addr %s456, 256
        %s458 = scalar_lea.vmem [#allocation11], %s457
        %v460 = vld [vmem:[%s396] sm:$0xf]
        %v461 = vld [vmem:[%s396 + $0x4] sm:$0xf]
        %v462 = vld [vmem:[%s396 + $0x8] sm:$0xf]
        %v463 = vld [vmem:[%s396 + $0xc] sm:$0xf]
        %v464 = vld [vmem:[%s396 + $0x10] sm:$0xf]
        %v465 = vld [vmem:[%s396 + $0x14] sm:$0xf]
        %v466 = vld [vmem:[%s396 + $0x18] sm:$0xf]
        %v467 = vld [vmem:[%s396 + $0x1c] sm:$0xf]
        %v468 = vld [vmem:[%s396 + $0x20] sm:$0xf]
        %v469 = vld [vmem:[%s396 + $0x24] sm:$0xf]
        %v470 = vld [vmem:[%s396 + $0x28] sm:$0xf]
        %v471 = vld [vmem:[%s396 + $0x2c] sm:$0xf]
        %v472 = vld [vmem:[%s396 + $0x30] sm:$0xf]
        %v473 = vld [vmem:[%s396 + $0x34] sm:$0xf]
        %v474 = vld [vmem:[%s396 + $0x38] sm:$0xf]
        %v475 = vld [vmem:[%s396 + $0x3c] sm:$0xf]
        %v476 = vld [vmem:[%s396 + $0x40] sm:$0xf]
        %v477 = vld [vmem:[%s396 + $0x44] sm:$0xf]
        %v478 = vld [vmem:[%s396 + $0x48] sm:$0xf]
        %v479 = vld [vmem:[%s396 + $0x4c] sm:$0xf]
        %v480 = vld [vmem:[%s396 + $0x50] sm:$0xf]
        %v481 = vld [vmem:[%s396 + $0x54] sm:$0xf]
        %v482 = vld [vmem:[%s396 + $0x58] sm:$0xf]
        %v483 = vld [vmem:[%s396 + $0x5c] sm:$0xf]
        %v484 = vld [vmem:[%s396 + $0x60] sm:$0xf]
        %v485 = vld [vmem:[%s396 + $0x64] sm:$0xf]
        %v486 = vld [vmem:[%s396 + $0x68] sm:$0xf]
        %v487 = vld [vmem:[%s396 + $0x6c] sm:$0xf]
        %v488 = vld [vmem:[%s396 + $0x70] sm:$0xf]
        %v489 = vld [vmem:[%s396 + $0x74] sm:$0xf]
        %v490 = vld [vmem:[%s396 + $0x78] sm:$0xf]
        %v491 = vld [vmem:[%s396 + $0x7c] sm:$0xf]
        %v492 = vld [vmem:[%s396 + $0x80] sm:$0xf]
        %v493 = vld [vmem:[%s396 + $0x84] sm:$0xf]
        %v494 = vld [vmem:[%s396 + $0x88] sm:$0xf]
        %v495 = vld [vmem:[%s396 + $0x8c] sm:$0xf]
        %v496 = vld [vmem:[%s405] sm:$0x1]
        %v497 = vld [vmem:[%s405 + $0x1] sm:$0x1]
        %v534 = vunpack.c.l.b16 %v460
        %v535 = vunpack.c.l.b16 %v461
        %v536 = vunpack.c.l.b16 %v462
        %v537 = vunpack.c.l.b16 %v463
        %v538 = vunpack.c.l.b16 %v464
        %v539 = vunpack.c.l.b16 %v465
        %v540 = vunpack.c.l.b16 %v466
        %v541 = vunpack.c.l.b16 %v467
        %v542 = vunpack.c.l.b16 %v468
        %v543 = vunpack.c.l.b16 %v469
        %v544 = vunpack.c.l.b16 %v470
        %v545 = vunpack.c.l.b16 %v471
        %v546 = vunpack.c.l.b16 %v472
        %v547 = vunpack.c.l.b16 %v473
        %v548 = vunpack.c.l.b16 %v474
        %v549 = vunpack.c.l.b16 %v475
        %v550 = vunpack.c.l.b16 %v476
        %v551 = vunpack.c.l.b16 %v477
        %v552 = vunpack.c.l.b16 %v478
        %v553 = vunpack.c.l.b16 %v479
        %v554 = vunpack.c.l.b16 %v480
        %v555 = vunpack.c.l.b16 %v481
        %v556 = vunpack.c.l.b16 %v482
        %v557 = vunpack.c.l.b16 %v483
        %v558 = vunpack.c.l.b16 %v484
        %v559 = vunpack.c.l.b16 %v485
        %v560 = vunpack.c.l.b16 %v486
        %v561 = vunpack.c.l.b16 %v487
        %v562 = vunpack.c.l.b16 %v488
        %v563 = vunpack.c.l.b16 %v489
        %v564 = vunpack.c.l.b16 %v490
        %v565 = vunpack.c.l.b16 %v491
        %v566 = vunpack.c.l.b16 %v492
        %v567 = vunpack.c.l.b16 %v493
        %v568 = vunpack.c.l.b16 %v494
        %v569 = vunpack.c.l.b16 %v495
        %v570 = vpack.c.b16 %v535, %v534
        %v571 = vpack.c.b16 %v537, %v536
        %v572 = vpack.c.b16 %v539, %v538
        %v573 = vpack.c.b16 %v541, %v540
        %v574 = vpack.c.b16 %v543, %v542
        %v575 = vpack.c.b16 %v545, %v544
        %v576 = vpack.c.b16 %v547, %v546
        %v577 = vpack.c.b16 %v549, %v548
        %v578 = vpack.c.b16 %v551, %v550
        %v579 = vpack.c.b16 %v553, %v552
        %v580 = vpack.c.b16 %v555, %v554
        %v581 = vpack.c.b16 %v557, %v556
        %v582 = vpack.c.b16 %v559, %v558
        %v583 = vpack.c.b16 %v561, %v560
        %v584 = vpack.c.b16 %v563, %v562
        %v585 = vpack.c.b16 %v565, %v564
        %v586 = vpack.c.b16 %v567, %v566
        %v587 = vpack.c.b16 %v569, %v568
        %v589 = vshrl.u32 %v570, 16
        %v591 = vrot.slane %v589, 7
        %v592 = vshll.u32 %v570, 16
        %v594 = vor.u32 %v591, %v592
        %v596 = vshrl.u32 %v571, 16
        %v598 = vrot.slane %v596, 7
        %v599 = vshll.u32 %v571, 16
        %v601 = vor.u32 %v598, %v599
        %v603 = vshrl.u32 %v572, 16
        %v605 = vrot.slane %v603, 7
        %v606 = vshll.u32 %v572, 16
        %v608 = vor.u32 %v605, %v606
        %v610 = vshrl.u32 %v573, 16
        %v612 = vrot.slane %v610, 7
        %v613 = vshll.u32 %v573, 16
        %v615 = vor.u32 %v612, %v613
        %v617 = vshrl.u32 %v574, 16
        %v619 = vrot.slane %v617, 7
        %v620 = vshll.u32 %v574, 16
        %v622 = vor.u32 %v619, %v620
        %v624 = vshrl.u32 %v575, 16
        %v626 = vrot.slane %v624, 7
        %v627 = vshll.u32 %v575, 16
        %v629 = vor.u32 %v626, %v627
        %v631 = vshrl.u32 %v576, 16
        %v633 = vrot.slane %v631, 7
        %v634 = vshll.u32 %v576, 16
        %v636 = vor.u32 %v633, %v634
        %v638 = vshrl.u32 %v577, 16
        %v640 = vrot.slane %v638, 7
        %v641 = vshll.u32 %v577, 16
        %v643 = vor.u32 %v640, %v641
        %v645 = vshrl.u32 %v578, 16
        %v647 = vrot.slane %v645, 7
        %v648 = vshll.u32 %v578, 16
        %v650 = vor.u32 %v647, %v648
        %v652 = vshrl.u32 %v579, 16
        %v654 = vrot.slane %v652, 7
        %v655 = vshll.u32 %v579, 16
        %v657 = vor.u32 %v654, %v655
        %v659 = vshrl.u32 %v580, 16
        %v661 = vrot.slane %v659, 7
        %v662 = vshll.u32 %v580, 16
        %v664 = vor.u32 %v661, %v662
        %v666 = vshrl.u32 %v581, 16
        %v668 = vrot.slane %v666, 7
        %v669 = vshll.u32 %v581, 16
        %v671 = vor.u32 %v668, %v669
        %v673 = vshrl.u32 %v582, 16
        %v675 = vrot.slane %v673, 7
        %v676 = vshll.u32 %v582, 16
        %v678 = vor.u32 %v675, %v676
        %v680 = vshrl.u32 %v583, 16
        %v682 = vrot.slane %v680, 7
        %v683 = vshll.u32 %v583, 16
        %v685 = vor.u32 %v682, %v683
        %v687 = vshrl.u32 %v584, 16
        %v689 = vrot.slane %v687, 7
        %v690 = vshll.u32 %v584, 16
        %v692 = vor.u32 %v689, %v690
        %v694 = vshrl.u32 %v585, 16
        %v696 = vrot.slane %v694, 7
        %v697 = vshll.u32 %v585, 16
        %v699 = vor.u32 %v696, %v697
        %v701 = vshrl.u32 %v586, 16
        %v703 = vrot.slane %v701, 7
        %v704 = vshll.u32 %v586, 16
        %v706 = vor.u32 %v703, %v704
        %v708 = vshrl.u32 %v587, 16
        %v710 = vrot.slane %v708, 7
        %v711 = vshll.u32 %v587, 16
        %v713 = vor.u32 %v710, %v711
        %vm732 = vcmask 1040384
        %vm733 = vsmask.f32 256
        %vm734 = vmand %vm732, %vm733
        %v735 = vsel %vm734, 0, %v594
        %v736 = vsel %vm734, 0, %v601
        %v737 = vsel %vm734, 0, %v608
        %v738 = vsel %vm734, 0, %v615
        %v739 = vsel %vm734, 0, %v622
        %v740 = vsel %vm734, 0, %v629
        %v741 = vsel %vm734, 0, %v636
        %v742 = vsel %vm734, 0, %v643
        %v743 = vsel %vm734, 0, %v650
        %v744 = vsel %vm734, 0, %v657
        %v745 = vsel %vm734, 0, %v664
        %v746 = vsel %vm734, 0, %v671
        %v747 = vsel %vm734, 0, %v678
        %v748 = vsel %vm734, 0, %v685
        %v749 = vsel %vm734, 0, %v692
        %v750 = vsel %vm734, 0, %v699
        %v751 = vsel %vm734, 0, %v706
        %v752 = vsel %vm734, 0, %v713
        %v753 = vrot.slane %v592, 1
        %v754 = vor.u32 %v589, %v753
        %v755 = vrot.slane %v599, 1
        %v756 = vor.u32 %v596, %v755
        %v757 = vrot.slane %v606, 1
        %v758 = vor.u32 %v603, %v757
        %v759 = vrot.slane %v613, 1
        %v760 = vor.u32 %v610, %v759
        %v761 = vrot.slane %v620, 1
        %v762 = vor.u32 %v617, %v761
        %v763 = vrot.slane %v627, 1
        %v764 = vor.u32 %v624, %v763
        %v765 = vrot.slane %v634, 1
        %v766 = vor.u32 %v631, %v765
        %v767 = vrot.slane %v641, 1
        %v768 = vor.u32 %v638, %v767
        %v769 = vrot.slane %v648, 1
        %v770 = vor.u32 %v645, %v769
        %v771 = vrot.slane %v655, 1
        %v772 = vor.u32 %v652, %v771
        %v773 = vrot.slane %v662, 1
        %v774 = vor.u32 %v659, %v773
        %v775 = vrot.slane %v669, 1
        %v776 = vor.u32 %v666, %v775
        %v777 = vrot.slane %v676, 1
        %v778 = vor.u32 %v673, %v777
        %v779 = vrot.slane %v683, 1
        %v780 = vor.u32 %v680, %v779
        %v781 = vrot.slane %v690, 1
        %v782 = vor.u32 %v687, %v781
        %v783 = vrot.slane %v697, 1
        %v784 = vor.u32 %v694, %v783
        %v785 = vrot.slane %v704, 1
        %v786 = vor.u32 %v701, %v785
        %v787 = vrot.slane %v711, 1
        %v788 = vor.u32 %v708, %v787
        %vm807 = vcmask 1047552
        %vm808 = vsmask.f32 7424
        %vm809 = vmand %vm807, %vm808
        %v810 = vsel %vm809, %v754, 0
        %v811 = vsel %vm809, %v756, 0
        %v812 = vsel %vm809, %v758, 0
        %v813 = vsel %vm809, %v760, 0
        %v814 = vsel %vm809, %v762, 0
        %v815 = vsel %vm809, %v764, 0
        %v816 = vsel %vm809, %v766, 0
        %v817 = vsel %vm809, %v768, 0
        %v818 = vsel %vm809, %v770, 0
        %v819 = vsel %vm809, %v772, 0
        %v820 = vsel %vm809, %v774, 0
        %v821 = vsel %vm809, %v776, 0
        %v822 = vsel %vm809, %v778, 0
        %v823 = vsel %vm809, %v780, 0
        %v824 = vsel %vm809, %v782, 0
        %v825 = vsel %vm809, %v784, 0
        %v826 = vsel %vm809, %v786, 0
        %v827 = vsel %vm809, %v788, 0
        %v846 = vld [vmem:[#allocation7] sm:$0xf]
        %v847 = vld [vmem:[#allocation7 + $0x4] sm:$0xf]
        %v848 = vld [vmem:[#allocation7 + $0x8] sm:$0xf]
        %v849 = vld [vmem:[#allocation7 + $0xc] sm:$0xf]
        %v850 = vld [vmem:[#allocation7 + $0x10] sm:$0xf]
        %v851 = vld [vmem:[#allocation7 + $0x14] sm:$0xf]
        %v852 = vld [vmem:[#allocation7 + $0x18] sm:$0xf]
        %v853 = vld [vmem:[#allocation7 + $0x1c] sm:$0xf]
        %v854 = vld [vmem:[#allocation7 + $0x20] sm:$0xf]
        %v855 = vld [vmem:[#allocation7 + $0x24] sm:$0xf]
        %v856 = vld [vmem:[#allocation7 + $0x28] sm:$0xf]
        %v857 = vld [vmem:[#allocation7 + $0x2c] sm:$0xf]
        %v858 = vld [vmem:[#allocation7 + $0x30] sm:$0xf]
        %v859 = vld [vmem:[#allocation7 + $0x34] sm:$0xf]
        %v860 = vld [vmem:[#allocation7 + $0x38] sm:$0xf]
        %v861 = vld [vmem:[#allocation7 + $0x3c] sm:$0xf]
        %v862 = vld [vmem:[#allocation7 + $0x40] sm:$0xf]
        %v863 = vld [vmem:[#allocation7 + $0x44] sm:$0xf]
        %v864 = vld [vmem:[#allocation7 + $0x48] sm:$0xf]
        %v865 = vld [vmem:[#allocation7 + $0x4c] sm:$0xf]
        %v866 = vld [vmem:[#allocation7 + $0x50] sm:$0xf]
        %v867 = vld [vmem:[#allocation7 + $0x54] sm:$0xf]
        %v868 = vld [vmem:[#allocation7 + $0x58] sm:$0xf]
        %v869 = vld [vmem:[#allocation7 + $0x5c] sm:$0xf]
        %v870 = vld [vmem:[#allocation7 + $0x60] sm:$0xf]
        %v871 = vld [vmem:[#allocation7 + $0x64] sm:$0xf]
        %v872 = vld [vmem:[#allocation7 + $0x68] sm:$0xf]
        %v873 = vld [vmem:[#allocation7 + $0x6c] sm:$0xf]
        %v874 = vld [vmem:[#allocation7 + $0x70] sm:$0xf]
        %v875 = vld [vmem:[#allocation7 + $0x74] sm:$0xf]
        %v876 = vld [vmem:[#allocation7 + $0x78] sm:$0xf]
        %v877 = vld [vmem:[#allocation7 + $0x7c] sm:$0xf]
        %v878 = vld [vmem:[#allocation7 + $0x80] sm:$0xf]
        %v879 = vld [vmem:[#allocation7 + $0x84] sm:$0xf]
        %v880 = vld [vmem:[#allocation7 + $0x88] sm:$0xf]
        %v881 = vld [vmem:[#allocation7 + $0x8c] sm:$0xf]
        %v882 = vld [vmem:[#allocation7 + $0x90] sm:$0xf]
        %v883 = vld [vmem:[#allocation7 + $0x94] sm:$0xf]
        %v884 = vld [vmem:[#allocation7 + $0x98] sm:$0xf]
        %v885 = vld [vmem:[#allocation7 + $0x9c] sm:$0xf]
        %v886 = vld [vmem:[#allocation7 + $0xa0] sm:$0xf]
        %v887 = vld [vmem:[#allocation7 + $0xa4] sm:$0xf]
        %v888 = vld [vmem:[#allocation7 + $0xa8] sm:$0xf]
        %v889 = vld [vmem:[#allocation7 + $0xac] sm:$0xf]
        %v890 = vld [vmem:[#allocation7 + $0xb0] sm:$0xf]
        %v891 = vld [vmem:[#allocation7 + $0xb4] sm:$0xf]
        %v892 = vld [vmem:[#allocation7 + $0xb8] sm:$0xf]
        %v893 = vld [vmem:[#allocation7 + $0xbc] sm:$0xf]
        %s894 = scalar_lea.vmem [#allocation7], 192
        %v895 = vld [vmem:[%s894] sm:$0xf]
        %v896 = vld [vmem:[%s894 + $0x4] sm:$0xf]
        %v897 = vld [vmem:[%s894 + $0x8] sm:$0xf]
        %v898 = vld [vmem:[%s894 + $0xc] sm:$0xf]
        %v899 = vld [vmem:[%s894 + $0x10] sm:$0xf]
        %v900 = vld [vmem:[%s894 + $0x14] sm:$0xf]
        %v901 = vld [vmem:[%s894 + $0x18] sm:$0xf]
        %v902 = vld [vmem:[%s894 + $0x1c] sm:$0xf]
        %v903 = vld [vmem:[%s894 + $0x20] sm:$0xf]
        %v904 = vld [vmem:[%s894 + $0x24] sm:$0xf]
        %v905 = vld [vmem:[%s894 + $0x28] sm:$0xf]
        %v906 = vld [vmem:[%s894 + $0x2c] sm:$0xf]
        %v907 = vld [vmem:[%s894 + $0x30] sm:$0xf]
        %v908 = vld [vmem:[%s894 + $0x34] sm:$0xf]
        %v909 = vld [vmem:[%s894 + $0x38] sm:$0xf]
        %v910 = vld [vmem:[%s894 + $0x3c] sm:$0xf]
        %v911 = vld [vmem:[%s894 + $0x40] sm:$0xf]
        %v912 = vld [vmem:[%s894 + $0x44] sm:$0xf]
        %v913 = vld [vmem:[%s894 + $0x48] sm:$0xf]
        %v914 = vld [vmem:[%s894 + $0x4c] sm:$0xf]
        %v915 = vld [vmem:[%s894 + $0x50] sm:$0xf]
        %v916 = vld [vmem:[%s894 + $0x54] sm:$0xf]
        %v917 = vld [vmem:[%s894 + $0x58] sm:$0xf]
        %v918 = vld [vmem:[%s894 + $0x5c] sm:$0xf]
        %v919 = vld [vmem:[%s894 + $0x60] sm:$0xf]
        %v920 = vld [vmem:[%s894 + $0x64] sm:$0xf]
        %v921 = vld [vmem:[%s894 + $0x68] sm:$0xf]
        %v922 = vld [vmem:[%s894 + $0x6c] sm:$0xf]
        %v923 = vld [vmem:[%s894 + $0x70] sm:$0xf]
        %v924 = vld [vmem:[%s894 + $0x74] sm:$0xf]
        %v925 = vld [vmem:[%s894 + $0x78] sm:$0xf]
        %v926 = vld [vmem:[%s894 + $0x7c] sm:$0xf]
        %v927 = vld [vmem:[%s894 + $0x80] sm:$0xf]
        %v928 = vld [vmem:[%s894 + $0x84] sm:$0xf]
        %v929 = vld [vmem:[%s894 + $0x88] sm:$0xf]
        %v930 = vld [vmem:[%s894 + $0x8c] sm:$0xf]
        %v931 = vld [vmem:[%s894 + $0x90] sm:$0xf]
        %v932 = vld [vmem:[%s894 + $0x94] sm:$0xf]
        %v933 = vld [vmem:[%s894 + $0x98] sm:$0xf]
        %v934 = vld [vmem:[%s894 + $0x9c] sm:$0xf]
        %v935 = vld [vmem:[%s894 + $0xa0] sm:$0xf]
        %v936 = vld [vmem:[%s894 + $0xa4] sm:$0xf]
        %v937 = vld [vmem:[%s894 + $0xa8] sm:$0xf]
        %v938 = vld [vmem:[%s894 + $0xac] sm:$0xf]
        %v939 = vld [vmem:[%s894 + $0xb0] sm:$0xf]
        %v940 = vld [vmem:[%s894 + $0xb4] sm:$0xf]
        %v941 = vld [vmem:[%s894 + $0xb8] sm:$0xf]
        %v942 = vld [vmem:[%s894 + $0xbc] sm:$0xf]
        %v991 = vunpack.c.l.b16 %v895
        %v992 = vunpack.c.l.b16 %v896
        %v993 = vunpack.c.l.b16 %v897
        %v994 = vunpack.c.l.b16 %v898
        %v995 = vunpack.c.l.b16 %v899
        %v996 = vunpack.c.l.b16 %v900
        %v997 = vunpack.c.l.b16 %v901
        %v998 = vunpack.c.l.b16 %v902
        %v999 = vunpack.c.l.b16 %v903
        %v1000 = vunpack.c.l.b16 %v904
        %v1001 = vunpack.c.l.b16 %v905
        %v1002 = vunpack.c.l.b16 %v906
        %v1003 = vunpack.c.l.b16 %v907
        %v1004 = vunpack.c.l.b16 %v908
        %v1005 = vunpack.c.l.b16 %v909
        %v1006 = vunpack.c.l.b16 %v910
        %v1007 = vunpack.c.l.b16 %v911
        %v1008 = vunpack.c.l.b16 %v912
        %v1009 = vunpack.c.l.b16 %v913
        %v1010 = vunpack.c.l.b16 %v914
        %v1011 = vunpack.c.l.b16 %v915
        %v1012 = vunpack.c.l.b16 %v916
        %v1013 = vunpack.c.l.b16 %v917
        %v1014 = vunpack.c.l.b16 %v918
        %v1015 = vunpack.c.l.b16 %v919
        %v1016 = vunpack.c.l.b16 %v920
        %v1017 = vunpack.c.l.b16 %v921
        %v1018 = vunpack.c.l.b16 %v922
        %v1019 = vunpack.c.l.b16 %v923
        %v1020 = vunpack.c.l.b16 %v924
        %v1021 = vunpack.c.l.b16 %v925
        %v1022 = vunpack.c.l.b16 %v926
        %v1023 = vunpack.c.l.b16 %v927
        %v1024 = vunpack.c.l.b16 %v928
        %v1025 = vunpack.c.l.b16 %v929
        %v1026 = vunpack.c.l.b16 %v930
        %v1027 = vunpack.c.l.b16 %v931
        %v1028 = vunpack.c.l.b16 %v932
        %v1029 = vunpack.c.l.b16 %v933
        %v1030 = vunpack.c.l.b16 %v934
        %v1031 = vunpack.c.l.b16 %v935
        %v1032 = vunpack.c.l.b16 %v936
        %v1033 = vunpack.c.l.b16 %v937
        %v1034 = vunpack.c.l.b16 %v938
        %v1035 = vunpack.c.l.b16 %v939
        %v1036 = vunpack.c.l.b16 %v940
        %v1037 = vunpack.c.l.b16 %v941
        %v1038 = vunpack.c.l.b16 %v942
        %v1039 = vpack.c.b16 %v992, %v991
        %v1040 = vpack.c.b16 %v994, %v993
        %v1041 = vpack.c.b16 %v996, %v995
        %v1042 = vpack.c.b16 %v998, %v997
        %v1043 = vpack.c.b16 %v1000, %v999
        %v1044 = vpack.c.b16 %v1002, %v1001
        %v1045 = vpack.c.b16 %v1004, %v1003
        %v1046 = vpack.c.b16 %v1006, %v1005
        %v1047 = vpack.c.b16 %v1008, %v1007
        %v1048 = vpack.c.b16 %v1010, %v1009
        %v1049 = vpack.c.b16 %v1012, %v1011
        %v1050 = vpack.c.b16 %v1014, %v1013
        %v1051 = vpack.c.b16 %v1016, %v1015
        %v1052 = vpack.c.b16 %v1018, %v1017
        %v1053 = vpack.c.b16 %v1020, %v1019
        %v1054 = vpack.c.b16 %v1022, %v1021
        %v1055 = vpack.c.b16 %v1024, %v1023
        %v1056 = vpack.c.b16 %v1026, %v1025
        %v1057 = vpack.c.b16 %v1028, %v1027
        %v1058 = vpack.c.b16 %v1030, %v1029
        %v1059 = vpack.c.b16 %v1032, %v1031
        %v1060 = vpack.c.b16 %v1034, %v1033
        %v1061 = vpack.c.b16 %v1036, %v1035
        %v1062 = vpack.c.b16 %v1038, %v1037
        %1087 = vmatprep.subr.bf16.mxu0 0
        %1088 = vmatpush1.bf16.msra.mxu0 %v1039
        %1089 = vmatprep.subr.bf16.mxu0 0
        %1090 = vmatpush1.bf16.msra.mxu0 %v1040
        %1091 = vmatprep.subr.bf16.mxu0 0
        %1092 = vmatpush1.bf16.msra.mxu0 %v1041
        %1093 = vmatprep.subr.bf16.mxu0 0
        %1094 = vmatpush1.bf16.msra.mxu0 %v1042
        %1095 = vmatprep.subr.bf16.mxu0 0
        %1096 = vmatpush1.bf16.msra.mxu0 %v1043
        %1097 = vmatprep.subr.bf16.mxu0 0
        %1098 = vmatpush1.bf16.msra.mxu0 %v1044
        %1099 = vmatprep.subr.bf16.mxu0 0
        %1100 = vmatpush1.bf16.msra.mxu0 %v1045
        %1101 = vmatprep.subr.bf16.mxu0 0
        %1102 = vmatpush1.bf16.msra.mxu0 %v1046
        %1103 = vmatprep.subr.bf16.mxu0 0
        %1104 = vmatpush1.bf16.msra.mxu0 %v1047
        %1105 = vmatprep.subr.bf16.mxu0 0
        %1106 = vmatpush1.bf16.msra.mxu0 %v1048
        %1107 = vmatprep.subr.bf16.mxu0 0
        %1108 = vmatpush1.bf16.msra.mxu0 %v1049
        %1109 = vmatprep.subr.bf16.mxu0 0
        %1110 = vmatpush1.bf16.msra.mxu0 %v1050
        %1111 = vmatprep.subr.bf16.mxu0 0
        %1112 = vmatpush1.bf16.msra.mxu0 %v1051
        %1113 = vmatprep.subr.bf16.mxu0 0
        %1114 = vmatpush1.bf16.msra.mxu0 %v1052
        %1115 = vmatprep.subr.bf16.mxu0 0
        %1116 = vmatpush1.bf16.msra.mxu0 %v1053
        %1117 = vmatprep.subr.bf16.mxu0 0
        %1118 = vmatpush1.bf16.msra.mxu0 %v1054
        %1119 = vmatprep.mubr.bf16.mxu0 %v571
        %1120 = vmatmul.mubr.bf16.gmra.mrb[0].mxu0 %v736
        %v1121 = vpop.f32.mrb[0].mxu0
        %v1122 = vadd.f32 0.0, %v1121
        %v1123 = vpop.f32.mrb[0].mxu0
        %v1124 = vpop.f32.mrb[0].mxu0
        %v1125 = vadd.f32 0.0, %v1124
        %v1126 = vpop.f32.mrb[0].mxu0
        %1127 = vmatprep.mubr.bf16.mxu0 %v572
        %1128 = vmatmul.mubr.bf16.gmra.mrb[0].mxu0 %v737
        %v1129 = vpop.f32.mrb[0].mxu0
        %v1130 = vadd.f32 0.0, %v1129
        %v1131 = vpop.f32.mrb[0].mxu0
        %v1132 = vpop.f32.mrb[0].mxu0
        %v1133 = vadd.f32 0.0, %v1132
        %v1134 = vpop.f32.mrb[0].mxu0
        %1135 = vmatprep.mubr.bf16.mxu0 %v573
        %1136 = vmatmul.mubr.bf16.gmra.mrb[0].mxu0 %v738
        %v1137 = vpop.f32.mrb[0].mxu0
        %v1138 = vadd.f32 0.0, %v1137
        %v1139 = vpop.f32.mrb[0].mxu0
        %v1140 = vpop.f32.mrb[0].mxu0
        %v1141 = vadd.f32 0.0, %v1140
        %v1142 = vpop.f32.mrb[0].mxu0
        %1143 = vmatprep.mubr.bf16.mxu0 %v574
        %1144 = vmatmul.mubr.bf16.gmra.mrb[0].mxu0 %v739
        %v1145 = vpop.f32.mrb[0].mxu0
        %v1146 = vadd.f32 0.0, %v1145
        %v1147 = vpop.f32.mrb[0].mxu0
        %v1148 = vpop.f32.mrb[0].mxu0
        %v1149 = vadd.f32 0.0, %v1148
        %v1150 = vpop.f32.mrb[0].mxu0
        %1151 = vmatprep.mubr.bf16.mxu0 %v575
        %1152 = vmatmul.mubr.bf16.gmra.mrb[0].mxu0 %v740
        %v1153 = vpop.f32.mrb[0].mxu0
        %v1154 = vadd.f32 0.0, %v1153
        %v1155 = vpop.f32.mrb[0].mxu0
        %v1156 = vpop.f32.mrb[0].mxu0
        %v1157 = vadd.f32 0.0, %v1156
        %v1158 = vpop.f32.mrb[0].mxu0
        %1159 = vmatprep.mubr.bf16.mxu0 %v576
        %1160 = vmatmul.mubr.bf16.gmra.mrb[0].mxu0 %v741
        %v1161 = vpop.f32.mrb[0].mxu0
        %v1162 = vadd.f32 0.0, %v1161
        %v1163 = vpop.f32.mrb[0].mxu0
        %v1164 = vpop.f32.mrb[0].mxu0
        %v1165 = vadd.f32 0.0, %v1164
        %v1166 = vpop.f32.mrb[0].mxu0
        %1167 = vmatprep.mubr.bf16.mxu0 %v577
        %1168 = vmatmul.mubr.bf16.gmra.mrb[0].mxu0 %v742
        %v1169 = vpop.f32.mrb[0].mxu0
        %v1170 = vadd.f32 0.0, %v1169
        %v1171 = vpop.f32.mrb[0].mxu0
        %v1172 = vpop.f32.mrb[0].mxu0
        %v1173 = vadd.f32 0.0, %v1172
        %v1174 = vpop.f32.mrb[0].mxu0
        %1175 = vmatprep.mubr.bf16.mxu0 %v578
        %1176 = vmatmul.mubr.bf16.gmra.mrb[0].mxu0 %v743
        %v1177 = vpop.f32.mrb[0].mxu0
        %v1178 = vadd.f32 0.0, %v1177
        %v1179 = vpop.f32.mrb[0].mxu0
        %v1180 = vpop.f32.mrb[0].mxu0
        %v1181 = vadd.f32 0.0, %v1180
        %v1182 = vpop.f32.mrb[0].mxu0
        %1183 = vmatprep.mubr.bf16.mxu0 %v579
        %1184 = vmatmul.mubr.bf16.gmra.mrb[0].mxu0 %v744
        %v1185 = vpop.f32.mrb[0].mxu0
        %v1186 = vadd.f32 0.0, %v1185
        %v1187 = vpop.f32.mrb[0].mxu0
        %v1188 = vpop.f32.mrb[0].mxu0
        %v1189 = vadd.f32 0.0, %v1188
        %v1190 = vpop.f32.mrb[0].mxu0
        %1191 = vmatprep.mubr.bf16.mxu0 %v580
        %1192 = vmatmul.mubr.bf16.gmra.mrb[0].mxu0 %v745
        %v1193 = vpop.f32.mrb[0].mxu0
        %v1194 = vadd.f32 0.0, %v1193
        %v1195 = vpop.f32.mrb[0].mxu0
        %v1196 = vpop.f32.mrb[0].mxu0
        %v1197 = vadd.f32 0.0, %v1196
        %v1198 = vpop.f32.mrb[0].mxu0
        %1199 = vmatprep.mubr.bf16.mxu0 %v581
        %1200 = vmatmul.mubr.bf16.gmra.mrb[0].mxu0 %v746
        %v1201 = vpop.f32.mrb[0].mxu0
        %v1202 = vadd.f32 0.0, %v1201
        %v1203 = vpop.f32.mrb[0].mxu0
        %v1204 = vpop.f32.mrb[0].mxu0
        %v1205 = vadd.f32 0.0, %v1204
        %v1206 = vpop.f32.mrb[0].mxu0
        %1207 = vmatprep.mubr.bf16.mxu0 %v582
        %1208 = vmatmul.mubr.bf16.gmra.mrb[0].mxu0 %v747
        %v1209 = vpop.f32.mrb[0].mxu0
        %v1210 = vadd.f32 0.0, %v1209
        %v1211 = vpop.f32.mrb[0].mxu0
        %v1212 = vpop.f32.mrb[0].mxu0
        %v1213 = vadd.f32 0.0, %v1212
        %v1214 = vpop.f32.mrb[0].mxu0
        %1215 = vmatprep.mubr.bf16.mxu0 %v583
        %1216 = vmatmul.mubr.bf16.gmra.mrb[0].mxu0 %v748
        %v1217 = vpop.f32.mrb[0].mxu0
        %v1218 = vadd.f32 0.0, %v1217
        %v1219 = vpop.f32.mrb[0].mxu0
        %v1220 = vpop.f32.mrb[0].mxu0
        %v1221 = vadd.f32 0.0, %v1220
        %v1222 = vpop.f32.mrb[0].mxu0
        %1223 = vmatprep.mubr.bf16.mxu0 %v584
        %1224 = vmatmul.mubr.bf16.gmra.mrb[0].mxu0 %v749
        %v1225 = vpop.f32.mrb[0].mxu0
        %v1226 = vadd.f32 0.0, %v1225
        %v1227 = vpop.f32.mrb[0].mxu0
        %v1228 = vpop.f32.mrb[0].mxu0
        %v1229 = vadd.f32 0.0, %v1228
        %v1230 = vpop.f32.mrb[0].mxu0
        %1231 = vmatprep.mubr.bf16.mxu0 %v585
        %1232 = vmatmul.mubr.bf16.gmra.mrb[0].mxu0 %v750
        %v1233 = vpop.f32.mrb[0].mxu0
        %v1234 = vadd.f32 0.0, %v1233
        %v1235 = vpop.f32.mrb[0].mxu0
        %v1236 = vpop.f32.mrb[0].mxu0
        %v1237 = vadd.f32 0.0, %v1236
        %v1238 = vpop.f32.mrb[0].mxu0
        %1239 = vmatprep.mubr.bf16.mxu0 %v586
        %1240 = vmatmul.mubr.bf16.gmra.mrb[0].mxu0 %v751
        %v1241 = vpop.f32.mrb[0].mxu0
        %v1242 = vadd.f32 0.0, %v1241
        %v1243 = vpop.f32.mrb[0].mxu0
        %v1244 = vpop.f32.mrb[0].mxu0
        %v1245 = vadd.f32 0.0, %v1244
        %v1246 = vpop.f32.mrb[0].mxu0
        %1247 = vdwg.mxu0
        %1248 = vmatprep.subr.bf16.mxu0 0
        %1249 = vmatpush1.bf16.msra.mxu0 %v1055
        %1250 = vmatprep.subr.bf16.mxu0 0
        %1251 = vmatpush1.bf16.msra.mxu0 %v1056
        %1252 = vmatprep.subr.bf16.mxu0 0
        %1253 = vmatpush1.bf16.msra.mxu0 %v1057
        %1254 = vmatprep.subr.bf16.mxu0 0
        %1255 = vmatpush1.bf16.msra.mxu0 %v1058
        %1256 = vmatprep.subr.bf16.mxu0 0
        %1257 = vmatpush1.bf16.msra.mxu0 %v1059
        %1258 = vmatprep.subr.bf16.mxu0 0
        %1259 = vmatpush1.bf16.msra.mxu0 %v1060
        %1260 = vmatprep.subr.bf16.mxu0 0
        %1261 = vmatpush1.bf16.msra.mxu0 %v1061
        %1262 = vmatprep.subr.bf16.mxu0 0
        %1263 = vmatpush1.bf16.msra.mxu0 %v1062
        %1264 = vmatprep.subr.bf16.mxu0 0
        %1265 = vmatpush1.bf16.msra.mxu0 0
        %1266 = vmatprep.subr.bf16.mxu0 0
        %1267 = vmatpush1.bf16.msra.mxu0 0
        %1268 = vmatprep.subr.bf16.mxu0 0
        %1269 = vmatpush1.bf16.msra.mxu0 0
        %1270 = vmatprep.subr.bf16.mxu0 0
        %1271 = vmatpush1.bf16.msra.mxu0 0
        %1272 = vmatprep.subr.bf16.mxu0 0
        %1273 = vmatpush1.bf16.msra.mxu0 0
        %1274 = vmatprep.subr.bf16.mxu0 0
        %1275 = vmatpush1.bf16.msra.mxu0 0
        %1276 = vmatprep.subr.bf16.mxu0 0
        %1277 = vmatpush1.bf16.msra.mxu0 0
        %1278 = vmatprep.subr.bf16.mxu0 0
        %1279 = vmatpush1.bf16.msra.mxu0 0
        %1280 = vmatprep.mubr.bf16.mxu0 0
        %1281 = vmatmul.mubr.bf16.gmra.mrb[0].mxu0 %v811
        %v1282 = vpop.f32.mrb[0].mxu0
        %v1283 = vadd.f32 %v1122, %v1282
        %v1284 = vpop.f32.mrb[0].mxu0
        %v1285 = vpop.f32.mrb[0].mxu0
        %v1286 = vadd.f32 %v1125, %v1285
        %v1287 = vpop.f32.mrb[0].mxu0
        %1288 = vmatprep.mubr.bf16.mxu0 0
        %1289 = vmatmul.mubr.bf16.gmra.mrb[0].mxu0 %v812
        %v1290 = vpop.f32.mrb[0].mxu0
        %v1291 = vadd.f32 %v1130, %v1290
        %v1292 = vpop.f32.mrb[0].mxu0
        %v1293 = vpop.f32.mrb[0].mxu0
        %v1294 = vadd.f32 %v1133, %v1293
        %v1295 = vpop.f32.mrb[0].mxu0
        %1296 = vmatprep.mubr.bf16.mxu0 0
        %1297 = vmatmul.mubr.bf16.gmra.mrb[0].mxu0 %v813
        %v1298 = vpop.f32.mrb[0].mxu0
        %v1299 = vadd.f32 %v1138, %v1298
        %v1300 = vpop.f32.mrb[0].mxu0
        %v1301 = vpop.f32.mrb[0].mxu0
        %v1302 = vadd.f32 %v1141, %v1301
        %v1303 = vpop.f32.mrb[0].mxu0
        %1304 = vmatprep.mubr.bf16.mxu0 0
        %1305 = vmatmul.mubr.bf16.gmra.mrb[0].mxu0 %v814
        %v1306 = vpop.f32.mrb[0].mxu0
        %v1307 = vadd.f32 %v1146, %v1306
        %v1308 = vpop.f32.mrb[0].mxu0
        %v1309 = vpop.f32.mrb[0].mxu0
        %v1310 = vadd.f32 %v1149, %v1309
        %v1311 = vpop.f32.mrb[0].mxu0
        %1312 = vmatprep.mubr.bf16.mxu0 0
        %1313 = vmatmul.mubr.bf16.gmra.mrb[0].mxu0 %v815
        %v1314 = vpop.f32.mrb[0].mxu0
        %v1315 = vadd.f32 %v1154, %v1314
        %v1316 = vpop.f32.mrb[0].mxu0
        %v1317 = vpop.f32.mrb[0].mxu0
        %v1318 = vadd.f32 %v1157, %v1317
        %v1319 = vpop.f32.mrb[0].mxu0
        %1320 = vmatprep.mubr.bf16.mxu0 0
        %1321 = vmatmul.mubr.bf16.gmra.mrb[0].mxu0 %v816
        %v1322 = vpop.f32.mrb[0].mxu0
        %v1323 = vadd.f32 %v1162, %v1322
        %v1324 = vpop.f32.mrb[0].mxu0
        %v1325 = vpop.f32.mrb[0].mxu0
        %v1326 = vadd.f32 %v1165, %v1325
        %v1327 = vpop.f32.mrb[0].mxu0
        %1328 = vmatprep.mubr.bf16.mxu0 0
        %1329 = vmatmul.mubr.bf16.gmra.mrb[0].mxu0 %v817
        %v1330 = vpop.f32.mrb[0].mxu0
        %v1331 = vadd.f32 %v1170, %v1330
        %v1332 = vpop.f32.mrb[0].mxu0
        %v1333 = vpop.f32.mrb[0].mxu0
        %v1334 = vadd.f32 %v1173, %v1333
        %v1335 = vpop.f32.mrb[0].mxu0
        %1336 = vmatprep.mubr.bf16.mxu0 0
        %1337 = vmatmul.mubr.bf16.gmra.mrb[0].mxu0 %v818
        %v1338 = vpop.f32.mrb[0].mxu0
        %v1339 = vadd.f32 %v1178, %v1338
        %v1340 = vpop.f32.mrb[0].mxu0
        %v1341 = vpop.f32.mrb[0].mxu0
        %v1342 = vadd.f32 %v1181, %v1341
        %v1343 = vpop.f32.mrb[0].mxu0
        %1344 = vmatprep.mubr.bf16.mxu0 0
        %1345 = vmatmul.mubr.bf16.gmra.mrb[0].mxu0 %v819
        %v1346 = vpop.f32.mrb[0].mxu0
        %v1347 = vadd.f32 %v1186, %v1346
        %v1348 = vpop.f32.mrb[0].mxu0
        %v1349 = vpop.f32.mrb[0].mxu0
        %v1350 = vadd.f32 %v1189, %v1349
        %v1351 = vpop.f32.mrb[0].mxu0
        %1352 = vmatprep.mubr.bf16.mxu0 0
        %1353 = vmatmul.mubr.bf16.gmra.mrb[0].mxu0 %v820
        %v1354 = vpop.f32.mrb[0].mxu0
        %v1355 = vadd.f32 %v1194, %v1354
        %v1356 = vpop.f32.mrb[0].mxu0
        %v1357 = vpop.f32.mrb[0].mxu0
        %v1358 = vadd.f32 %v1197, %v1357
        %v1359 = vpop.f32.mrb[0].mxu0
        %1360 = vmatprep.mubr.bf16.mxu0 0
        %1361 = vmatmul.mubr.bf16.gmra.mrb[0].mxu0 %v821
        %v1362 = vpop.f32.mrb[0].mxu0
        %v1363 = vadd.f32 %v1202, %v1362
        %v1364 = vpop.f32.mrb[0].mxu0
        %v1365 = vpop.f32.mrb[0].mxu0
        %v1366 = vadd.f32 %v1205, %v1365
        %v1367 = vpop.f32.mrb[0].mxu0
        %1368 = vmatprep.mubr.bf16.mxu0 0
        %1369 = vmatmul.mubr.bf16.gmra.mrb[0].mxu0 %v822
        %v1370 = vpop.f32.mrb[0].mxu0
        %v1371 = vadd.f32 %v1210, %v1370
        %v1372 = vpop.f32.mrb[0].mxu0
        %v1373 = vpop.f32.mrb[0].mxu0
        %v1374 = vadd.f32 %v1213, %v1373
        %v1375 = vpop.f32.mrb[0].mxu0
        %1376 = vmatprep.mubr.bf16.mxu0 0
        %1377 = vmatmul.mubr.bf16.gmra.mrb[0].mxu0 %v823
        %v1378 = vpop.f32.mrb[0].mxu0
        %v1379 = vadd.f32 %v1218, %v1378
        %v1380 = vpop.f32.mrb[0].mxu0
        %v1381 = vpop.f32.mrb[0].mxu0
        %v1382 = vadd.f32 %v1221, %v1381
        %v1383 = vpop.f32.mrb[0].mxu0
        %1384 = vmatprep.mubr.bf16.mxu0 0
        %1385 = vmatmul.mubr.bf16.gmra.mrb[0].mxu0 %v824
        %v1386 = vpop.f32.mrb[0].mxu0
        %v1387 = vadd.f32 %v1226, %v1386
        %v1388 = vpop.f32.mrb[0].mxu0
        %v1389 = vpop.f32.mrb[0].mxu0
        %v1390 = vadd.f32 %v1229, %v1389
        %v1391 = vpop.f32.mrb[0].mxu0
        %1392 = vmatprep.mubr.bf16.mxu0 0
        %1393 = vmatmul.mubr.bf16.gmra.mrb[0].mxu0 %v825
        %v1394 = vpop.f32.mrb[0].mxu0
        %v1395 = vadd.f32 %v1234, %v1394
        %v1396 = vpop.f32.mrb[0].mxu0
        %v1397 = vpop.f32.mrb[0].mxu0
        %v1398 = vadd.f32 %v1237, %v1397
        %v1399 = vpop.f32.mrb[0].mxu0
        %1400 = vmatprep.mubr.bf16.mxu0 0
        %1401 = vmatmul.mubr.bf16.gmra.mrb[0].mxu0 %v826
        %v1402 = vpop.f32.mrb[0].mxu0
        %v1403 = vadd.f32 %v1242, %v1402
        %v1404 = vpop.f32.mrb[0].mxu0
        %v1405 = vpop.f32.mrb[0].mxu0
        %v1406 = vadd.f32 %v1245, %v1405
        %v1407 = vpop.f32.mrb[0].mxu0
        %1408 = vdwg.mxu0
        %v1457 = vunpack.c.l.b16 %v846
        %v1458 = vunpack.c.l.b16 %v847
        %v1459 = vunpack.c.l.b16 %v848
        %v1460 = vunpack.c.l.b16 %v849
        %v1461 = vunpack.c.l.b16 %v850
        %v1462 = vunpack.c.l.b16 %v851
        %v1463 = vunpack.c.l.b16 %v852
        %v1464 = vunpack.c.l.b16 %v853
        %v1465 = vunpack.c.l.b16 %v854
        %v1466 = vunpack.c.l.b16 %v855
        %v1467 = vunpack.c.l.b16 %v856
        %v1468 = vunpack.c.l.b16 %v857
        %v1469 = vunpack.c.l.b16 %v858
        %v1470 = vunpack.c.l.b16 %v859
        %v1471 = vunpack.c.l.b16 %v860
        %v1472 = vunpack.c.l.b16 %v861
        %v1473 = vunpack.c.l.b16 %v862
        %v1474 = vunpack.c.l.b16 %v863
        %v1475 = vunpack.c.l.b16 %v864
        %v1476 = vunpack.c.l.b16 %v865
        %v1477 = vunpack.c.l.b16 %v866
        %v1478 = vunpack.c.l.b16 %v867
        %v1479 = vunpack.c.l.b16 %v868
        %v1480 = vunpack.c.l.b16 %v869
        %v1481 = vunpack.c.l.b16 %v870
        %v1482 = vunpack.c.l.b16 %v871
        %v1483 = vunpack.c.l.b16 %v872
        %v1484 = vunpack.c.l.b16 %v873
        %v1485 = vunpack.c.l.b16 %v874
        %v1486 = vunpack.c.l.b16 %v875
        %v1487 = vunpack.c.l.b16 %v876
        %v1488 = vunpack.c.l.b16 %v877
        %v1489 = vunpack.c.l.b16 %v878
        %v1490 = vunpack.c.l.b16 %v879
        %v1491 = vunpack.c.l.b16 %v880
        %v1492 = vunpack.c.l.b16 %v881
        %v1493 = vunpack.c.l.b16 %v882
        %v1494 = vunpack.c.l.b16 %v883
        %v1495 = vunpack.c.l.b16 %v884
        %v1496 = vunpack.c.l.b16 %v885
        %v1497 = vunpack.c.l.b16 %v886
        %v1498 = vunpack.c.l.b16 %v887
        %v1499 = vunpack.c.l.b16 %v888
        %v1500 = vunpack.c.l.b16 %v889
        %v1501 = vunpack.c.l.b16 %v890
        %v1502 = vunpack.c.l.b16 %v891
        %v1503 = vunpack.c.l.b16 %v892
        %v1504 = vunpack.c.l.b16 %v893
        %v1505 = vpack.c.b16 %v1458, %v1457
        %v1506 = vpack.c.b16 %v1460, %v1459
        %v1507 = vpack.c.b16 %v1462, %v1461
        %v1508 = vpack.c.b16 %v1464, %v1463
        %v1509 = vpack.c.b16 %v1466, %v1465
        %v1510 = vpack.c.b16 %v1468, %v1467
        %v1511 = vpack.c.b16 %v1470, %v1469
        %v1512 = vpack.c.b16 %v1472, %v1471
        %v1513 = vpack.c.b16 %v1474, %v1473
        %v1514 = vpack.c.b16 %v1476, %v1475
        %v1515 = vpack.c.b16 %v1478, %v1477
        %v1516 = vpack.c.b16 %v1480, %v1479
        %v1517 = vpack.c.b16 %v1482, %v1481
        %v1518 = vpack.c.b16 %v1484, %v1483
        %v1519 = vpack.c.b16 %v1486, %v1485
        %v1520 = vpack.c.b16 %v1488, %v1487
        %v1521 = vpack.c.b16 %v1490, %v1489
        %v1522 = vpack.c.b16 %v1492, %v1491
        %v1523 = vpack.c.b16 %v1494, %v1493
        %v1524 = vpack.c.b16 %v1496, %v1495
        %v1525 = vpack.c.b16 %v1498, %v1497
        %v1526 = vpack.c.b16 %v1500, %v1499
        %v1527 = vpack.c.b16 %v1502, %v1501
        %v1528 = vpack.c.b16 %v1504, %v1503
        %1553 = vmatprep.subr.bf16.mxu0 0
        %1554 = vmatpush1.bf16.msra.mxu0 %v1505
        %1555 = vmatprep.subr.bf16.mxu0 0
        %1556 = vmatpush1.bf16.msra.mxu0 %v1506
        %1557 = vmatprep.subr.bf16.mxu0 0
        %1558 = vmatpush1.bf16.msra.mxu0 %v1507
        %1559 = vmatprep.subr.bf16.mxu0 0
        %1560 = vmatpush1.bf16.msra.mxu0 %v1508
        %1561 = vmatprep.subr.bf16.mxu0 0
        %1562 = vmatpush1.bf16.msra.mxu0 %v1509
        %1563 = vmatprep.subr.bf16.mxu0 0
        %1564 = vmatpush1.bf16.msra.mxu0 %v1510
        %1565 = vmatprep.subr.bf16.mxu0 0
        %1566 = vmatpush1.bf16.msra.mxu0 %v1511
        %1567 = vmatprep.subr.bf16.mxu0 0
        %1568 = vmatpush1.bf16.msra.mxu0 %v1512
        %1569 = vmatprep.subr.bf16.mxu0 0
        %1570 = vmatpush1.bf16.msra.mxu0 %v1513
        %1571 = vmatprep.subr.bf16.mxu0 0
        %1572 = vmatpush1.bf16.msra.mxu0 %v1514
        %1573 = vmatprep.subr.bf16.mxu0 0
        %1574 = vmatpush1.bf16.msra.mxu0 %v1515
        %1575 = vmatprep.subr.bf16.mxu0 0
        %1576 = vmatpush1.bf16.msra.mxu0 %v1516
        %1577 = vmatprep.subr.bf16.mxu0 0
        %1578 = vmatpush1.bf16.msra.mxu0 %v1517
        %1579 = vmatprep.subr.bf16.mxu0 0
        %1580 = vmatpush1.bf16.msra.mxu0 %v1518
        %1581 = vmatprep.subr.bf16.mxu0 0
        %1582 = vmatpush1.bf16.msra.mxu0 %v1519
        %1583 = vmatprep.subr.bf16.mxu0 0
        %1584 = vmatpush1.bf16.msra.mxu0 %v1520
        %1585 = vmatprep.mubr.bf16.mxu0 %v570
        %1586 = vmatmul.mubr.bf16.gmra.mrb[0].mxu0 %v735
        %v1587 = vpop.f32.mrb[0].mxu0
        %v1588 = vadd.f32 %v1283, %v1587
        %v1589 = vpop.f32.mrb[0].mxu0
        %v1590 = vpop.f32.mrb[0].mxu0
        %v1591 = vadd.f32 %v1286, %v1590
        %v1592 = vpop.f32.mrb[0].mxu0
        %1593 = vmatprep.mubr.bf16.mxu0 %v571
        %1594 = vmatmul.mubr.bf16.gmra.mrb[0].mxu0 %v736
        %v1595 = vpop.f32.mrb[0].mxu0
        %v1596 = vadd.f32 %v1291, %v1595
        %v1597 = vpop.f32.mrb[0].mxu0
        %v1598 = vpop.f32.mrb[0].mxu0
        %v1599 = vadd.f32 %v1294, %v1598
        %v1600 = vpop.f32.mrb[0].mxu0
        %1601 = vmatprep.mubr.bf16.mxu0 %v572
        %1602 = vmatmul.mubr.bf16.gmra.mrb[0].mxu0 %v737
        %v1603 = vpop.f32.mrb[0].mxu0
        %v1604 = vadd.f32 %v1299, %v1603
        %v1605 = vpop.f32.mrb[0].mxu0
        %v1606 = vpop.f32.mrb[0].mxu0
        %v1607 = vadd.f32 %v1302, %v1606
        %v1608 = vpop.f32.mrb[0].mxu0
        %1609 = vmatprep.mubr.bf16.mxu0 %v573
        %1610 = vmatmul.mubr.bf16.gmra.mrb[0].mxu0 %v738
        %v1611 = vpop.f32.mrb[0].mxu0
        %v1612 = vadd.f32 %v1307, %v1611
        %v1613 = vpop.f32.mrb[0].mxu0
        %v1614 = vpop.f32.mrb[0].mxu0
        %v1615 = vadd.f32 %v1310, %v1614
        %v1616 = vpop.f32.mrb[0].mxu0
        %1617 = vmatprep.mubr.bf16.mxu0 %v574
        %1618 = vmatmul.mubr.bf16.gmra.mrb[0].mxu0 %v739
        %v1619 = vpop.f32.mrb[0].mxu0
        %v1620 = vadd.f32 %v1315, %v1619
        %v1621 = vpop.f32.mrb[0].mxu0
        %v1622 = vpop.f32.mrb[0].mxu0
        %v1623 = vadd.f32 %v1318, %v1622
        %v1624 = vpop.f32.mrb[0].mxu0
        %1625 = vmatprep.mubr.bf16.mxu0 %v575
        %1626 = vmatmul.mubr.bf16.gmra.mrb[0].mxu0 %v740
        %v1627 = vpop.f32.mrb[0].mxu0
        %v1628 = vadd.f32 %v1323, %v1627
        %v1629 = vpop.f32.mrb[0].mxu0
        %v1630 = vpop.f32.mrb[0].mxu0
        %v1631 = vadd.f32 %v1326, %v1630
        %v1632 = vpop.f32.mrb[0].mxu0
        %1633 = vmatprep.mubr.bf16.mxu0 %v576
        %1634 = vmatmul.mubr.bf16.gmra.mrb[0].mxu0 %v741
        %v1635 = vpop.f32.mrb[0].mxu0
        %v1636 = vadd.f32 %v1331, %v1635
        %v1637 = vpop.f32.mrb[0].mxu0
        %v1638 = vpop.f32.mrb[0].mxu0
        %v1639 = vadd.f32 %v1334, %v1638
        %v1640 = vpop.f32.mrb[0].mxu0
        %1641 = vmatprep.mubr.bf16.mxu0 %v577
        %1642 = vmatmul.mubr.bf16.gmra.mrb[0].mxu0 %v742
        %v1643 = vpop.f32.mrb[0].mxu0
        %v1644 = vadd.f32 %v1339, %v1643
        %v1645 = vpop.f32.mrb[0].mxu0
        %v1646 = vpop.f32.mrb[0].mxu0
        %v1647 = vadd.f32 %v1342, %v1646
        %v1648 = vpop.f32.mrb[0].mxu0
        %1649 = vmatprep.mubr.bf16.mxu0 %v578
        %1650 = vmatmul.mubr.bf16.gmra.mrb[0].mxu0 %v743
        %v1651 = vpop.f32.mrb[0].mxu0
        %v1652 = vadd.f32 %v1347, %v1651
        %v1653 = vpop.f32.mrb[0].mxu0
        %v1654 = vpop.f32.mrb[0].mxu0
        %v1655 = vadd.f32 %v1350, %v1654
        %v1656 = vpop.f32.mrb[0].mxu0
        %1657 = vmatprep.mubr.bf16.mxu0 %v579
        %1658 = vmatmul.mubr.bf16.gmra.mrb[0].mxu0 %v744
        %v1659 = vpop.f32.mrb[0].mxu0
        %v1660 = vadd.f32 %v1355, %v1659
        %v1661 = vpop.f32.mrb[0].mxu0
        %v1662 = vpop.f32.mrb[0].mxu0
        %v1663 = vadd.f32 %v1358, %v1662
        %v1664 = vpop.f32.mrb[0].mxu0
        %1665 = vmatprep.mubr.bf16.mxu0 %v580
        %1666 = vmatmul.mubr.bf16.gmra.mrb[0].mxu0 %v745
        %v1667 = vpop.f32.mrb[0].mxu0
        %v1668 = vadd.f32 %v1363, %v1667
        %v1669 = vpop.f32.mrb[0].mxu0
        %v1670 = vpop.f32.mrb[0].mxu0
        %v1671 = vadd.f32 %v1366, %v1670
        %v1672 = vpop.f32.mrb[0].mxu0
        %1673 = vmatprep.mubr.bf16.mxu0 %v581
        %1674 = vmatmul.mubr.bf16.gmra.mrb[0].mxu0 %v746
        %v1675 = vpop.f32.mrb[0].mxu0
        %v1676 = vadd.f32 %v1371, %v1675
        %v1677 = vpop.f32.mrb[0].mxu0
        %v1678 = vpop.f32.mrb[0].mxu0
        %v1679 = vadd.f32 %v1374, %v1678
        %v1680 = vpop.f32.mrb[0].mxu0
        %1681 = vmatprep.mubr.bf16.mxu0 %v582
        %1682 = vmatmul.mubr.bf16.gmra.mrb[0].mxu0 %v747
        %v1683 = vpop.f32.mrb[0].mxu0
        %v1684 = vadd.f32 %v1379, %v1683
        %v1685 = vpop.f32.mrb[0].mxu0
        %v1686 = vpop.f32.mrb[0].mxu0
        %v1687 = vadd.f32 %v1382, %v1686
        %v1688 = vpop.f32.mrb[0].mxu0
        %1689 = vmatprep.mubr.bf16.mxu0 %v583
        %1690 = vmatmul.mubr.bf16.gmra.mrb[0].mxu0 %v748
        %v1691 = vpop.f32.mrb[0].mxu0
        %v1692 = vadd.f32 %v1387, %v1691
        %v1693 = vpop.f32.mrb[0].mxu0
        %v1694 = vpop.f32.mrb[0].mxu0
        %v1695 = vadd.f32 %v1390, %v1694
        %v1696 = vpop.f32.mrb[0].mxu0
        %1697 = vmatprep.mubr.bf16.mxu0 %v584
        %1698 = vmatmul.mubr.bf16.gmra.mrb[0].mxu0 %v749
        %v1699 = vpop.f32.mrb[0].mxu0
        %v1700 = vadd.f32 %v1395, %v1699
        %v1701 = vpop.f32.mrb[0].mxu0
        %v1702 = vpop.f32.mrb[0].mxu0
        %v1703 = vadd.f32 %v1398, %v1702
        %v1704 = vpop.f32.mrb[0].mxu0
        %1705 = vmatprep.mubr.bf16.mxu0 %v585
        %1706 = vmatmul.mubr.bf16.gmra.mrb[0].mxu0 %v750
        %v1707 = vpop.f32.mrb[0].mxu0
        %v1708 = vadd.f32 %v1403, %v1707
        %v1709 = vpop.f32.mrb[0].mxu0
        %v1710 = vpop.f32.mrb[0].mxu0
        %v1711 = vadd.f32 %v1406, %v1710
        %v1712 = vpop.f32.mrb[0].mxu0
        %1713 = vdwg.mxu0
        %1714 = vmatprep.subr.bf16.mxu0 0
        %1715 = vmatpush1.bf16.msra.mxu0 %v1521
        %1716 = vmatprep.subr.bf16.mxu0 0
        %1717 = vmatpush1.bf16.msra.mxu0 %v1522
        %1718 = vmatprep.subr.bf16.mxu0 0
        %1719 = vmatpush1.bf16.msra.mxu0 %v1523
        %1720 = vmatprep.subr.bf16.mxu0 0
        %1721 = vmatpush1.bf16.msra.mxu0 %v1524
        %1722 = vmatprep.subr.bf16.mxu0 0
        %1723 = vmatpush1.bf16.msra.mxu0 %v1525
        %1724 = vmatprep.subr.bf16.mxu0 0
        %1725 = vmatpush1.bf16.msra.mxu0 %v1526
        %1726 = vmatprep.subr.bf16.mxu0 0
        %1727 = vmatpush1.bf16.msra.mxu0 %v1527
        %1728 = vmatprep.subr.bf16.mxu0 0
        %1729 = vmatpush1.bf16.msra.mxu0 %v1528
        %1730 = vmatprep.subr.bf16.mxu0 0
        %1731 = vmatpush1.bf16.msra.mxu0 0
        %1732 = vmatprep.subr.bf16.mxu0 0
        %1733 = vmatpush1.bf16.msra.mxu0 0
        %1734 = vmatprep.subr.bf16.mxu0 0
        %1735 = vmatpush1.bf16.msra.mxu0 0
        %1736 = vmatprep.subr.bf16.mxu0 0
        %1737 = vmatpush1.bf16.msra.mxu0 0
        %1738 = vmatprep.subr.bf16.mxu0 0
        %1739 = vmatpush1.bf16.msra.mxu0 0
        %1740 = vmatprep.subr.bf16.mxu0 0
        %1741 = vmatpush1.bf16.msra.mxu0 0
        %1742 = vmatprep.subr.bf16.mxu0 0
        %1743 = vmatpush1.bf16.msra.mxu0 0
        %1744 = vmatprep.subr.bf16.mxu0 0
        %1745 = vmatpush1.bf16.msra.mxu0 0
        %1746 = vmatprep.mubr.bf16.mxu0 0
        %1747 = vmatmul.mubr.bf16.gmra.mrb[0].mxu0 %v810
        %v1748 = vpop.f32.mrb[0].mxu0
        %v1749 = vadd.f32 %v1588, %v1748
        %v1750 = vpop.f32.mrb[0].mxu0
        %v1751 = vpop.f32.mrb[0].mxu0
        %v1752 = vadd.f32 %v1591, %v1751
        %v1753 = vpop.f32.mrb[0].mxu0
        %1754 = vmatprep.mubr.bf16.mxu0 0
        %1755 = vmatmul.mubr.bf16.gmra.mrb[0].mxu0 %v811
        %v1756 = vpop.f32.mrb[0].mxu0
        %v1757 = vadd.f32 %v1596, %v1756
        %v1758 = vpop.f32.mrb[0].mxu0
        %v1759 = vpop.f32.mrb[0].mxu0
        %v1760 = vadd.f32 %v1599, %v1759
        %v1761 = vpop.f32.mrb[0].mxu0
        %1762 = vmatprep.mubr.bf16.mxu0 0
        %1763 = vmatmul.mubr.bf16.gmra.mrb[0].mxu0 %v812
        %v1764 = vpop.f32.mrb[0].mxu0
        %v1765 = vadd.f32 %v1604, %v1764
        %v1766 = vpop.f32.mrb[0].mxu0
        %v1767 = vpop.f32.mrb[0].mxu0
        %v1768 = vadd.f32 %v1607, %v1767
        %v1769 = vpop.f32.mrb[0].mxu0
        %1770 = vmatprep.mubr.bf16.mxu0 0
        %1771 = vmatmul.mubr.bf16.gmra.mrb[0].mxu0 %v813
        %v1772 = vpop.f32.mrb[0].mxu0
        %v1773 = vadd.f32 %v1612, %v1772
        %v1774 = vpop.f32.mrb[0].mxu0
        %v1775 = vpop.f32.mrb[0].mxu0
        %v1776 = vadd.f32 %v1615, %v1775
        %v1777 = vpop.f32.mrb[0].mxu0
        %1778 = vmatprep.mubr.bf16.mxu0 0
        %1779 = vmatmul.mubr.bf16.gmra.mrb[0].mxu0 %v814
        %v1780 = vpop.f32.mrb[0].mxu0
        %v1781 = vadd.f32 %v1620, %v1780
        %v1782 = vpop.f32.mrb[0].mxu0
        %v1783 = vpop.f32.mrb[0].mxu0
        %v1784 = vadd.f32 %v1623, %v1783
        %v1785 = vpop.f32.mrb[0].mxu0
        %1786 = vmatprep.mubr.bf16.mxu0 0
        %1787 = vmatmul.mubr.bf16.gmra.mrb[0].mxu0 %v815
        %v1788 = vpop.f32.mrb[0].mxu0
        %v1789 = vadd.f32 %v1628, %v1788
        %v1790 = vpop.f32.mrb[0].mxu0
        %v1791 = vpop.f32.mrb[0].mxu0
        %v1792 = vadd.f32 %v1631, %v1791
        %v1793 = vpop.f32.mrb[0].mxu0
        %1794 = vmatprep.mubr.bf16.mxu0 0
        %1795 = vmatmul.mubr.bf16.gmra.mrb[0].mxu0 %v816
        %v1796 = vpop.f32.mrb[0].mxu0
        %v1797 = vadd.f32 %v1636, %v1796
        %v1798 = vpop.f32.mrb[0].mxu0
        %v1799 = vpop.f32.mrb[0].mxu0
        %v1800 = vadd.f32 %v1639, %v1799
        %v1801 = vpop.f32.mrb[0].mxu0
        %1802 = vmatprep.mubr.bf16.mxu0 0
        %1803 = vmatmul.mubr.bf16.gmra.mrb[0].mxu0 %v817
        %v1804 = vpop.f32.mrb[0].mxu0
        %v1805 = vadd.f32 %v1644, %v1804
        %v1806 = vpop.f32.mrb[0].mxu0
        %v1807 = vpop.f32.mrb[0].mxu0
        %v1808 = vadd.f32 %v1647, %v1807
        %v1809 = vpop.f32.mrb[0].mxu0
        %1810 = vmatprep.mubr.bf16.mxu0 0
        %1811 = vmatmul.mubr.bf16.gmra.mrb[0].mxu0 %v818
        %v1812 = vpop.f32.mrb[0].mxu0
        %v1813 = vadd.f32 %v1652, %v1812
        %v1814 = vpop.f32.mrb[0].mxu0
        %v1815 = vpop.f32.mrb[0].mxu0
        %v1816 = vadd.f32 %v1655, %v1815
        %v1817 = vpop.f32.mrb[0].mxu0
        %1818 = vmatprep.mubr.bf16.mxu0 0
        %1819 = vmatmul.mubr.bf16.gmra.mrb[0].mxu0 %v819
        %v1820 = vpop.f32.mrb[0].mxu0
        %v1821 = vadd.f32 %v1660, %v1820
        %v1822 = vpop.f32.mrb[0].mxu0
        %v1823 = vpop.f32.mrb[0].mxu0
        %v1824 = vadd.f32 %v1663, %v1823
        %v1825 = vpop.f32.mrb[0].mxu0
        %1826 = vmatprep.mubr.bf16.mxu0 0
        %1827 = vmatmul.mubr.bf16.gmra.mrb[0].mxu0 %v820
        %v1828 = vpop.f32.mrb[0].mxu0
        %v1829 = vadd.f32 %v1668, %v1828
        %v1830 = vpop.f32.mrb[0].mxu0
        %v1831 = vpop.f32.mrb[0].mxu0
        %v1832 = vadd.f32 %v1671, %v1831
        %v1833 = vpop.f32.mrb[0].mxu0
        %1834 = vmatprep.mubr.bf16.mxu0 0
        %1835 = vmatmul.mubr.bf16.gmra.mrb[0].mxu0 %v821
        %v1836 = vpop.f32.mrb[0].mxu0
        %v1837 = vadd.f32 %v1676, %v1836
        %v1838 = vpop.f32.mrb[0].mxu0
        %v1839 = vpop.f32.mrb[0].mxu0
        %v1840 = vadd.f32 %v1679, %v1839
        %v1841 = vpop.f32.mrb[0].mxu0
        %1842 = vmatprep.mubr.bf16.mxu0 0
        %1843 = vmatmul.mubr.bf16.gmra.mrb[0].mxu0 %v822
        %v1844 = vpop.f32.mrb[0].mxu0
        %v1845 = vadd.f32 %v1684, %v1844
        %v1846 = vpop.f32.mrb[0].mxu0
        %v1847 = vpop.f32.mrb[0].mxu0
        %v1848 = vadd.f32 %v1687, %v1847
        %v1849 = vpop.f32.mrb[0].mxu0
        %1850 = vmatprep.mubr.bf16.mxu0 0
        %1851 = vmatmul.mubr.bf16.gmra.mrb[0].mxu0 %v823
        %v1852 = vpop.f32.mrb[0].mxu0
        %v1853 = vadd.f32 %v1692, %v1852
        %v1854 = vpop.f32.mrb[0].mxu0
        %v1855 = vpop.f32.mrb[0].mxu0
        %v1856 = vadd.f32 %v1695, %v1855
        %v1857 = vpop.f32.mrb[0].mxu0
        %1858 = vmatprep.mubr.bf16.mxu0 0
        %1859 = vmatmul.mubr.bf16.gmra.mrb[0].mxu0 %v824
        %v1860 = vpop.f32.mrb[0].mxu0
        %v1861 = vadd.f32 %v1700, %v1860
        %v1862 = vpop.f32.mrb[0].mxu0
        %v1863 = vpop.f32.mrb[0].mxu0
        %v1864 = vadd.f32 %v1703, %v1863
        %v1865 = vpop.f32.mrb[0].mxu0
        %1866 = vmatprep.mubr.bf16.mxu0 0
        %1867 = vmatmul.mubr.bf16.gmra.mrb[0].mxu0 %v825
        %v1868 = vpop.f32.mrb[0].mxu0
        %v1869 = vadd.f32 %v1708, %v1868
        %v1870 = vpop.f32.mrb[0].mxu0
        %v1871 = vpop.f32.mrb[0].mxu0
        %v1872 = vadd.f32 %v1711, %v1871
        %v1873 = vpop.f32.mrb[0].mxu0
        %1874 = vdwg.mxu0
        %s1875 = scalar_lea.vmem [#allocation7], 384
        %v1876 = vld [vmem:[%s1875] sm:$0xf]
        %v1877 = vld [vmem:[%s1875 + $0x4] sm:$0xf]
        %v1878 = vld [vmem:[%s1875 + $0x8] sm:$0xf]
        %v1879 = vld [vmem:[%s1875 + $0xc] sm:$0xf]
        %v1880 = vld [vmem:[%s1875 + $0x10] sm:$0xf]
        %v1881 = vld [vmem:[%s1875 + $0x14] sm:$0xf]
        %v1882 = vld [vmem:[%s1875 + $0x18] sm:$0xf]
        %v1883 = vld [vmem:[%s1875 + $0x1c] sm:$0xf]
        %v1884 = vld [vmem:[%s1875 + $0x20] sm:$0xf]
        %v1885 = vld [vmem:[%s1875 + $0x24] sm:$0xf]
        %v1886 = vld [vmem:[%s1875 + $0x28] sm:$0xf]
        %v1887 = vld [vmem:[%s1875 + $0x2c] sm:$0xf]
        %v1888 = vld [vmem:[%s1875 + $0x30] sm:$0xf]
        %v1889 = vld [vmem:[%s1875 + $0x34] sm:$0xf]
        %v1890 = vld [vmem:[%s1875 + $0x38] sm:$0xf]
        %v1891 = vld [vmem:[%s1875 + $0x3c] sm:$0xf]
        %v1892 = vld [vmem:[%s1875 + $0x40] sm:$0xf]
        %v1893 = vld [vmem:[%s1875 + $0x44] sm:$0xf]
        %v1894 = vld [vmem:[%s1875 + $0x48] sm:$0xf]
        %v1895 = vld [vmem:[%s1875 + $0x4c] sm:$0xf]
        %v1896 = vld [vmem:[%s1875 + $0x50] sm:$0xf]
        %v1897 = vld [vmem:[%s1875 + $0x54] sm:$0xf]
        %v1898 = vld [vmem:[%s1875 + $0x58] sm:$0xf]
        %v1899 = vld [vmem:[%s1875 + $0x5c] sm:$0xf]
        %v1900 = vld [vmem:[%s1875 + $0x60] sm:$0xf]
        %v1901 = vld [vmem:[%s1875 + $0x64] sm:$0xf]
        %v1902 = vld [vmem:[%s1875 + $0x68] sm:$0xf]
        %v1903 = vld [vmem:[%s1875 + $0x6c] sm:$0xf]
        %v1904 = vld [vmem:[%s1875 + $0x70] sm:$0xf]
        %v1905 = vld [vmem:[%s1875 + $0x74] sm:$0xf]
        %v1906 = vld [vmem:[%s1875 + $0x78] sm:$0xf]
        %v1907 = vld [vmem:[%s1875 + $0x7c] sm:$0xf]
        %v1908 = vld [vmem:[%s1875 + $0x80] sm:$0xf]
        %v1909 = vld [vmem:[%s1875 + $0x84] sm:$0xf]
        %v1910 = vld [vmem:[%s1875 + $0x88] sm:$0xf]
        %v1911 = vld [vmem:[%s1875 + $0x8c] sm:$0xf]
        %v1912 = vld [vmem:[%s1875 + $0x90] sm:$0xf]
        %v1913 = vld [vmem:[%s1875 + $0x94] sm:$0xf]
        %v1914 = vld [vmem:[%s1875 + $0x98] sm:$0xf]
        %v1915 = vld [vmem:[%s1875 + $0x9c] sm:$0xf]
        %v1916 = vld [vmem:[%s1875 + $0xa0] sm:$0xf]
        %v1917 = vld [vmem:[%s1875 + $0xa4] sm:$0xf]
        %v1918 = vld [vmem:[%s1875 + $0xa8] sm:$0xf]
        %v1919 = vld [vmem:[%s1875 + $0xac] sm:$0xf]
        %v1920 = vld [vmem:[%s1875 + $0xb0] sm:$0xf]
        %v1921 = vld [vmem:[%s1875 + $0xb4] sm:$0xf]
        %v1922 = vld [vmem:[%s1875 + $0xb8] sm:$0xf]
        %v1923 = vld [vmem:[%s1875 + $0xbc] sm:$0xf]
        %v1972 = vunpack.c.l.b16 %v1876
        %v1973 = vunpack.c.l.b16 %v1877
        %v1974 = vunpack.c.l.b16 %v1878
        %v1975 = vunpack.c.l.b16 %v1879
        %v1976 = vunpack.c.l.b16 %v1880
        %v1977 = vunpack.c.l.b16 %v1881
        %v1978 = vunpack.c.l.b16 %v1882
        %v1979 = vunpack.c.l.b16 %v1883
        %v1980 = vunpack.c.l.b16 %v1884
        %v1981 = vunpack.c.l.b16 %v1885
        %v1982 = vunpack.c.l.b16 %v1886
        %v1983 = vunpack.c.l.b16 %v1887
        %v1984 = vunpack.c.l.b16 %v1888
        %v1985 = vunpack.c.l.b16 %v1889
        %v1986 = vunpack.c.l.b16 %v1890
        %v1987 = vunpack.c.l.b16 %v1891
        %v1988 = vunpack.c.l.b16 %v1892
        %v1989 = vunpack.c.l.b16 %v1893
        %v1990 = vunpack.c.l.b16 %v1894
        %v1991 = vunpack.c.l.b16 %v1895
        %v1992 = vunpack.c.l.b16 %v1896
        %v1993 = vunpack.c.l.b16 %v1897
        %v1994 = vunpack.c.l.b16 %v1898
        %v1995 = vunpack.c.l.b16 %v1899
        %v1996 = vunpack.c.l.b16 %v1900
        %v1997 = vunpack.c.l.b16 %v1901
        %v1998 = vunpack.c.l.b16 %v1902
        %v1999 = vunpack.c.l.b16 %v1903
        %v2000 = vunpack.c.l.b16 %v1904
        %v2001 = vunpack.c.l.b16 %v1905
        %v2002 = vunpack.c.l.b16 %v1906
        %v2003 = vunpack.c.l.b16 %v1907
        %v2004 = vunpack.c.l.b16 %v1908
        %v2005 = vunpack.c.l.b16 %v1909
        %v2006 = vunpack.c.l.b16 %v1910
        %v2007 = vunpack.c.l.b16 %v1911
        %v2008 = vunpack.c.l.b16 %v1912
        %v2009 = vunpack.c.l.b16 %v1913
        %v2010 = vunpack.c.l.b16 %v1914
        %v2011 = vunpack.c.l.b16 %v1915
        %v2012 = vunpack.c.l.b16 %v1916
        %v2013 = vunpack.c.l.b16 %v1917
        %v2014 = vunpack.c.l.b16 %v1918
        %v2015 = vunpack.c.l.b16 %v1919
        %v2016 = vunpack.c.l.b16 %v1920
        %v2017 = vunpack.c.l.b16 %v1921
        %v2018 = vunpack.c.l.b16 %v1922
        %v2019 = vunpack.c.l.b16 %v1923
        %v2020 = vpack.c.b16 %v1973, %v1972
        %v2021 = vpack.c.b16 %v1975, %v1974
        %v2022 = vpack.c.b16 %v1977, %v1976
        %v2023 = vpack.c.b16 %v1979, %v1978
        %v2024 = vpack.c.b16 %v1981, %v1980
        %v2025 = vpack.c.b16 %v1983, %v1982
        %v2026 = vpack.c.b16 %v1985, %v1984
        %v2027 = vpack.c.b16 %v1987, %v1986
        %v2028 = vpack.c.b16 %v1989, %v1988
        %v2029 = vpack.c.b16 %v1991, %v1990
        %v2030 = vpack.c.b16 %v1993, %v1992
        %v2031 = vpack.c.b16 %v1995, %v1994
        %v2032 = vpack.c.b16 %v1997, %v1996
        %v2033 = vpack.c.b16 %v1999, %v1998
        %v2034 = vpack.c.b16 %v2001, %v2000
        %v2035 = vpack.c.b16 %v2003, %v2002
        %v2036 = vpack.c.b16 %v2005, %v2004
        %v2037 = vpack.c.b16 %v2007, %v2006
        %v2038 = vpack.c.b16 %v2009, %v2008
        %v2039 = vpack.c.b16 %v2011, %v2010
        %v2040 = vpack.c.b16 %v2013, %v2012
        %v2041 = vpack.c.b16 %v2015, %v2014
        %v2042 = vpack.c.b16 %v2017, %v2016
        %v2043 = vpack.c.b16 %v2019, %v2018
        %2068 = vmatprep.subr.bf16.mxu0 0
        %2069 = vmatpush1.bf16.msra.mxu0 %v2020
        %2070 = vmatprep.subr.bf16.mxu0 0
        %2071 = vmatpush1.bf16.msra.mxu0 %v2021
        %2072 = vmatprep.subr.bf16.mxu0 0
        %2073 = vmatpush1.bf16.msra.mxu0 %v2022
        %2074 = vmatprep.subr.bf16.mxu0 0
        %2075 = vmatpush1.bf16.msra.mxu0 %v2023
        %2076 = vmatprep.subr.bf16.mxu0 0
        %2077 = vmatpush1.bf16.msra.mxu0 %v2024
        %2078 = vmatprep.subr.bf16.mxu0 0
        %2079 = vmatpush1.bf16.msra.mxu0 %v2025
        %2080 = vmatprep.subr.bf16.mxu0 0
        %2081 = vmatpush1.bf16.msra.mxu0 %v2026
        %2082 = vmatprep.subr.bf16.mxu0 0
        %2083 = vmatpush1.bf16.msra.mxu0 %v2027
        %2084 = vmatprep.subr.bf16.mxu0 0
        %2085 = vmatpush1.bf16.msra.mxu0 %v2028
        %2086 = vmatprep.subr.bf16.mxu0 0
        %2087 = vmatpush1.bf16.msra.mxu0 %v2029
        %2088 = vmatprep.subr.bf16.mxu0 0
        %2089 = vmatpush1.bf16.msra.mxu0 %v2030
        %2090 = vmatprep.subr.bf16.mxu0 0
        %2091 = vmatpush1.bf16.msra.mxu0 %v2031
        %2092 = vmatprep.subr.bf16.mxu0 0
        %2093 = vmatpush1.bf16.msra.mxu0 %v2032
        %2094 = vmatprep.subr.bf16.mxu0 0
        %2095 = vmatpush1.bf16.msra.mxu0 %v2033
        %2096 = vmatprep.subr.bf16.mxu0 0
        %2097 = vmatpush1.bf16.msra.mxu0 %v2034
        %2098 = vmatprep.subr.bf16.mxu0 0
        %2099 = vmatpush1.bf16.msra.mxu0 %v2035
        %2100 = vmatprep.mubr.bf16.mxu0 %v572
        %2101 = vmatmul.mubr.bf16.gmra.mrb[0].mxu0 %v737
        %v2102 = vpop.f32.mrb[0].mxu0
        %v2103 = vadd.f32 0.0, %v2102
        %v2104 = vpop.f32.mrb[0].mxu0
        %v2105 = vpop.f32.mrb[0].mxu0
        %v2106 = vadd.f32 0.0, %v2105
        %v2107 = vpop.f32.mrb[0].mxu0
        %2108 = vmatprep.mubr.bf16.mxu0 %v573
        %2109 = vmatmul.mubr.bf16.gmra.mrb[0].mxu0 %v738
        %v2110 = vpop.f32.mrb[0].mxu0
        %v2111 = vadd.f32 0.0, %v2110
        %v2112 = vpop.f32.mrb[0].mxu0
        %v2113 = vpop.f32.mrb[0].mxu0
        %v2114 = vadd.f32 0.0, %v2113
        %v2115 = vpop.f32.mrb[0].mxu0
        %2116 = vmatprep.mubr.bf16.mxu0 %v574
        %2117 = vmatmul.mubr.bf16.gmra.mrb[0].mxu0 %v739
        %v2118 = vpop.f32.mrb[0].mxu0
        %v2119 = vadd.f32 0.0, %v2118
        %v2120 = vpop.f32.mrb[0].mxu0
        %v2121 = vpop.f32.mrb[0].mxu0
        %v2122 = vadd.f32 0.0, %v2121
        %v2123 = vpop.f32.mrb[0].mxu0
        %2124 = vmatprep.mubr.bf16.mxu0 %v575
        %2125 = vmatmul.mubr.bf16.gmra.mrb[0].mxu0 %v740
        %v2126 = vpop.f32.mrb[0].mxu0
        %v2127 = vadd.f32 0.0, %v2126
        %v2128 = vpop.f32.mrb[0].mxu0
        %v2129 = vpop.f32.mrb[0].mxu0
        %v2130 = vadd.f32 0.0, %v2129
        %v2131 = vpop.f32.mrb[0].mxu0
        %2132 = vmatprep.mubr.bf16.mxu0 %v576
        %2133 = vmatmul.mubr.bf16.gmra.mrb[0].mxu0 %v741
        %v2134 = vpop.f32.mrb[0].mxu0
        %v2135 = vadd.f32 0.0, %v2134
        %v2136 = vpop.f32.mrb[0].mxu0
        %v2137 = vpop.f32.mrb[0].mxu0
        %v2138 = vadd.f32 0.0, %v2137
        %v2139 = vpop.f32.mrb[0].mxu0
        %2140 = vmatprep.mubr.bf16.mxu0 %v577
        %2141 = vmatmul.mubr.bf16.gmra.mrb[0].mxu0 %v742
        %v2142 = vpop.f32.mrb[0].mxu0
        %v2143 = vadd.f32 0.0, %v2142
        %v2144 = vpop.f32.mrb[0].mxu0
        %v2145 = vpop.f32.mrb[0].mxu0
        %v2146 = vadd.f32 0.0, %v2145
        %v2147 = vpop.f32.mrb[0].mxu0
        %2148 = vmatprep.mubr.bf16.mxu0 %v578
        %2149 = vmatmul.mubr.bf16.gmra.mrb[0].mxu0 %v743
        %v2150 = vpop.f32.mrb[0].mxu0
        %v2151 = vadd.f32 0.0, %v2150
        %v2152 = vpop.f32.mrb[0].mxu0
        %v2153 = vpop.f32.mrb[0].mxu0
        %v2154 = vadd.f32 0.0, %v2153
        %v2155 = vpop.f32.mrb[0].mxu0
        %2156 = vmatprep.mubr.bf16.mxu0 %v579
        %2157 = vmatmul.mubr.bf16.gmra.mrb[0].mxu0 %v744
        %v2158 = vpop.f32.mrb[0].mxu0
        %v2159 = vadd.f32 0.0, %v2158
        %v2160 = vpop.f32.mrb[0].mxu0
        %v2161 = vpop.f32.mrb[0].mxu0
        %v2162 = vadd.f32 0.0, %v2161
        %v2163 = vpop.f32.mrb[0].mxu0
        %2164 = vmatprep.mubr.bf16.mxu0 %v580
        %2165 = vmatmul.mubr.bf16.gmra.mrb[0].mxu0 %v745
        %v2166 = vpop.f32.mrb[0].mxu0
        %v2167 = vadd.f32 0.0, %v2166
        %v2168 = vpop.f32.mrb[0].mxu0
        %v2169 = vpop.f32.mrb[0].mxu0
        %v2170 = vadd.f32 0.0, %v2169
        %v2171 = vpop.f32.mrb[0].mxu0
        %2172 = vmatprep.mubr.bf16.mxu0 %v581
        %2173 = vmatmul.mubr.bf16.gmra.mrb[0].mxu0 %v746
        %v2174 = vpop.f32.mrb[0].mxu0
        %v2175 = vadd.f32 0.0, %v2174
        %v2176 = vpop.f32.mrb[0].mxu0
        %v2177 = vpop.f32.mrb[0].mxu0
        %v2178 = vadd.f32 0.0, %v2177
        %v2179 = vpop.f32.mrb[0].mxu0
        %2180 = vmatprep.mubr.bf16.mxu0 %v582
        %2181 = vmatmul.mubr.bf16.gmra.mrb[0].mxu0 %v747
        %v2182 = vpop.f32.mrb[0].mxu0
        %v2183 = vadd.f32 0.0, %v2182
        %v2184 = vpop.f32.mrb[0].mxu0
        %v2185 = vpop.f32.mrb[0].mxu0
        %v2186 = vadd.f32 0.0, %v2185
        %v2187 = vpop.f32.mrb[0].mxu0
        %2188 = vmatprep.mubr.bf16.mxu0 %v583
        %2189 = vmatmul.mubr.bf16.gmra.mrb[0].mxu0 %v748
        %v2190 = vpop.f32.mrb[0].mxu0
        %v2191 = vadd.f32 0.0, %v2190
        %v2192 = vpop.f32.mrb[0].mxu0
        %v2193 = vpop.f32.mrb[0].mxu0
        %v2194 = vadd.f32 0.0, %v2193
        %v2195 = vpop.f32.mrb[0].mxu0
        %2196 = vmatprep.mubr.bf16.mxu0 %v584
        %2197 = vmatmul.mubr.bf16.gmra.mrb[0].mxu0 %v749
        %v2198 = vpop.f32.mrb[0].mxu0
        %v2199 = vadd.f32 0.0, %v2198
        %v2200 = vpop.f32.mrb[0].mxu0
        %v2201 = vpop.f32.mrb[0].mxu0
        %v2202 = vadd.f32 0.0, %v2201
        %v2203 = vpop.f32.mrb[0].mxu0
        %2204 = vmatprep.mubr.bf16.mxu0 %v585
        %2205 = vmatmul.mubr.bf16.gmra.mrb[0].mxu0 %v750
        %v2206 = vpop.f32.mrb[0].mxu0
        %v2207 = vadd.f32 0.0, %v2206
        %v2208 = vpop.f32.mrb[0].mxu0
        %v2209 = vpop.f32.mrb[0].mxu0
        %v2210 = vadd.f32 0.0, %v2209
        %v2211 = vpop.f32.mrb[0].mxu0
        %2212 = vmatprep.mubr.bf16.mxu0 %v586
        %2213 = vmatmul.mubr.bf16.gmra.mrb[0].mxu0 %v751
        %v2214 = vpop.f32.mrb[0].mxu0
        %v2215 = vadd.f32 0.0, %v2214
        %v2216 = vpop.f32.mrb[0].mxu0
        %v2217 = vpop.f32.mrb[0].mxu0
        %v2218 = vadd.f32 0.0, %v2217
        %v2219 = vpop.f32.mrb[0].mxu0
        %2220 = vmatprep.mubr.bf16.mxu0 %v587
        %2221 = vmatmul.mubr.bf16.gmra.mrb[0].mxu0 %v752
        %v2222 = vpop.f32.mrb[0].mxu0
        %v2223 = vadd.f32 0.0, %v2222
        %v2224 = vpop.f32.mrb[0].mxu0
        %v2225 = vpop.f32.mrb[0].mxu0
        %v2226 = vadd.f32 0.0, %v2225
        %v2227 = vpop.f32.mrb[0].mxu0
        %2228 = vdwg.mxu0
        %2229 = vmatprep.subr.bf16.mxu0 0
        %2230 = vmatpush1.bf16.msra.mxu0 %v2036
        %2231 = vmatprep.subr.bf16.mxu0 0
        %2232 = vmatpush1.bf16.msra.mxu0 %v2037
        %2233 = vmatprep.subr.bf16.mxu0 0
        %2234 = vmatpush1.bf16.msra.mxu0 %v2038
        %2235 = vmatprep.subr.bf16.mxu0 0
        %2236 = vmatpush1.bf16.msra.mxu0 %v2039
        %2237 = vmatprep.subr.bf16.mxu0 0
        %2238 = vmatpush1.bf16.msra.mxu0 %v2040
        %2239 = vmatprep.subr.bf16.mxu0 0
        %2240 = vmatpush1.bf16.msra.mxu0 %v2041
        %2241 = vmatprep.subr.bf16.mxu0 0
        %2242 = vmatpush1.bf16.msra.mxu0 %v2042
        %2243 = vmatprep.subr.bf16.mxu0 0
        %2244 = vmatpush1.bf16.msra.mxu0 %v2043
        %2245 = vmatprep.subr.bf16.mxu0 0
        %2246 = vmatpush1.bf16.msra.mxu0 0
        %2247 = vmatprep.subr.bf16.mxu0 0
        %2248 = vmatpush1.bf16.msra.mxu0 0
        %2249 = vmatprep.subr.bf16.mxu0 0
        %2250 = vmatpush1.bf16.msra.mxu0 0
        %2251 = vmatprep.subr.bf16.mxu0 0
        %2252 = vmatpush1.bf16.msra.mxu0 0
        %2253 = vmatprep.subr.bf16.mxu0 0
        %2254 = vmatpush1.bf16.msra.mxu0 0
        %2255 = vmatprep.subr.bf16.mxu0 0
        %2256 = vmatpush1.bf16.msra.mxu0 0
        %2257 = vmatprep.subr.bf16.mxu0 0
        %2258 = vmatpush1.bf16.msra.mxu0 0
        %2259 = vmatprep.subr.bf16.mxu0 0
        %2260 = vmatpush1.bf16.msra.mxu0 0
        %2261 = vmatprep.mubr.bf16.mxu0 0
        %2262 = vmatmul.mubr.bf16.gmra.mrb[0].mxu0 %v812
        %v2263 = vpop.f32.mrb[0].mxu0
        %v2264 = vadd.f32 %v2103, %v2263
        %v2265 = vpop.f32.mrb[0].mxu0
        %v2266 = vpop.f32.mrb[0].mxu0
        %v2267 = vadd.f32 %v2106, %v2266
        %v2268 = vpop.f32.mrb[0].mxu0
        %2269 = vmatprep.mubr.bf16.mxu0 0
        %2270 = vmatmul.mubr.bf16.gmra.mrb[0].mxu0 %v813
        %v2271 = vpop.f32.mrb[0].mxu0
        %v2272 = vadd.f32 %v2111, %v2271
        %v2273 = vpop.f32.mrb[0].mxu0
        %v2274 = vpop.f32.mrb[0].mxu0
        %v2275 = vadd.f32 %v2114, %v2274
        %v2276 = vpop.f32.mrb[0].mxu0
        %2277 = vmatprep.mubr.bf16.mxu0 0
        %2278 = vmatmul.mubr.bf16.gmra.mrb[0].mxu0 %v814
        %v2279 = vpop.f32.mrb[0].mxu0
        %v2280 = vadd.f32 %v2119, %v2279
        %v2281 = vpop.f32.mrb[0].mxu0
        %v2282 = vpop.f32.mrb[0].mxu0
        %v2283 = vadd.f32 %v2122, %v2282
        %v2284 = vpop.f32.mrb[0].mxu0
        %2285 = vmatprep.mubr.bf16.mxu0 0
        %2286 = vmatmul.mubr.bf16.gmra.mrb[0].mxu0 %v815
        %v2287 = vpop.f32.mrb[0].mxu0
        %v2288 = vadd.f32 %v2127, %v2287
        %v2289 = vpop.f32.mrb[0].mxu0
        %v2290 = vpop.f32.mrb[0].mxu0
        %v2291 = vadd.f32 %v2130, %v2290
        %v2292 = vpop.f32.mrb[0].mxu0
        %2293 = vmatprep.mubr.bf16.mxu0 0
        %2294 = vmatmul.mubr.bf16.gmra.mrb[0].mxu0 %v816
        %v2295 = vpop.f32.mrb[0].mxu0
        %v2296 = vadd.f32 %v2135, %v2295
        %v2297 = vpop.f32.mrb[0].mxu0
        %v2298 = vpop.f32.mrb[0].mxu0
        %v2299 = vadd.f32 %v2138, %v2298
        %v2300 = vpop.f32.mrb[0].mxu0
        %2301 = vmatprep.mubr.bf16.mxu0 0
        %2302 = vmatmul.mubr.bf16.gmra.mrb[0].mxu0 %v817
        %v2303 = vpop.f32.mrb[0].mxu0
        %v2304 = vadd.f32 %v2143, %v2303
        %v2305 = vpop.f32.mrb[0].mxu0
        %v2306 = vpop.f32.mrb[0].mxu0
        %v2307 = vadd.f32 %v2146, %v2306
        %v2308 = vpop.f32.mrb[0].mxu0
        %2309 = vmatprep.mubr.bf16.mxu0 0
        %2310 = vmatmul.mubr.bf16.gmra.mrb[0].mxu0 %v818
        %v2311 = vpop.f32.mrb[0].mxu0
        %v2312 = vadd.f32 %v2151, %v2311
        %v2313 = vpop.f32.mrb[0].mxu0
        %v2314 = vpop.f32.mrb[0].mxu0
        %v2315 = vadd.f32 %v2154, %v2314
        %v2316 = vpop.f32.mrb[0].mxu0
        %2317 = vmatprep.mubr.bf16.mxu0 0
        %2318 = vmatmul.mubr.bf16.gmra.mrb[0].mxu0 %v819
        %v2319 = vpop.f32.mrb[0].mxu0
        %v2320 = vadd.f32 %v2159, %v2319
        %v2321 = vpop.f32.mrb[0].mxu0
        %v2322 = vpop.f32.mrb[0].mxu0
        %v2323 = vadd.f32 %v2162, %v2322
        %v2324 = vpop.f32.mrb[0].mxu0
        %2325 = vmatprep.mubr.bf16.mxu0 0
        %2326 = vmatmul.mubr.bf16.gmra.mrb[0].mxu0 %v820
        %v2327 = vpop.f32.mrb[0].mxu0
        %v2328 = vadd.f32 %v2167, %v2327
        %v2329 = vpop.f32.mrb[0].mxu0
        %v2330 = vpop.f32.mrb[0].mxu0
        %v2331 = vadd.f32 %v2170, %v2330
        %v2332 = vpop.f32.mrb[0].mxu0
        %2333 = vmatprep.mubr.bf16.mxu0 0
        %2334 = vmatmul.mubr.bf16.gmra.mrb[0].mxu0 %v821
        %v2335 = vpop.f32.mrb[0].mxu0
        %v2336 = vadd.f32 %v2175, %v2335
        %v2337 = vpop.f32.mrb[0].mxu0
        %v2338 = vpop.f32.mrb[0].mxu0
        %v2339 = vadd.f32 %v2178, %v2338
        %v2340 = vpop.f32.mrb[0].mxu0
        %2341 = vmatprep.mubr.bf16.mxu0 0
        %2342 = vmatmul.mubr.bf16.gmra.mrb[0].mxu0 %v822
        %v2343 = vpop.f32.mrb[0].mxu0
        %v2344 = vadd.f32 %v2183, %v2343
        %v2345 = vpop.f32.mrb[0].mxu0
        %v2346 = vpop.f32.mrb[0].mxu0
        %v2347 = vadd.f32 %v2186, %v2346
        %v2348 = vpop.f32.mrb[0].mxu0
        %2349 = vmatprep.mubr.bf16.mxu0 0
        %2350 = vmatmul.mubr.bf16.gmra.mrb[0].mxu0 %v823
        %v2351 = vpop.f32.mrb[0].mxu0
        %v2352 = vadd.f32 %v2191, %v2351
        %v2353 = vpop.f32.mrb[0].mxu0
        %v2354 = vpop.f32.mrb[0].mxu0
        %v2355 = vadd.f32 %v2194, %v2354
        %v2356 = vpop.f32.mrb[0].mxu0
        %2357 = vmatprep.mubr.bf16.mxu0 0
        %2358 = vmatmul.mubr.bf16.gmra.mrb[0].mxu0 %v824
        %v2359 = vpop.f32.mrb[0].mxu0
        %v2360 = vadd.f32 %v2199, %v2359
        %v2361 = vpop.f32.mrb[0].mxu0
        %v2362 = vpop.f32.mrb[0].mxu0
        %v2363 = vadd.f32 %v2202, %v2362
        %v2364 = vpop.f32.mrb[0].mxu0
        %2365 = vmatprep.mubr.bf16.mxu0 0
        %2366 = vmatmul.mubr.bf16.gmra.mrb[0].mxu0 %v825
        %v2367 = vpop.f32.mrb[0].mxu0
        %v2368 = vadd.f32 %v2207, %v2367
        %v2369 = vpop.f32.mrb[0].mxu0
        %v2370 = vpop.f32.mrb[0].mxu0
        %v2371 = vadd.f32 %v2210, %v2370
        %v2372 = vpop.f32.mrb[0].mxu0
        %2373 = vmatprep.mubr.bf16.mxu0 0
        %2374 = vmatmul.mubr.bf16.gmra.mrb[0].mxu0 %v826
        %v2375 = vpop.f32.mrb[0].mxu0
        %v2376 = vadd.f32 %v2215, %v2375
        %v2377 = vpop.f32.mrb[0].mxu0
        %v2378 = vpop.f32.mrb[0].mxu0
        %v2379 = vadd.f32 %v2218, %v2378
        %v2380 = vpop.f32.mrb[0].mxu0
        %2381 = vmatprep.mubr.bf16.mxu0 0
        %2382 = vmatmul.mubr.bf16.gmra.mrb[0].mxu0 %v827
        %v2383 = vpop.f32.mrb[0].mxu0
        %v2384 = vadd.f32 %v2223, %v2383
        %v2385 = vpop.f32.mrb[0].mxu0
        %v2386 = vpop.f32.mrb[0].mxu0
        %v2387 = vadd.f32 %v2226, %v2386
        %v2388 = vpop.f32.mrb[0].mxu0
        %2389 = vdwg.mxu0
        %v2390 = vadd.f32 %v1749, %v2264
        %v2391 = vadd.f32 %v1752, %v2267
        %v2392 = vadd.f32 %v1757, %v2272
        %v2393 = vadd.f32 %v1760, %v2275
        %v2394 = vadd.f32 %v1765, %v2280
        %v2395 = vadd.f32 %v1768, %v2283
        %v2396 = vadd.f32 %v1773, %v2288
        %v2397 = vadd.f32 %v1776, %v2291
        %v2398 = vadd.f32 %v1781, %v2296
        %v2399 = vadd.f32 %v1784, %v2299
        %v2400 = vadd.f32 %v1789, %v2304
        %v2401 = vadd.f32 %v1792, %v2307
        %v2402 = vadd.f32 %v1797, %v2312
        %v2403 = vadd.f32 %v1800, %v2315
        %v2404 = vadd.f32 %v1805, %v2320
        %v2405 = vadd.f32 %v1808, %v2323
        %v2406 = vadd.f32 %v1813, %v2328
        %v2407 = vadd.f32 %v1816, %v2331
        %v2408 = vadd.f32 %v1821, %v2336
        %v2409 = vadd.f32 %v1824, %v2339
        %v2410 = vadd.f32 %v1829, %v2344
        %v2411 = vadd.f32 %v1832, %v2347
        %v2412 = vadd.f32 %v1837, %v2352
        %v2413 = vadd.f32 %v1840, %v2355
        %v2414 = vadd.f32 %v1845, %v2360
        %v2415 = vadd.f32 %v1848, %v2363
        %v2416 = vadd.f32 %v1853, %v2368
        %v2417 = vadd.f32 %v1856, %v2371
        %v2418 = vadd.f32 %v1861, %v2376
        %v2419 = vadd.f32 %v1864, %v2379
        %v2420 = vadd.f32 %v1869, %v2384
        %v2421 = vadd.f32 %v1872, %v2387
        %v2422 = vld [vmem:[%s3] sm:$0x1]
        %v2424 = vlaneseq
        %v2425 = vshrl.u32 %v2424, 7
        %v2426 = vsub.s32 0, %v2425
        %v2427 = vrot.slane %v2422, %v2426
        %v2429 = vadd.f32 %v2390, %v2427
        %v2430 = vadd.f32 %v2391, %v2427
        %v2431 = vadd.f32 %v2392, %v2427
        %v2432 = vadd.f32 %v2393, %v2427
        %v2433 = vadd.f32 %v2394, %v2427
        %v2434 = vadd.f32 %v2395, %v2427
        %v2435 = vadd.f32 %v2396, %v2427
        %v2436 = vadd.f32 %v2397, %v2427
        %v2437 = vadd.f32 %v2398, %v2427
        %v2438 = vadd.f32 %v2399, %v2427
        %v2439 = vadd.f32 %v2400, %v2427
        %v2440 = vadd.f32 %v2401, %v2427
        %v2441 = vadd.f32 %v2402, %v2427
        %v2442 = vadd.f32 %v2403, %v2427
        %v2443 = vadd.f32 %v2404, %v2427
        %v2444 = vadd.f32 %v2405, %v2427
        %v2445 = vadd.f32 %v2406, %v2427
        %v2446 = vadd.f32 %v2407, %v2427
        %v2447 = vadd.f32 %v2408, %v2427
        %v2448 = vadd.f32 %v2409, %v2427
        %v2449 = vadd.f32 %v2410, %v2427
        %v2450 = vadd.f32 %v2411, %v2427
        %v2451 = vadd.f32 %v2412, %v2427
        %v2452 = vadd.f32 %v2413, %v2427
        %v2453 = vadd.f32 %v2414, %v2427
        %v2454 = vadd.f32 %v2415, %v2427
        %v2455 = vadd.f32 %v2416, %v2427
        %v2456 = vadd.f32 %v2417, %v2427
        %v2457 = vadd.f32 %v2418, %v2427
        %v2458 = vadd.f32 %v2419, %v2427
        %v2459 = vadd.f32 %v2420, %v2427
        %v2460 = vadd.f32 %v2421, %v2427
        %v2461 = vmul.f32 %v2429, %v2429
        %v2462 = vmul.f32 %v2430, %v2430
        %v2463 = vmul.f32 %v2431, %v2431
        %v2464 = vmul.f32 %v2432, %v2432
        %v2465 = vmul.f32 %v2433, %v2433
        %v2466 = vmul.f32 %v2434, %v2434
        %v2467 = vmul.f32 %v2435, %v2435
        %v2468 = vmul.f32 %v2436, %v2436
        %v2469 = vmul.f32 %v2437, %v2437
        %v2470 = vmul.f32 %v2438, %v2438
        %v2471 = vmul.f32 %v2439, %v2439
        %v2472 = vmul.f32 %v2440, %v2440
        %v2473 = vmul.f32 %v2441, %v2441
        %v2474 = vmul.f32 %v2442, %v2442
        %v2475 = vmul.f32 %v2443, %v2443
        %v2476 = vmul.f32 %v2444, %v2444
        %v2477 = vmul.f32 %v2445, %v2445
        %v2478 = vmul.f32 %v2446, %v2446
        %v2479 = vmul.f32 %v2447, %v2447
        %v2480 = vmul.f32 %v2448, %v2448
        %v2481 = vmul.f32 %v2449, %v2449
        %v2482 = vmul.f32 %v2450, %v2450
        %v2483 = vmul.f32 %v2451, %v2451
        %v2484 = vmul.f32 %v2452, %v2452
        %v2485 = vmul.f32 %v2453, %v2453
        %v2486 = vmul.f32 %v2454, %v2454
        %v2487 = vmul.f32 %v2455, %v2455
        %v2488 = vmul.f32 %v2456, %v2456
        %v2489 = vmul.f32 %v2457, %v2457
        %v2490 = vmul.f32 %v2458, %v2458
        %v2491 = vmul.f32 %v2459, %v2459
        %v2492 = vmul.f32 %v2460, %v2460
        %2493 = vadd.xlane.f32.xlu0 %v2461
        %v2494 = vpop.xlane.xlu0 %2493
        %2495 = vadd.xlane.f32.xlu0 %v2462
        %v2496 = vpop.xlane.xlu0 %2495
        %2497 = vadd.xlane.f32.xlu0 %v2463
        %v2498 = vpop.xlane.xlu0 %2497
        %2499 = vadd.xlane.f32.xlu0 %v2464
        %v2500 = vpop.xlane.xlu0 %2499
        %2501 = vadd.xlane.f32.xlu0 %v2465
        %v2502 = vpop.xlane.xlu0 %2501
        %2503 = vadd.xlane.f32.xlu0 %v2466
        %v2504 = vpop.xlane.xlu0 %2503
        %2505 = vadd.xlane.f32.xlu0 %v2467
        %v2506 = vpop.xlane.xlu0 %2505
        %2507 = vadd.xlane.f32.xlu0 %v2468
        %v2508 = vpop.xlane.xlu0 %2507
        %2509 = vadd.xlane.f32.xlu0 %v2469
        %v2510 = vpop.xlane.xlu0 %2509
        %2511 = vadd.xlane.f32.xlu0 %v2470
        %v2512 = vpop.xlane.xlu0 %2511
        %2513 = vadd.xlane.f32.xlu0 %v2471
        %v2514 = vpop.xlane.xlu0 %2513
        %2515 = vadd.xlane.f32.xlu0 %v2472
        %v2516 = vpop.xlane.xlu0 %2515
        %2517 = vadd.xlane.f32.xlu0 %v2473
        %v2518 = vpop.xlane.xlu0 %2517
        %2519 = vadd.xlane.f32.xlu0 %v2474
        %v2520 = vpop.xlane.xlu0 %2519
        %2521 = vadd.xlane.f32.xlu0 %v2475
        %v2522 = vpop.xlane.xlu0 %2521
        %2523 = vadd.xlane.f32.xlu0 %v2476
        %v2524 = vpop.xlane.xlu0 %2523
        %2525 = vadd.xlane.f32.xlu0 %v2477
        %v2526 = vpop.xlane.xlu0 %2525
        %2527 = vadd.xlane.f32.xlu0 %v2478
        %v2528 = vpop.xlane.xlu0 %2527
        %2529 = vadd.xlane.f32.xlu0 %v2479
        %v2530 = vpop.xlane.xlu0 %2529
        %2531 = vadd.xlane.f32.xlu0 %v2480
        %v2532 = vpop.xlane.xlu0 %2531
        %2533 = vadd.xlane.f32.xlu0 %v2481
        %v2534 = vpop.xlane.xlu0 %2533
        %2535 = vadd.xlane.f32.xlu0 %v2482
        %v2536 = vpop.xlane.xlu0 %2535
        %2537 = vadd.xlane.f32.xlu0 %v2483
        %v2538 = vpop.xlane.xlu0 %2537
        %2539 = vadd.xlane.f32.xlu0 %v2484
        %v2540 = vpop.xlane.xlu0 %2539
        %2541 = vadd.xlane.f32.xlu0 %v2485
        %v2542 = vpop.xlane.xlu0 %2541
        %2543 = vadd.xlane.f32.xlu0 %v2486
        %v2544 = vpop.xlane.xlu0 %2543
        %2545 = vadd.xlane.f32.xlu0 %v2487
        %v2546 = vpop.xlane.xlu0 %2545
        %2547 = vadd.xlane.f32.xlu0 %v2488
        %v2548 = vpop.xlane.xlu0 %2547
        %2549 = vadd.xlane.f32.xlu0 %v2489
        %v2550 = vpop.xlane.xlu0 %2549
        %2551 = vadd.xlane.f32.xlu0 %v2490
        %v2552 = vpop.xlane.xlu0 %2551
        %2553 = vadd.xlane.f32.xlu0 %v2491
        %v2554 = vpop.xlane.xlu0 %2553
        %2555 = vadd.xlane.f32.xlu0 %v2492
        %v2556 = vpop.xlane.xlu0 %2555
        %v2557 = vmax.f32 %v2494, 1e-24
        %v2558 = vmax.f32 %v2496, 1e-24
        %v2559 = vmax.f32 %v2498, 1e-24
        %v2560 = vmax.f32 %v2500, 1e-24
        %v2561 = vmax.f32 %v2502, 1e-24
        %v2562 = vmax.f32 %v2504, 1e-24
        %v2563 = vmax.f32 %v2506, 1e-24
        %v2564 = vmax.f32 %v2508, 1e-24
        %v2565 = vmax.f32 %v2510, 1e-24
        %v2566 = vmax.f32 %v2512, 1e-24
        %v2567 = vmax.f32 %v2514, 1e-24
        %v2568 = vmax.f32 %v2516, 1e-24
        %v2569 = vmax.f32 %v2518, 1e-24
        %v2570 = vmax.f32 %v2520, 1e-24
        %v2571 = vmax.f32 %v2522, 1e-24
        %v2572 = vmax.f32 %v2524, 1e-24
        %v2573 = vmax.f32 %v2526, 1e-24
        %v2574 = vmax.f32 %v2528, 1e-24
        %v2575 = vmax.f32 %v2530, 1e-24
        %v2576 = vmax.f32 %v2532, 1e-24
        %v2577 = vmax.f32 %v2534, 1e-24
        %v2578 = vmax.f32 %v2536, 1e-24
        %v2579 = vmax.f32 %v2538, 1e-24
        %v2580 = vmax.f32 %v2540, 1e-24
        %v2581 = vmax.f32 %v2542, 1e-24
        %v2582 = vmax.f32 %v2544, 1e-24
        %v2583 = vmax.f32 %v2546, 1e-24
        %v2584 = vmax.f32 %v2548, 1e-24
        %v2585 = vmax.f32 %v2550, 1e-24
        %v2586 = vmax.f32 %v2552, 1e-24
        %v2587 = vmax.f32 %v2554, 1e-24
        %v2588 = vmax.f32 %v2556, 1e-24
        %v2589 = vrsqrt.pop %v2557
        %v2590 = vrsqrt.pop %v2558
        %v2591 = vrsqrt.pop %v2559
        %v2592 = vrsqrt.pop %v2560
        %v2593 = vrsqrt.pop %v2561
        %v2594 = vrsqrt.pop %v2562
        %v2595 = vrsqrt.pop %v2563
        %v2596 = vrsqrt.pop %v2564
        %v2597 = vrsqrt.pop %v2565
        %v2598 = vrsqrt.pop %v2566
        %v2599 = vrsqrt.pop %v2567
        %v2600 = vrsqrt.pop %v2568
        %v2601 = vrsqrt.pop %v2569
        %v2602 = vrsqrt.pop %v2570
        %v2603 = vrsqrt.pop %v2571
        %v2604 = vrsqrt.pop %v2572
        %v2605 = vrsqrt.pop %v2573
        %v2606 = vrsqrt.pop %v2574
        %v2607 = vrsqrt.pop %v2575
        %v2608 = vrsqrt.pop %v2576
        %v2609 = vrsqrt.pop %v2577
        %v2610 = vrsqrt.pop %v2578
        %v2611 = vrsqrt.pop %v2579
        %v2612 = vrsqrt.pop %v2580
        %v2613 = vrsqrt.pop %v2581
        %v2614 = vrsqrt.pop %v2582
        %v2615 = vrsqrt.pop %v2583
        %v2616 = vrsqrt.pop %v2584
        %v2617 = vrsqrt.pop %v2585
        %v2618 = vrsqrt.pop %v2586
        %v2619 = vrsqrt.pop %v2587
        %v2620 = vrsqrt.pop %v2588
        %v2621 = vmul.f32 %v2429, %v2589
        %v2622 = vmul.f32 %v2430, %v2590
        %v2623 = vmul.f32 %v2431, %v2591
        %v2624 = vmul.f32 %v2432, %v2592
        %v2625 = vmul.f32 %v2433, %v2593
        %v2626 = vmul.f32 %v2434, %v2594
        %v2627 = vmul.f32 %v2435, %v2595
        %v2628 = vmul.f32 %v2436, %v2596
        %v2629 = vmul.f32 %v2437, %v2597
        %v2630 = vmul.f32 %v2438, %v2598
        %v2631 = vmul.f32 %v2439, %v2599
        %v2632 = vmul.f32 %v2440, %v2600
        %v2633 = vmul.f32 %v2441, %v2601
        %v2634 = vmul.f32 %v2442, %v2602
        %v2635 = vmul.f32 %v2443, %v2603
        %v2636 = vmul.f32 %v2444, %v2604
        %v2637 = vmul.f32 %v2445, %v2605
        %v2638 = vmul.f32 %v2446, %v2606
        %v2639 = vmul.f32 %v2447, %v2607
        %v2640 = vmul.f32 %v2448, %v2608
        %v2641 = vmul.f32 %v2449, %v2609
        %v2642 = vmul.f32 %v2450, %v2610
        %v2643 = vmul.f32 %v2451, %v2611
        %v2644 = vmul.f32 %v2452, %v2612
        %v2645 = vmul.f32 %v2453, %v2613
        %v2646 = vmul.f32 %v2454, %v2614
        %v2647 = vmul.f32 %v2455, %v2615
        %v2648 = vmul.f32 %v2456, %v2616
        %v2649 = vmul.f32 %v2457, %v2617
        %v2650 = vmul.f32 %v2458, %v2618
        %v2651 = vmul.f32 %v2459, %v2619
        %v2652 = vmul.f32 %v2460, %v2620
        %v2653 = vld [vmem:[%s4] sm:$0x1]
        %v2655 = vlaneseq
        %v2656 = vshrl.u32 %v2655, 7
        %v2657 = vsub.s32 0, %v2656
        %v2658 = vrot.slane %v2653, %v2657
        %v2660 = vmul.f32 %v2621, %v2658
        %v2661 = vmul.f32 %v2622, %v2658
        %v2662 = vmul.f32 %v2623, %v2658
        %v2663 = vmul.f32 %v2624, %v2658
        %v2664 = vmul.f32 %v2625, %v2658
        %v2665 = vmul.f32 %v2626, %v2658
        %v2666 = vmul.f32 %v2627, %v2658
        %v2667 = vmul.f32 %v2628, %v2658
        %v2668 = vmul.f32 %v2629, %v2658
        %v2669 = vmul.f32 %v2630, %v2658
        %v2670 = vmul.f32 %v2631, %v2658
        %v2671 = vmul.f32 %v2632, %v2658
        %v2672 = vmul.f32 %v2633, %v2658
        %v2673 = vmul.f32 %v2634, %v2658
        %v2674 = vmul.f32 %v2635, %v2658
        %v2675 = vmul.f32 %v2636, %v2658
        %v2676 = vmul.f32 %v2637, %v2658
        %v2677 = vmul.f32 %v2638, %v2658
        %v2678 = vmul.f32 %v2639, %v2658
        %v2679 = vmul.f32 %v2640, %v2658
        %v2680 = vmul.f32 %v2641, %v2658
        %v2681 = vmul.f32 %v2642, %v2658
        %v2682 = vmul.f32 %v2643, %v2658
        %v2683 = vmul.f32 %v2644, %v2658
        %v2684 = vmul.f32 %v2645, %v2658
        %v2685 = vmul.f32 %v2646, %v2658
        %v2686 = vmul.f32 %v2647, %v2658
        %v2687 = vmul.f32 %v2648, %v2658
        %v2688 = vmul.f32 %v2649, %v2658
        %v2689 = vmul.f32 %v2650, %v2658
        %v2690 = vmul.f32 %v2651, %v2658
        %v2691 = vmul.f32 %v2652, %v2658
        %v2692 = vadd.f32 %v496, 1.0
        %v2694 = vlaneseq
        %v2695 = vshrl.u32 %v2694, 7
        %v2696 = vsub.s32 0, %v2695
        %v2697 = vrot.slane %v2692, %v2696
        %v2699 = vmul.f32 %v2660, %v2697
        %v2700 = vmul.f32 %v2661, %v2697
        %v2701 = vmul.f32 %v2662, %v2697
        %v2702 = vmul.f32 %v2663, %v2697
        %v2703 = vmul.f32 %v2664, %v2697
        %v2704 = vmul.f32 %v2665, %v2697
        %v2705 = vmul.f32 %v2666, %v2697
        %v2706 = vmul.f32 %v2667, %v2697
        %v2707 = vmul.f32 %v2668, %v2697
        %v2708 = vmul.f32 %v2669, %v2697
        %v2709 = vmul.f32 %v2670, %v2697
        %v2710 = vmul.f32 %v2671, %v2697
        %v2711 = vmul.f32 %v2672, %v2697
        %v2712 = vmul.f32 %v2673, %v2697
        %v2713 = vmul.f32 %v2674, %v2697
        %v2714 = vmul.f32 %v2675, %v2697
        %v2715 = vmul.f32 %v2676, %v2697
        %v2716 = vmul.f32 %v2677, %v2697
        %v2717 = vmul.f32 %v2678, %v2697
        %v2718 = vmul.f32 %v2679, %v2697
        %v2719 = vmul.f32 %v2680, %v2697
        %v2720 = vmul.f32 %v2681, %v2697
        %v2721 = vmul.f32 %v2682, %v2697
        %v2722 = vmul.f32 %v2683, %v2697
        %v2723 = vmul.f32 %v2684, %v2697
        %v2724 = vmul.f32 %v2685, %v2697
        %v2725 = vmul.f32 %v2686, %v2697
        %v2726 = vmul.f32 %v2687, %v2697
        %v2727 = vmul.f32 %v2688, %v2697
        %v2728 = vmul.f32 %v2689, %v2697
        %v2729 = vmul.f32 %v2690, %v2697
        %v2730 = vmul.f32 %v2691, %v2697
        %v2732 = vlaneseq
        %v2733 = vshrl.u32 %v2732, 7
        %v2734 = vsub.s32 0, %v2733
        %v2735 = vrot.slane %v497, %v2734
        %v2737 = vadd.f32 %v2699, %v2735
        %v2738 = vadd.f32 %v2700, %v2735
        %v2739 = vadd.f32 %v2701, %v2735
        %v2740 = vadd.f32 %v2702, %v2735
        %v2741 = vadd.f32 %v2703, %v2735
        %v2742 = vadd.f32 %v2704, %v2735
        %v2743 = vadd.f32 %v2705, %v2735
        %v2744 = vadd.f32 %v2706, %v2735
        %v2745 = vadd.f32 %v2707, %v2735
        %v2746 = vadd.f32 %v2708, %v2735
        %v2747 = vadd.f32 %v2709, %v2735
        %v2748 = vadd.f32 %v2710, %v2735
        %v2749 = vadd.f32 %v2711, %v2735
        %v2750 = vadd.f32 %v2712, %v2735
        %v2751 = vadd.f32 %v2713, %v2735
        %v2752 = vadd.f32 %v2714, %v2735
        %v2753 = vadd.f32 %v2715, %v2735
        %v2754 = vadd.f32 %v2716, %v2735
        %v2755 = vadd.f32 %v2717, %v2735
        %v2756 = vadd.f32 %v2718, %v2735
        %v2757 = vadd.f32 %v2719, %v2735
        %v2758 = vadd.f32 %v2720, %v2735
        %v2759 = vadd.f32 %v2721, %v2735
        %v2760 = vadd.f32 %v2722, %v2735
        %v2761 = vadd.f32 %v2723, %v2735
        %v2762 = vadd.f32 %v2724, %v2735
        %v2763 = vadd.f32 %v2725, %v2735
        %v2764 = vadd.f32 %v2726, %v2735
        %v2765 = vadd.f32 %v2727, %v2735
        %v2766 = vadd.f32 %v2728, %v2735
        %v2767 = vadd.f32 %v2729, %v2735
        %v2768 = vadd.f32 %v2730, %v2735
        %v2769 = vxor.u32 %v2737, 2147483648
        %v2770 = vxor.u32 %v2738, 2147483648
        %v2771 = vxor.u32 %v2739, 2147483648
        %v2772 = vxor.u32 %v2740, 2147483648
        %v2773 = vxor.u32 %v2741, 2147483648
        %v2774 = vxor.u32 %v2742, 2147483648
        %v2775 = vxor.u32 %v2743, 2147483648
        %v2776 = vxor.u32 %v2744, 2147483648
        %v2777 = vxor.u32 %v2745, 2147483648
        %v2778 = vxor.u32 %v2746, 2147483648
        %v2779 = vxor.u32 %v2747, 2147483648
        %v2780 = vxor.u32 %v2748, 2147483648
        %v2781 = vxor.u32 %v2749, 2147483648
        %v2782 = vxor.u32 %v2750, 2147483648
        %v2783 = vxor.u32 %v2751, 2147483648
        %v2784 = vxor.u32 %v2752, 2147483648
        %v2785 = vxor.u32 %v2753, 2147483648
        %v2786 = vxor.u32 %v2754, 2147483648
        %v2787 = vxor.u32 %v2755, 2147483648
        %v2788 = vxor.u32 %v2756, 2147483648
        %v2789 = vxor.u32 %v2757, 2147483648
        %v2790 = vxor.u32 %v2758, 2147483648
        %v2791 = vxor.u32 %v2759, 2147483648
        %v2792 = vxor.u32 %v2760, 2147483648
        %v2793 = vxor.u32 %v2761, 2147483648
        %v2794 = vxor.u32 %v2762, 2147483648
        %v2795 = vxor.u32 %v2763, 2147483648
        %v2796 = vxor.u32 %v2764, 2147483648
        %v2797 = vxor.u32 %v2765, 2147483648
        %v2798 = vxor.u32 %v2766, 2147483648
        %v2799 = vxor.u32 %v2767, 2147483648
        %v2800 = vxor.u32 %v2768, 2147483648
        %v2801 = vmul.f32 %v2769, 1.442695
        %v2802 = vpow.pop %v2801
        %v2803 = vmul.f32 %v2770, 1.442695
        %v2804 = vpow.pop %v2803
        %v2805 = vmul.f32 %v2771, 1.442695
        %v2806 = vpow.pop %v2805
        %v2807 = vmul.f32 %v2772, 1.442695
        %v2808 = vpow.pop %v2807
        %v2809 = vmul.f32 %v2773, 1.442695
        %v2810 = vpow.pop %v2809
        %v2811 = vmul.f32 %v2774, 1.442695
        %v2812 = vpow.pop %v2811
        %v2813 = vmul.f32 %v2775, 1.442695
        %v2814 = vpow.pop %v2813
        %v2815 = vmul.f32 %v2776, 1.442695
        %v2816 = vpow.pop %v2815
        %v2817 = vmul.f32 %v2777, 1.442695
        %v2818 = vpow.pop %v2817
        %v2819 = vmul.f32 %v2778, 1.442695
        %v2820 = vpow.pop %v2819
        %v2821 = vmul.f32 %v2779, 1.442695
        %v2822 = vpow.pop %v2821
        %v2823 = vmul.f32 %v2780, 1.442695
        %v2824 = vpow.pop %v2823
        %v2825 = vmul.f32 %v2781, 1.442695
        %v2826 = vpow.pop %v2825
        %v2827 = vmul.f32 %v2782, 1.442695
        %v2828 = vpow.pop %v2827
        %v2829 = vmul.f32 %v2783, 1.442695
        %v2830 = vpow.pop %v2829
        %v2831 = vmul.f32 %v2784, 1.442695
        %v2832 = vpow.pop %v2831
        %v2833 = vmul.f32 %v2785, 1.442695
        %v2834 = vpow.pop %v2833
        %v2835 = vmul.f32 %v2786, 1.442695
        %v2836 = vpow.pop %v2835
        %v2837 = vmul.f32 %v2787, 1.442695
        %v2838 = vpow.pop %v2837
        %v2839 = vmul.f32 %v2788, 1.442695
        %v2840 = vpow.pop %v2839
        %v2841 = vmul.f32 %v2789, 1.442695
        %v2842 = vpow.pop %v2841
        %v2843 = vmul.f32 %v2790, 1.442695
        %v2844 = vpow.pop %v2843
        %v2845 = vmul.f32 %v2791, 1.442695
        %v2846 = vpow.pop %v2845
        %v2847 = vmul.f32 %v2792, 1.442695
        %v2848 = vpow.pop %v2847
        %v2849 = vmul.f32 %v2793, 1.442695
        %v2850 = vpow.pop %v2849
        %v2851 = vmul.f32 %v2794, 1.442695
        %v2852 = vpow.pop %v2851
        %v2853 = vmul.f32 %v2795, 1.442695
        %v2854 = vpow.pop %v2853
        %v2855 = vmul.f32 %v2796, 1.442695
        %v2856 = vpow.pop %v2855
        %v2857 = vmul.f32 %v2797, 1.442695
        %v2858 = vpow.pop %v2857
        %v2859 = vmul.f32 %v2798, 1.442695
        %v2860 = vpow.pop %v2859
        %v2861 = vmul.f32 %v2799, 1.442695
        %v2862 = vpow.pop %v2861
        %v2863 = vmul.f32 %v2800, 1.442695
        %v2864 = vpow.pop %v2863
        %v2865 = vadd.f32 %v2802, 1.0
        %v2866 = vadd.f32 %v2804, 1.0
        %v2867 = vadd.f32 %v2806, 1.0
        %v2868 = vadd.f32 %v2808, 1.0
        %v2869 = vadd.f32 %v2810, 1.0
        %v2870 = vadd.f32 %v2812, 1.0
        %v2871 = vadd.f32 %v2814, 1.0
        %v2872 = vadd.f32 %v2816, 1.0
        %v2873 = vadd.f32 %v2818, 1.0
        %v2874 = vadd.f32 %v2820, 1.0
        %v2875 = vadd.f32 %v2822, 1.0
        %v2876 = vadd.f32 %v2824, 1.0
        %v2877 = vadd.f32 %v2826, 1.0
        %v2878 = vadd.f32 %v2828, 1.0
        %v2879 = vadd.f32 %v2830, 1.0
        %v2880 = vadd.f32 %v2832, 1.0
        %v2881 = vadd.f32 %v2834, 1.0
        %v2882 = vadd.f32 %v2836, 1.0
        %v2883 = vadd.f32 %v2838, 1.0
        %v2884 = vadd.f32 %v2840, 1.0
        %v2885 = vadd.f32 %v2842, 1.0
        %v2886 = vadd.f32 %v2844, 1.0
        %v2887 = vadd.f32 %v2846, 1.0
        %v2888 = vadd.f32 %v2848, 1.0
        %v2889 = vadd.f32 %v2850, 1.0
        %v2890 = vadd.f32 %v2852, 1.0
        %v2891 = vadd.f32 %v2854, 1.0
        %v2892 = vadd.f32 %v2856, 1.0
        %v2893 = vadd.f32 %v2858, 1.0
        %v2894 = vadd.f32 %v2860, 1.0
        %v2895 = vadd.f32 %v2862, 1.0
        %v2896 = vadd.f32 %v2864, 1.0
        %v2897 = vrcp.pop %v2865
        %v2898 = vmul.f32 1.0, %v2897
        %v2899 = vrcp.pop %v2866
        %v2900 = vmul.f32 1.0, %v2899
        %v2901 = vrcp.pop %v2867
        %v2902 = vmul.f32 1.0, %v2901
        %v2903 = vrcp.pop %v2868
        %v2904 = vmul.f32 1.0, %v2903
        %v2905 = vrcp.pop %v2869
        %v2906 = vmul.f32 1.0, %v2905
        %v2907 = vrcp.pop %v2870
        %v2908 = vmul.f32 1.0, %v2907
        %v2909 = vrcp.pop %v2871
        %v2910 = vmul.f32 1.0, %v2909
        %v2911 = vrcp.pop %v2872
        %v2912 = vmul.f32 1.0, %v2911
        %v2913 = vrcp.pop %v2873
        %v2914 = vmul.f32 1.0, %v2913
        %v2915 = vrcp.pop %v2874
        %v2916 = vmul.f32 1.0, %v2915
        %v2917 = vrcp.pop %v2875
        %v2918 = vmul.f32 1.0, %v2917
        %v2919 = vrcp.pop %v2876
        %v2920 = vmul.f32 1.0, %v2919
        %v2921 = vrcp.pop %v2877
        %v2922 = vmul.f32 1.0, %v2921
        %v2923 = vrcp.pop %v2878
        %v2924 = vmul.f32 1.0, %v2923
        %v2925 = vrcp.pop %v2879
        %v2926 = vmul.f32 1.0, %v2925
        %v2927 = vrcp.pop %v2880
        %v2928 = vmul.f32 1.0, %v2927
        %v2929 = vrcp.pop %v2881
        %v2930 = vmul.f32 1.0, %v2929
        %v2931 = vrcp.pop %v2882
        %v2932 = vmul.f32 1.0, %v2931
        %v2933 = vrcp.pop %v2883
        %v2934 = vmul.f32 1.0, %v2933
        %v2935 = vrcp.pop %v2884
        %v2936 = vmul.f32 1.0, %v2935
        %v2937 = vrcp.pop %v2885
        %v2938 = vmul.f32 1.0, %v2937
        %v2939 = vrcp.pop %v2886
        %v2940 = vmul.f32 1.0, %v2939
        %v2941 = vrcp.pop %v2887
        %v2942 = vmul.f32 1.0, %v2941
        %v2943 = vrcp.pop %v2888
        %v2944 = vmul.f32 1.0, %v2943
        %v2945 = vrcp.pop %v2889
        %v2946 = vmul.f32 1.0, %v2945
        %v2947 = vrcp.pop %v2890
        %v2948 = vmul.f32 1.0, %v2947
        %v2949 = vrcp.pop %v2891
        %v2950 = vmul.f32 1.0, %v2949
        %v2951 = vrcp.pop %v2892
        %v2952 = vmul.f32 1.0, %v2951
        %v2953 = vrcp.pop %v2893
        %v2954 = vmul.f32 1.0, %v2953
        %v2955 = vrcp.pop %v2894
        %v2956 = vmul.f32 1.0, %v2955
        %v2957 = vrcp.pop %v2895
        %v2958 = vmul.f32 1.0, %v2957
        %v2959 = vrcp.pop %v2896
        %v2960 = vmul.f32 1.0, %v2959
        %v2961 = vmul.f32 %v2737, %v2898
        %v2962 = vmul.f32 %v2738, %v2900
        %v2963 = vmul.f32 %v2739, %v2902
        %v2964 = vmul.f32 %v2740, %v2904
        %v2965 = vmul.f32 %v2741, %v2906
        %v2966 = vmul.f32 %v2742, %v2908
        %v2967 = vmul.f32 %v2743, %v2910
        %v2968 = vmul.f32 %v2744, %v2912
        %v2969 = vmul.f32 %v2745, %v2914
        %v2970 = vmul.f32 %v2746, %v2916
        %v2971 = vmul.f32 %v2747, %v2918
        %v2972 = vmul.f32 %v2748, %v2920
        %v2973 = vmul.f32 %v2749, %v2922
        %v2974 = vmul.f32 %v2750, %v2924
        %v2975 = vmul.f32 %v2751, %v2926
        %v2976 = vmul.f32 %v2752, %v2928
        %v2977 = vmul.f32 %v2753, %v2930
        %v2978 = vmul.f32 %v2754, %v2932
        %v2979 = vmul.f32 %v2755, %v2934
        %v2980 = vmul.f32 %v2756, %v2936
        %v2981 = vmul.f32 %v2757, %v2938
        %v2982 = vmul.f32 %v2758, %v2940
        %v2983 = vmul.f32 %v2759, %v2942
        %v2984 = vmul.f32 %v2760, %v2944
        %v2985 = vmul.f32 %v2761, %v2946
        %v2986 = vmul.f32 %v2762, %v2948
        %v2987 = vmul.f32 %v2763, %v2950
        %v2988 = vmul.f32 %v2764, %v2952
        %v2989 = vmul.f32 %v2765, %v2954
        %v2990 = vmul.f32 %v2766, %v2956
        %v2991 = vmul.f32 %v2767, %v2958
        %v2992 = vmul.f32 %v2768, %v2960
        %v2993 = vpack.c.bf16 %v2962, %v2961
        %v2994 = vpack.c.bf16 %v2964, %v2963
        %v2995 = vpack.c.bf16 %v2966, %v2965
        %v2996 = vpack.c.bf16 %v2968, %v2967
        %v2997 = vpack.c.bf16 %v2970, %v2969
        %v2998 = vpack.c.bf16 %v2972, %v2971
        %v2999 = vpack.c.bf16 %v2974, %v2973
        %v3000 = vpack.c.bf16 %v2976, %v2975
        %v3001 = vpack.c.bf16 %v2978, %v2977
        %v3002 = vpack.c.bf16 %v2980, %v2979
        %v3003 = vpack.c.bf16 %v2982, %v2981
        %v3004 = vpack.c.bf16 %v2984, %v2983
        %v3005 = vpack.c.bf16 %v2986, %v2985
        %v3006 = vpack.c.bf16 %v2988, %v2987
        %v3007 = vpack.c.bf16 %v2990, %v2989
        %v3008 = vpack.c.bf16 %v2992, %v2991
        %v3010 = vshrl.u32 0, 16
        %v3012 = vrot.slane %v3010, 7
        %v3013 = vshll.u32 0, 16
        %v3015 = vor.u32 %v3012, %v3013
        %v3017 = vshrl.u32 %v2993, 16
        %v3019 = vrot.slane %v3017, 7
        %v3020 = vshll.u32 %v2993, 16
        %v3022 = vor.u32 %v3019, %v3020
        %v3024 = vshrl.u32 %v2994, 16
        %v3026 = vrot.slane %v3024, 7
        %v3027 = vshll.u32 %v2994, 16
        %v3029 = vor.u32 %v3026, %v3027
        %v3031 = vshrl.u32 %v2995, 16
        %v3033 = vrot.slane %v3031, 7
        %v3034 = vshll.u32 %v2995, 16
        %v3036 = vor.u32 %v3033, %v3034
        %v3038 = vshrl.u32 %v2996, 16
        %v3040 = vrot.slane %v3038, 7
        %v3041 = vshll.u32 %v2996, 16
        %v3043 = vor.u32 %v3040, %v3041
        %v3045 = vshrl.u32 %v2997, 16
        %v3047 = vrot.slane %v3045, 7
        %v3048 = vshll.u32 %v2997, 16
        %v3050 = vor.u32 %v3047, %v3048
        %v3052 = vshrl.u32 %v2998, 16
        %v3054 = vrot.slane %v3052, 7
        %v3055 = vshll.u32 %v2998, 16
        %v3057 = vor.u32 %v3054, %v3055
        %v3059 = vshrl.u32 %v2999, 16
        %v3061 = vrot.slane %v3059, 7
        %v3062 = vshll.u32 %v2999, 16
        %v3064 = vor.u32 %v3061, %v3062
        %v3066 = vshrl.u32 %v3000, 16
        %v3068 = vrot.slane %v3066, 7
        %v3069 = vshll.u32 %v3000, 16
        %v3071 = vor.u32 %v3068, %v3069
        %v3073 = vshrl.u32 %v3001, 16
        %v3075 = vrot.slane %v3073, 7
        %v3076 = vshll.u32 %v3001, 16
        %v3078 = vor.u32 %v3075, %v3076
        %v3080 = vshrl.u32 %v3002, 16
        %v3082 = vrot.slane %v3080, 7
        %v3083 = vshll.u32 %v3002, 16
        %v3085 = vor.u32 %v3082, %v3083
        %v3087 = vshrl.u32 %v3003, 16
        %v3089 = vrot.slane %v3087, 7
        %v3090 = vshll.u32 %v3003, 16
        %v3092 = vor.u32 %v3089, %v3090
        %v3094 = vshrl.u32 %v3004, 16
        %v3096 = vrot.slane %v3094, 7
        %v3097 = vshll.u32 %v3004, 16
        %v3099 = vor.u32 %v3096, %v3097
        %v3101 = vshrl.u32 %v3005, 16
        %v3103 = vrot.slane %v3101, 7
        %v3104 = vshll.u32 %v3005, 16
        %v3106 = vor.u32 %v3103, %v3104
        %v3108 = vshrl.u32 %v3006, 16
        %v3110 = vrot.slane %v3108, 7
        %v3111 = vshll.u32 %v3006, 16
        %v3113 = vor.u32 %v3110, %v3111
        %v3115 = vshrl.u32 %v3007, 16
        %v3117 = vrot.slane %v3115, 7
        %v3118 = vshll.u32 %v3007, 16
        %v3120 = vor.u32 %v3117, %v3118
        %v3122 = vshrl.u32 %v3008, 16
        %v3124 = vrot.slane %v3122, 7
        %v3125 = vshll.u32 %v3008, 16
        %v3127 = vor.u32 %v3124, %v3125
        %v3145 = vsel %vm734, 0, %v3015
        %v3146 = vsel %vm734, 0, %v3022
        %v3147 = vsel %vm734, 0, %v3029
        %v3148 = vsel %vm734, 0, %v3036
        %v3149 = vsel %vm734, 0, %v3043
        %v3150 = vsel %vm734, 0, %v3050
        %v3151 = vsel %vm734, 0, %v3057
        %v3152 = vsel %vm734, 0, %v3064
        %v3153 = vsel %vm734, 0, %v3071
        %v3154 = vsel %vm734, 0, %v3078
        %v3155 = vsel %vm734, 0, %v3085
        %v3156 = vsel %vm734, 0, %v3092
        %v3157 = vsel %vm734, 0, %v3099
        %v3158 = vsel %vm734, 0, %v3106
        %v3159 = vsel %vm734, 0, %v3113
        %v3160 = vsel %vm734, 0, %v3120
        %v3161 = vsel %vm734, 0, %v3127
        %v3162 = vrot.slane %v3013, 1
        %v3163 = vor.u32 %v3010, %v3162
        %v3164 = vrot.slane %v3020, 1
        %v3165 = vor.u32 %v3017, %v3164
        %v3166 = vrot.slane %v3027, 1
        %v3167 = vor.u32 %v3024, %v3166
        %v3168 = vrot.slane %v3034, 1
        %v3169 = vor.u32 %v3031, %v3168
        %v3170 = vrot.slane %v3041, 1
        %v3171 = vor.u32 %v3038, %v3170
        %v3172 = vrot.slane %v3048, 1
        %v3173 = vor.u32 %v3045, %v3172
        %v3174 = vrot.slane %v3055, 1
        %v3175 = vor.u32 %v3052, %v3174
        %v3176 = vrot.slane %v3062, 1
        %v3177 = vor.u32 %v3059, %v3176
        %v3178 = vrot.slane %v3069, 1
        %v3179 = vor.u32 %v3066, %v3178
        %v3180 = vrot.slane %v3076, 1
        %v3181 = vor.u32 %v3073, %v3180
        %v3182 = vrot.slane %v3083, 1
        %v3183 = vor.u32 %v3080, %v3182
        %v3184 = vrot.slane %v3090, 1
        %v3185 = vor.u32 %v3087, %v3184
        %v3186 = vrot.slane %v3097, 1
        %v3187 = vor.u32 %v3094, %v3186
        %v3188 = vrot.slane %v3104, 1
        %v3189 = vor.u32 %v3101, %v3188
        %v3190 = vrot.slane %v3111, 1
        %v3191 = vor.u32 %v3108, %v3190
        %v3192 = vrot.slane %v3118, 1
        %v3193 = vor.u32 %v3115, %v3192
        %v3194 = vrot.slane %v3125, 1
        %v3195 = vor.u32 %v3122, %v3194
        %v3213 = vsel %vm809, %v3163, 0
        %v3214 = vsel %vm809, %v3165, 0
        %v3215 = vsel %vm809, %v3167, 0
        %v3216 = vsel %vm809, %v3169, 0
        %v3217 = vsel %vm809, %v3171, 0
        %v3218 = vsel %vm809, %v3173, 0
        %v3219 = vsel %vm809, %v3175, 0
        %v3220 = vsel %vm809, %v3177, 0
        %v3221 = vsel %vm809, %v3179, 0
        %v3222 = vsel %vm809, %v3181, 0
        %v3223 = vsel %vm809, %v3183, 0
        %v3224 = vsel %vm809, %v3185, 0
        %v3225 = vsel %vm809, %v3187, 0
        %v3226 = vsel %vm809, %v3189, 0
        %v3227 = vsel %vm809, %v3191, 0
        %v3228 = vsel %vm809, %v3193, 0
        %v3229 = vsel %vm809, %v3195, 0
        %v3230 = vld [vmem:[#allocation8] sm:$0xf]
        %v3231 = vld [vmem:[#allocation8 + $0x4] sm:$0xf]
        %v3232 = vld [vmem:[#allocation8 + $0x8] sm:$0xf]
        %v3233 = vld [vmem:[#allocation8 + $0xc] sm:$0xf]
        %v3234 = vld [vmem:[#allocation8 + $0x10] sm:$0xf]
        %v3235 = vld [vmem:[#allocation8 + $0x14] sm:$0xf]
        %v3236 = vld [vmem:[#allocation8 + $0x18] sm:$0xf]
        %v3237 = vld [vmem:[#allocation8 + $0x1c] sm:$0xf]
        %v3238 = vld [vmem:[#allocation8 + $0x20] sm:$0xf]
        %v3239 = vld [vmem:[#allocation8 + $0x24] sm:$0xf]
        %v3240 = vld [vmem:[#allocation8 + $0x28] sm:$0xf]
        %v3241 = vld [vmem:[#allocation8 + $0x2c] sm:$0xf]
        %v3242 = vld [vmem:[#allocation8 + $0x30] sm:$0xf]
        %v3243 = vld [vmem:[#allocation8 + $0x34] sm:$0xf]
        %v3244 = vld [vmem:[#allocation8 + $0x38] sm:$0xf]
        %v3245 = vld [vmem:[#allocation8 + $0x3c] sm:$0xf]
        %v3246 = vld [vmem:[#allocation8 + $0x40] sm:$0xf]
        %v3247 = vld [vmem:[#allocation8 + $0x44] sm:$0xf]
        %v3248 = vld [vmem:[#allocation8 + $0x48] sm:$0xf]
        %v3249 = vld [vmem:[#allocation8 + $0x4c] sm:$0xf]
        %v3250 = vld [vmem:[#allocation8 + $0x50] sm:$0xf]
        %v3251 = vld [vmem:[#allocation8 + $0x54] sm:$0xf]
        %v3252 = vld [vmem:[#allocation8 + $0x58] sm:$0xf]
        %v3253 = vld [vmem:[#allocation8 + $0x5c] sm:$0xf]
        %v3254 = vld [vmem:[#allocation8 + $0x60] sm:$0xf]
        %v3255 = vld [vmem:[#allocation8 + $0x64] sm:$0xf]
        %v3256 = vld [vmem:[#allocation8 + $0x68] sm:$0xf]
        %v3257 = vld [vmem:[#allocation8 + $0x6c] sm:$0xf]
        %v3258 = vld [vmem:[#allocation8 + $0x70] sm:$0xf]
        %v3259 = vld [vmem:[#allocation8 + $0x74] sm:$0xf]
        %v3260 = vld [vmem:[#allocation8 + $0x78] sm:$0xf]
        %v3261 = vld [vmem:[#allocation8 + $0x7c] sm:$0xf]
        %v3262 = vld [vmem:[#allocation8 + $0x80] sm:$0xf]
        %v3263 = vld [vmem:[#allocation8 + $0x84] sm:$0xf]
        %v3264 = vld [vmem:[#allocation8 + $0x88] sm:$0xf]
        %v3265 = vld [vmem:[#allocation8 + $0x8c] sm:$0xf]
        %v3266 = vld [vmem:[#allocation8 + $0x90] sm:$0xf]
        %v3267 = vld [vmem:[#allocation8 + $0x94] sm:$0xf]
        %v3268 = vld [vmem:[#allocation8 + $0x98] sm:$0xf]
        %v3269 = vld [vmem:[#allocation8 + $0x9c] sm:$0xf]
        %v3270 = vld [vmem:[#allocation8 + $0xa0] sm:$0xf]
        %v3271 = vld [vmem:[#allocation8 + $0xa4] sm:$0xf]
        %v3272 = vld [vmem:[#allocation8 + $0xa8] sm:$0xf]
        %v3273 = vld [vmem:[#allocation8 + $0xac] sm:$0xf]
        %v3274 = vld [vmem:[#allocation8 + $0xb0] sm:$0xf]
        %v3275 = vld [vmem:[#allocation8 + $0xb4] sm:$0xf]
        %v3276 = vld [vmem:[#allocation8 + $0xb8] sm:$0xf]
        %v3277 = vld [vmem:[#allocation8 + $0xbc] sm:$0xf]
        %s3278 = scalar_lea.vmem [#allocation8], 192
        %v3279 = vld [vmem:[%s3278] sm:$0xf]
        %v3280 = vld [vmem:[%s3278 + $0x4] sm:$0xf]
        %v3281 = vld [vmem:[%s3278 + $0x8] sm:$0xf]
        %v3282 = vld [vmem:[%s3278 + $0xc] sm:$0xf]
        %v3283 = vld [vmem:[%s3278 + $0x10] sm:$0xf]
        %v3284 = vld [vmem:[%s3278 + $0x14] sm:$0xf]
        %v3285 = vld [vmem:[%s3278 + $0x18] sm:$0xf]
        %v3286 = vld [vmem:[%s3278 + $0x1c] sm:$0xf]
        %v3287 = vld [vmem:[%s3278 + $0x20] sm:$0xf]
        %v3288 = vld [vmem:[%s3278 + $0x24] sm:$0xf]
        %v3289 = vld [vmem:[%s3278 + $0x28] sm:$0xf]
        %v3290 = vld [vmem:[%s3278 + $0x2c] sm:$0xf]
        %v3291 = vld [vmem:[%s3278 + $0x30] sm:$0xf]
        %v3292 = vld [vmem:[%s3278 + $0x34] sm:$0xf]
        %v3293 = vld [vmem:[%s3278 + $0x38] sm:$0xf]
        %v3294 = vld [vmem:[%s3278 + $0x3c] sm:$0xf]
        %v3295 = vld [vmem:[%s3278 + $0x40] sm:$0xf]
        %v3296 = vld [vmem:[%s3278 + $0x44] sm:$0xf]
        %v3297 = vld [vmem:[%s3278 + $0x48] sm:$0xf]
        %v3298 = vld [vmem:[%s3278 + $0x4c] sm:$0xf]
        %v3299 = vld [vmem:[%s3278 + $0x50] sm:$0xf]
        %v3300 = vld [vmem:[%s3278 + $0x54] sm:$0xf]
        %v3301 = vld [vmem:[%s3278 + $0x58] sm:$0xf]
        %v3302 = vld [vmem:[%s3278 + $0x5c] sm:$0xf]
        %v3303 = vld [vmem:[%s3278 + $0x60] sm:$0xf]
        %v3304 = vld [vmem:[%s3278 + $0x64] sm:$0xf]
        %v3305 = vld [vmem:[%s3278 + $0x68] sm:$0xf]
        %v3306 = vld [vmem:[%s3278 + $0x6c] sm:$0xf]
        %v3307 = vld [vmem:[%s3278 + $0x70] sm:$0xf]
        %v3308 = vld [vmem:[%s3278 + $0x74] sm:$0xf]
        %v3309 = vld [vmem:[%s3278 + $0x78] sm:$0xf]
        %v3310 = vld [vmem:[%s3278 + $0x7c] sm:$0xf]
        %v3311 = vld [vmem:[%s3278 + $0x80] sm:$0xf]
        %v3312 = vld [vmem:[%s3278 + $0x84] sm:$0xf]
        %v3313 = vld [vmem:[%s3278 + $0x88] sm:$0xf]
        %v3314 = vld [vmem:[%s3278 + $0x8c] sm:$0xf]
        %v3315 = vld [vmem:[%s3278 + $0x90] sm:$0xf]
        %v3316 = vld [vmem:[%s3278 + $0x94] sm:$0xf]
        %v3317 = vld [vmem:[%s3278 + $0x98] sm:$0xf]
        %v3318 = vld [vmem:[%s3278 + $0x9c] sm:$0xf]
        %v3319 = vld [vmem:[%s3278 + $0xa0] sm:$0xf]
        %v3320 = vld [vmem:[%s3278 + $0xa4] sm:$0xf]
        %v3321 = vld [vmem:[%s3278 + $0xa8] sm:$0xf]
        %v3322 = vld [vmem:[%s3278 + $0xac] sm:$0xf]
        %v3323 = vld [vmem:[%s3278 + $0xb0] sm:$0xf]
        %v3324 = vld [vmem:[%s3278 + $0xb4] sm:$0xf]
        %v3325 = vld [vmem:[%s3278 + $0xb8] sm:$0xf]
        %v3326 = vld [vmem:[%s3278 + $0xbc] sm:$0xf]
        %v3375 = vunpack.c.l.b16 %v3279
        %v3376 = vunpack.c.l.b16 %v3280
        %v3377 = vunpack.c.l.b16 %v3281
        %v3378 = vunpack.c.l.b16 %v3282
        %v3379 = vunpack.c.l.b16 %v3283
        %v3380 = vunpack.c.l.b16 %v3284
        %v3381 = vunpack.c.l.b16 %v3285
        %v3382 = vunpack.c.l.b16 %v3286
        %v3383 = vunpack.c.l.b16 %v3287
        %v3384 = vunpack.c.l.b16 %v3288
        %v3385 = vunpack.c.l.b16 %v3289
        %v3386 = vunpack.c.l.b16 %v3290
        %v3387 = vunpack.c.l.b16 %v3291
        %v3388 = vunpack.c.l.b16 %v3292
        %v3389 = vunpack.c.l.b16 %v3293
        %v3390 = vunpack.c.l.b16 %v3294
        %v3391 = vunpack.c.l.b16 %v3295
        %v3392 = vunpack.c.l.b16 %v3296
        %v3393 = vunpack.c.l.b16 %v3297
        %v3394 = vunpack.c.l.b16 %v3298
        %v3395 = vunpack.c.l.b16 %v3299
        %v3396 = vunpack.c.l.b16 %v3300
        %v3397 = vunpack.c.l.b16 %v3301
        %v3398 = vunpack.c.l.b16 %v3302
        %v3399 = vunpack.c.l.b16 %v3303
        %v3400 = vunpack.c.l.b16 %v3304
        %v3401 = vunpack.c.l.b16 %v3305
        %v3402 = vunpack.c.l.b16 %v3306
        %v3403 = vunpack.c.l.b16 %v3307
        %v3404 = vunpack.c.l.b16 %v3308
        %v3405 = vunpack.c.l.b16 %v3309
        %v3406 = vunpack.c.l.b16 %v3310
        %v3407 = vunpack.c.l.b16 %v3311
        %v3408 = vunpack.c.l.b16 %v3312
        %v3409 = vunpack.c.l.b16 %v3313
        %v3410 = vunpack.c.l.b16 %v3314
        %v3411 = vunpack.c.l.b16 %v3315
        %v3412 = vunpack.c.l.b16 %v3316
        %v3413 = vunpack.c.l.b16 %v3317
        %v3414 = vunpack.c.l.b16 %v3318
        %v3415 = vunpack.c.l.b16 %v3319
        %v3416 = vunpack.c.l.b16 %v3320
        %v3417 = vunpack.c.l.b16 %v3321
        %v3418 = vunpack.c.l.b16 %v3322
        %v3419 = vunpack.c.l.b16 %v3323
        %v3420 = vunpack.c.l.b16 %v3324
        %v3421 = vunpack.c.l.b16 %v3325
        %v3422 = vunpack.c.l.b16 %v3326
        %v3423 = vpack.c.b16 %v3376, %v3375
        %v3424 = vpack.c.b16 %v3378, %v3377
        %v3425 = vpack.c.b16 %v3380, %v3379
        %v3426 = vpack.c.b16 %v3382, %v3381
        %v3427 = vpack.c.b16 %v3384, %v3383
        %v3428 = vpack.c.b16 %v3386, %v3385
        %v3429 = vpack.c.b16 %v3388, %v3387
        %v3430 = vpack.c.b16 %v3390, %v3389
        %v3431 = vpack.c.b16 %v3392, %v3391
        %v3432 = vpack.c.b16 %v3394, %v3393
        %v3433 = vpack.c.b16 %v3396, %v3395
        %v3434 = vpack.c.b16 %v3398, %v3397
        %v3435 = vpack.c.b16 %v3400, %v3399
        %v3436 = vpack.c.b16 %v3402, %v3401
        %v3437 = vpack.c.b16 %v3404, %v3403
        %v3438 = vpack.c.b16 %v3406, %v3405
        %v3439 = vpack.c.b16 %v3408, %v3407
        %v3440 = vpack.c.b16 %v3410, %v3409
        %v3441 = vpack.c.b16 %v3412, %v3411
        %v3442 = vpack.c.b16 %v3414, %v3413
        %v3443 = vpack.c.b16 %v3416, %v3415
        %v3444 = vpack.c.b16 %v3418, %v3417
        %v3445 = vpack.c.b16 %v3420, %v3419
        %v3446 = vpack.c.b16 %v3422, %v3421
        %3471 = vmatprep.subr.bf16.mxu0 0
        %3472 = vmatpush1.bf16.msra.mxu0 %v3423
        %3473 = vmatprep.subr.bf16.mxu0 0
        %3474 = vmatpush1.bf16.msra.mxu0 %v3424
        %3475 = vmatprep.subr.bf16.mxu0 0
        %3476 = vmatpush1.bf16.msra.mxu0 %v3425
        %3477 = vmatprep.subr.bf16.mxu0 0
        %3478 = vmatpush1.bf16.msra.mxu0 %v3426
        %3479 = vmatprep.subr.bf16.mxu0 0
        %3480 = vmatpush1.bf16.msra.mxu0 %v3427
        %3481 = vmatprep.subr.bf16.mxu0 0
        %3482 = vmatpush1.bf16.msra.mxu0 %v3428
        %3483 = vmatprep.subr.bf16.mxu0 0
        %3484 = vmatpush1.bf16.msra.mxu0 %v3429
        %3485 = vmatprep.subr.bf16.mxu0 0
        %3486 = vmatpush1.bf16.msra.mxu0 %v3430
        %3487 = vmatprep.subr.bf16.mxu0 0
        %3488 = vmatpush1.bf16.msra.mxu0 %v3431
        %3489 = vmatprep.subr.bf16.mxu0 0
        %3490 = vmatpush1.bf16.msra.mxu0 %v3432
        %3491 = vmatprep.subr.bf16.mxu0 0
        %3492 = vmatpush1.bf16.msra.mxu0 %v3433
        %3493 = vmatprep.subr.bf16.mxu0 0
        %3494 = vmatpush1.bf16.msra.mxu0 %v3434
        %3495 = vmatprep.subr.bf16.mxu0 0
        %3496 = vmatpush1.bf16.msra.mxu0 %v3435
        %3497 = vmatprep.subr.bf16.mxu0 0
        %3498 = vmatpush1.bf16.msra.mxu0 %v3436
        %3499 = vmatprep.subr.bf16.mxu0 0
        %3500 = vmatpush1.bf16.msra.mxu0 %v3437
        %3501 = vmatprep.subr.bf16.mxu0 0
        %3502 = vmatpush1.bf16.msra.mxu0 %v3438
        %3503 = vmatprep.mubr.bf16.mxu0 %v2993
        %3504 = vmatmul.mubr.bf16.gmra.mrb[0].mxu0 %v3146
        %v3505 = vpop.f32.mrb[0].mxu0
        %v3506 = vadd.f32 0.0, %v3505
        %v3507 = vpop.f32.mrb[0].mxu0
        %v3508 = vpop.f32.mrb[0].mxu0
        %v3509 = vadd.f32 0.0, %v3508
        %v3510 = vpop.f32.mrb[0].mxu0
        %3511 = vmatprep.mubr.bf16.mxu0 %v2994
        %3512 = vmatmul.mubr.bf16.gmra.mrb[0].mxu0 %v3147
        %v3513 = vpop.f32.mrb[0].mxu0
        %v3514 = vadd.f32 0.0, %v3513
        %v3515 = vpop.f32.mrb[0].mxu0
        %v3516 = vpop.f32.mrb[0].mxu0
        %v3517 = vadd.f32 0.0, %v3516
        %v3518 = vpop.f32.mrb[0].mxu0
        %3519 = vmatprep.mubr.bf16.mxu0 %v2995
        %3520 = vmatmul.mubr.bf16.gmra.mrb[0].mxu0 %v3148
        %v3521 = vpop.f32.mrb[0].mxu0
        %v3522 = vadd.f32 0.0, %v3521
        %v3523 = vpop.f32.mrb[0].mxu0
        %v3524 = vpop.f32.mrb[0].mxu0
        %v3525 = vadd.f32 0.0, %v3524
        %v3526 = vpop.f32.mrb[0].mxu0
        %3527 = vmatprep.mubr.bf16.mxu0 %v2996
        %3528 = vmatmul.mubr.bf16.gmra.mrb[0].mxu0 %v3149
        %v3529 = vpop.f32.mrb[0].mxu0
        %v3530 = vadd.f32 0.0, %v3529
        %v3531 = vpop.f32.mrb[0].mxu0
        %v3532 = vpop.f32.mrb[0].mxu0
        %v3533 = vadd.f32 0.0, %v3532
        %v3534 = vpop.f32.mrb[0].mxu0
        %3535 = vmatprep.mubr.bf16.mxu0 %v2997
        %3536 = vmatmul.mubr.bf16.gmra.mrb[0].mxu0 %v3150
        %v3537 = vpop.f32.mrb[0].mxu0
        %v3538 = vadd.f32 0.0, %v3537
        %v3539 = vpop.f32.mrb[0].mxu0
        %v3540 = vpop.f32.mrb[0].mxu0
        %v3541 = vadd.f32 0.0, %v3540
        %v3542 = vpop.f32.mrb[0].mxu0
        %3543 = vmatprep.mubr.bf16.mxu0 %v2998
        %3544 = vmatmul.mubr.bf16.gmra.mrb[0].mxu0 %v3151
        %v3545 = vpop.f32.mrb[0].mxu0
        %v3546 = vadd.f32 0.0, %v3545
        %v3547 = vpop.f32.mrb[0].mxu0
        %v3548 = vpop.f32.mrb[0].mxu0
        %v3549 = vadd.f32 0.0, %v3548
        %v3550 = vpop.f32.mrb[0].mxu0
        %3551 = vmatprep.mubr.bf16.mxu0 %v2999
        %3552 = vmatmul.mubr.bf16.gmra.mrb[0].mxu0 %v3152
        %v3553 = vpop.f32.mrb[0].mxu0
        %v3554 = vadd.f32 0.0, %v3553
        %v3555 = vpop.f32.mrb[0].mxu0
        %v3556 = vpop.f32.mrb[0].mxu0
        %v3557 = vadd.f32 0.0, %v3556
        %v3558 = vpop.f32.mrb[0].mxu0
        %3559 = vmatprep.mubr.bf16.mxu0 %v3000
        %3560 = vmatmul.mubr.bf16.gmra.mrb[0].mxu0 %v3153
        %v3561 = vpop.f32.mrb[0].mxu0
        %v3562 = vadd.f32 0.0, %v3561
        %v3563 = vpop.f32.mrb[0].mxu0
        %v3564 = vpop.f32.mrb[0].mxu0
        %v3565 = vadd.f32 0.0, %v3564
        %v3566 = vpop.f32.mrb[0].mxu0
        %3567 = vmatprep.mubr.bf16.mxu0 %v3001
        %3568 = vmatmul.mubr.bf16.gmra.mrb[0].mxu0 %v3154
        %v3569 = vpop.f32.mrb[0].mxu0
        %v3570 = vadd.f32 0.0, %v3569
        %v3571 = vpop.f32.mrb[0].mxu0
        %v3572 = vpop.f32.mrb[0].mxu0
        %v3573 = vadd.f32 0.0, %v3572
        %v3574 = vpop.f32.mrb[0].mxu0
        %3575 = vmatprep.mubr.bf16.mxu0 %v3002
        %3576 = vmatmul.mubr.bf16.gmra.mrb[0].mxu0 %v3155
        %v3577 = vpop.f32.mrb[0].mxu0
        %v3578 = vadd.f32 0.0, %v3577
        %v3579 = vpop.f32.mrb[0].mxu0
        %v3580 = vpop.f32.mrb[0].mxu0
        %v3581 = vadd.f32 0.0, %v3580
        %v3582 = vpop.f32.mrb[0].mxu0
        %3583 = vmatprep.mubr.bf16.mxu0 %v3003
        %3584 = vmatmul.mubr.bf16.gmra.mrb[0].mxu0 %v3156
        %v3585 = vpop.f32.mrb[0].mxu0
        %v3586 = vadd.f32 0.0, %v3585
        %v3587 = vpop.f32.mrb[0].mxu0
        %v3588 = vpop.f32.mrb[0].mxu0
        %v3589 = vadd.f32 0.0, %v3588
        %v3590 = vpop.f32.mrb[0].mxu0
        %3591 = vmatprep.mubr.bf16.mxu0 %v3004
        %3592 = vmatmul.mubr.bf16.gmra.mrb[0].mxu0 %v3157
        %v3593 = vpop.f32.mrb[0].mxu0
        %v3594 = vadd.f32 0.0, %v3593
        %v3595 = vpop.f32.mrb[0].mxu0
        %v3596 = vpop.f32.mrb[0].mxu0
        %v3597 = vadd.f32 0.0, %v3596
        %v3598 = vpop.f32.mrb[0].mxu0
        %3599 = vmatprep.mubr.bf16.mxu0 %v3005
        %3600 = vmatmul.mubr.bf16.gmra.mrb[0].mxu0 %v3158
        %v3601 = vpop.f32.mrb[0].mxu0
        %v3602 = vadd.f32 0.0, %v3601
        %v3603 = vpop.f32.mrb[0].mxu0
        %v3604 = vpop.f32.mrb[0].mxu0
        %v3605 = vadd.f32 0.0, %v3604
        %v3606 = vpop.f32.mrb[0].mxu0
        %3607 = vmatprep.mubr.bf16.mxu0 %v3006
        %3608 = vmatmul.mubr.bf16.gmra.mrb[0].mxu0 %v3159
        %v3609 = vpop.f32.mrb[0].mxu0
        %v3610 = vadd.f32 0.0, %v3609
        %v3611 = vpop.f32.mrb[0].mxu0
        %v3612 = vpop.f32.mrb[0].mxu0
        %v3613 = vadd.f32 0.0, %v3612
        %v3614 = vpop.f32.mrb[0].mxu0
        %3615 = vmatprep.mubr.bf16.mxu0 %v3007
        %3616 = vmatmul.mubr.bf16.gmra.mrb[0].mxu0 %v3160
        %v3617 = vpop.f32.mrb[0].mxu0
        %v3618 = vadd.f32 0.0, %v3617
        %v3619 = vpop.f32.mrb[0].mxu0
        %v3620 = vpop.f32.mrb[0].mxu0
        %v3621 = vadd.f32 0.0, %v3620
        %v3622 = vpop.f32.mrb[0].mxu0
        %3623 = vmatprep.mubr.bf16.mxu0 %v3008
        %3624 = vmatmul.mubr.bf16.gmra.mrb[0].mxu0 %v3161
        %v3625 = vpop.f32.mrb[0].mxu0
        %v3626 = vadd.f32 0.0, %v3625
        %v3627 = vpop.f32.mrb[0].mxu0
        %v3628 = vpop.f32.mrb[0].mxu0
        %v3629 = vadd.f32 0.0, %v3628
        %v3630 = vpop.f32.mrb[0].mxu0
        %3631 = vdwg.mxu0
        %3632 = vmatprep.subr.bf16.mxu0 0
        %3633 = vmatpush1.bf16.msra.mxu0 %v3439
        %3634 = vmatprep.subr.bf16.mxu0 0
        %3635 = vmatpush1.bf16.msra.mxu0 %v3440
        %3636 = vmatprep.subr.bf16.mxu0 0
        %3637 = vmatpush1.bf16.msra.mxu0 %v3441
        %3638 = vmatprep.subr.bf16.mxu0 0
        %3639 = vmatpush1.bf16.msra.mxu0 %v3442
        %3640 = vmatprep.subr.bf16.mxu0 0
        %3641 = vmatpush1.bf16.msra.mxu0 %v3443
        %3642 = vmatprep.subr.bf16.mxu0 0
        %3643 = vmatpush1.bf16.msra.mxu0 %v3444
        %3644 = vmatprep.subr.bf16.mxu0 0
        %3645 = vmatpush1.bf16.msra.mxu0 %v3445
        %3646 = vmatprep.subr.bf16.mxu0 0
        %3647 = vmatpush1.bf16.msra.mxu0 %v3446
        %3648 = vmatprep.subr.bf16.mxu0 0
        %3649 = vmatpush1.bf16.msra.mxu0 0
        %3650 = vmatprep.subr.bf16.mxu0 0
        %3651 = vmatpush1.bf16.msra.mxu0 0
        %3652 = vmatprep.subr.bf16.mxu0 0
        %3653 = vmatpush1.bf16.msra.mxu0 0
        %3654 = vmatprep.subr.bf16.mxu0 0
        %3655 = vmatpush1.bf16.msra.mxu0 0
        %3656 = vmatprep.subr.bf16.mxu0 0
        %3657 = vmatpush1.bf16.msra.mxu0 0
        %3658 = vmatprep.subr.bf16.mxu0 0
        %3659 = vmatpush1.bf16.msra.mxu0 0
        %3660 = vmatprep.subr.bf16.mxu0 0
        %3661 = vmatpush1.bf16.msra.mxu0 0
        %3662 = vmatprep.subr.bf16.mxu0 0
        %3663 = vmatpush1.bf16.msra.mxu0 0
        %3664 = vmatprep.mubr.bf16.mxu0 0
        %3665 = vmatmul.mubr.bf16.gmra.mrb[0].mxu0 %v3214
        %v3666 = vpop.f32.mrb[0].mxu0
        %v3667 = vadd.f32 %v3506, %v3666
        %v3668 = vpop.f32.mrb[0].mxu0
        %v3669 = vpop.f32.mrb[0].mxu0
        %v3670 = vadd.f32 %v3509, %v3669
        %v3671 = vpop.f32.mrb[0].mxu0
        %3672 = vmatprep.mubr.bf16.mxu0 0
        %3673 = vmatmul.mubr.bf16.gmra.mrb[0].mxu0 %v3215
        %v3674 = vpop.f32.mrb[0].mxu0
        %v3675 = vadd.f32 %v3514, %v3674
        %v3676 = vpop.f32.mrb[0].mxu0
        %v3677 = vpop.f32.mrb[0].mxu0
        %v3678 = vadd.f32 %v3517, %v3677
        %v3679 = vpop.f32.mrb[0].mxu0
        %3680 = vmatprep.mubr.bf16.mxu0 0
        %3681 = vmatmul.mubr.bf16.gmra.mrb[0].mxu0 %v3216
        %v3682 = vpop.f32.mrb[0].mxu0
        %v3683 = vadd.f32 %v3522, %v3682
        %v3684 = vpop.f32.mrb[0].mxu0
        %v3685 = vpop.f32.mrb[0].mxu0
        %v3686 = vadd.f32 %v3525, %v3685
        %v3687 = vpop.f32.mrb[0].mxu0
        %3688 = vmatprep.mubr.bf16.mxu0 0
        %3689 = vmatmul.mubr.bf16.gmra.mrb[0].mxu0 %v3217
        %v3690 = vpop.f32.mrb[0].mxu0
        %v3691 = vadd.f32 %v3530, %v3690
        %v3692 = vpop.f32.mrb[0].mxu0
        %v3693 = vpop.f32.mrb[0].mxu0
        %v3694 = vadd.f32 %v3533, %v3693
        %v3695 = vpop.f32.mrb[0].mxu0
        %3696 = vmatprep.mubr.bf16.mxu0 0
        %3697 = vmatmul.mubr.bf16.gmra.mrb[0].mxu0 %v3218
        %v3698 = vpop.f32.mrb[0].mxu0
        %v3699 = vadd.f32 %v3538, %v3698
        %v3700 = vpop.f32.mrb[0].mxu0
        %v3701 = vpop.f32.mrb[0].mxu0
        %v3702 = vadd.f32 %v3541, %v3701
        %v3703 = vpop.f32.mrb[0].mxu0
        %3704 = vmatprep.mubr.bf16.mxu0 0
        %3705 = vmatmul.mubr.bf16.gmra.mrb[0].mxu0 %v3219
        %v3706 = vpop.f32.mrb[0].mxu0
        %v3707 = vadd.f32 %v3546, %v3706
        %v3708 = vpop.f32.mrb[0].mxu0
        %v3709 = vpop.f32.mrb[0].mxu0
        %v3710 = vadd.f32 %v3549, %v3709
        %v3711 = vpop.f32.mrb[0].mxu0
        %3712 = vmatprep.mubr.bf16.mxu0 0
        %3713 = vmatmul.mubr.bf16.gmra.mrb[0].mxu0 %v3220
        %v3714 = vpop.f32.mrb[0].mxu0
        %v3715 = vadd.f32 %v3554, %v3714
        %v3716 = vpop.f32.mrb[0].mxu0
        %v3717 = vpop.f32.mrb[0].mxu0
        %v3718 = vadd.f32 %v3557, %v3717
        %v3719 = vpop.f32.mrb[0].mxu0
        %3720 = vmatprep.mubr.bf16.mxu0 0
        %3721 = vmatmul.mubr.bf16.gmra.mrb[0].mxu0 %v3221
        %v3722 = vpop.f32.mrb[0].mxu0
        %v3723 = vadd.f32 %v3562, %v3722
        %v3724 = vpop.f32.mrb[0].mxu0
        %v3725 = vpop.f32.mrb[0].mxu0
        %v3726 = vadd.f32 %v3565, %v3725
        %v3727 = vpop.f32.mrb[0].mxu0
        %3728 = vmatprep.mubr.bf16.mxu0 0
        %3729 = vmatmul.mubr.bf16.gmra.mrb[0].mxu0 %v3222
        %v3730 = vpop.f32.mrb[0].mxu0
        %v3731 = vadd.f32 %v3570, %v3730
        %v3732 = vpop.f32.mrb[0].mxu0
        %v3733 = vpop.f32.mrb[0].mxu0
        %v3734 = vadd.f32 %v3573, %v3733
        %v3735 = vpop.f32.mrb[0].mxu0
        %3736 = vmatprep.mubr.bf16.mxu0 0
        %3737 = vmatmul.mubr.bf16.gmra.mrb[0].mxu0 %v3223
        %v3738 = vpop.f32.mrb[0].mxu0
        %v3739 = vadd.f32 %v3578, %v3738
        %v3740 = vpop.f32.mrb[0].mxu0
        %v3741 = vpop.f32.mrb[0].mxu0
        %v3742 = vadd.f32 %v3581, %v3741
        %v3743 = vpop.f32.mrb[0].mxu0
        %3744 = vmatprep.mubr.bf16.mxu0 0
        %3745 = vmatmul.mubr.bf16.gmra.mrb[0].mxu0 %v3224
        %v3746 = vpop.f32.mrb[0].mxu0
        %v3747 = vadd.f32 %v3586, %v3746
        %v3748 = vpop.f32.mrb[0].mxu0
        %v3749 = vpop.f32.mrb[0].mxu0
        %v3750 = vadd.f32 %v3589, %v3749
        %v3751 = vpop.f32.mrb[0].mxu0
        %3752 = vmatprep.mubr.bf16.mxu0 0
        %3753 = vmatmul.mubr.bf16.gmra.mrb[0].mxu0 %v3225
        %v3754 = vpop.f32.mrb[0].mxu0
        %v3755 = vadd.f32 %v3594, %v3754
        %v3756 = vpop.f32.mrb[0].mxu0
        %v3757 = vpop.f32.mrb[0].mxu0
        %v3758 = vadd.f32 %v3597, %v3757
        %v3759 = vpop.f32.mrb[0].mxu0
        %3760 = vmatprep.mubr.bf16.mxu0 0
        %3761 = vmatmul.mubr.bf16.gmra.mrb[0].mxu0 %v3226
        %v3762 = vpop.f32.mrb[0].mxu0
        %v3763 = vadd.f32 %v3602, %v3762
        %v3764 = vpop.f32.mrb[0].mxu0
        %v3765 = vpop.f32.mrb[0].mxu0
        %v3766 = vadd.f32 %v3605, %v3765
        %v3767 = vpop.f32.mrb[0].mxu0
        %3768 = vmatprep.mubr.bf16.mxu0 0
        %3769 = vmatmul.mubr.bf16.gmra.mrb[0].mxu0 %v3227
        %v3770 = vpop.f32.mrb[0].mxu0
        %v3771 = vadd.f32 %v3610, %v3770
        %v3772 = vpop.f32.mrb[0].mxu0
        %v3773 = vpop.f32.mrb[0].mxu0
        %v3774 = vadd.f32 %v3613, %v3773
        %v3775 = vpop.f32.mrb[0].mxu0
        %3776 = vmatprep.mubr.bf16.mxu0 0
        %3777 = vmatmul.mubr.bf16.gmra.mrb[0].mxu0 %v3228
        %v3778 = vpop.f32.mrb[0].mxu0
        %v3779 = vadd.f32 %v3618, %v3778
        %v3780 = vpop.f32.mrb[0].mxu0
        %v3781 = vpop.f32.mrb[0].mxu0
        %v3782 = vadd.f32 %v3621, %v3781
        %v3783 = vpop.f32.mrb[0].mxu0
        %3784 = vmatprep.mubr.bf16.mxu0 0
        %3785 = vmatmul.mubr.bf16.gmra.mrb[0].mxu0 %v3229
        %v3786 = vpop.f32.mrb[0].mxu0
        %v3787 = vadd.f32 %v3626, %v3786
        %v3788 = vpop.f32.mrb[0].mxu0
        %v3789 = vpop.f32.mrb[0].mxu0
        %v3790 = vadd.f32 %v3629, %v3789
        %v3791 = vpop.f32.mrb[0].mxu0
        %3792 = vdwg.mxu0
        %v3841 = vunpack.c.l.b16 %v3230
        %v3842 = vunpack.c.l.b16 %v3231
        %v3843 = vunpack.c.l.b16 %v3232
        %v3844 = vunpack.c.l.b16 %v3233
        %v3845 = vunpack.c.l.b16 %v3234
        %v3846 = vunpack.c.l.b16 %v3235
        %v3847 = vunpack.c.l.b16 %v3236
        %v3848 = vunpack.c.l.b16 %v3237
        %v3849 = vunpack.c.l.b16 %v3238
        %v3850 = vunpack.c.l.b16 %v3239
        %v3851 = vunpack.c.l.b16 %v3240
        %v3852 = vunpack.c.l.b16 %v3241
        %v3853 = vunpack.c.l.b16 %v3242
        %v3854 = vunpack.c.l.b16 %v3243
        %v3855 = vunpack.c.l.b16 %v3244
        %v3856 = vunpack.c.l.b16 %v3245
        %v3857 = vunpack.c.l.b16 %v3246
        %v3858 = vunpack.c.l.b16 %v3247
        %v3859 = vunpack.c.l.b16 %v3248
        %v3860 = vunpack.c.l.b16 %v3249
        %v3861 = vunpack.c.l.b16 %v3250
        %v3862 = vunpack.c.l.b16 %v3251
        %v3863 = vunpack.c.l.b16 %v3252
        %v3864 = vunpack.c.l.b16 %v3253
        %v3865 = vunpack.c.l.b16 %v3254
        %v3866 = vunpack.c.l.b16 %v3255
        %v3867 = vunpack.c.l.b16 %v3256
        %v3868 = vunpack.c.l.b16 %v3257
        %v3869 = vunpack.c.l.b16 %v3258
        %v3870 = vunpack.c.l.b16 %v3259
        %v3871 = vunpack.c.l.b16 %v3260
        %v3872 = vunpack.c.l.b16 %v3261
        %v3873 = vunpack.c.l.b16 %v3262
        %v3874 = vunpack.c.l.b16 %v3263
        %v3875 = vunpack.c.l.b16 %v3264
        %v3876 = vunpack.c.l.b16 %v3265
        %v3877 = vunpack.c.l.b16 %v3266
        %v3878 = vunpack.c.l.b16 %v3267
        %v3879 = vunpack.c.l.b16 %v3268
        %v3880 = vunpack.c.l.b16 %v3269
        %v3881 = vunpack.c.l.b16 %v3270
        %v3882 = vunpack.c.l.b16 %v3271
        %v3883 = vunpack.c.l.b16 %v3272
        %v3884 = vunpack.c.l.b16 %v3273
        %v3885 = vunpack.c.l.b16 %v3274
        %v3886 = vunpack.c.l.b16 %v3275
        %v3887 = vunpack.c.l.b16 %v3276
        %v3888 = vunpack.c.l.b16 %v3277
        %v3889 = vpack.c.b16 %v3842, %v3841
        %v3890 = vpack.c.b16 %v3844, %v3843
        %v3891 = vpack.c.b16 %v3846, %v3845
        %v3892 = vpack.c.b16 %v3848, %v3847
        %v3893 = vpack.c.b16 %v3850, %v3849
        %v3894 = vpack.c.b16 %v3852, %v3851
        %v3895 = vpack.c.b16 %v3854, %v3853
        %v3896 = vpack.c.b16 %v3856, %v3855
        %v3897 = vpack.c.b16 %v3858, %v3857
        %v3898 = vpack.c.b16 %v3860, %v3859
        %v3899 = vpack.c.b16 %v3862, %v3861
        %v3900 = vpack.c.b16 %v3864, %v3863
        %v3901 = vpack.c.b16 %v3866, %v3865
        %v3902 = vpack.c.b16 %v3868, %v3867
        %v3903 = vpack.c.b16 %v3870, %v3869
        %v3904 = vpack.c.b16 %v3872, %v3871
        %v3905 = vpack.c.b16 %v3874, %v3873
        %v3906 = vpack.c.b16 %v3876, %v3875
        %v3907 = vpack.c.b16 %v3878, %v3877
        %v3908 = vpack.c.b16 %v3880, %v3879
        %v3909 = vpack.c.b16 %v3882, %v3881
        %v3910 = vpack.c.b16 %v3884, %v3883
        %v3911 = vpack.c.b16 %v3886, %v3885
        %v3912 = vpack.c.b16 %v3888, %v3887
        %3937 = vmatprep.subr.bf16.mxu0 0
        %3938 = vmatpush1.bf16.msra.mxu0 %v3889
        %3939 = vmatprep.subr.bf16.mxu0 0
        %3940 = vmatpush1.bf16.msra.mxu0 %v3890
        %3941 = vmatprep.subr.bf16.mxu0 0
        %3942 = vmatpush1.bf16.msra.mxu0 %v3891
        %3943 = vmatprep.subr.bf16.mxu0 0
        %3944 = vmatpush1.bf16.msra.mxu0 %v3892
        %3945 = vmatprep.subr.bf16.mxu0 0
        %3946 = vmatpush1.bf16.msra.mxu0 %v3893
        %3947 = vmatprep.subr.bf16.mxu0 0
        %3948 = vmatpush1.bf16.msra.mxu0 %v3894
        %3949 = vmatprep.subr.bf16.mxu0 0
        %3950 = vmatpush1.bf16.msra.mxu0 %v3895
        %3951 = vmatprep.subr.bf16.mxu0 0
        %3952 = vmatpush1.bf16.msra.mxu0 %v3896
        %3953 = vmatprep.subr.bf16.mxu0 0
        %3954 = vmatpush1.bf16.msra.mxu0 %v3897
        %3955 = vmatprep.subr.bf16.mxu0 0
        %3956 = vmatpush1.bf16.msra.mxu0 %v3898
        %3957 = vmatprep.subr.bf16.mxu0 0
        %3958 = vmatpush1.bf16.msra.mxu0 %v3899
        %3959 = vmatprep.subr.bf16.mxu0 0
        %3960 = vmatpush1.bf16.msra.mxu0 %v3900
        %3961 = vmatprep.subr.bf16.mxu0 0
        %3962 = vmatpush1.bf16.msra.mxu0 %v3901
        %3963 = vmatprep.subr.bf16.mxu0 0
        %3964 = vmatpush1.bf16.msra.mxu0 %v3902
        %3965 = vmatprep.subr.bf16.mxu0 0
        %3966 = vmatpush1.bf16.msra.mxu0 %v3903
        %3967 = vmatprep.subr.bf16.mxu0 0
        %3968 = vmatpush1.bf16.msra.mxu0 %v3904
        %3969 = vmatprep.mubr.bf16.mxu0 0
        %3970 = vmatmul.mubr.bf16.gmra.mrb[0].mxu0 %v3145
        %v3971 = vpop.f32.mrb[0].mxu0
        %v3972 = vadd.f32 %v3667, %v3971
        %v3973 = vpop.f32.mrb[0].mxu0
        %v3974 = vpop.f32.mrb[0].mxu0
        %v3975 = vadd.f32 %v3670, %v3974
        %v3976 = vpop.f32.mrb[0].mxu0
        %3977 = vmatprep.mubr.bf16.mxu0 %v2993
        %3978 = vmatmul.mubr.bf16.gmra.mrb[0].mxu0 %v3146
        %v3979 = vpop.f32.mrb[0].mxu0
        %v3980 = vadd.f32 %v3675, %v3979
        %v3981 = vpop.f32.mrb[0].mxu0
        %v3982 = vpop.f32.mrb[0].mxu0
        %v3983 = vadd.f32 %v3678, %v3982
        %v3984 = vpop.f32.mrb[0].mxu0
        %3985 = vmatprep.mubr.bf16.mxu0 %v2994
        %3986 = vmatmul.mubr.bf16.gmra.mrb[0].mxu0 %v3147
        %v3987 = vpop.f32.mrb[0].mxu0
        %v3988 = vadd.f32 %v3683, %v3987
        %v3989 = vpop.f32.mrb[0].mxu0
        %v3990 = vpop.f32.mrb[0].mxu0
        %v3991 = vadd.f32 %v3686, %v3990
        %v3992 = vpop.f32.mrb[0].mxu0
        %3993 = vmatprep.mubr.bf16.mxu0 %v2995
        %3994 = vmatmul.mubr.bf16.gmra.mrb[0].mxu0 %v3148
        %v3995 = vpop.f32.mrb[0].mxu0
        %v3996 = vadd.f32 %v3691, %v3995
        %v3997 = vpop.f32.mrb[0].mxu0
        %v3998 = vpop.f32.mrb[0].mxu0
        %v3999 = vadd.f32 %v3694, %v3998
        %v4000 = vpop.f32.mrb[0].mxu0
        %4001 = vmatprep.mubr.bf16.mxu0 %v2996
        %4002 = vmatmul.mubr.bf16.gmra.mrb[0].mxu0 %v3149
        %v4003 = vpop.f32.mrb[0].mxu0
        %v4004 = vadd.f32 %v3699, %v4003
        %v4005 = vpop.f32.mrb[0].mxu0
        %v4006 = vpop.f32.mrb[0].mxu0
        %v4007 = vadd.f32 %v3702, %v4006
        %v4008 = vpop.f32.mrb[0].mxu0
        %4009 = vmatprep.mubr.bf16.mxu0 %v2997
        %4010 = vmatmul.mubr.bf16.gmra.mrb[0].mxu0 %v3150
        %v4011 = vpop.f32.mrb[0].mxu0
        %v4012 = vadd.f32 %v3707, %v4011
        %v4013 = vpop.f32.mrb[0].mxu0
        %v4014 = vpop.f32.mrb[0].mxu0
        %v4015 = vadd.f32 %v3710, %v4014
        %v4016 = vpop.f32.mrb[0].mxu0
        %4017 = vmatprep.mubr.bf16.mxu0 %v2998
        %4018 = vmatmul.mubr.bf16.gmra.mrb[0].mxu0 %v3151
        %v4019 = vpop.f32.mrb[0].mxu0
        %v4020 = vadd.f32 %v3715, %v4019
        %v4021 = vpop.f32.mrb[0].mxu0
        %v4022 = vpop.f32.mrb[0].mxu0
        %v4023 = vadd.f32 %v3718, %v4022
        %v4024 = vpop.f32.mrb[0].mxu0
        %4025 = vmatprep.mubr.bf16.mxu0 %v2999
        %4026 = vmatmul.mubr.bf16.gmra.mrb[0].mxu0 %v3152
        %v4027 = vpop.f32.mrb[0].mxu0
        %v4028 = vadd.f32 %v3723, %v4027
        %v4029 = vpop.f32.mrb[0].mxu0
        %v4030 = vpop.f32.mrb[0].mxu0
        %v4031 = vadd.f32 %v3726, %v4030
        %v4032 = vpop.f32.mrb[0].mxu0
        %4033 = vmatprep.mubr.bf16.mxu0 %v3000
        %4034 = vmatmul.mubr.bf16.gmra.mrb[0].mxu0 %v3153
        %v4035 = vpop.f32.mrb[0].mxu0
        %v4036 = vadd.f32 %v3731, %v4035
        %v4037 = vpop.f32.mrb[0].mxu0
        %v4038 = vpop.f32.mrb[0].mxu0
        %v4039 = vadd.f32 %v3734, %v4038
        %v4040 = vpop.f32.mrb[0].mxu0
        %4041 = vmatprep.mubr.bf16.mxu0 %v3001
        %4042 = vmatmul.mubr.bf16.gmra.mrb[0].mxu0 %v3154
        %v4043 = vpop.f32.mrb[0].mxu0
        %v4044 = vadd.f32 %v3739, %v4043
        %v4045 = vpop.f32.mrb[0].mxu0
        %v4046 = vpop.f32.mrb[0].mxu0
        %v4047 = vadd.f32 %v3742, %v4046
        %v4048 = vpop.f32.mrb[0].mxu0
        %4049 = vmatprep.mubr.bf16.mxu0 %v3002
        %4050 = vmatmul.mubr.bf16.gmra.mrb[0].mxu0 %v3155
        %v4051 = vpop.f32.mrb[0].mxu0
        %v4052 = vadd.f32 %v3747, %v4051
        %v4053 = vpop.f32.mrb[0].mxu0
        %v4054 = vpop.f32.mrb[0].mxu0
        %v4055 = vadd.f32 %v3750, %v4054
        %v4056 = vpop.f32.mrb[0].mxu0
        %4057 = vmatprep.mubr.bf16.mxu0 %v3003
        %4058 = vmatmul.mubr.bf16.gmra.mrb[0].mxu0 %v3156
        %v4059 = vpop.f32.mrb[0].mxu0
        %v4060 = vadd.f32 %v3755, %v4059
        %v4061 = vpop.f32.mrb[0].mxu0
        %v4062 = vpop.f32.mrb[0].mxu0
        %v4063 = vadd.f32 %v3758, %v4062
        %v4064 = vpop.f32.mrb[0].mxu0
        %4065 = vmatprep.mubr.bf16.mxu0 %v3004
        %4066 = vmatmul.mubr.bf16.gmra.mrb[0].mxu0 %v3157
        %v4067 = vpop.f32.mrb[0].mxu0
        %v4068 = vadd.f32 %v3763, %v4067
        %v4069 = vpop.f32.mrb[0].mxu0
        %v4070 = vpop.f32.mrb[0].mxu0
        %v4071 = vadd.f32 %v3766, %v4070
        %v4072 = vpop.f32.mrb[0].mxu0
        %4073 = vmatprep.mubr.bf16.mxu0 %v3005
        %4074 = vmatmul.mubr.bf16.gmra.mrb[0].mxu0 %v3158
        %v4075 = vpop.f32.mrb[0].mxu0
        %v4076 = vadd.f32 %v3771, %v4075
        %v4077 = vpop.f32.mrb[0].mxu0
        %v4078 = vpop.f32.mrb[0].mxu0
        %v4079 = vadd.f32 %v3774, %v4078
        %v4080 = vpop.f32.mrb[0].mxu0
        %4081 = vmatprep.mubr.bf16.mxu0 %v3006
        %4082 = vmatmul.mubr.bf16.gmra.mrb[0].mxu0 %v3159
        %v4083 = vpop.f32.mrb[0].mxu0
        %v4084 = vadd.f32 %v3779, %v4083
        %v4085 = vpop.f32.mrb[0].mxu0
        %v4086 = vpop.f32.mrb[0].mxu0
        %v4087 = vadd.f32 %v3782, %v4086
        %v4088 = vpop.f32.mrb[0].mxu0
        %4089 = vmatprep.mubr.bf16.mxu0 %v3007
        %4090 = vmatmul.mubr.bf16.gmra.mrb[0].mxu0 %v3160
        %v4091 = vpop.f32.mrb[0].mxu0
        %v4092 = vadd.f32 %v3787, %v4091
        %v4093 = vpop.f32.mrb[0].mxu0
        %v4094 = vpop.f32.mrb[0].mxu0
        %v4095 = vadd.f32 %v3790, %v4094
        %v4096 = vpop.f32.mrb[0].mxu0
        %4097 = vdwg.mxu0
        %4098 = vmatprep.subr.bf16.mxu0 0
        %4099 = vmatpush1.bf16.msra.mxu0 %v3905
        %4100 = vmatprep.subr.bf16.mxu0 0
        %4101 = vmatpush1.bf16.msra.mxu0 %v3906
        %4102 = vmatprep.subr.bf16.mxu0 0
        %4103 = vmatpush1.bf16.msra.mxu0 %v3907
        %4104 = vmatprep.subr.bf16.mxu0 0
        %4105 = vmatpush1.bf16.msra.mxu0 %v3908
        %4106 = vmatprep.subr.bf16.mxu0 0
        %4107 = vmatpush1.bf16.msra.mxu0 %v3909
        %4108 = vmatprep.subr.bf16.mxu0 0
        %4109 = vmatpush1.bf16.msra.mxu0 %v3910
        %4110 = vmatprep.subr.bf16.mxu0 0
        %4111 = vmatpush1.bf16.msra.mxu0 %v3911
        %4112 = vmatprep.subr.bf16.mxu0 0
        %4113 = vmatpush1.bf16.msra.mxu0 %v3912
        %4114 = vmatprep.subr.bf16.mxu0 0
        %4115 = vmatpush1.bf16.msra.mxu0 0
        %4116 = vmatprep.subr.bf16.mxu0 0
        %4117 = vmatpush1.bf16.msra.mxu0 0
        %4118 = vmatprep.subr.bf16.mxu0 0
        %4119 = vmatpush1.bf16.msra.mxu0 0
        %4120 = vmatprep.subr.bf16.mxu0 0
        %4121 = vmatpush1.bf16.msra.mxu0 0
        %4122 = vmatprep.subr.bf16.mxu0 0
        %4123 = vmatpush1.bf16.msra.mxu0 0
        %4124 = vmatprep.subr.bf16.mxu0 0
        %4125 = vmatpush1.bf16.msra.mxu0 0
        %4126 = vmatprep.subr.bf16.mxu0 0
        %4127 = vmatpush1.bf16.msra.mxu0 0
        %4128 = vmatprep.subr.bf16.mxu0 0
        %4129 = vmatpush1.bf16.msra.mxu0 0
        %4130 = vmatprep.mubr.bf16.mxu0 0
        %4131 = vmatmul.mubr.bf16.gmra.mrb[0].mxu0 %v3213
        %v4132 = vpop.f32.mrb[0].mxu0
        %v4133 = vadd.f32 %v3972, %v4132
        %v4134 = vpop.f32.mrb[0].mxu0
        %v4135 = vpop.f32.mrb[0].mxu0
        %v4136 = vadd.f32 %v3975, %v4135
        %v4137 = vpop.f32.mrb[0].mxu0
        %4138 = vmatprep.mubr.bf16.mxu0 0
        %4139 = vmatmul.mubr.bf16.gmra.mrb[0].mxu0 %v3214
        %v4140 = vpop.f32.mrb[0].mxu0
        %v4141 = vadd.f32 %v3980, %v4140
        %v4142 = vpop.f32.mrb[0].mxu0
        %v4143 = vpop.f32.mrb[0].mxu0
        %v4144 = vadd.f32 %v3983, %v4143
        %v4145 = vpop.f32.mrb[0].mxu0
        %4146 = vmatprep.mubr.bf16.mxu0 0
        %4147 = vmatmul.mubr.bf16.gmra.mrb[0].mxu0 %v3215
        %v4148 = vpop.f32.mrb[0].mxu0
        %v4149 = vadd.f32 %v3988, %v4148
        %v4150 = vpop.f32.mrb[0].mxu0
        %v4151 = vpop.f32.mrb[0].mxu0
        %v4152 = vadd.f32 %v3991, %v4151
        %v4153 = vpop.f32.mrb[0].mxu0
        %4154 = vmatprep.mubr.bf16.mxu0 0
        %4155 = vmatmul.mubr.bf16.gmra.mrb[0].mxu0 %v3216
        %v4156 = vpop.f32.mrb[0].mxu0
        %v4157 = vadd.f32 %v3996, %v4156
        %v4158 = vpop.f32.mrb[0].mxu0
        %v4159 = vpop.f32.mrb[0].mxu0
        %v4160 = vadd.f32 %v3999, %v4159
        %v4161 = vpop.f32.mrb[0].mxu0
        %4162 = vmatprep.mubr.bf16.mxu0 0
        %4163 = vmatmul.mubr.bf16.gmra.mrb[0].mxu0 %v3217
        %v4164 = vpop.f32.mrb[0].mxu0
        %v4165 = vadd.f32 %v4004, %v4164
        %v4166 = vpop.f32.mrb[0].mxu0
        %v4167 = vpop.f32.mrb[0].mxu0
        %v4168 = vadd.f32 %v4007, %v4167
        %v4169 = vpop.f32.mrb[0].mxu0
        %4170 = vmatprep.mubr.bf16.mxu0 0
        %4171 = vmatmul.mubr.bf16.gmra.mrb[0].mxu0 %v3218
        %v4172 = vpop.f32.mrb[0].mxu0
        %v4173 = vadd.f32 %v4012, %v4172
        %v4174 = vpop.f32.mrb[0].mxu0
        %v4175 = vpop.f32.mrb[0].mxu0
        %v4176 = vadd.f32 %v4015, %v4175
        %v4177 = vpop.f32.mrb[0].mxu0
        %4178 = vmatprep.mubr.bf16.mxu0 0
        %4179 = vmatmul.mubr.bf16.gmra.mrb[0].mxu0 %v3219
        %v4180 = vpop.f32.mrb[0].mxu0
        %v4181 = vadd.f32 %v4020, %v4180
        %v4182 = vpop.f32.mrb[0].mxu0
        %v4183 = vpop.f32.mrb[0].mxu0
        %v4184 = vadd.f32 %v4023, %v4183
        %v4185 = vpop.f32.mrb[0].mxu0
        %4186 = vmatprep.mubr.bf16.mxu0 0
        %4187 = vmatmul.mubr.bf16.gmra.mrb[0].mxu0 %v3220
        %v4188 = vpop.f32.mrb[0].mxu0
        %v4189 = vadd.f32 %v4028, %v4188
        %v4190 = vpop.f32.mrb[0].mxu0
        %v4191 = vpop.f32.mrb[0].mxu0
        %v4192 = vadd.f32 %v4031, %v4191
        %v4193 = vpop.f32.mrb[0].mxu0
        %4194 = vmatprep.mubr.bf16.mxu0 0
        %4195 = vmatmul.mubr.bf16.gmra.mrb[0].mxu0 %v3221
        %v4196 = vpop.f32.mrb[0].mxu0
        %v4197 = vadd.f32 %v4036, %v4196
        %v4198 = vpop.f32.mrb[0].mxu0
        %v4199 = vpop.f32.mrb[0].mxu0
        %v4200 = vadd.f32 %v4039, %v4199
        %v4201 = vpop.f32.mrb[0].mxu0
        %4202 = vmatprep.mubr.bf16.mxu0 0
        %4203 = vmatmul.mubr.bf16.gmra.mrb[0].mxu0 %v3222
        %v4204 = vpop.f32.mrb[0].mxu0
        %v4205 = vadd.f32 %v4044, %v4204
        %v4206 = vpop.f32.mrb[0].mxu0
        %v4207 = vpop.f32.mrb[0].mxu0
        %v4208 = vadd.f32 %v4047, %v4207
        %v4209 = vpop.f32.mrb[0].mxu0
        %4210 = vmatprep.mubr.bf16.mxu0 0
        %4211 = vmatmul.mubr.bf16.gmra.mrb[0].mxu0 %v3223
        %v4212 = vpop.f32.mrb[0].mxu0
        %v4213 = vadd.f32 %v4052, %v4212
        %v4214 = vpop.f32.mrb[0].mxu0
        %v4215 = vpop.f32.mrb[0].mxu0
        %v4216 = vadd.f32 %v4055, %v4215
        %v4217 = vpop.f32.mrb[0].mxu0
        %4218 = vmatprep.mubr.bf16.mxu0 0
        %4219 = vmatmul.mubr.bf16.gmra.mrb[0].mxu0 %v3224
        %v4220 = vpop.f32.mrb[0].mxu0
        %v4221 = vadd.f32 %v4060, %v4220
        %v4222 = vpop.f32.mrb[0].mxu0
        %v4223 = vpop.f32.mrb[0].mxu0
        %v4224 = vadd.f32 %v4063, %v4223
        %v4225 = vpop.f32.mrb[0].mxu0
        %4226 = vmatprep.mubr.bf16.mxu0 0
        %4227 = vmatmul.mubr.bf16.gmra.mrb[0].mxu0 %v3225
        %v4228 = vpop.f32.mrb[0].mxu0
        %v4229 = vadd.f32 %v4068, %v4228
        %v4230 = vpop.f32.mrb[0].mxu0
        %v4231 = vpop.f32.mrb[0].mxu0
        %v4232 = vadd.f32 %v4071, %v4231
        %v4233 = vpop.f32.mrb[0].mxu0
        %4234 = vmatprep.mubr.bf16.mxu0 0
        %4235 = vmatmul.mubr.bf16.gmra.mrb[0].mxu0 %v3226
        %v4236 = vpop.f32.mrb[0].mxu0
        %v4237 = vadd.f32 %v4076, %v4236
        %v4238 = vpop.f32.mrb[0].mxu0
        %v4239 = vpop.f32.mrb[0].mxu0
        %v4240 = vadd.f32 %v4079, %v4239
        %v4241 = vpop.f32.mrb[0].mxu0
        %4242 = vmatprep.mubr.bf16.mxu0 0
        %4243 = vmatmul.mubr.bf16.gmra.mrb[0].mxu0 %v3227
        %v4244 = vpop.f32.mrb[0].mxu0
        %v4245 = vadd.f32 %v4084, %v4244
        %v4246 = vpop.f32.mrb[0].mxu0
        %v4247 = vpop.f32.mrb[0].mxu0
        %v4248 = vadd.f32 %v4087, %v4247
        %v4249 = vpop.f32.mrb[0].mxu0
        %4250 = vmatprep.mubr.bf16.mxu0 0
        %4251 = vmatmul.mubr.bf16.gmra.mrb[0].mxu0 %v3228
        %v4252 = vpop.f32.mrb[0].mxu0
        %v4253 = vadd.f32 %v4092, %v4252
        %v4254 = vpop.f32.mrb[0].mxu0
        %v4255 = vpop.f32.mrb[0].mxu0
        %v4256 = vadd.f32 %v4095, %v4255
        %v4257 = vpop.f32.mrb[0].mxu0
        %4258 = vdwg.mxu0
        %s4259 = scalar_lea.vmem [#allocation8], 384
        %v4260 = vld [vmem:[%s4259] sm:$0xf]
        %v4261 = vld [vmem:[%s4259 + $0x4] sm:$0xf]
        %v4262 = vld [vmem:[%s4259 + $0x8] sm:$0xf]
        %v4263 = vld [vmem:[%s4259 + $0xc] sm:$0xf]
        %v4264 = vld [vmem:[%s4259 + $0x10] sm:$0xf]
        %v4265 = vld [vmem:[%s4259 + $0x14] sm:$0xf]
        %v4266 = vld [vmem:[%s4259 + $0x18] sm:$0xf]
        %v4267 = vld [vmem:[%s4259 + $0x1c] sm:$0xf]
        %v4268 = vld [vmem:[%s4259 + $0x20] sm:$0xf]
        %v4269 = vld [vmem:[%s4259 + $0x24] sm:$0xf]
        %v4270 = vld [vmem:[%s4259 + $0x28] sm:$0xf]
        %v4271 = vld [vmem:[%s4259 + $0x2c] sm:$0xf]
        %v4272 = vld [vmem:[%s4259 + $0x30] sm:$0xf]
        %v4273 = vld [vmem:[%s4259 + $0x34] sm:$0xf]
        %v4274 = vld [vmem:[%s4259 + $0x38] sm:$0xf]
        %v4275 = vld [vmem:[%s4259 + $0x3c] sm:$0xf]
        %v4276 = vld [vmem:[%s4259 + $0x40] sm:$0xf]
        %v4277 = vld [vmem:[%s4259 + $0x44] sm:$0xf]
        %v4278 = vld [vmem:[%s4259 + $0x48] sm:$0xf]
        %v4279 = vld [vmem:[%s4259 + $0x4c] sm:$0xf]
        %v4280 = vld [vmem:[%s4259 + $0x50] sm:$0xf]
        %v4281 = vld [vmem:[%s4259 + $0x54] sm:$0xf]
        %v4282 = vld [vmem:[%s4259 + $0x58] sm:$0xf]
        %v4283 = vld [vmem:[%s4259 + $0x5c] sm:$0xf]
        %v4284 = vld [vmem:[%s4259 + $0x60] sm:$0xf]
        %v4285 = vld [vmem:[%s4259 + $0x64] sm:$0xf]
        %v4286 = vld [vmem:[%s4259 + $0x68] sm:$0xf]
        %v4287 = vld [vmem:[%s4259 + $0x6c] sm:$0xf]
        %v4288 = vld [vmem:[%s4259 + $0x70] sm:$0xf]
        %v4289 = vld [vmem:[%s4259 + $0x74] sm:$0xf]
        %v4290 = vld [vmem:[%s4259 + $0x78] sm:$0xf]
        %v4291 = vld [vmem:[%s4259 + $0x7c] sm:$0xf]
        %v4292 = vld [vmem:[%s4259 + $0x80] sm:$0xf]
        %v4293 = vld [vmem:[%s4259 + $0x84] sm:$0xf]
        %v4294 = vld [vmem:[%s4259 + $0x88] sm:$0xf]
        %v4295 = vld [vmem:[%s4259 + $0x8c] sm:$0xf]
        %v4296 = vld [vmem:[%s4259 + $0x90] sm:$0xf]
        %v4297 = vld [vmem:[%s4259 + $0x94] sm:$0xf]
        %v4298 = vld [vmem:[%s4259 + $0x98] sm:$0xf]
        %v4299 = vld [vmem:[%s4259 + $0x9c] sm:$0xf]
        %v4300 = vld [vmem:[%s4259 + $0xa0] sm:$0xf]
        %v4301 = vld [vmem:[%s4259 + $0xa4] sm:$0xf]
        %v4302 = vld [vmem:[%s4259 + $0xa8] sm:$0xf]
        %v4303 = vld [vmem:[%s4259 + $0xac] sm:$0xf]
        %v4304 = vld [vmem:[%s4259 + $0xb0] sm:$0xf]
        %v4305 = vld [vmem:[%s4259 + $0xb4] sm:$0xf]
        %v4306 = vld [vmem:[%s4259 + $0xb8] sm:$0xf]
        %v4307 = vld [vmem:[%s4259 + $0xbc] sm:$0xf]
        %v4356 = vunpack.c.l.b16 %v4260
        %v4357 = vunpack.c.l.b16 %v4261
        %v4358 = vunpack.c.l.b16 %v4262
        %v4359 = vunpack.c.l.b16 %v4263
        %v4360 = vunpack.c.l.b16 %v4264
        %v4361 = vunpack.c.l.b16 %v4265
        %v4362 = vunpack.c.l.b16 %v4266
        %v4363 = vunpack.c.l.b16 %v4267
        %v4364 = vunpack.c.l.b16 %v4268
        %v4365 = vunpack.c.l.b16 %v4269
        %v4366 = vunpack.c.l.b16 %v4270
        %v4367 = vunpack.c.l.b16 %v4271
        %v4368 = vunpack.c.l.b16 %v4272
        %v4369 = vunpack.c.l.b16 %v4273
        %v4370 = vunpack.c.l.b16 %v4274
        %v4371 = vunpack.c.l.b16 %v4275
        %v4372 = vunpack.c.l.b16 %v4276
        %v4373 = vunpack.c.l.b16 %v4277
        %v4374 = vunpack.c.l.b16 %v4278
        %v4375 = vunpack.c.l.b16 %v4279
        %v4376 = vunpack.c.l.b16 %v4280
        %v4377 = vunpack.c.l.b16 %v4281
        %v4378 = vunpack.c.l.b16 %v4282
        %v4379 = vunpack.c.l.b16 %v4283
        %v4380 = vunpack.c.l.b16 %v4284
        %v4381 = vunpack.c.l.b16 %v4285
        %v4382 = vunpack.c.l.b16 %v4286
        %v4383 = vunpack.c.l.b16 %v4287
        %v4384 = vunpack.c.l.b16 %v4288
        %v4385 = vunpack.c.l.b16 %v4289
        %v4386 = vunpack.c.l.b16 %v4290
        %v4387 = vunpack.c.l.b16 %v4291
        %v4388 = vunpack.c.l.b16 %v4292
        %v4389 = vunpack.c.l.b16 %v4293
        %v4390 = vunpack.c.l.b16 %v4294
        %v4391 = vunpack.c.l.b16 %v4295
        %v4392 = vunpack.c.l.b16 %v4296
        %v4393 = vunpack.c.l.b16 %v4297
        %v4394 = vunpack.c.l.b16 %v4298
        %v4395 = vunpack.c.l.b16 %v4299
        %v4396 = vunpack.c.l.b16 %v4300
        %v4397 = vunpack.c.l.b16 %v4301
        %v4398 = vunpack.c.l.b16 %v4302
        %v4399 = vunpack.c.l.b16 %v4303
        %v4400 = vunpack.c.l.b16 %v4304
        %v4401 = vunpack.c.l.b16 %v4305
        %v4402 = vunpack.c.l.b16 %v4306
        %v4403 = vunpack.c.l.b16 %v4307
        %v4404 = vpack.c.b16 %v4357, %v4356
        %v4405 = vpack.c.b16 %v4359, %v4358
        %v4406 = vpack.c.b16 %v4361, %v4360
        %v4407 = vpack.c.b16 %v4363, %v4362
        %v4408 = vpack.c.b16 %v4365, %v4364
        %v4409 = vpack.c.b16 %v4367, %v4366
        %v4410 = vpack.c.b16 %v4369, %v4368
        %v4411 = vpack.c.b16 %v4371, %v4370
        %v4412 = vpack.c.b16 %v4373, %v4372
        %v4413 = vpack.c.b16 %v4375, %v4374
        %v4414 = vpack.c.b16 %v4377, %v4376
        %v4415 = vpack.c.b16 %v4379, %v4378
        %v4416 = vpack.c.b16 %v4381, %v4380
        %v4417 = vpack.c.b16 %v4383, %v4382
        %v4418 = vpack.c.b16 %v4385, %v4384
        %v4419 = vpack.c.b16 %v4387, %v4386
        %v4420 = vpack.c.b16 %v4389, %v4388
        %v4421 = vpack.c.b16 %v4391, %v4390
        %v4422 = vpack.c.b16 %v4393, %v4392
        %v4423 = vpack.c.b16 %v4395, %v4394
        %v4424 = vpack.c.b16 %v4397, %v4396
        %v4425 = vpack.c.b16 %v4399, %v4398
        %v4426 = vpack.c.b16 %v4401, %v4400
        %v4427 = vpack.c.b16 %v4403, %v4402
        %4452 = vmatprep.subr.bf16.mxu0 0
        %4453 = vmatpush1.bf16.msra.mxu0 %v4404
        %4454 = vmatprep.subr.bf16.mxu0 0
        %4455 = vmatpush1.bf16.msra.mxu0 %v4405
        %4456 = vmatprep.subr.bf16.mxu0 0
        %4457 = vmatpush1.bf16.msra.mxu0 %v4406
        %4458 = vmatprep.subr.bf16.mxu0 0
        %4459 = vmatpush1.bf16.msra.mxu0 %v4407
        %4460 = vmatprep.subr.bf16.mxu0 0
        %4461 = vmatpush1.bf16.msra.mxu0 %v4408
        %4462 = vmatprep.subr.bf16.mxu0 0
        %4463 = vmatpush1.bf16.msra.mxu0 %v4409
        %4464 = vmatprep.subr.bf16.mxu0 0
        %4465 = vmatpush1.bf16.msra.mxu0 %v4410
        %4466 = vmatprep.subr.bf16.mxu0 0
        %4467 = vmatpush1.bf16.msra.mxu0 %v4411
        %4468 = vmatprep.subr.bf16.mxu0 0
        %4469 = vmatpush1.bf16.msra.mxu0 %v4412
        %4470 = vmatprep.subr.bf16.mxu0 0
        %4471 = vmatpush1.bf16.msra.mxu0 %v4413
        %4472 = vmatprep.subr.bf16.mxu0 0
        %4473 = vmatpush1.bf16.msra.mxu0 %v4414
        %4474 = vmatprep.subr.bf16.mxu0 0
        %4475 = vmatpush1.bf16.msra.mxu0 %v4415
        %4476 = vmatprep.subr.bf16.mxu0 0
        %4477 = vmatpush1.bf16.msra.mxu0 %v4416
        %4478 = vmatprep.subr.bf16.mxu0 0
        %4479 = vmatpush1.bf16.msra.mxu0 %v4417
        %4480 = vmatprep.subr.bf16.mxu0 0
        %4481 = vmatpush1.bf16.msra.mxu0 %v4418
        %4482 = vmatprep.subr.bf16.mxu0 0
        %4483 = vmatpush1.bf16.msra.mxu0 %v4419
        %4484 = vmatprep.mubr.bf16.mxu0 %v2994
        %4485 = vmatmul.mubr.bf16.gmra.mrb[0].mxu0 %v3147
        %v4486 = vpop.f32.mrb[0].mxu0
        %v4487 = vadd.f32 0.0, %v4486
        %v4488 = vpop.f32.mrb[0].mxu0
        %v4489 = vpop.f32.mrb[0].mxu0
        %v4490 = vadd.f32 0.0, %v4489
        %v4491 = vpop.f32.mrb[0].mxu0
        %4492 = vmatprep.mubr.bf16.mxu0 %v2995
        %4493 = vmatmul.mubr.bf16.gmra.mrb[0].mxu0 %v3148
        %v4494 = vpop.f32.mrb[0].mxu0
        %v4495 = vadd.f32 0.0, %v4494
        %v4496 = vpop.f32.mrb[0].mxu0
        %v4497 = vpop.f32.mrb[0].mxu0
        %v4498 = vadd.f32 0.0, %v4497
        %v4499 = vpop.f32.mrb[0].mxu0
        %4500 = vmatprep.mubr.bf16.mxu0 %v2996
        %4501 = vmatmul.mubr.bf16.gmra.mrb[0].mxu0 %v3149
        %v4502 = vpop.f32.mrb[0].mxu0
        %v4503 = vadd.f32 0.0, %v4502
        %v4504 = vpop.f32.mrb[0].mxu0
        %v4505 = vpop.f32.mrb[0].mxu0
        %v4506 = vadd.f32 0.0, %v4505
        %v4507 = vpop.f32.mrb[0].mxu0
        %4508 = vmatprep.mubr.bf16.mxu0 %v2997
        %4509 = vmatmul.mubr.bf16.gmra.mrb[0].mxu0 %v3150
        %v4510 = vpop.f32.mrb[0].mxu0
        %v4511 = vadd.f32 0.0, %v4510
        %v4512 = vpop.f32.mrb[0].mxu0
        %v4513 = vpop.f32.mrb[0].mxu0
        %v4514 = vadd.f32 0.0, %v4513
        %v4515 = vpop.f32.mrb[0].mxu0
        %4516 = vmatprep.mubr.bf16.mxu0 %v2998
        %4517 = vmatmul.mubr.bf16.gmra.mrb[0].mxu0 %v3151
        %v4518 = vpop.f32.mrb[0].mxu0
        %v4519 = vadd.f32 0.0, %v4518
        %v4520 = vpop.f32.mrb[0].mxu0
        %v4521 = vpop.f32.mrb[0].mxu0
        %v4522 = vadd.f32 0.0, %v4521
        %v4523 = vpop.f32.mrb[0].mxu0
        %4524 = vmatprep.mubr.bf16.mxu0 %v2999
        %4525 = vmatmul.mubr.bf16.gmra.mrb[0].mxu0 %v3152
        %v4526 = vpop.f32.mrb[0].mxu0
        %v4527 = vadd.f32 0.0, %v4526
        %v4528 = vpop.f32.mrb[0].mxu0
        %v4529 = vpop.f32.mrb[0].mxu0
        %v4530 = vadd.f32 0.0, %v4529
        %v4531 = vpop.f32.mrb[0].mxu0
        %4532 = vmatprep.mubr.bf16.mxu0 %v3000
        %4533 = vmatmul.mubr.bf16.gmra.mrb[0].mxu0 %v3153
        %v4534 = vpop.f32.mrb[0].mxu0
        %v4535 = vadd.f32 0.0, %v4534
        %v4536 = vpop.f32.mrb[0].mxu0
        %v4537 = vpop.f32.mrb[0].mxu0
        %v4538 = vadd.f32 0.0, %v4537
        %v4539 = vpop.f32.mrb[0].mxu0
        %4540 = vmatprep.mubr.bf16.mxu0 %v3001
        %4541 = vmatmul.mubr.bf16.gmra.mrb[0].mxu0 %v3154
        %v4542 = vpop.f32.mrb[0].mxu0
        %v4543 = vadd.f32 0.0, %v4542
        %v4544 = vpop.f32.mrb[0].mxu0
        %v4545 = vpop.f32.mrb[0].mxu0
        %v4546 = vadd.f32 0.0, %v4545
        %v4547 = vpop.f32.mrb[0].mxu0
        %4548 = vmatprep.mubr.bf16.mxu0 %v3002
        %4549 = vmatmul.mubr.bf16.gmra.mrb[0].mxu0 %v3155
        %v4550 = vpop.f32.mrb[0].mxu0
        %v4551 = vadd.f32 0.0, %v4550
        %v4552 = vpop.f32.mrb[0].mxu0
        %v4553 = vpop.f32.mrb[0].mxu0
        %v4554 = vadd.f32 0.0, %v4553
        %v4555 = vpop.f32.mrb[0].mxu0
        %4556 = vmatprep.mubr.bf16.mxu0 %v3003
        %4557 = vmatmul.mubr.bf16.gmra.mrb[0].mxu0 %v3156
        %v4558 = vpop.f32.mrb[0].mxu0
        %v4559 = vadd.f32 0.0, %v4558
        %v4560 = vpop.f32.mrb[0].mxu0
        %v4561 = vpop.f32.mrb[0].mxu0
        %v4562 = vadd.f32 0.0, %v4561
        %v4563 = vpop.f32.mrb[0].mxu0
        %4564 = vmatprep.mubr.bf16.mxu0 %v3004
        %4565 = vmatmul.mubr.bf16.gmra.mrb[0].mxu0 %v3157
        %v4566 = vpop.f32.mrb[0].mxu0
        %v4567 = vadd.f32 0.0, %v4566
        %v4568 = vpop.f32.mrb[0].mxu0
        %v4569 = vpop.f32.mrb[0].mxu0
        %v4570 = vadd.f32 0.0, %v4569
        %v4571 = vpop.f32.mrb[0].mxu0
        %4572 = vmatprep.mubr.bf16.mxu0 %v3005
        %4573 = vmatmul.mubr.bf16.gmra.mrb[0].mxu0 %v3158
        %v4574 = vpop.f32.mrb[0].mxu0
        %v4575 = vadd.f32 0.0, %v4574
        %v4576 = vpop.f32.mrb[0].mxu0
        %v4577 = vpop.f32.mrb[0].mxu0
        %v4578 = vadd.f32 0.0, %v4577
        %v4579 = vpop.f32.mrb[0].mxu0
        %4580 = vmatprep.mubr.bf16.mxu0 %v3006
        %4581 = vmatmul.mubr.bf16.gmra.mrb[0].mxu0 %v3159
        %v4582 = vpop.f32.mrb[0].mxu0
        %v4583 = vadd.f32 0.0, %v4582
        %v4584 = vpop.f32.mrb[0].mxu0
        %v4585 = vpop.f32.mrb[0].mxu0
        %v4586 = vadd.f32 0.0, %v4585
        %v4587 = vpop.f32.mrb[0].mxu0
        %4588 = vmatprep.mubr.bf16.mxu0 %v3007
        %4589 = vmatmul.mubr.bf16.gmra.mrb[0].mxu0 %v3160
        %v4590 = vpop.f32.mrb[0].mxu0
        %v4591 = vadd.f32 0.0, %v4590
        %v4592 = vpop.f32.mrb[0].mxu0
        %v4593 = vpop.f32.mrb[0].mxu0
        %v4594 = vadd.f32 0.0, %v4593
        %v4595 = vpop.f32.mrb[0].mxu0
        %4596 = vmatprep.mubr.bf16.mxu0 %v3008
        %4597 = vmatmul.mubr.bf16.gmra.mrb[0].mxu0 %v3161
        %v4598 = vpop.f32.mrb[0].mxu0
        %v4599 = vadd.f32 0.0, %v4598
        %v4600 = vpop.f32.mrb[0].mxu0
        %v4601 = vpop.f32.mrb[0].mxu0
        %v4602 = vadd.f32 0.0, %v4601
        %v4603 = vpop.f32.mrb[0].mxu0
        %4604 = vmatprep.mubr.bf16.mxu0 0
        %4605 = vmatmul.mubr.bf16.gmra.mrb[0].mxu0 %v3145
        %v4606 = vpop.f32.mrb[0].mxu0
        %v4607 = vadd.f32 0.0, %v4606
        %v4608 = vpop.f32.mrb[0].mxu0
        %v4609 = vpop.f32.mrb[0].mxu0
        %v4610 = vadd.f32 0.0, %v4609
        %v4611 = vpop.f32.mrb[0].mxu0
        %4612 = vdwg.mxu0
        %4613 = vmatprep.subr.bf16.mxu0 0
        %4614 = vmatpush1.bf16.msra.mxu0 %v4420
        %4615 = vmatprep.subr.bf16.mxu0 0
        %4616 = vmatpush1.bf16.msra.mxu0 %v4421
        %4617 = vmatprep.subr.bf16.mxu0 0
        %4618 = vmatpush1.bf16.msra.mxu0 %v4422
        %4619 = vmatprep.subr.bf16.mxu0 0
        %4620 = vmatpush1.bf16.msra.mxu0 %v4423
        %4621 = vmatprep.subr.bf16.mxu0 0
        %4622 = vmatpush1.bf16.msra.mxu0 %v4424
        %4623 = vmatprep.subr.bf16.mxu0 0
        %4624 = vmatpush1.bf16.msra.mxu0 %v4425
        %4625 = vmatprep.subr.bf16.mxu0 0
        %4626 = vmatpush1.bf16.msra.mxu0 %v4426
        %4627 = vmatprep.subr.bf16.mxu0 0
        %4628 = vmatpush1.bf16.msra.mxu0 %v4427
        %4629 = vmatprep.subr.bf16.mxu0 0
        %4630 = vmatpush1.bf16.msra.mxu0 0
        %4631 = vmatprep.subr.bf16.mxu0 0
        %4632 = vmatpush1.bf16.msra.mxu0 0
        %4633 = vmatprep.subr.bf16.mxu0 0
        %4634 = vmatpush1.bf16.msra.mxu0 0
        %4635 = vmatprep.subr.bf16.mxu0 0
        %4636 = vmatpush1.bf16.msra.mxu0 0
        %4637 = vmatprep.subr.bf16.mxu0 0
        %4638 = vmatpush1.bf16.msra.mxu0 0
        %4639 = vmatprep.subr.bf16.mxu0 0
        %4640 = vmatpush1.bf16.msra.mxu0 0
        %4641 = vmatprep.subr.bf16.mxu0 0
        %4642 = vmatpush1.bf16.msra.mxu0 0
        %4643 = vmatprep.subr.bf16.mxu0 0
        %4644 = vmatpush1.bf16.msra.mxu0 0
        %4645 = vmatprep.mubr.bf16.mxu0 0
        %4646 = vmatmul.mubr.bf16.gmra.mrb[0].mxu0 %v3215
        %v4647 = vpop.f32.mrb[0].mxu0
        %v4648 = vadd.f32 %v4487, %v4647
        %v4649 = vpop.f32.mrb[0].mxu0
        %v4650 = vpop.f32.mrb[0].mxu0
        %v4651 = vadd.f32 %v4490, %v4650
        %v4652 = vpop.f32.mrb[0].mxu0
        %4653 = vmatprep.mubr.bf16.mxu0 0
        %4654 = vmatmul.mubr.bf16.gmra.mrb[0].mxu0 %v3216
        %v4655 = vpop.f32.mrb[0].mxu0
        %v4656 = vadd.f32 %v4495, %v4655
        %v4657 = vpop.f32.mrb[0].mxu0
        %v4658 = vpop.f32.mrb[0].mxu0
        %v4659 = vadd.f32 %v4498, %v4658
        %v4660 = vpop.f32.mrb[0].mxu0
        %4661 = vmatprep.mubr.bf16.mxu0 0
        %4662 = vmatmul.mubr.bf16.gmra.mrb[0].mxu0 %v3217
        %v4663 = vpop.f32.mrb[0].mxu0
        %v4664 = vadd.f32 %v4503, %v4663
        %v4665 = vpop.f32.mrb[0].mxu0
        %v4666 = vpop.f32.mrb[0].mxu0
        %v4667 = vadd.f32 %v4506, %v4666
        %v4668 = vpop.f32.mrb[0].mxu0
        %4669 = vmatprep.mubr.bf16.mxu0 0
        %4670 = vmatmul.mubr.bf16.gmra.mrb[0].mxu0 %v3218
        %v4671 = vpop.f32.mrb[0].mxu0
        %v4672 = vadd.f32 %v4511, %v4671
        %v4673 = vpop.f32.mrb[0].mxu0
        %v4674 = vpop.f32.mrb[0].mxu0
        %v4675 = vadd.f32 %v4514, %v4674
        %v4676 = vpop.f32.mrb[0].mxu0
        %4677 = vmatprep.mubr.bf16.mxu0 0
        %4678 = vmatmul.mubr.bf16.gmra.mrb[0].mxu0 %v3219
        %v4679 = vpop.f32.mrb[0].mxu0
        %v4680 = vadd.f32 %v4519, %v4679
        %v4681 = vpop.f32.mrb[0].mxu0
        %v4682 = vpop.f32.mrb[0].mxu0
        %v4683 = vadd.f32 %v4522, %v4682
        %v4684 = vpop.f32.mrb[0].mxu0
        %4685 = vmatprep.mubr.bf16.mxu0 0
        %4686 = vmatmul.mubr.bf16.gmra.mrb[0].mxu0 %v3220
        %v4687 = vpop.f32.mrb[0].mxu0
        %v4688 = vadd.f32 %v4527, %v4687
        %v4689 = vpop.f32.mrb[0].mxu0
        %v4690 = vpop.f32.mrb[0].mxu0
        %v4691 = vadd.f32 %v4530, %v4690
        %v4692 = vpop.f32.mrb[0].mxu0
        %4693 = vmatprep.mubr.bf16.mxu0 0
        %4694 = vmatmul.mubr.bf16.gmra.mrb[0].mxu0 %v3221
        %v4695 = vpop.f32.mrb[0].mxu0
        %v4696 = vadd.f32 %v4535, %v4695
        %v4697 = vpop.f32.mrb[0].mxu0
        %v4698 = vpop.f32.mrb[0].mxu0
        %v4699 = vadd.f32 %v4538, %v4698
        %v4700 = vpop.f32.mrb[0].mxu0
        %4701 = vmatprep.mubr.bf16.mxu0 0
        %4702 = vmatmul.mubr.bf16.gmra.mrb[0].mxu0 %v3222
        %v4703 = vpop.f32.mrb[0].mxu0
        %v4704 = vadd.f32 %v4543, %v4703
        %v4705 = vpop.f32.mrb[0].mxu0
        %v4706 = vpop.f32.mrb[0].mxu0
        %v4707 = vadd.f32 %v4546, %v4706
        %v4708 = vpop.f32.mrb[0].mxu0
        %4709 = vmatprep.mubr.bf16.mxu0 0
        %4710 = vmatmul.mubr.bf16.gmra.mrb[0].mxu0 %v3223
        %v4711 = vpop.f32.mrb[0].mxu0
        %v4712 = vadd.f32 %v4551, %v4711
        %v4713 = vpop.f32.mrb[0].mxu0
        %v4714 = vpop.f32.mrb[0].mxu0
        %v4715 = vadd.f32 %v4554, %v4714
        %v4716 = vpop.f32.mrb[0].mxu0
        %4717 = vmatprep.mubr.bf16.mxu0 0
        %4718 = vmatmul.mubr.bf16.gmra.mrb[0].mxu0 %v3224
        %v4719 = vpop.f32.mrb[0].mxu0
        %v4720 = vadd.f32 %v4559, %v4719
        %v4721 = vpop.f32.mrb[0].mxu0
        %v4722 = vpop.f32.mrb[0].mxu0
        %v4723 = vadd.f32 %v4562, %v4722
        %v4724 = vpop.f32.mrb[0].mxu0
        %4725 = vmatprep.mubr.bf16.mxu0 0
        %4726 = vmatmul.mubr.bf16.gmra.mrb[0].mxu0 %v3225
        %v4727 = vpop.f32.mrb[0].mxu0
        %v4728 = vadd.f32 %v4567, %v4727
        %v4729 = vpop.f32.mrb[0].mxu0
        %v4730 = vpop.f32.mrb[0].mxu0
        %v4731 = vadd.f32 %v4570, %v4730
        %v4732 = vpop.f32.mrb[0].mxu0
        %4733 = vmatprep.mubr.bf16.mxu0 0
        %4734 = vmatmul.mubr.bf16.gmra.mrb[0].mxu0 %v3226
        %v4735 = vpop.f32.mrb[0].mxu0
        %v4736 = vadd.f32 %v4575, %v4735
        %v4737 = vpop.f32.mrb[0].mxu0
        %v4738 = vpop.f32.mrb[0].mxu0
        %v4739 = vadd.f32 %v4578, %v4738
        %v4740 = vpop.f32.mrb[0].mxu0
        %4741 = vmatprep.mubr.bf16.mxu0 0
        %4742 = vmatmul.mubr.bf16.gmra.mrb[0].mxu0 %v3227
        %v4743 = vpop.f32.mrb[0].mxu0
        %v4744 = vadd.f32 %v4583, %v4743
        %v4745 = vpop.f32.mrb[0].mxu0
        %v4746 = vpop.f32.mrb[0].mxu0
        %v4747 = vadd.f32 %v4586, %v4746
        %v4748 = vpop.f32.mrb[0].mxu0
        %4749 = vmatprep.mubr.bf16.mxu0 0
        %4750 = vmatmul.mubr.bf16.gmra.mrb[0].mxu0 %v3228
        %v4751 = vpop.f32.mrb[0].mxu0
        %v4752 = vadd.f32 %v4591, %v4751
        %v4753 = vpop.f32.mrb[0].mxu0
        %v4754 = vpop.f32.mrb[0].mxu0
        %v4755 = vadd.f32 %v4594, %v4754
        %v4756 = vpop.f32.mrb[0].mxu0
        %4757 = vmatprep.mubr.bf16.mxu0 0
        %4758 = vmatmul.mubr.bf16.gmra.mrb[0].mxu0 %v3229
        %v4759 = vpop.f32.mrb[0].mxu0
        %v4760 = vadd.f32 %v4599, %v4759
        %v4761 = vpop.f32.mrb[0].mxu0
        %v4762 = vpop.f32.mrb[0].mxu0
        %v4763 = vadd.f32 %v4602, %v4762
        %v4764 = vpop.f32.mrb[0].mxu0
        %4765 = vmatprep.mubr.bf16.mxu0 0
        %4766 = vmatmul.mubr.bf16.gmra.mrb[0].mxu0 %v3213
        %v4767 = vpop.f32.mrb[0].mxu0
        %v4768 = vadd.f32 %v4607, %v4767
        %v4769 = vpop.f32.mrb[0].mxu0
        %v4770 = vpop.f32.mrb[0].mxu0
        %v4771 = vadd.f32 %v4610, %v4770
        %v4772 = vpop.f32.mrb[0].mxu0
        %4773 = vdwg.mxu0
        %v4774 = vadd.f32 %v4133, %v4648
        %v4775 = vadd.f32 %v4136, %v4651
        %v4776 = vadd.f32 %v4141, %v4656
        %v4777 = vadd.f32 %v4144, %v4659
        %v4778 = vadd.f32 %v4149, %v4664
        %v4779 = vadd.f32 %v4152, %v4667
        %v4780 = vadd.f32 %v4157, %v4672
        %v4781 = vadd.f32 %v4160, %v4675
        %v4782 = vadd.f32 %v4165, %v4680
        %v4783 = vadd.f32 %v4168, %v4683
        %v4784 = vadd.f32 %v4173, %v4688
        %v4785 = vadd.f32 %v4176, %v4691
        %v4786 = vadd.f32 %v4181, %v4696
        %v4787 = vadd.f32 %v4184, %v4699
        %v4788 = vadd.f32 %v4189, %v4704
        %v4789 = vadd.f32 %v4192, %v4707
        %v4790 = vadd.f32 %v4197, %v4712
        %v4791 = vadd.f32 %v4200, %v4715
        %v4792 = vadd.f32 %v4205, %v4720
        %v4793 = vadd.f32 %v4208, %v4723
        %v4794 = vadd.f32 %v4213, %v4728
        %v4795 = vadd.f32 %v4216, %v4731
        %v4796 = vadd.f32 %v4221, %v4736
        %v4797 = vadd.f32 %v4224, %v4739
        %v4798 = vadd.f32 %v4229, %v4744
        %v4799 = vadd.f32 %v4232, %v4747
        %v4800 = vadd.f32 %v4237, %v4752
        %v4801 = vadd.f32 %v4240, %v4755
        %v4802 = vadd.f32 %v4245, %v4760
        %v4803 = vadd.f32 %v4248, %v4763
        %v4804 = vadd.f32 %v4253, %v4768
        %v4805 = vadd.f32 %v4256, %v4771
        %v4806 = vld [vmem:[%s6] sm:$0x1]
        %v4808 = vlaneseq
        %v4809 = vshrl.u32 %v4808, 7
        %v4810 = vsub.s32 0, %v4809
        %v4811 = vrot.slane %v4806, %v4810
        %v4813 = vadd.f32 %v4774, %v4811
        %v4814 = vadd.f32 %v4775, %v4811
        %v4815 = vadd.f32 %v4776, %v4811
        %v4816 = vadd.f32 %v4777, %v4811
        %v4817 = vadd.f32 %v4778, %v4811
        %v4818 = vadd.f32 %v4779, %v4811
        %v4819 = vadd.f32 %v4780, %v4811
        %v4820 = vadd.f32 %v4781, %v4811
        %v4821 = vadd.f32 %v4782, %v4811
        %v4822 = vadd.f32 %v4783, %v4811
        %v4823 = vadd.f32 %v4784, %v4811
        %v4824 = vadd.f32 %v4785, %v4811
        %v4825 = vadd.f32 %v4786, %v4811
        %v4826 = vadd.f32 %v4787, %v4811
        %v4827 = vadd.f32 %v4788, %v4811
        %v4828 = vadd.f32 %v4789, %v4811
        %v4829 = vadd.f32 %v4790, %v4811
        %v4830 = vadd.f32 %v4791, %v4811
        %v4831 = vadd.f32 %v4792, %v4811
        %v4832 = vadd.f32 %v4793, %v4811
        %v4833 = vadd.f32 %v4794, %v4811
        %v4834 = vadd.f32 %v4795, %v4811
        %v4835 = vadd.f32 %v4796, %v4811
        %v4836 = vadd.f32 %v4797, %v4811
        %v4837 = vadd.f32 %v4798, %v4811
        %v4838 = vadd.f32 %v4799, %v4811
        %v4839 = vadd.f32 %v4800, %v4811
        %v4840 = vadd.f32 %v4801, %v4811
        %v4841 = vadd.f32 %v4802, %v4811
        %v4842 = vadd.f32 %v4803, %v4811
        %v4843 = vadd.f32 %v4804, %v4811
        %v4844 = vadd.f32 %v4805, %v4811
        %v4845 = vmul.f32 %v4813, %v4813
        %v4846 = vmul.f32 %v4814, %v4814
        %v4847 = vmul.f32 %v4815, %v4815
        %v4848 = vmul.f32 %v4816, %v4816
        %v4849 = vmul.f32 %v4817, %v4817
        %v4850 = vmul.f32 %v4818, %v4818
        %v4851 = vmul.f32 %v4819, %v4819
        %v4852 = vmul.f32 %v4820, %v4820
        %v4853 = vmul.f32 %v4821, %v4821
        %v4854 = vmul.f32 %v4822, %v4822
        %v4855 = vmul.f32 %v4823, %v4823
        %v4856 = vmul.f32 %v4824, %v4824
        %v4857 = vmul.f32 %v4825, %v4825
        %v4858 = vmul.f32 %v4826, %v4826
        %v4859 = vmul.f32 %v4827, %v4827
        %v4860 = vmul.f32 %v4828, %v4828
        %v4861 = vmul.f32 %v4829, %v4829
        %v4862 = vmul.f32 %v4830, %v4830
        %v4863 = vmul.f32 %v4831, %v4831
        %v4864 = vmul.f32 %v4832, %v4832
        %v4865 = vmul.f32 %v4833, %v4833
        %v4866 = vmul.f32 %v4834, %v4834
        %v4867 = vmul.f32 %v4835, %v4835
        %v4868 = vmul.f32 %v4836, %v4836
        %v4869 = vmul.f32 %v4837, %v4837
        %v4870 = vmul.f32 %v4838, %v4838
        %v4871 = vmul.f32 %v4839, %v4839
        %v4872 = vmul.f32 %v4840, %v4840
        %v4873 = vmul.f32 %v4841, %v4841
        %v4874 = vmul.f32 %v4842, %v4842
        %v4875 = vmul.f32 %v4843, %v4843
        %v4876 = vmul.f32 %v4844, %v4844
        %4877 = vadd.xlane.f32.xlu0 %v4845
        %v4878 = vpop.xlane.xlu0 %4877
        %4879 = vadd.xlane.f32.xlu0 %v4846
        %v4880 = vpop.xlane.xlu0 %4879
        %4881 = vadd.xlane.f32.xlu0 %v4847
        %v4882 = vpop.xlane.xlu0 %4881
        %4883 = vadd.xlane.f32.xlu0 %v4848
        %v4884 = vpop.xlane.xlu0 %4883
        %4885 = vadd.xlane.f32.xlu0 %v4849
        %v4886 = vpop.xlane.xlu0 %4885
        %4887 = vadd.xlane.f32.xlu0 %v4850
        %v4888 = vpop.xlane.xlu0 %4887
        %4889 = vadd.xlane.f32.xlu0 %v4851
        %v4890 = vpop.xlane.xlu0 %4889
        %4891 = vadd.xlane.f32.xlu0 %v4852
        %v4892 = vpop.xlane.xlu0 %4891
        %4893 = vadd.xlane.f32.xlu0 %v4853
        %v4894 = vpop.xlane.xlu0 %4893
        %4895 = vadd.xlane.f32.xlu0 %v4854
        %v4896 = vpop.xlane.xlu0 %4895
        %4897 = vadd.xlane.f32.xlu0 %v4855
        %v4898 = vpop.xlane.xlu0 %4897
        %4899 = vadd.xlane.f32.xlu0 %v4856
        %v4900 = vpop.xlane.xlu0 %4899
        %4901 = vadd.xlane.f32.xlu0 %v4857
        %v4902 = vpop.xlane.xlu0 %4901
        %4903 = vadd.xlane.f32.xlu0 %v4858
        %v4904 = vpop.xlane.xlu0 %4903
        %4905 = vadd.xlane.f32.xlu0 %v4859
        %v4906 = vpop.xlane.xlu0 %4905
        %4907 = vadd.xlane.f32.xlu0 %v4860
        %v4908 = vpop.xlane.xlu0 %4907
        %4909 = vadd.xlane.f32.xlu0 %v4861
        %v4910 = vpop.xlane.xlu0 %4909
        %4911 = vadd.xlane.f32.xlu0 %v4862
        %v4912 = vpop.xlane.xlu0 %4911
        %4913 = vadd.xlane.f32.xlu0 %v4863
        %v4914 = vpop.xlane.xlu0 %4913
        %4915 = vadd.xlane.f32.xlu0 %v4864
        %v4916 = vpop.xlane.xlu0 %4915
        %4917 = vadd.xlane.f32.xlu0 %v4865
        %v4918 = vpop.xlane.xlu0 %4917
        %4919 = vadd.xlane.f32.xlu0 %v4866
        %v4920 = vpop.xlane.xlu0 %4919
        %4921 = vadd.xlane.f32.xlu0 %v4867
        %v4922 = vpop.xlane.xlu0 %4921
        %4923 = vadd.xlane.f32.xlu0 %v4868
        %v4924 = vpop.xlane.xlu0 %4923
        %4925 = vadd.xlane.f32.xlu0 %v4869
        %v4926 = vpop.xlane.xlu0 %4925
        %4927 = vadd.xlane.f32.xlu0 %v4870
        %v4928 = vpop.xlane.xlu0 %4927
        %4929 = vadd.xlane.f32.xlu0 %v4871
        %v4930 = vpop.xlane.xlu0 %4929
        %4931 = vadd.xlane.f32.xlu0 %v4872
        %v4932 = vpop.xlane.xlu0 %4931
        %4933 = vadd.xlane.f32.xlu0 %v4873
        %v4934 = vpop.xlane.xlu0 %4933
        %4935 = vadd.xlane.f32.xlu0 %v4874
        %v4936 = vpop.xlane.xlu0 %4935
        %4937 = vadd.xlane.f32.xlu0 %v4875
        %v4938 = vpop.xlane.xlu0 %4937
        %4939 = vadd.xlane.f32.xlu0 %v4876
        %v4940 = vpop.xlane.xlu0 %4939
        %v4941 = vmax.f32 %v4878, 1e-24
        %v4942 = vmax.f32 %v4880, 1e-24
        %v4943 = vmax.f32 %v4882, 1e-24
        %v4944 = vmax.f32 %v4884, 1e-24
        %v4945 = vmax.f32 %v4886, 1e-24
        %v4946 = vmax.f32 %v4888, 1e-24
        %v4947 = vmax.f32 %v4890, 1e-24
        %v4948 = vmax.f32 %v4892, 1e-24
        %v4949 = vmax.f32 %v4894, 1e-24
        %v4950 = vmax.f32 %v4896, 1e-24
        %v4951 = vmax.f32 %v4898, 1e-24
        %v4952 = vmax.f32 %v4900, 1e-24
        %v4953 = vmax.f32 %v4902, 1e-24
        %v4954 = vmax.f32 %v4904, 1e-24
        %v4955 = vmax.f32 %v4906, 1e-24
        %v4956 = vmax.f32 %v4908, 1e-24
        %v4957 = vmax.f32 %v4910, 1e-24
        %v4958 = vmax.f32 %v4912, 1e-24
        %v4959 = vmax.f32 %v4914, 1e-24
        %v4960 = vmax.f32 %v4916, 1e-24
        %v4961 = vmax.f32 %v4918, 1e-24
        %v4962 = vmax.f32 %v4920, 1e-24
        %v4963 = vmax.f32 %v4922, 1e-24
        %v4964 = vmax.f32 %v4924, 1e-24
        %v4965 = vmax.f32 %v4926, 1e-24
        %v4966 = vmax.f32 %v4928, 1e-24
        %v4967 = vmax.f32 %v4930, 1e-24
        %v4968 = vmax.f32 %v4932, 1e-24
        %v4969 = vmax.f32 %v4934, 1e-24
        %v4970 = vmax.f32 %v4936, 1e-24
        %v4971 = vmax.f32 %v4938, 1e-24
        %v4972 = vmax.f32 %v4940, 1e-24
        %v4973 = vrsqrt.pop %v4941
        %v4974 = vrsqrt.pop %v4942
        %v4975 = vrsqrt.pop %v4943
        %v4976 = vrsqrt.pop %v4944
        %v4977 = vrsqrt.pop %v4945
        %v4978 = vrsqrt.pop %v4946
        %v4979 = vrsqrt.pop %v4947
        %v4980 = vrsqrt.pop %v4948
        %v4981 = vrsqrt.pop %v4949
        %v4982 = vrsqrt.pop %v4950
        %v4983 = vrsqrt.pop %v4951
        %v4984 = vrsqrt.pop %v4952
        %v4985 = vrsqrt.pop %v4953
        %v4986 = vrsqrt.pop %v4954
        %v4987 = vrsqrt.pop %v4955
        %v4988 = vrsqrt.pop %v4956
        %v4989 = vrsqrt.pop %v4957
        %v4990 = vrsqrt.pop %v4958
        %v4991 = vrsqrt.pop %v4959
        %v4992 = vrsqrt.pop %v4960
        %v4993 = vrsqrt.pop %v4961
        %v4994 = vrsqrt.pop %v4962
        %v4995 = vrsqrt.pop %v4963
        %v4996 = vrsqrt.pop %v4964
        %v4997 = vrsqrt.pop %v4965
        %v4998 = vrsqrt.pop %v4966
        %v4999 = vrsqrt.pop %v4967
        %v5000 = vrsqrt.pop %v4968
        %v5001 = vrsqrt.pop %v4969
        %v5002 = vrsqrt.pop %v4970
        %v5003 = vrsqrt.pop %v4971
        %v5004 = vrsqrt.pop %v4972
        %v5005 = vmul.f32 %v4813, %v4973
        %v5006 = vmul.f32 %v4814, %v4974
        %v5007 = vmul.f32 %v4815, %v4975
        %v5008 = vmul.f32 %v4816, %v4976
        %v5009 = vmul.f32 %v4817, %v4977
        %v5010 = vmul.f32 %v4818, %v4978
        %v5011 = vmul.f32 %v4819, %v4979
        %v5012 = vmul.f32 %v4820, %v4980
        %v5013 = vmul.f32 %v4821, %v4981
        %v5014 = vmul.f32 %v4822, %v4982
        %v5015 = vmul.f32 %v4823, %v4983
        %v5016 = vmul.f32 %v4824, %v4984
        %v5017 = vmul.f32 %v4825, %v4985
        %v5018 = vmul.f32 %v4826, %v4986
        %v5019 = vmul.f32 %v4827, %v4987
        %v5020 = vmul.f32 %v4828, %v4988
        %v5021 = vmul.f32 %v4829, %v4989
        %v5022 = vmul.f32 %v4830, %v4990
        %v5023 = vmul.f32 %v4831, %v4991
        %v5024 = vmul.f32 %v4832, %v4992
        %v5025 = vmul.f32 %v4833, %v4993
        %v5026 = vmul.f32 %v4834, %v4994
        %v5027 = vmul.f32 %v4835, %v4995
        %v5028 = vmul.f32 %v4836, %v4996
        %v5029 = vmul.f32 %v4837, %v4997
        %v5030 = vmul.f32 %v4838, %v4998
        %v5031 = vmul.f32 %v4839, %v4999
        %v5032 = vmul.f32 %v4840, %v5000
        %v5033 = vmul.f32 %v4841, %v5001
        %v5034 = vmul.f32 %v4842, %v5002
        %v5035 = vmul.f32 %v4843, %v5003
        %v5036 = vmul.f32 %v4844, %v5004
        %v5037 = vld [vmem:[%s7] sm:$0x1]
        %v5039 = vlaneseq
        %v5040 = vshrl.u32 %v5039, 7
        %v5041 = vsub.s32 0, %v5040
        %v5042 = vrot.slane %v5037, %v5041
        %v5044 = vmul.f32 %v5005, %v5042
        %v5045 = vmul.f32 %v5006, %v5042
        %v5046 = vmul.f32 %v5007, %v5042
        %v5047 = vmul.f32 %v5008, %v5042
        %v5048 = vmul.f32 %v5009, %v5042
        %v5049 = vmul.f32 %v5010, %v5042
        %v5050 = vmul.f32 %v5011, %v5042
        %v5051 = vmul.f32 %v5012, %v5042
        %v5052 = vmul.f32 %v5013, %v5042
        %v5053 = vmul.f32 %v5014, %v5042
        %v5054 = vmul.f32 %v5015, %v5042
        %v5055 = vmul.f32 %v5016, %v5042
        %v5056 = vmul.f32 %v5017, %v5042
        %v5057 = vmul.f32 %v5018, %v5042
        %v5058 = vmul.f32 %v5019, %v5042
        %v5059 = vmul.f32 %v5020, %v5042
        %v5060 = vmul.f32 %v5021, %v5042
        %v5061 = vmul.f32 %v5022, %v5042
        %v5062 = vmul.f32 %v5023, %v5042
        %v5063 = vmul.f32 %v5024, %v5042
        %v5064 = vmul.f32 %v5025, %v5042
        %v5065 = vmul.f32 %v5026, %v5042
        %v5066 = vmul.f32 %v5027, %v5042
        %v5067 = vmul.f32 %v5028, %v5042
        %v5068 = vmul.f32 %v5029, %v5042
        %v5069 = vmul.f32 %v5030, %v5042
        %v5070 = vmul.f32 %v5031, %v5042
        %v5071 = vmul.f32 %v5032, %v5042
        %v5072 = vmul.f32 %v5033, %v5042
        %v5073 = vmul.f32 %v5034, %v5042
        %v5074 = vmul.f32 %v5035, %v5042
        %v5075 = vmul.f32 %v5036, %v5042
        %v5076 = vxor.u32 %v5044, 2147483648
        %v5077 = vxor.u32 %v5045, 2147483648
        %v5078 = vxor.u32 %v5046, 2147483648
        %v5079 = vxor.u32 %v5047, 2147483648
        %v5080 = vxor.u32 %v5048, 2147483648
        %v5081 = vxor.u32 %v5049, 2147483648
        %v5082 = vxor.u32 %v5050, 2147483648
        %v5083 = vxor.u32 %v5051, 2147483648
        %v5084 = vxor.u32 %v5052, 2147483648
        %v5085 = vxor.u32 %v5053, 2147483648
        %v5086 = vxor.u32 %v5054, 2147483648
        %v5087 = vxor.u32 %v5055, 2147483648
        %v5088 = vxor.u32 %v5056, 2147483648
        %v5089 = vxor.u32 %v5057, 2147483648
        %v5090 = vxor.u32 %v5058, 2147483648
        %v5091 = vxor.u32 %v5059, 2147483648
        %v5092 = vxor.u32 %v5060, 2147483648
        %v5093 = vxor.u32 %v5061, 2147483648
        %v5094 = vxor.u32 %v5062, 2147483648
        %v5095 = vxor.u32 %v5063, 2147483648
        %v5096 = vxor.u32 %v5064, 2147483648
        %v5097 = vxor.u32 %v5065, 2147483648
        %v5098 = vxor.u32 %v5066, 2147483648
        %v5099 = vxor.u32 %v5067, 2147483648
        %v5100 = vxor.u32 %v5068, 2147483648
        %v5101 = vxor.u32 %v5069, 2147483648
        %v5102 = vxor.u32 %v5070, 2147483648
        %v5103 = vxor.u32 %v5071, 2147483648
        %v5104 = vxor.u32 %v5072, 2147483648
        %v5105 = vxor.u32 %v5073, 2147483648
        %v5106 = vxor.u32 %v5074, 2147483648
        %v5107 = vxor.u32 %v5075, 2147483648
        %v5108 = vmul.f32 %v5076, 1.442695
        %v5109 = vpow.pop %v5108
        %v5110 = vmul.f32 %v5077, 1.442695
        %v5111 = vpow.pop %v5110
        %v5112 = vmul.f32 %v5078, 1.442695
        %v5113 = vpow.pop %v5112
        %v5114 = vmul.f32 %v5079, 1.442695
        %v5115 = vpow.pop %v5114
        %v5116 = vmul.f32 %v5080, 1.442695
        %v5117 = vpow.pop %v5116
        %v5118 = vmul.f32 %v5081, 1.442695
        %v5119 = vpow.pop %v5118
        %v5120 = vmul.f32 %v5082, 1.442695
        %v5121 = vpow.pop %v5120
        %v5122 = vmul.f32 %v5083, 1.442695
        %v5123 = vpow.pop %v5122
        %v5124 = vmul.f32 %v5084, 1.442695
        %v5125 = vpow.pop %v5124
        %v5126 = vmul.f32 %v5085, 1.442695
        %v5127 = vpow.pop %v5126
        %v5128 = vmul.f32 %v5086, 1.442695
        %v5129 = vpow.pop %v5128
        %v5130 = vmul.f32 %v5087, 1.442695
        %v5131 = vpow.pop %v5130
        %v5132 = vmul.f32 %v5088, 1.442695
        %v5133 = vpow.pop %v5132
        %v5134 = vmul.f32 %v5089, 1.442695
        %v5135 = vpow.pop %v5134
        %v5136 = vmul.f32 %v5090, 1.442695
        %v5137 = vpow.pop %v5136
        %v5138 = vmul.f32 %v5091, 1.442695
        %v5139 = vpow.pop %v5138
        %v5140 = vmul.f32 %v5092, 1.442695
        %v5141 = vpow.pop %v5140
        %v5142 = vmul.f32 %v5093, 1.442695
        %v5143 = vpow.pop %v5142
        %v5144 = vmul.f32 %v5094, 1.442695
        %v5145 = vpow.pop %v5144
        %v5146 = vmul.f32 %v5095, 1.442695
        %v5147 = vpow.pop %v5146
        %v5148 = vmul.f32 %v5096, 1.442695
        %v5149 = vpow.pop %v5148
        %v5150 = vmul.f32 %v5097, 1.442695
        %v5151 = vpow.pop %v5150
        %v5152 = vmul.f32 %v5098, 1.442695
        %v5153 = vpow.pop %v5152
        %v5154 = vmul.f32 %v5099, 1.442695
        %v5155 = vpow.pop %v5154
        %v5156 = vmul.f32 %v5100, 1.442695
        %v5157 = vpow.pop %v5156
        %v5158 = vmul.f32 %v5101, 1.442695
        %v5159 = vpow.pop %v5158
        %v5160 = vmul.f32 %v5102, 1.442695
        %v5161 = vpow.pop %v5160
        %v5162 = vmul.f32 %v5103, 1.442695
        %v5163 = vpow.pop %v5162
        %v5164 = vmul.f32 %v5104, 1.442695
        %v5165 = vpow.pop %v5164
        %v5166 = vmul.f32 %v5105, 1.442695
        %v5167 = vpow.pop %v5166
        %v5168 = vmul.f32 %v5106, 1.442695
        %v5169 = vpow.pop %v5168
        %v5170 = vmul.f32 %v5107, 1.442695
        %v5171 = vpow.pop %v5170
        %v5172 = vadd.f32 %v5109, 1.0
        %v5173 = vadd.f32 %v5111, 1.0
        %v5174 = vadd.f32 %v5113, 1.0
        %v5175 = vadd.f32 %v5115, 1.0
        %v5176 = vadd.f32 %v5117, 1.0
        %v5177 = vadd.f32 %v5119, 1.0
        %v5178 = vadd.f32 %v5121, 1.0
        %v5179 = vadd.f32 %v5123, 1.0
        %v5180 = vadd.f32 %v5125, 1.0
        %v5181 = vadd.f32 %v5127, 1.0
        %v5182 = vadd.f32 %v5129, 1.0
        %v5183 = vadd.f32 %v5131, 1.0
        %v5184 = vadd.f32 %v5133, 1.0
        %v5185 = vadd.f32 %v5135, 1.0
        %v5186 = vadd.f32 %v5137, 1.0
        %v5187 = vadd.f32 %v5139, 1.0
        %v5188 = vadd.f32 %v5141, 1.0
        %v5189 = vadd.f32 %v5143, 1.0
        %v5190 = vadd.f32 %v5145, 1.0
        %v5191 = vadd.f32 %v5147, 1.0
        %v5192 = vadd.f32 %v5149, 1.0
        %v5193 = vadd.f32 %v5151, 1.0
        %v5194 = vadd.f32 %v5153, 1.0
        %v5195 = vadd.f32 %v5155, 1.0
        %v5196 = vadd.f32 %v5157, 1.0
        %v5197 = vadd.f32 %v5159, 1.0
        %v5198 = vadd.f32 %v5161, 1.0
        %v5199 = vadd.f32 %v5163, 1.0
        %v5200 = vadd.f32 %v5165, 1.0
        %v5201 = vadd.f32 %v5167, 1.0
        %v5202 = vadd.f32 %v5169, 1.0
        %v5203 = vadd.f32 %v5171, 1.0
        %v5204 = vrcp.pop %v5172
        %v5205 = vmul.f32 1.0, %v5204
        %v5206 = vrcp.pop %v5173
        %v5207 = vmul.f32 1.0, %v5206
        %v5208 = vrcp.pop %v5174
        %v5209 = vmul.f32 1.0, %v5208
        %v5210 = vrcp.pop %v5175
        %v5211 = vmul.f32 1.0, %v5210
        %v5212 = vrcp.pop %v5176
        %v5213 = vmul.f32 1.0, %v5212
        %v5214 = vrcp.pop %v5177
        %v5215 = vmul.f32 1.0, %v5214
        %v5216 = vrcp.pop %v5178
        %v5217 = vmul.f32 1.0, %v5216
        %v5218 = vrcp.pop %v5179
        %v5219 = vmul.f32 1.0, %v5218
        %v5220 = vrcp.pop %v5180
        %v5221 = vmul.f32 1.0, %v5220
        %v5222 = vrcp.pop %v5181
        %v5223 = vmul.f32 1.0, %v5222
        %v5224 = vrcp.pop %v5182
        %v5225 = vmul.f32 1.0, %v5224
        %v5226 = vrcp.pop %v5183
        %v5227 = vmul.f32 1.0, %v5226
        %v5228 = vrcp.pop %v5184
        %v5229 = vmul.f32 1.0, %v5228
        %v5230 = vrcp.pop %v5185
        %v5231 = vmul.f32 1.0, %v5230
        %v5232 = vrcp.pop %v5186
        %v5233 = vmul.f32 1.0, %v5232
        %v5234 = vrcp.pop %v5187
        %v5235 = vmul.f32 1.0, %v5234
        %v5236 = vrcp.pop %v5188
        %v5237 = vmul.f32 1.0, %v5236
        %v5238 = vrcp.pop %v5189
        %v5239 = vmul.f32 1.0, %v5238
        %v5240 = vrcp.pop %v5190
        %v5241 = vmul.f32 1.0, %v5240
        %v5242 = vrcp.pop %v5191
        %v5243 = vmul.f32 1.0, %v5242
        %v5244 = vrcp.pop %v5192
        %v5245 = vmul.f32 1.0, %v5244
        %v5246 = vrcp.pop %v5193
        %v5247 = vmul.f32 1.0, %v5246
        %v5248 = vrcp.pop %v5194
        %v5249 = vmul.f32 1.0, %v5248
        %v5250 = vrcp.pop %v5195
        %v5251 = vmul.f32 1.0, %v5250
        %v5252 = vrcp.pop %v5196
        %v5253 = vmul.f32 1.0, %v5252
        %v5254 = vrcp.pop %v5197
        %v5255 = vmul.f32 1.0, %v5254
        %v5256 = vrcp.pop %v5198
        %v5257 = vmul.f32 1.0, %v5256
        %v5258 = vrcp.pop %v5199
        %v5259 = vmul.f32 1.0, %v5258
        %v5260 = vrcp.pop %v5200
        %v5261 = vmul.f32 1.0, %v5260
        %v5262 = vrcp.pop %v5201
        %v5263 = vmul.f32 1.0, %v5262
        %v5264 = vrcp.pop %v5202
        %v5265 = vmul.f32 1.0, %v5264
        %v5266 = vrcp.pop %v5203
        %v5267 = vmul.f32 1.0, %v5266
        %v5268 = vmul.f32 %v5044, %v5205
        %v5269 = vmul.f32 %v5045, %v5207
        %v5270 = vmul.f32 %v5046, %v5209
        %v5271 = vmul.f32 %v5047, %v5211
        %v5272 = vmul.f32 %v5048, %v5213
        %v5273 = vmul.f32 %v5049, %v5215
        %v5274 = vmul.f32 %v5050, %v5217
        %v5275 = vmul.f32 %v5051, %v5219
        %v5276 = vmul.f32 %v5052, %v5221
        %v5277 = vmul.f32 %v5053, %v5223
        %v5278 = vmul.f32 %v5054, %v5225
        %v5279 = vmul.f32 %v5055, %v5227
        %v5280 = vmul.f32 %v5056, %v5229
        %v5281 = vmul.f32 %v5057, %v5231
        %v5282 = vmul.f32 %v5058, %v5233
        %v5283 = vmul.f32 %v5059, %v5235
        %v5284 = vmul.f32 %v5060, %v5237
        %v5285 = vmul.f32 %v5061, %v5239
        %v5286 = vmul.f32 %v5062, %v5241
        %v5287 = vmul.f32 %v5063, %v5243
        %v5288 = vmul.f32 %v5064, %v5245
        %v5289 = vmul.f32 %v5065, %v5247
        %v5290 = vmul.f32 %v5066, %v5249
        %v5291 = vmul.f32 %v5067, %v5251
        %v5292 = vmul.f32 %v5068, %v5253
        %v5293 = vmul.f32 %v5069, %v5255
        %v5294 = vmul.f32 %v5070, %v5257
        %v5295 = vmul.f32 %v5071, %v5259
        %v5296 = vmul.f32 %v5072, %v5261
        %v5297 = vmul.f32 %v5073, %v5263
        %v5298 = vmul.f32 %v5074, %v5265
        %v5299 = vmul.f32 %v5075, %v5267
        %v5300 = vld [vmem:[#allocation10] sm:$0xf]
        %v5301 = vld [vmem:[#allocation10 + $0x4] sm:$0xf]
        %v5302 = vld [vmem:[#allocation10 + $0x8] sm:$0xf]
        %v5303 = vld [vmem:[#allocation10 + $0xc] sm:$0xf]
        %v5304 = vld [vmem:[#allocation10 + $0x10] sm:$0xf]
        %v5305 = vld [vmem:[#allocation10 + $0x14] sm:$0xf]
        %v5306 = vld [vmem:[#allocation10 + $0x18] sm:$0xf]
        %v5307 = vld [vmem:[#allocation10 + $0x1c] sm:$0xf]
        %v5308 = vld [vmem:[#allocation10 + $0x20] sm:$0xf]
        %v5309 = vld [vmem:[#allocation10 + $0x24] sm:$0xf]
        %v5310 = vld [vmem:[#allocation10 + $0x28] sm:$0xf]
        %v5311 = vld [vmem:[#allocation10 + $0x2c] sm:$0xf]
        %v5312 = vld [vmem:[#allocation10 + $0x30] sm:$0xf]
        %v5313 = vld [vmem:[#allocation10 + $0x34] sm:$0xf]
        %v5314 = vld [vmem:[#allocation10 + $0x38] sm:$0xf]
        %v5315 = vld [vmem:[#allocation10 + $0x3c] sm:$0xf]
        %v5316 = vld [vmem:[%s9] sm:$0x1]
        %v5318 = vlaneseq
        %v5319 = vshrl.u32 %v5318, 7
        %v5320 = vsub.s32 0, %v5319
        %v5321 = vrot.slane %v5316, %v5320
        %v5339 = vunpack.c.l.b16 %v5300
        %v5340 = vunpack.c.l.b16 %v5301
        %v5341 = vunpack.c.l.b16 %v5302
        %v5342 = vunpack.c.l.b16 %v5303
        %v5343 = vunpack.c.l.b16 %v5304
        %v5344 = vunpack.c.l.b16 %v5305
        %v5345 = vunpack.c.l.b16 %v5306
        %v5346 = vunpack.c.l.b16 %v5307
        %v5347 = vunpack.c.l.b16 %v5308
        %v5348 = vunpack.c.l.b16 %v5309
        %v5349 = vunpack.c.l.b16 %v5310
        %v5350 = vunpack.c.l.b16 %v5311
        %v5351 = vunpack.c.l.b16 %v5312
        %v5352 = vunpack.c.l.b16 %v5313
        %v5353 = vunpack.c.l.b16 %v5314
        %v5354 = vunpack.c.l.b16 %v5315
        %v5355 = vpack.c.b16 %v5340, %v5339
        %v5356 = vpack.c.b16 %v5342, %v5341
        %v5357 = vpack.c.b16 %v5344, %v5343
        %v5358 = vpack.c.b16 %v5346, %v5345
        %v5359 = vpack.c.b16 %v5348, %v5347
        %v5360 = vpack.c.b16 %v5350, %v5349
        %v5361 = vpack.c.b16 %v5352, %v5351
        %v5362 = vpack.c.b16 %v5354, %v5353
        %5371 = vmatprep.subr.bf16.mxu0 0
        %5372 = vmatpush1.bf16.msra.mxu0 %v5355
        %5373 = vmatprep.subr.bf16.mxu0 0
        %5374 = vmatpush1.bf16.msra.mxu0 %v5356
        %5375 = vmatprep.subr.bf16.mxu0 0
        %5376 = vmatpush1.bf16.msra.mxu0 %v5357
        %5377 = vmatprep.subr.bf16.mxu0 0
        %5378 = vmatpush1.bf16.msra.mxu0 %v5358
        %5379 = vmatprep.subr.bf16.mxu0 0
        %5380 = vmatpush1.bf16.msra.mxu0 %v5359
        %5381 = vmatprep.subr.bf16.mxu0 0
        %5382 = vmatpush1.bf16.msra.mxu0 %v5360
        %5383 = vmatprep.subr.bf16.mxu0 0
        %5384 = vmatpush1.bf16.msra.mxu0 %v5361
        %5385 = vmatprep.subr.bf16.mxu0 0
        %5386 = vmatpush1.bf16.msra.mxu0 %v5362
        %5387 = vmatprep.subr.bf16.mxu0 0
        %5388 = vmatpush1.bf16.msra.mxu0 0
        %5389 = vmatprep.subr.bf16.mxu0 0
        %5390 = vmatpush1.bf16.msra.mxu0 0
        %5391 = vmatprep.subr.bf16.mxu0 0
        %5392 = vmatpush1.bf16.msra.mxu0 0
        %5393 = vmatprep.subr.bf16.mxu0 0
        %5394 = vmatpush1.bf16.msra.mxu0 0
        %5395 = vmatprep.subr.bf16.mxu0 0
        %5396 = vmatpush1.bf16.msra.mxu0 0
        %5397 = vmatprep.subr.bf16.mxu0 0
        %5398 = vmatpush1.bf16.msra.mxu0 0
        %5399 = vmatprep.subr.bf16.mxu0 0
        %5400 = vmatpush1.bf16.msra.mxu0 0
        %5401 = vmatprep.subr.bf16.mxu0 0
        %5402 = vmatpush1.bf16.msra.mxu0 0
        %5403 = vmatprep.mubr.bf16.mxu0 0
        %5404 = vmatmul.mubr.bf16.gmra.mrb[0].mxu0 %v571
        %v5405 = vpop.f32.mrb[0].mxu0
        %v5406 = vadd.f32 %v5321, %v5405
        %v5407 = vpop.f32.mrb[0].mxu0
        %v5408 = vpop.f32.mrb[0].mxu0
        %v5409 = vadd.f32 %v5321, %v5408
        %v5410 = vpop.f32.mrb[0].mxu0
        %5411 = vmatprep.mubr.bf16.mxu0 0
        %5412 = vmatmul.mubr.bf16.gmra.mrb[0].mxu0 %v572
        %v5413 = vpop.f32.mrb[0].mxu0
        %v5414 = vadd.f32 %v5321, %v5413
        %v5415 = vpop.f32.mrb[0].mxu0
        %v5416 = vpop.f32.mrb[0].mxu0
        %v5417 = vadd.f32 %v5321, %v5416
        %v5418 = vpop.f32.mrb[0].mxu0
        %5419 = vmatprep.mubr.bf16.mxu0 0
        %5420 = vmatmul.mubr.bf16.gmra.mrb[0].mxu0 %v573
        %v5421 = vpop.f32.mrb[0].mxu0
        %v5422 = vadd.f32 %v5321, %v5421
        %v5423 = vpop.f32.mrb[0].mxu0
        %v5424 = vpop.f32.mrb[0].mxu0
        %v5425 = vadd.f32 %v5321, %v5424
        %v5426 = vpop.f32.mrb[0].mxu0
        %5427 = vmatprep.mubr.bf16.mxu0 0
        %5428 = vmatmul.mubr.bf16.gmra.mrb[0].mxu0 %v574
        %v5429 = vpop.f32.mrb[0].mxu0
        %v5430 = vadd.f32 %v5321, %v5429
        %v5431 = vpop.f32.mrb[0].mxu0
        %v5432 = vpop.f32.mrb[0].mxu0
        %v5433 = vadd.f32 %v5321, %v5432
        %v5434 = vpop.f32.mrb[0].mxu0
        %5435 = vmatprep.mubr.bf16.mxu0 0
        %5436 = vmatmul.mubr.bf16.gmra.mrb[0].mxu0 %v575
        %v5437 = vpop.f32.mrb[0].mxu0
        %v5438 = vadd.f32 %v5321, %v5437
        %v5439 = vpop.f32.mrb[0].mxu0
        %v5440 = vpop.f32.mrb[0].mxu0
        %v5441 = vadd.f32 %v5321, %v5440
        %v5442 = vpop.f32.mrb[0].mxu0
        %5443 = vmatprep.mubr.bf16.mxu0 0
        %5444 = vmatmul.mubr.bf16.gmra.mrb[0].mxu0 %v576
        %v5445 = vpop.f32.mrb[0].mxu0
        %v5446 = vadd.f32 %v5321, %v5445
        %v5447 = vpop.f32.mrb[0].mxu0
        %v5448 = vpop.f32.mrb[0].mxu0
        %v5449 = vadd.f32 %v5321, %v5448
        %v5450 = vpop.f32.mrb[0].mxu0
        %5451 = vmatprep.mubr.bf16.mxu0 0
        %5452 = vmatmul.mubr.bf16.gmra.mrb[0].mxu0 %v577
        %v5453 = vpop.f32.mrb[0].mxu0
        %v5454 = vadd.f32 %v5321, %v5453
        %v5455 = vpop.f32.mrb[0].mxu0
        %v5456 = vpop.f32.mrb[0].mxu0
        %v5457 = vadd.f32 %v5321, %v5456
        %v5458 = vpop.f32.mrb[0].mxu0
        %5459 = vmatprep.mubr.bf16.mxu0 0
        %5460 = vmatmul.mubr.bf16.gmra.mrb[0].mxu0 %v578
        %v5461 = vpop.f32.mrb[0].mxu0
        %v5462 = vadd.f32 %v5321, %v5461
        %v5463 = vpop.f32.mrb[0].mxu0
        %v5464 = vpop.f32.mrb[0].mxu0
        %v5465 = vadd.f32 %v5321, %v5464
        %v5466 = vpop.f32.mrb[0].mxu0
        %5467 = vmatprep.mubr.bf16.mxu0 0
        %5468 = vmatmul.mubr.bf16.gmra.mrb[0].mxu0 %v579
        %v5469 = vpop.f32.mrb[0].mxu0
        %v5470 = vadd.f32 %v5321, %v5469
        %v5471 = vpop.f32.mrb[0].mxu0
        %v5472 = vpop.f32.mrb[0].mxu0
        %v5473 = vadd.f32 %v5321, %v5472
        %v5474 = vpop.f32.mrb[0].mxu0
        %5475 = vmatprep.mubr.bf16.mxu0 0
        %5476 = vmatmul.mubr.bf16.gmra.mrb[0].mxu0 %v580
        %v5477 = vpop.f32.mrb[0].mxu0
        %v5478 = vadd.f32 %v5321, %v5477
        %v5479 = vpop.f32.mrb[0].mxu0
        %v5480 = vpop.f32.mrb[0].mxu0
        %v5481 = vadd.f32 %v5321, %v5480
        %v5482 = vpop.f32.mrb[0].mxu0
        %5483 = vmatprep.mubr.bf16.mxu0 0
        %5484 = vmatmul.mubr.bf16.gmra.mrb[0].mxu0 %v581
        %v5485 = vpop.f32.mrb[0].mxu0
        %v5486 = vadd.f32 %v5321, %v5485
        %v5487 = vpop.f32.mrb[0].mxu0
        %v5488 = vpop.f32.mrb[0].mxu0
        %v5489 = vadd.f32 %v5321, %v5488
        %v5490 = vpop.f32.mrb[0].mxu0
        %5491 = vmatprep.mubr.bf16.mxu0 0
        %5492 = vmatmul.mubr.bf16.gmra.mrb[0].mxu0 %v582
        %v5493 = vpop.f32.mrb[0].mxu0
        %v5494 = vadd.f32 %v5321, %v5493
        %v5495 = vpop.f32.mrb[0].mxu0
        %v5496 = vpop.f32.mrb[0].mxu0
        %v5497 = vadd.f32 %v5321, %v5496
        %v5498 = vpop.f32.mrb[0].mxu0
        %5499 = vmatprep.mubr.bf16.mxu0 0
        %5500 = vmatmul.mubr.bf16.gmra.mrb[0].mxu0 %v583
        %v5501 = vpop.f32.mrb[0].mxu0
        %v5502 = vadd.f32 %v5321, %v5501
        %v5503 = vpop.f32.mrb[0].mxu0
        %v5504 = vpop.f32.mrb[0].mxu0
        %v5505 = vadd.f32 %v5321, %v5504
        %v5506 = vpop.f32.mrb[0].mxu0
        %5507 = vmatprep.mubr.bf16.mxu0 0
        %5508 = vmatmul.mubr.bf16.gmra.mrb[0].mxu0 %v584
        %v5509 = vpop.f32.mrb[0].mxu0
        %v5510 = vadd.f32 %v5321, %v5509
        %v5511 = vpop.f32.mrb[0].mxu0
        %v5512 = vpop.f32.mrb[0].mxu0
        %v5513 = vadd.f32 %v5321, %v5512
        %v5514 = vpop.f32.mrb[0].mxu0
        %5515 = vmatprep.mubr.bf16.mxu0 0
        %5516 = vmatmul.mubr.bf16.gmra.mrb[0].mxu0 %v585
        %v5517 = vpop.f32.mrb[0].mxu0
        %v5518 = vadd.f32 %v5321, %v5517
        %v5519 = vpop.f32.mrb[0].mxu0
        %v5520 = vpop.f32.mrb[0].mxu0
        %v5521 = vadd.f32 %v5321, %v5520
        %v5522 = vpop.f32.mrb[0].mxu0
        %5523 = vmatprep.mubr.bf16.mxu0 0
        %5524 = vmatmul.mubr.bf16.gmra.mrb[0].mxu0 %v586
        %v5525 = vpop.f32.mrb[0].mxu0
        %v5526 = vadd.f32 %v5321, %v5525
        %v5527 = vpop.f32.mrb[0].mxu0
        %v5528 = vpop.f32.mrb[0].mxu0
        %v5529 = vadd.f32 %v5321, %v5528
        %v5530 = vpop.f32.mrb[0].mxu0
        %5531 = vdwg.mxu0
        %v5532 = vadd.f32 %v5268, %v5406
        %v5533 = vadd.f32 %v5269, %v5409
        %v5534 = vadd.f32 %v5270, %v5414
        %v5535 = vadd.f32 %v5271, %v5417
        %v5536 = vadd.f32 %v5272, %v5422
        %v5537 = vadd.f32 %v5273, %v5425
        %v5538 = vadd.f32 %v5274, %v5430
        %v5539 = vadd.f32 %v5275, %v5433
        %v5540 = vadd.f32 %v5276, %v5438
        %v5541 = vadd.f32 %v5277, %v5441
        %v5542 = vadd.f32 %v5278, %v5446
        %v5543 = vadd.f32 %v5279, %v5449
        %v5544 = vadd.f32 %v5280, %v5454
        %v5545 = vadd.f32 %v5281, %v5457
        %v5546 = vadd.f32 %v5282, %v5462
        %v5547 = vadd.f32 %v5283, %v5465
        %v5548 = vadd.f32 %v5284, %v5470
        %v5549 = vadd.f32 %v5285, %v5473
        %v5550 = vadd.f32 %v5286, %v5478
        %v5551 = vadd.f32 %v5287, %v5481
        %v5552 = vadd.f32 %v5288, %v5486
        %v5553 = vadd.f32 %v5289, %v5489
        %v5554 = vadd.f32 %v5290, %v5494
        %v5555 = vadd.f32 %v5291, %v5497
        %v5556 = vadd.f32 %v5292, %v5502
        %v5557 = vadd.f32 %v5293, %v5505
        %v5558 = vadd.f32 %v5294, %v5510
        %v5559 = vadd.f32 %v5295, %v5513
        %v5560 = vadd.f32 %v5296, %v5518
        %v5561 = vadd.f32 %v5297, %v5521
        %v5562 = vadd.f32 %v5298, %v5526
        %v5563 = vadd.f32 %v5299, %v5529
        %5564 = vst [vmem:[%s458] sm:$0xff] %v5532
        %5565 = vst [vmem:[%s458 + $0x8] sm:$0xff] %v5533
        %5566 = vst [vmem:[%s458 + $0x10] sm:$0xff] %v5534
        %5567 = vst [vmem:[%s458 + $0x18] sm:$0xff] %v5535
        %5568 = vst [vmem:[%s458 + $0x20] sm:$0xff] %v5536
        %5569 = vst [vmem:[%s458 + $0x28] sm:$0xff] %v5537
        %5570 = vst [vmem:[%s458 + $0x30] sm:$0xff] %v5538
        %5571 = vst [vmem:[%s458 + $0x38] sm:$0xff] %v5539
        %5572 = vst [vmem:[%s458 + $0x40] sm:$0xff] %v5540
        %5573 = vst [vmem:[%s458 + $0x48] sm:$0xff] %v5541
        %5574 = vst [vmem:[%s458 + $0x50] sm:$0xff] %v5542
        %5575 = vst [vmem:[%s458 + $0x58] sm:$0xff] %v5543
        %5576 = vst [vmem:[%s458 + $0x60] sm:$0xff] %v5544
        %5577 = vst [vmem:[%s458 + $0x68] sm:$0xff] %v5545
        %5578 = vst [vmem:[%s458 + $0x70] sm:$0xff] %v5546
        %5579 = vst [vmem:[%s458 + $0x78] sm:$0xff] %v5547
        %5580 = vst [vmem:[%s458 + $0x80] sm:$0xff] %v5548
        %5581 = vst [vmem:[%s458 + $0x88] sm:$0xff] %v5549
        %5582 = vst [vmem:[%s458 + $0x90] sm:$0xff] %v5550
        %5583 = vst [vmem:[%s458 + $0x98] sm:$0xff] %v5551
        %5584 = vst [vmem:[%s458 + $0xa0] sm:$0xff] %v5552
        %5585 = vst [vmem:[%s458 + $0xa8] sm:$0xff] %v5553
        %5586 = vst [vmem:[%s458 + $0xb0] sm:$0xff] %v5554
        %5587 = vst [vmem:[%s458 + $0xb8] sm:$0xff] %v5555
        %5588 = vst [vmem:[%s458 + $0xc0] sm:$0xff] %v5556
        %5589 = vst [vmem:[%s458 + $0xc8] sm:$0xff] %v5557
        %5590 = vst [vmem:[%s458 + $0xd0] sm:$0xff] %v5558
        %5591 = vst [vmem:[%s458 + $0xd8] sm:$0xff] %v5559
        %5592 = vst [vmem:[%s458 + $0xe0] sm:$0xff] %v5560
        %5593 = vst [vmem:[%s458 + $0xe8] sm:$0xff] %v5561
        %5594 = vst [vmem:[%s458 + $0xf0] sm:$0xff] %v5562
        %5595 = vst [vmem:[%s458 + $0xf8] sm:$0xff] %v5563
        %s5596 = sand.u32 %s259, 1
        %s5597 = scalar_lea.sflag [#allocation4], %s5596
        %s5598 = sand.u32 %s259, 1
        %s5599 = smul.addr %s5598, 256
        %s5600 = scalar_lea.vmem [#allocation11], %s5599
        // Predicated region
        $region81: #{tpu_custom_call.1} parent=59 // pred_check
          %p5601 = pneg %p269
        $region82: #{tpu_custom_call.1} parent=59 // pred_check_branch
          %5603 = sbr.rel (%p5601) target = $region84
        $region83: #{tpu_custom_call.1} parent=59 // pred_region
          %s5605 = ssub.s32 4096, 4096
          %5606 = vsyncadd %s5597, %s5605
          %s5607 = smul.addr %s31, 32
          %s5608 = smul.addr %s5607, 128
          %s5609 = scalar_lea.hbm %s10, %s5608
          %s5610 = sshll.u32 %s5600, 4
          %s5611 = int_to_ptr.vmem [resolvable:$true] %s5610
          %5616 = dma.vmem_to_hbm [thread:$0]  %s5611, 4096, %s5609, %s5597, 128, 128, 8
        $region84: #{tpu_custom_call.1} parent=59 // pred_fallthru
          _
      $region60: #{tpu_custom_call.1} parent=5 // pred_fallthru
        _
      %p5617 = scmp.le.s32.totalorder 2, %s26
      // Predicated region
      $region85: #{tpu_custom_call.1} parent=5 // pred_check
        %p5618 = pneg %p5617
      $region86: #{tpu_custom_call.1} parent=5 // pred_check_branch
        %5620 = sbr.rel (%p5618) target = $region88
      $region87: #{tpu_custom_call.1} parent=5 // pred_region
        %s5621 = ssub.s32 %s26, 2
        // Predicated region
        $region89: #{tpu_custom_call.1} parent=87 // pred_check
          %p5622 = pneg %p275
        $region90: #{tpu_custom_call.1} parent=87 // pred_check_branch
          %5624 = sbr.rel (%p5622) target = $region92
        $region91: #{tpu_custom_call.1} parent=87 // pred_region
          %s5625 = sand.u32 %s260, 1
          %s5626 = scalar_lea.sflag [#allocation4], %s5625
          %s5627 = sand.u32 %s260, 1
          %s5628 = smul.addr %s5627, 256
          %s5629 = scalar_lea.vmem [#allocation11], %s5628
          %5630 = dma.done %s5626, 4096
        $region92: #{tpu_custom_call.1} parent=87 // pred_fallthru
          _
      $region88: #{tpu_custom_call.1} parent=5 // pred_fallthru
        _
    $region6: #{tpu_custom_call.1} parent=1 // loop_footer
      %s30 = sadd.s32 1, %s26
    $region7: #{tpu_custom_call.1} parent=1 // loop_footer_branch
      %25 = sbr.rel target = $region3
    $region8: #{tpu_custom_call.1} parent=1 // loop_exit
      _
    %5631 = vsyncpa [#allocation3], 1
    %s5632 = scalar_lea.sflag [#allocation3], 1
    %5633 = vsyncpa %s5632, 1
    %5634 = vsyncpa [#allocation6], 1
    %s5635 = scalar_lea.sflag [#allocation6], 1
    %5636 = vsyncpa %s5635, 1
    %5637 = vsyncpa [#allocation9], 1
    %5638 = vsyncpa [#allocation4], 1
    %s5639 = scalar_lea.sflag [#allocation4], 1
    %5640 = vsyncpa %s5639, 1

// kernel: tpu_custom_call.1
$region0: #{tpu_custom_call.1}
  #allocation0 [shape = 'u32[]', space=smem, size = 0x4, offset = 0x4, fixed_abs, tag = 'smem constant byte address 0x4 - core index']
  #allocation1 [shape = 'u32[144,128]{1,0:T(1,128)}', space=vmem, size = 0x12000, scoped, tag = 'internal scratch']
  %s0 = inlined_call_operand.hbm [shape: bf16[2,18,16,128], index: 0, kind: input, shape index: {}]
  %s1 = inlined_call_operand.hbm [shape: f32[2,1,256], index: 1, kind: input, shape index: {}]
  %s2 = inlined_call_operand.hbm [shape: bf16[3,384,128], index: 2, kind: input, shape index: {}]
  %s3 = inlined_call_operand.vmem [shape: f32[1,128], index: 3, kind: input, shape index: {}]
  %s4 = inlined_call_operand.vmem [shape: f32[1,128], index: 4, kind: input, shape index: {}]
  %s5 = inlined_call_operand.hbm [shape: bf16[3,384,128], index: 5, kind: input, shape index: {}]
  %s6 = inlined_call_operand.vmem [shape: f32[1,128], index: 6, kind: input, shape index: {}]
  %s7 = inlined_call_operand.vmem [shape: f32[1,128], index: 7, kind: input, shape index: {}]
  %s8 = inlined_call_operand.hbm [shape: bf16[128,128], index: 8, kind: input, shape index: {}]
  %s9 = inlined_call_operand.vmem [shape: f32[1,128], index: 9, kind: input, shape index: {}]
  %s10 = inlined_call_operand.hbm [shape: f32[2,16,16,128], index: 10, kind: output, shape index: {}]
  %s11 = sld [smem:[#allocation0]]
  $region93: #{tpu_custom_call.1} parent=0
    _
  %s13 = ssub.s32 1, %s11
  %s14 = scalar_select 0, %s13, %s11
  $region1: #{tpu_custom_call.1} parent=0
    #allocation2 [shape = 'u8[147456]{0}', space=vmem, size = 0x24000, scoped, tag = 'input window, operand 0']
    #allocation3 [shape = 's32[2]{0}', space=sflag, size = 0x8, scoped, tag = 'scoped memory for tpu_custom_call.1']
    #allocation4 [shape = 's32[2]{0}', space=sflag, size = 0x8, scoped, tag = 'scoped memory for tpu_custom_call.1']
    #allocation5 [shape = 'u8[2048]{0}', space=vmem, size = 0x800, scoped, tag = 'input window, operand 1']
    #allocation6 [shape = 's32[2]{0}', space=sflag, size = 0x8, scoped, tag = 'scoped memory for tpu_custom_call.1']
    #allocation7 [shape = 'u8[294912]{0}', space=vmem, size = 0x48000, scoped, tag = 'input window, operand 2, single buffered']
    #allocation8 [shape = 'u8[294912]{0}', space=vmem, size = 0x48000, scoped, tag = 'input window, operand 5, single buffered']
    #allocation9 [shape = 's32[1]{0}', space=sflag, size = 0x4, scoped, tag = 'scoped memory for tpu_custom_call.1']
    #allocation10 [shape = 'u8[32768]{0}', space=vmem, size = 0x8000, scoped, tag = 'input window, operand 8, single buffered']
    #allocation11 [shape = 'u8[262144]{0}', space=vmem, size = 0x40000, scoped, tag = 'output window, operand 0']
    %15 = vsyncpa [#allocation3], 0
    %s16 = scalar_lea.sflag [#allocation3], 1
    %17 = vsyncpa %s16, 0
    %18 = vsyncpa [#allocation6], 0
    %s19 = scalar_lea.sflag [#allocation6], 1
    %20 = vsyncpa %s19, 0
    %21 = vsyncpa [#allocation9], 0
    %22 = vsyncpa [#allocation4], 0
    %s23 = scalar_lea.sflag [#allocation4], 1
    %24 = vsyncpa %s23, 0
    loop: start=0, step=1, limit=4
    $region2: #{tpu_custom_call.1} parent=1 // loop_pre_header
      _
    $region3: #{tpu_custom_call.1} parent=1 // loop_header
      %s26 = sphi 0, %s30
      %p27 = scmp.ge.s32.totalorder %s26, 4
      %s36 = sphi 0, %s38
      %s39 = sphi 0, %s36
      %s40 = sphi 0, %s39
      %s56 = sphi 0, %s40
      %s62 = sphi 0, %s64
      %s65 = sphi 0, %s62
      %s66 = sphi 0, %s65
      %s82 = sphi 0, %s66
      %s86 = sphi 0, %s86
      %s88 = sphi 0, %s86
      %s89 = sphi 0, %s88
      %s103 = sphi 0, %s89
      %s107 = sphi 0, %s107
      %s109 = sphi 0, %s107
      %s110 = sphi 0, %s109
      %s124 = sphi 0, %s110
      %s128 = sphi 0, %s128
      %s130 = sphi 0, %s128
      %s131 = sphi 0, %s130
      %s145 = sphi 0, %s131
      %s149 = sphi 0, %s149
      %s151 = sphi 0, %s149
      %s152 = sphi 0, %s151
      %s166 = sphi 0, %s152
      %s170 = sphi 0, %s170
      %s172 = sphi 0, %s170
      %s173 = sphi 0, %s172
      %s187 = sphi 0, %s173
      %s191 = sphi 0, %s191
      %s193 = sphi 0, %s191
      %s194 = sphi 0, %s193
      %s208 = sphi 0, %s194
      %s212 = sphi 0, %s212
      %s214 = sphi 0, %s212
      %s215 = sphi 0, %s214
      %s229 = sphi 0, %s215
      %s233 = sphi 0, %s233
      %s235 = sphi 0, %s233
      %s236 = sphi 0, %s235
      %s250 = sphi 0, %s236
      %s256 = sphi 0, %s258
      %s259 = sphi 0, %s256
      %s260 = sphi 0, %s259
      %s276 = sphi 0, %s260
    $region4: #{tpu_custom_call.1} parent=1 // loop_header_branch
      %29 = sbr.rel (%p27) target = $region8
    $region5: #{tpu_custom_call.1} parent=1 // loop_body
      %s31 = ssub.s32 %s26, 1
      %s32 = ssub.s32 %s26, 2
      %s33 = sadd.s32 %s26, 1
      %s34 = ssub.s32 %s26, %s33
      %p35 = scmp.eq.s32.totalorder %s34, 0
      %s37 = sadd.s32 %s36, 1
      %s38 = scalar_select %p35, %s36, %s37
      %p41 = pneg %p35
      %p42 = scmp.eq.s32.totalorder %s26, 1
      %p43 = por %p41, %p42
      %p44 = scmp.ne.s32.totalorder %s36, %s39
      %p45 = scmp.eq.s32.totalorder %s26, 0
      %p46 = por %p44, %p45
      %p47 = scmp.ne.s32.totalorder %s36, %s39
      %p48 = scmp.eq.s32.totalorder %s31, 1
      %p49 = por %p47, %p48
      %p50 = scmp.ne.s32.totalorder %s39, %s40
      %p51 = scmp.eq.s32.totalorder %s31, 0
      %p52 = por %p50, %p51
      %p53 = scmp.ne.s32.totalorder %s39, %s40
      %p54 = scmp.eq.s32.totalorder %s32, 1
      %p55 = por %p53, %p54
      %p57 = scmp.ne.s32.totalorder %s40, %s56
      %p58 = scmp.eq.s32.totalorder %s32, 0
      %p59 = por %p57, %p58
      %s60 = ssub.s32 %s26, %s33
      %p61 = scmp.eq.s32.totalorder %s60, 0
      %s63 = sadd.s32 %s62, 1
      %s64 = scalar_select %p61, %s62, %s63
      %p67 = pneg %p61
      %p68 = scmp.eq.s32.totalorder %s26, 1
      %p69 = por %p67, %p68
      %p70 = scmp.ne.s32.totalorder %s62, %s65
      %p71 = scmp.eq.s32.totalorder %s26, 0
      %p72 = por %p70, %p71
      %p73 = scmp.ne.s32.totalorder %s62, %s65
      %p74 = scmp.eq.s32.totalorder %s31, 1
      %p75 = por %p73, %p74
      %p76 = scmp.ne.s32.totalorder %s65, %s66
      %p77 = scmp.eq.s32.totalorder %s31, 0
      %p78 = por %p76, %p77
      %p79 = scmp.ne.s32.totalorder %s65, %s66
      %p80 = scmp.eq.s32.totalorder %s32, 1
      %p81 = por %p79, %p80
      %p83 = scmp.ne.s32.totalorder %s66, %s82
      %p84 = scmp.eq.s32.totalorder %s32, 0
      %p85 = por %p83, %p84
      %s87 = sadd.s32 %s86, 1
      %p90 = scmp.eq.s32.totalorder %s26, 1
      %p91 = scmp.ne.s32.totalorder %s86, %s88
      %p92 = scmp.eq.s32.totalorder %s26, 0
      %p93 = por %p91, %p92
      %p94 = scmp.ne.s32.totalorder %s86, %s88
      %p95 = scmp.eq.s32.totalorder %s31, 1
      %p96 = por %p94, %p95
      %p97 = scmp.ne.s32.totalorder %s88, %s89
      %p98 = scmp.eq.s32.totalorder %s31, 0
      %p99 = por %p97, %p98
      %p100 = scmp.ne.s32.totalorder %s88, %s89
      %p101 = scmp.eq.s32.totalorder %s32, 1
      %p102 = por %p100, %p101
      %p104 = scmp.ne.s32.totalorder %s89, %s103
      %p105 = scmp.eq.s32.totalorder %s32, 0
      %p106 = por %p104, %p105
      %s108 = sadd.s32 %s107, 1
      %p111 = scmp.eq.s32.totalorder %s26, 1
      %p112 = scmp.ne.s32.totalorder %s107, %s109
      %p113 = scmp.eq.s32.totalorder %s26, 0
      %p114 = por %p112, %p113
      %p115 = scmp.ne.s32.totalorder %s107, %s109
      %p116 = scmp.eq.s32.totalorder %s31, 1
      %p117 = por %p115, %p116
      %p118 = scmp.ne.s32.totalorder %s109, %s110
      %p119 = scmp.eq.s32.totalorder %s31, 0
      %p120 = por %p118, %p119
      %p121 = scmp.ne.s32.totalorder %s109, %s110
      %p122 = scmp.eq.s32.totalorder %s32, 1
      %p123 = por %p121, %p122
      %p125 = scmp.ne.s32.totalorder %s110, %s124
      %p126 = scmp.eq.s32.totalorder %s32, 0
      %p127 = por %p125, %p126
      %s129 = sadd.s32 %s128, 1
      %p132 = scmp.eq.s32.totalorder %s26, 1
      %p133 = scmp.ne.s32.totalorder %s128, %s130
      %p134 = scmp.eq.s32.totalorder %s26, 0
      %p135 = por %p133, %p134
      %p136 = scmp.ne.s32.totalorder %s128, %s130
      %p137 = scmp.eq.s32.totalorder %s31, 1
      %p138 = por %p136, %p137
      %p139 = scmp.ne.s32.totalorder %s130, %s131
      %p140 = scmp.eq.s32.totalorder %s31, 0
      %p141 = por %p139, %p140
      %p142 = scmp.ne.s32.totalorder %s130, %s131
      %p143 = scmp.eq.s32.totalorder %s32, 1
      %p144 = por %p142, %p143
      %p146 = scmp.ne.s32.totalorder %s131, %s145
      %p147 = scmp.eq.s32.totalorder %s32, 0
      %p148 = por %p146, %p147
      %s150 = sadd.s32 %s149, 1
      %p153 = scmp.eq.s32.totalorder %s26, 1
      %p154 = scmp.ne.s32.totalorder %s149, %s151
      %p155 = scmp.eq.s32.totalorder %s26, 0
      %p156 = por %p154, %p155
      %p157 = scmp.ne.s32.totalorder %s149, %s151
      %p158 = scmp.eq.s32.totalorder %s31, 1
      %p159 = por %p157, %p158
      %p160 = scmp.ne.s32.totalorder %s151, %s152
      %p161 = scmp.eq.s32.totalorder %s31, 0
      %p162 = por %p160, %p161
      %p163 = scmp.ne.s32.totalorder %s151, %s152
      %p164 = scmp.eq.s32.totalorder %s32, 1
      %p165 = por %p163, %p164
      %p167 = scmp.ne.s32.totalorder %s152, %s166
      %p168 = scmp.eq.s32.totalorder %s32, 0
      %p169 = por %p167, %p168
      %s171 = sadd.s32 %s170, 1
      %p174 = scmp.eq.s32.totalorder %s26, 1
      %p175 = scmp.ne.s32.totalorder %s170, %s172
      %p176 = scmp.eq.s32.totalorder %s26, 0
      %p177 = por %p175, %p176
      %p178 = scmp.ne.s32.totalorder %s170, %s172
      %p179 = scmp.eq.s32.totalorder %s31, 1
      %p180 = por %p178, %p179
      %p181 = scmp.ne.s32.totalorder %s172, %s173
      %p182 = scmp.eq.s32.totalorder %s31, 0
      %p183 = por %p181, %p182
      %p184 = scmp.ne.s32.totalorder %s172, %s173
      %p185 = scmp.eq.s32.totalorder %s32, 1
      %p186 = por %p184, %p185
      %p188 = scmp.ne.s32.totalorder %s173, %s187
      %p189 = scmp.eq.s32.totalorder %s32, 0
      %p190 = por %p188, %p189
      %s192 = sadd.s32 %s191, 1
      %p195 = scmp.eq.s32.totalorder %s26, 1
      %p196 = scmp.ne.s32.totalorder %s191, %s193
      %p197 = scmp.eq.s32.totalorder %s26, 0
      %p198 = por %p196, %p197
      %p199 = scmp.ne.s32.totalorder %s191, %s193
      %p200 = scmp.eq.s32.totalorder %s31, 1
      %p201 = por %p199, %p200
      %p202 = scmp.ne.s32.totalorder %s193, %s194
      %p203 = scmp.eq.s32.totalorder %s31, 0
      %p204 = por %p202, %p203
      %p205 = scmp.ne.s32.totalorder %s193, %s194
      %p206 = scmp.eq.s32.totalorder %s32, 1
      %p207 = por %p205, %p206
      %p209 = scmp.ne.s32.totalorder %s194, %s208
      %p210 = scmp.eq.s32.totalorder %s32, 0
      %p211 = por %p209, %p210
      %s213 = sadd.s32 %s212, 1
      %p216 = scmp.eq.s32.totalorder %s26, 1
      %p217 = scmp.ne.s32.totalorder %s212, %s214
      %p218 = scmp.eq.s32.totalorder %s26, 0
      %p219 = por %p217, %p218
      %p220 = scmp.ne.s32.totalorder %s212, %s214
      %p221 = scmp.eq.s32.totalorder %s31, 1
      %p222 = por %p220, %p221
      %p223 = scmp.ne.s32.totalorder %s214, %s215
      %p224 = scmp.eq.s32.totalorder %s31, 0
      %p225 = por %p223, %p224
      %p226 = scmp.ne.s32.totalorder %s214, %s215
      %p227 = scmp.eq.s32.totalorder %s32, 1
      %p228 = por %p226, %p227
      %p230 = scmp.ne.s32.totalorder %s215, %s229
      %p231 = scmp.eq.s32.totalorder %s32, 0
      %p232 = por %p230, %p231
      %s234 = sadd.s32 %s233, 1
      %p237 = scmp.eq.s32.totalorder %s26, 1
      %p238 = scmp.ne.s32.totalorder %s233, %s235
      %p239 = scmp.eq.s32.totalorder %s26, 0
      %p240 = por %p238, %p239
      %p241 = scmp.ne.s32.totalorder %s233, %s235
      %p242 = scmp.eq.s32.totalorder %s31, 1
      %p243 = por %p241, %p242
      %p244 = scmp.ne.s32.totalorder %s235, %s236
      %p245 = scmp.eq.s32.totalorder %s31, 0
      %p246 = por %p244, %p245
      %p247 = scmp.ne.s32.totalorder %s235, %s236
      %p248 = scmp.eq.s32.totalorder %s32, 1
      %p249 = por %p247, %p248
      %p251 = scmp.ne.s32.totalorder %s236, %s250
      %p252 = scmp.eq.s32.totalorder %s32, 0
      %p253 = por %p251, %p252
      %s254 = ssub.s32 %s26, %s33
      %p255 = scmp.eq.s32.totalorder %s254, 0
      %s257 = sadd.s32 %s256, 1
      %s258 = scalar_select %p255, %s256, %s257
      %p261 = pneg %p255
      %p262 = scmp.eq.s32.totalorder %s26, 1
      %p263 = por %p261, %p262
      %p264 = scmp.ne.s32.totalorder %s256, %s259
      %p265 = scmp.eq.s32.totalorder %s26, 0
      %p266 = por %p264, %p265
      %p267 = scmp.ne.s32.totalorder %s256, %s259
      %p268 = scmp.eq.s32.totalorder %s31, 1
      %p269 = por %p267, %p268
      %p270 = scmp.ne.s32.totalorder %s259, %s260
      %p271 = scmp.eq.s32.totalorder %s31, 0
      %p272 = por %p270, %p271
      %p273 = scmp.ne.s32.totalorder %s259, %s260
      %p274 = scmp.eq.s32.totalorder %s32, 1
      %p275 = por %p273, %p274
      %p277 = scmp.ne.s32.totalorder %s260, %s276
      %p278 = scmp.eq.s32.totalorder %s32, 0
      %p279 = por %p277, %p278
      %p280 = scmp.le.s32.totalorder 1, %s26
      %p281 = scmp.lt.s32.totalorder %s26, 3
      %p282 = pnand %p280, %p281
      %p283 = pneg %p282
      // Predicated region
      $region9: #{tpu_custom_call.1} parent=5 // pred_check
        _
      $region10: #{tpu_custom_call.1} parent=5 // pred_check_branch
        %285 = sbr.rel (%p282) target = $region12
      $region11: #{tpu_custom_call.1} parent=5 // pred_region
        %s286 = ssub.s32 %s26, 1
        // Predicated region
        $region13: #{tpu_custom_call.1} parent=11 // pred_check
          %p287 = pneg %p99
        $region14: #{tpu_custom_call.1} parent=11 // pred_check_branch
          %289 = sbr.rel (%p287) target = $region16
        $region15: #{tpu_custom_call.1} parent=11 // pred_region
          %s291 = ssub.s32 9216, 9216
          %292 = vsyncadd [#allocation6], %s291
          %s293 = sshll.u32 [#allocation7], 4
          %s294 = int_to_ptr.vmem [resolvable:$true] %s293
          %299 = dma.hbm_to_vmem [thread:$0]  %s2, 9216, %s294, [#allocation6], 64, 64, 4
        $region16: #{tpu_custom_call.1} parent=11 // pred_fallthru
          _
        // Predicated region
        $region17: #{tpu_custom_call.1} parent=11 // pred_check
          %p300 = pneg %p120
        $region18: #{tpu_custom_call.1} parent=11 // pred_check_branch
          %302 = sbr.rel (%p300) target = $region20
        $region19: #{tpu_custom_call.1} parent=11 // pred_region
          _
        $region20: #{tpu_custom_call.1} parent=11 // pred_fallthru
          _
        // Predicated region
        $region21: #{tpu_custom_call.1} parent=11 // pred_check
          %p303 = pneg %p141
        $region22: #{tpu_custom_call.1} parent=11 // pred_check_branch
          %305 = sbr.rel (%p303) target = $region24
        $region23: #{tpu_custom_call.1} parent=11 // pred_region
          _
        $region24: #{tpu_custom_call.1} parent=11 // pred_fallthru
          _
        // Predicated region
        $region25: #{tpu_custom_call.1} parent=11 // pred_check
          %p306 = pneg %p162
        $region26: #{tpu_custom_call.1} parent=11 // pred_check_branch
          %308 = sbr.rel (%p306) target = $region28
        $region27: #{tpu_custom_call.1} parent=11 // pred_region
          %s310 = ssub.s32 9216, 9216
          %311 = vsyncadd [#allocation9], %s310
          %s312 = sshll.u32 [#allocation8], 4
          %s313 = int_to_ptr.vmem [resolvable:$true] %s312
          %318 = dma.hbm_to_vmem [thread:$0]  %s5, 9216, %s313, [#allocation9], 64, 64, 4
        $region28: #{tpu_custom_call.1} parent=11 // pred_fallthru
          _
        // Predicated region
        $region29: #{tpu_custom_call.1} parent=11 // pred_check
          %p319 = pneg %p183
        $region30: #{tpu_custom_call.1} parent=11 // pred_check_branch
          %321 = sbr.rel (%p319) target = $region32
        $region31: #{tpu_custom_call.1} parent=11 // pred_region
          _
        $region32: #{tpu_custom_call.1} parent=11 // pred_fallthru
          _
        // Predicated region
        $region33: #{tpu_custom_call.1} parent=11 // pred_check
          %p322 = pneg %p204
        $region34: #{tpu_custom_call.1} parent=11 // pred_check_branch
          %324 = sbr.rel (%p322) target = $region36
        $region35: #{tpu_custom_call.1} parent=11 // pred_region
          _
        $region36: #{tpu_custom_call.1} parent=11 // pred_fallthru
          _
        // Predicated region
        $region37: #{tpu_custom_call.1} parent=11 // pred_check
          %p325 = pneg %p225
        $region38: #{tpu_custom_call.1} parent=11 // pred_check_branch
          %327 = sbr.rel (%p325) target = $region40
        $region39: #{tpu_custom_call.1} parent=11 // pred_region
          %s329 = ssub.s32 1024, 1024
          %330 = vsyncadd [#allocation9], %s329
          %s331 = sshll.u32 [#allocation10], 4
          %s332 = int_to_ptr.vmem [resolvable:$true] %s331
          %337 = dma.hbm_to_vmem [thread:$0]  %s8, 1024, %s332, [#allocation9], 64, 64, 4
        $region40: #{tpu_custom_call.1} parent=11 // pred_fallthru
          _
        // Predicated region
        $region41: #{tpu_custom_call.1} parent=11 // pred_check
          %p338 = pneg %p246
        $region42: #{tpu_custom_call.1} parent=11 // pred_check_branch
          %340 = sbr.rel (%p338) target = $region44
        $region43: #{tpu_custom_call.1} parent=11 // pred_region
          _
        $region44: #{tpu_custom_call.1} parent=11 // pred_fallthru
          _
      $region12: #{tpu_custom_call.1} parent=5 // pred_fallthru
        _
      %p341 = scmp.lt.s32.totalorder %s26, 2
      // Predicated region
      $region45: #{tpu_custom_call.1} parent=5 // pred_check
        %p342 = pneg %p341
      $region46: #{tpu_custom_call.1} parent=5 // pred_check_branch
        %344 = sbr.rel (%p342) target = $region48
      $region47: #{tpu_custom_call.1} parent=5 // pred_region
        // Predicated region
        $region49: #{tpu_custom_call.1} parent=47 // pred_check
          %p345 = pneg %p46
        $region50: #{tpu_custom_call.1} parent=47 // pred_check_branch
          %347 = sbr.rel (%p345) target = $region52
        $region51: #{tpu_custom_call.1} parent=47 // pred_region
          %s348 = sand.u32 %s36, 1
          %s349 = scalar_lea.sflag [#allocation3], %s348
          %s350 = sand.u32 %s36, 1
          %s351 = smul.addr %s350, 144
          %s352 = scalar_lea.vmem [#allocation2], %s351
          %s354 = ssub.s32 2304, 2304
          %355 = vsyncadd %s349, %s354
          %s356 = smul.addr %s26, 36
          %s357 = smul.addr %s356, 64
          %s358 = scalar_lea.hbm %s0, %s357
          %s359 = sshll.u32 %s352, 4
          %s360 = int_to_ptr.vmem [resolvable:$true] %s359
          %365 = dma.hbm_to_vmem [thread:$0]  %s358, 2304, %s360, %s349, 64, 64, 4
        $region52: #{tpu_custom_call.1} parent=47 // pred_fallthru
          _
        // Predicated region
        $region53: #{tpu_custom_call.1} parent=47 // pred_check
          %p366 = pneg %p72
        $region54: #{tpu_custom_call.1} parent=47 // pred_check_branch
          %368 = sbr.rel (%p366) target = $region56
        $region55: #{tpu_custom_call.1} parent=47 // pred_region
          %s369 = sand.u32 %s26, 1
          %s370 = scalar_lea.sflag [#allocation6], %s369
          %s371 = sand.u32 %s62, 1
          %s372 = smul.addr %s371, 2
          %s373 = scalar_lea.vmem [#allocation5], %s372
          %s375 = ssub.s32 32, 32
          %376 = vsyncadd %s370, %s375
          %s377 = smul.addr %s26, 2
          %s378 = smul.addr %s377, 16
          %s379 = scalar_lea.hbm %s1, %s378
          %s381 = sshll.u32 %s373, 4
          %s382 = int_to_ptr.vmem [resolvable:$true] %s381
          %384 = dma.hbm_to_vmem [thread:$0]  %s379, 32, %s382, %s370
        $region56: #{tpu_custom_call.1} parent=47 // pred_fallthru
          _
      $region48: #{tpu_custom_call.1} parent=5 // pred_fallthru
        _
      %p385 = scmp.le.s32.totalorder 1, %s26
      %p386 = scmp.lt.s32.totalorder %s26, 3
      %p387 = pnand %p385, %p386
      %p388 = pneg %p387
      // Predicated region
      $region57: #{tpu_custom_call.1} parent=5 // pred_check
        _
      $region58: #{tpu_custom_call.1} parent=5 // pred_check_branch
        %390 = sbr.rel (%p387) target = $region60
      $region59: #{tpu_custom_call.1} parent=5 // pred_region
        %s391 = ssub.s32 %s26, 1
        %s392 = sand.u32 %s39, 1
        %s393 = scalar_lea.sflag [#allocation3], %s392
        %s394 = sand.u32 %s39, 1
        %s395 = smul.addr %s394, 144
        %s396 = scalar_lea.vmem [#allocation2], %s395
        // Predicated region
        $region61: #{tpu_custom_call.1} parent=59 // pred_check
          %p397 = pneg %p52
        $region62: #{tpu_custom_call.1} parent=59 // pred_check_branch
          %399 = sbr.rel (%p397) target = $region64
        $region63: #{tpu_custom_call.1} parent=59 // pred_region
          %400 = dma.done %s393, 2304
        $region64: #{tpu_custom_call.1} parent=59 // pred_fallthru
          _
        %s401 = sand.u32 %s31, 1
        %s402 = scalar_lea.sflag [#allocation6], %s401
        %s403 = sand.u32 %s65, 1
        %s404 = smul.addr %s403, 2
        %s405 = scalar_lea.vmem [#allocation5], %s404
        // Predicated region
        $region65: #{tpu_custom_call.1} parent=59 // pred_check
          %p406 = pneg %p78
        $region66: #{tpu_custom_call.1} parent=59 // pred_check_branch
          %408 = sbr.rel (%p406) target = $region68
        $region67: #{tpu_custom_call.1} parent=59 // pred_region
          %409 = dma.done %s402, 32
        $region68: #{tpu_custom_call.1} parent=59 // pred_fallthru
          _
        // Predicated region
        $region69: #{tpu_custom_call.1} parent=59 // pred_check
          %p410 = pneg %p99
        $region70: #{tpu_custom_call.1} parent=59 // pred_check_branch
          %412 = sbr.rel (%p410) target = $region72
        $region71: #{tpu_custom_call.1} parent=59 // pred_region
          %413 = dma.done [#allocation6], 9216
        $region72: #{tpu_custom_call.1} parent=59 // pred_fallthru
          _
        // Predicated region
        $region73: #{tpu_custom_call.1} parent=59 // pred_check
          %p414 = pneg %p162
        $region74: #{tpu_custom_call.1} parent=59 // pred_check_branch
          %416 = sbr.rel (%p414) target = $region76
        $region75: #{tpu_custom_call.1} parent=59 // pred_region
          %417 = dma.done [#allocation9], 9216
        $region76: #{tpu_custom_call.1} parent=59 // pred_fallthru
          _
        // Predicated region
        $region77: #{tpu_custom_call.1} parent=59 // pred_check
          %p418 = pneg %p225
        $region78: #{tpu_custom_call.1} parent=59 // pred_check_branch
          %420 = sbr.rel (%p418) target = $region80
        $region79: #{tpu_custom_call.1} parent=59 // pred_region
          %421 = dma.done [#allocation9], 1024
        $region80: #{tpu_custom_call.1} parent=59 // pred_fallthru
          _
        %s422 = sand.u32 %s39, 1
        %s423 = scalar_lea.sflag [#allocation3], %s422
        %s424 = sand.u32 %s39, 1
        %s425 = smul.addr %s424, 144
        %s426 = scalar_lea.vmem [#allocation2], %s425
        %p427 = pneg %p52
        %p428 = pneg %p49
        %s429 = sand.u32 %s31, 1
        %s430 = scalar_lea.sflag [#allocation6], %s429
        %s431 = sand.u32 %s65, 1
        %s432 = smul.addr %s431, 2
        %s433 = scalar_lea.vmem [#allocation5], %s432
        %p434 = pneg %p78
        %p435 = pneg %p75
        %p436 = pneg %p99
        %p437 = pneg %p96
        %p438 = pneg %p120
        %p439 = pneg %p117
        %p440 = pneg %p141
        %p441 = pneg %p138
        %p442 = pneg %p162
        %p443 = pneg %p159
        %p444 = pneg %p183
        %p445 = pneg %p180
        %p446 = pneg %p204
        %p447 = pneg %p201
        %p448 = pneg %p225
        %p449 = pneg %p222
        %p450 = pneg %p246
        %p451 = pneg %p243
        %p452 = pneg %p272
        %p453 = pneg %p269
        %s454 = sand.u32 %s259, 1
        %s455 = scalar_lea.sflag [#allocation4], %s454
        %s456 = sand.u32 %s259, 1
        %s457 = smul.addr %s456, 256
        %s458 = scalar_lea.vmem [#allocation11], %s457
        %v460 = vld [vmem:[%s396] sm:$0xf]
        %v461 = vld [vmem:[%s396 + $0x4] sm:$0xf]
        %v462 = vld [vmem:[%s396 + $0x8] sm:$0xf]
        %v463 = vld [vmem:[%s396 + $0xc] sm:$0xf]
        %v464 = vld [vmem:[%s396 + $0x10] sm:$0xf]
        %v465 = vld [vmem:[%s396 + $0x14] sm:$0xf]
        %v466 = vld [vmem:[%s396 + $0x18] sm:$0xf]
        %v467 = vld [vmem:[%s396 + $0x1c] sm:$0xf]
        %v468 = vld [vmem:[%s396 + $0x20] sm:$0xf]
        %v469 = vld [vmem:[%s396 + $0x24] sm:$0xf]
        %v470 = vld [vmem:[%s396 + $0x28] sm:$0xf]
        %v471 = vld [vmem:[%s396 + $0x2c] sm:$0xf]
        %v472 = vld [vmem:[%s396 + $0x30] sm:$0xf]
        %v473 = vld [vmem:[%s396 + $0x34] sm:$0xf]
        %v474 = vld [vmem:[%s396 + $0x38] sm:$0xf]
        %v475 = vld [vmem:[%s396 + $0x3c] sm:$0xf]
        %v476 = vld [vmem:[%s396 + $0x40] sm:$0xf]
        %v477 = vld [vmem:[%s396 + $0x44] sm:$0xf]
        %v478 = vld [vmem:[%s396 + $0x48] sm:$0xf]
        %v479 = vld [vmem:[%s396 + $0x4c] sm:$0xf]
        %v480 = vld [vmem:[%s396 + $0x50] sm:$0xf]
        %v481 = vld [vmem:[%s396 + $0x54] sm:$0xf]
        %v482 = vld [vmem:[%s396 + $0x58] sm:$0xf]
        %v483 = vld [vmem:[%s396 + $0x5c] sm:$0xf]
        %v484 = vld [vmem:[%s396 + $0x60] sm:$0xf]
        %v485 = vld [vmem:[%s396 + $0x64] sm:$0xf]
        %v486 = vld [vmem:[%s396 + $0x68] sm:$0xf]
        %v487 = vld [vmem:[%s396 + $0x6c] sm:$0xf]
        %v488 = vld [vmem:[%s396 + $0x70] sm:$0xf]
        %v489 = vld [vmem:[%s396 + $0x74] sm:$0xf]
        %v490 = vld [vmem:[%s396 + $0x78] sm:$0xf]
        %v491 = vld [vmem:[%s396 + $0x7c] sm:$0xf]
        %v492 = vld [vmem:[%s396 + $0x80] sm:$0xf]
        %v493 = vld [vmem:[%s396 + $0x84] sm:$0xf]
        %v494 = vld [vmem:[%s396 + $0x88] sm:$0xf]
        %v495 = vld [vmem:[%s396 + $0x8c] sm:$0xf]
        %v496 = vld [vmem:[%s405] sm:$0x1]
        %v497 = vld [vmem:[%s405 + $0x1] sm:$0x1]
        %v534 = vunpack.c.l.b16 %v460
        %v535 = vunpack.c.l.b16 %v461
        %v536 = vunpack.c.l.b16 %v462
        %v537 = vunpack.c.l.b16 %v463
        %v538 = vunpack.c.l.b16 %v464
        %v539 = vunpack.c.l.b16 %v465
        %v540 = vunpack.c.l.b16 %v466
        %v541 = vunpack.c.l.b16 %v467
        %v542 = vunpack.c.l.b16 %v468
        %v543 = vunpack.c.l.b16 %v469
        %v544 = vunpack.c.l.b16 %v470
        %v545 = vunpack.c.l.b16 %v471
        %v546 = vunpack.c.l.b16 %v472
        %v547 = vunpack.c.l.b16 %v473
        %v548 = vunpack.c.l.b16 %v474
        %v549 = vunpack.c.l.b16 %v475
        %v550 = vunpack.c.l.b16 %v476
        %v551 = vunpack.c.l.b16 %v477
        %v552 = vunpack.c.l.b16 %v478
        %v553 = vunpack.c.l.b16 %v479
        %v554 = vunpack.c.l.b16 %v480
        %v555 = vunpack.c.l.b16 %v481
        %v556 = vunpack.c.l.b16 %v482
        %v557 = vunpack.c.l.b16 %v483
        %v558 = vunpack.c.l.b16 %v484
        %v559 = vunpack.c.l.b16 %v485
        %v560 = vunpack.c.l.b16 %v486
        %v561 = vunpack.c.l.b16 %v487
        %v562 = vunpack.c.l.b16 %v488
        %v563 = vunpack.c.l.b16 %v489
        %v564 = vunpack.c.l.b16 %v490
        %v565 = vunpack.c.l.b16 %v491
        %v566 = vunpack.c.l.b16 %v492
        %v567 = vunpack.c.l.b16 %v493
        %v568 = vunpack.c.l.b16 %v494
        %v569 = vunpack.c.l.b16 %v495
        %v570 = vpack.c.b16 %v535, %v534
        %v571 = vpack.c.b16 %v537, %v536
        %v572 = vpack.c.b16 %v539, %v538
        %v573 = vpack.c.b16 %v541, %v540
        %v574 = vpack.c.b16 %v543, %v542
        %v575 = vpack.c.b16 %v545, %v544
        %v576 = vpack.c.b16 %v547, %v546
        %v577 = vpack.c.b16 %v549, %v548
        %v578 = vpack.c.b16 %v551, %v550
        %v579 = vpack.c.b16 %v553, %v552
        %v580 = vpack.c.b16 %v555, %v554
        %v581 = vpack.c.b16 %v557, %v556
        %v582 = vpack.c.b16 %v559, %v558
        %v583 = vpack.c.b16 %v561, %v560
        %v584 = vpack.c.b16 %v563, %v562
        %v585 = vpack.c.b16 %v565, %v564
        %v586 = vpack.c.b16 %v567, %v566
        %v587 = vpack.c.b16 %v569, %v568
        %v589 = vshrl.u32 %v570, 16
        %v591 = vrot.slane %v589, 7
        %v592 = vshll.u32 %v570, 16
        %v594 = vor.u32 %v591, %v592
        %v596 = vshrl.u32 %v571, 16
        %v598 = vrot.slane %v596, 7
        %v599 = vshll.u32 %v571, 16
        %v601 = vor.u32 %v598, %v599
        %v603 = vshrl.u32 %v572, 16
        %v605 = vrot.slane %v603, 7
        %v606 = vshll.u32 %v572, 16
        %v608 = vor.u32 %v605, %v606
        %v610 = vshrl.u32 %v573, 16
        %v612 = vrot.slane %v610, 7
        %v613 = vshll.u32 %v573, 16
        %v615 = vor.u32 %v612, %v613
        %v617 = vshrl.u32 %v574, 16
        %v619 = vrot.slane %v617, 7
        %v620 = vshll.u32 %v574, 16
        %v622 = vor.u32 %v619, %v620
        %v624 = vshrl.u32 %v575, 16
        %v626 = vrot.slane %v624, 7
        %v627 = vshll.u32 %v575, 16
        %v629 = vor.u32 %v626, %v627
        %v631 = vshrl.u32 %v576, 16
        %v633 = vrot.slane %v631, 7
        %v634 = vshll.u32 %v576, 16
        %v636 = vor.u32 %v633, %v634
        %v638 = vshrl.u32 %v577, 16
        %v640 = vrot.slane %v638, 7
        %v641 = vshll.u32 %v577, 16
        %v643 = vor.u32 %v640, %v641
        %v645 = vshrl.u32 %v578, 16
        %v647 = vrot.slane %v645, 7
        %v648 = vshll.u32 %v578, 16
        %v650 = vor.u32 %v647, %v648
        %v652 = vshrl.u32 %v579, 16
        %v654 = vrot.slane %v652, 7
        %v655 = vshll.u32 %v579, 16
        %v657 = vor.u32 %v654, %v655
        %v659 = vshrl.u32 %v580, 16
        %v661 = vrot.slane %v659, 7
        %v662 = vshll.u32 %v580, 16
        %v664 = vor.u32 %v661, %v662
        %v666 = vshrl.u32 %v581, 16
        %v668 = vrot.slane %v666, 7
        %v669 = vshll.u32 %v581, 16
        %v671 = vor.u32 %v668, %v669
        %v673 = vshrl.u32 %v582, 16
        %v675 = vrot.slane %v673, 7
        %v676 = vshll.u32 %v582, 16
        %v678 = vor.u32 %v675, %v676
        %v680 = vshrl.u32 %v583, 16
        %v682 = vrot.slane %v680, 7
        %v683 = vshll.u32 %v583, 16
        %v685 = vor.u32 %v682, %v683
        %v687 = vshrl.u32 %v584, 16
        %v689 = vrot.slane %v687, 7
        %v690 = vshll.u32 %v584, 16
        %v692 = vor.u32 %v689, %v690
        %v694 = vshrl.u32 %v585, 16
        %v696 = vrot.slane %v694, 7
        %v697 = vshll.u32 %v585, 16
        %v699 = vor.u32 %v696, %v697
        %v701 = vshrl.u32 %v586, 16
        %v703 = vrot.slane %v701, 7
        %v704 = vshll.u32 %v586, 16
        %v706 = vor.u32 %v703, %v704
        %v708 = vshrl.u32 %v587, 16
        %v710 = vrot.slane %v708, 7
        %v711 = vshll.u32 %v587, 16
        %v713 = vor.u32 %v710, %v711
        %vm732 = vcmask 1040384
        %vm733 = vsmask.f32 256
        %vm734 = vmand %vm732, %vm733
        %v735 = vsel %vm734, 0, %v594
        %v736 = vsel %vm734, 0, %v601
        %v737 = vsel %vm734, 0, %v608
        %v738 = vsel %vm734, 0, %v615
        %v739 = vsel %vm734, 0, %v622
        %v740 = vsel %vm734, 0, %v629
        %v741 = vsel %vm734, 0, %v636
        %v742 = vsel %vm734, 0, %v643
        %v743 = vsel %vm734, 0, %v650
        %v744 = vsel %vm734, 0, %v657
        %v745 = vsel %vm734, 0, %v664
        %v746 = vsel %vm734, 0, %v671
        %v747 = vsel %vm734, 0, %v678
        %v748 = vsel %vm734, 0, %v685
        %v749 = vsel %vm734, 0, %v692
        %v750 = vsel %vm734, 0, %v699
        %v751 = vsel %vm734, 0, %v706
        %v752 = vsel %vm734, 0, %v713
        %v753 = vrot.slane %v592, 1
        %v754 = vor.u32 %v589, %v753
        %v755 = vrot.slane %v599, 1
        %v756 = vor.u32 %v596, %v755
        %v757 = vrot.slane %v606, 1
        %v758 = vor.u32 %v603, %v757
        %v759 = vrot.slane %v613, 1
        %v760 = vor.u32 %v610, %v759
        %v761 = vrot.slane %v620, 1
        %v762 = vor.u32 %v617, %v761
        %v763 = vrot.slane %v627, 1
        %v764 = vor.u32 %v624, %v763
        %v765 = vrot.slane %v634, 1
        %v766 = vor.u32 %v631, %v765
        %v767 = vrot.slane %v641, 1
        %v768 = vor.u32 %v638, %v767
        %v769 = vrot.slane %v648, 1
        %v770 = vor.u32 %v645, %v769
        %v771 = vrot.slane %v655, 1
        %v772 = vor.u32 %v652, %v771
        %v773 = vrot.slane %v662, 1
        %v774 = vor.u32 %v659, %v773
        %v775 = vrot.slane %v669, 1
        %v776 = vor.u32 %v666, %v775
        %v777 = vrot.slane %v676, 1
        %v778 = vor.u32 %v673, %v777
        %v779 = vrot.slane %v683, 1
        %v780 = vor.u32 %v680, %v779
        %v781 = vrot.slane %v690, 1
        %v782 = vor.u32 %v687, %v781
        %v783 = vrot.slane %v697, 1
        %v784 = vor.u32 %v694, %v783
        %v785 = vrot.slane %v704, 1
        %v786 = vor.u32 %v701, %v785
        %v787 = vrot.slane %v711, 1
        %v788 = vor.u32 %v708, %v787
        %vm807 = vcmask 1047552
        %vm808 = vsmask.f32 7424
        %vm809 = vmand %vm807, %vm808
        %v810 = vsel %vm809, %v754, 0
        %v811 = vsel %vm809, %v756, 0
        %v812 = vsel %vm809, %v758, 0
        %v813 = vsel %vm809, %v760, 0
        %v814 = vsel %vm809, %v762, 0
        %v815 = vsel %vm809, %v764, 0
        %v816 = vsel %vm809, %v766, 0
        %v817 = vsel %vm809, %v768, 0
        %v818 = vsel %vm809, %v770, 0
        %v819 = vsel %vm809, %v772, 0
        %v820 = vsel %vm809, %v774, 0
        %v821 = vsel %vm809, %v776, 0
        %v822 = vsel %vm809, %v778, 0
        %v823 = vsel %vm809, %v780, 0
        %v824 = vsel %vm809, %v782, 0
        %v825 = vsel %vm809, %v784, 0
        %v826 = vsel %vm809, %v786, 0
        %v827 = vsel %vm809, %v788, 0
        %v846 = vld [vmem:[#allocation7] sm:$0xf]
        %v847 = vld [vmem:[#allocation7 + $0x4] sm:$0xf]
        %v848 = vld [vmem:[#allocation7 + $0x8] sm:$0xf]
        %v849 = vld [vmem:[#allocation7 + $0xc] sm:$0xf]
        %v850 = vld [vmem:[#allocation7 + $0x10] sm:$0xf]
        %v851 = vld [vmem:[#allocation7 + $0x14] sm:$0xf]
        %v852 = vld [vmem:[#allocation7 + $0x18] sm:$0xf]
        %v853 = vld [vmem:[#allocation7 + $0x1c] sm:$0xf]
        %v854 = vld [vmem:[#allocation7 + $0x20] sm:$0xf]
        %v855 = vld [vmem:[#allocation7 + $0x24] sm:$0xf]
        %v856 = vld [vmem:[#allocation7 + $0x28] sm:$0xf]
        %v857 = vld [vmem:[#allocation7 + $0x2c] sm:$0xf]
        %v858 = vld [vmem:[#allocation7 + $0x30] sm:$0xf]
        %v859 = vld [vmem:[#allocation7 + $0x34] sm:$0xf]
        %v860 = vld [vmem:[#allocation7 + $0x38] sm:$0xf]
        %v861 = vld [vmem:[#allocation7 + $0x3c] sm:$0xf]
        %v862 = vld [vmem:[#allocation7 + $0x40] sm:$0xf]
        %v863 = vld [vmem:[#allocation7 + $0x44] sm:$0xf]
        %v864 = vld [vmem:[#allocation7 + $0x48] sm:$0xf]
        %v865 = vld [vmem:[#allocation7 + $0x4c] sm:$0xf]
        %v866 = vld [vmem:[#allocation7 + $0x50] sm:$0xf]
        %v867 = vld [vmem:[#allocation7 + $0x54] sm:$0xf]
        %v868 = vld [vmem:[#allocation7 + $0x58] sm:$0xf]
        %v869 = vld [vmem:[#allocation7 + $0x5c] sm:$0xf]
        %v870 = vld [vmem:[#allocation7 + $0x60] sm:$0xf]
        %v871 = vld [vmem:[#allocation7 + $0x64] sm:$0xf]
        %v872 = vld [vmem:[#allocation7 + $0x68] sm:$0xf]
        %v873 = vld [vmem:[#allocation7 + $0x6c] sm:$0xf]
        %v874 = vld [vmem:[#allocation7 + $0x70] sm:$0xf]
        %v875 = vld [vmem:[#allocation7 + $0x74] sm:$0xf]
        %v876 = vld [vmem:[#allocation7 + $0x78] sm:$0xf]
        %v877 = vld [vmem:[#allocation7 + $0x7c] sm:$0xf]
        %v878 = vld [vmem:[#allocation7 + $0x80] sm:$0xf]
        %v879 = vld [vmem:[#allocation7 + $0x84] sm:$0xf]
        %v880 = vld [vmem:[#allocation7 + $0x88] sm:$0xf]
        %v881 = vld [vmem:[#allocation7 + $0x8c] sm:$0xf]
        %v882 = vld [vmem:[#allocation7 + $0x90] sm:$0xf]
        %v883 = vld [vmem:[#allocation7 + $0x94] sm:$0xf]
        %v884 = vld [vmem:[#allocation7 + $0x98] sm:$0xf]
        %v885 = vld [vmem:[#allocation7 + $0x9c] sm:$0xf]
        %v886 = vld [vmem:[#allocation7 + $0xa0] sm:$0xf]
        %v887 = vld [vmem:[#allocation7 + $0xa4] sm:$0xf]
        %v888 = vld [vmem:[#allocation7 + $0xa8] sm:$0xf]
        %v889 = vld [vmem:[#allocation7 + $0xac] sm:$0xf]
        %v890 = vld [vmem:[#allocation7 + $0xb0] sm:$0xf]
        %v891 = vld [vmem:[#allocation7 + $0xb4] sm:$0xf]
        %v892 = vld [vmem:[#allocation7 + $0xb8] sm:$0xf]
        %v893 = vld [vmem:[#allocation7 + $0xbc] sm:$0xf]
        %s894 = scalar_lea.vmem [#allocation7], 192
        %v895 = vld [vmem:[%s894] sm:$0xf]
        %v896 = vld [vmem:[%s894 + $0x4] sm:$0xf]
        %v897 = vld [vmem:[%s894 + $0x8] sm:$0xf]
        %v898 = vld [vmem:[%s894 + $0xc] sm:$0xf]
        %v899 = vld [vmem:[%s894 + $0x10] sm:$0xf]
        %v900 = vld [vmem:[%s894 + $0x14] sm:$0xf]
        %v901 = vld [vmem:[%s894 + $0x18] sm:$0xf]
        %v902 = vld [vmem:[%s894 + $0x1c] sm:$0xf]
        %v903 = vld [vmem:[%s894 + $0x20] sm:$0xf]
        %v904 = vld [vmem:[%s894 + $0x24] sm:$0xf]
        %v905 = vld [vmem:[%s894 + $0x28] sm:$0xf]
        %v906 = vld [vmem:[%s894 + $0x2c] sm:$0xf]
        %v907 = vld [vmem:[%s894 + $0x30] sm:$0xf]
        %v908 = vld [vmem:[%s894 + $0x34] sm:$0xf]
        %v909 = vld [vmem:[%s894 + $0x38] sm:$0xf]
        %v910 = vld [vmem:[%s894 + $0x3c] sm:$0xf]
        %v911 = vld [vmem:[%s894 + $0x40] sm:$0xf]
        %v912 = vld [vmem:[%s894 + $0x44] sm:$0xf]
        %v913 = vld [vmem:[%s894 + $0x48] sm:$0xf]
        %v914 = vld [vmem:[%s894 + $0x4c] sm:$0xf]
        %v915 = vld [vmem:[%s894 + $0x50] sm:$0xf]
        %v916 = vld [vmem:[%s894 + $0x54] sm:$0xf]
        %v917 = vld [vmem:[%s894 + $0x58] sm:$0xf]
        %v918 = vld [vmem:[%s894 + $0x5c] sm:$0xf]
        %v919 = vld [vmem:[%s894 + $0x60] sm:$0xf]
        %v920 = vld [vmem:[%s894 + $0x64] sm:$0xf]
        %v921 = vld [vmem:[%s894 + $0x68] sm:$0xf]
        %v922 = vld [vmem:[%s894 + $0x6c] sm:$0xf]
        %v923 = vld [vmem:[%s894 + $0x70] sm:$0xf]
        %v924 = vld [vmem:[%s894 + $0x74] sm:$0xf]
        %v925 = vld [vmem:[%s894 + $0x78] sm:$0xf]
        %v926 = vld [vmem:[%s894 + $0x7c] sm:$0xf]
        %v927 = vld [vmem:[%s894 + $0x80] sm:$0xf]
        %v928 = vld [vmem:[%s894 + $0x84] sm:$0xf]
        %v929 = vld [vmem:[%s894 + $0x88] sm:$0xf]
        %v930 = vld [vmem:[%s894 + $0x8c] sm:$0xf]
        %v931 = vld [vmem:[%s894 + $0x90] sm:$0xf]
        %v932 = vld [vmem:[%s894 + $0x94] sm:$0xf]
        %v933 = vld [vmem:[%s894 + $0x98] sm:$0xf]
        %v934 = vld [vmem:[%s894 + $0x9c] sm:$0xf]
        %v935 = vld [vmem:[%s894 + $0xa0] sm:$0xf]
        %v936 = vld [vmem:[%s894 + $0xa4] sm:$0xf]
        %v937 = vld [vmem:[%s894 + $0xa8] sm:$0xf]
        %v938 = vld [vmem:[%s894 + $0xac] sm:$0xf]
        %v939 = vld [vmem:[%s894 + $0xb0] sm:$0xf]
        %v940 = vld [vmem:[%s894 + $0xb4] sm:$0xf]
        %v941 = vld [vmem:[%s894 + $0xb8] sm:$0xf]
        %v942 = vld [vmem:[%s894 + $0xbc] sm:$0xf]
        %v991 = vunpack.c.l.b16 %v895
        %v992 = vunpack.c.l.b16 %v896
        %v993 = vunpack.c.l.b16 %v897
        %v994 = vunpack.c.l.b16 %v898
        %v995 = vunpack.c.l.b16 %v899
        %v996 = vunpack.c.l.b16 %v900
        %v997 = vunpack.c.l.b16 %v901
        %v998 = vunpack.c.l.b16 %v902
        %v999 = vunpack.c.l.b16 %v903
        %v1000 = vunpack.c.l.b16 %v904
        %v1001 = vunpack.c.l.b16 %v905
        %v1002 = vunpack.c.l.b16 %v906
        %v1003 = vunpack.c.l.b16 %v907
        %v1004 = vunpack.c.l.b16 %v908
        %v1005 = vunpack.c.l.b16 %v909
        %v1006 = vunpack.c.l.b16 %v910
        %v1007 = vunpack.c.l.b16 %v911
        %v1008 = vunpack.c.l.b16 %v912
        %v1009 = vunpack.c.l.b16 %v913
        %v1010 = vunpack.c.l.b16 %v914
        %v1011 = vunpack.c.l.b16 %v915
        %v1012 = vunpack.c.l.b16 %v916
        %v1013 = vunpack.c.l.b16 %v917
        %v1014 = vunpack.c.l.b16 %v918
        %v1015 = vunpack.c.l.b16 %v919
        %v1016 = vunpack.c.l.b16 %v920
        %v1017 = vunpack.c.l.b16 %v921
        %v1018 = vunpack.c.l.b16 %v922
        %v1019 = vunpack.c.l.b16 %v923
        %v1020 = vunpack.c.l.b16 %v924
        %v1021 = vunpack.c.l.b16 %v925
        %v1022 = vunpack.c.l.b16 %v926
        %v1023 = vunpack.c.l.b16 %v927
        %v1024 = vunpack.c.l.b16 %v928
        %v1025 = vunpack.c.l.b16 %v929
        %v1026 = vunpack.c.l.b16 %v930
        %v1027 = vunpack.c.l.b16 %v931
        %v1028 = vunpack.c.l.b16 %v932
        %v1029 = vunpack.c.l.b16 %v933
        %v1030 = vunpack.c.l.b16 %v934
        %v1031 = vunpack.c.l.b16 %v935
        %v1032 = vunpack.c.l.b16 %v936
        %v1033 = vunpack.c.l.b16 %v937
        %v1034 = vunpack.c.l.b16 %v938
        %v1035 = vunpack.c.l.b16 %v939
        %v1036 = vunpack.c.l.b16 %v940
        %v1037 = vunpack.c.l.b16 %v941
        %v1038 = vunpack.c.l.b16 %v942
        %v1039 = vpack.c.b16 %v992, %v991
        %v1040 = vpack.c.b16 %v994, %v993
        %v1041 = vpack.c.b16 %v996, %v995
        %v1042 = vpack.c.b16 %v998, %v997
        %v1043 = vpack.c.b16 %v1000, %v999
        %v1044 = vpack.c.b16 %v1002, %v1001
        %v1045 = vpack.c.b16 %v1004, %v1003
        %v1046 = vpack.c.b16 %v1006, %v1005
        %v1047 = vpack.c.b16 %v1008, %v1007
        %v1048 = vpack.c.b16 %v1010, %v1009
        %v1049 = vpack.c.b16 %v1012, %v1011
        %v1050 = vpack.c.b16 %v1014, %v1013
        %v1051 = vpack.c.b16 %v1016, %v1015
        %v1052 = vpack.c.b16 %v1018, %v1017
        %v1053 = vpack.c.b16 %v1020, %v1019
        %v1054 = vpack.c.b16 %v1022, %v1021
        %v1055 = vpack.c.b16 %v1024, %v1023
        %v1056 = vpack.c.b16 %v1026, %v1025
        %v1057 = vpack.c.b16 %v1028, %v1027
        %v1058 = vpack.c.b16 %v1030, %v1029
        %v1059 = vpack.c.b16 %v1032, %v1031
        %v1060 = vpack.c.b16 %v1034, %v1033
        %v1061 = vpack.c.b16 %v1036, %v1035
        %v1062 = vpack.c.b16 %v1038, %v1037
        %1087 = vmatprep.subr.bf16.mxu0 0
        %1088 = vmatpush1.bf16.msra.mxu0 %v1039
        %1089 = vmatprep.subr.bf16.mxu0 0
        %1090 = vmatpush1.bf16.msra.mxu0 %v1040
        %1091 = vmatprep.subr.bf16.mxu0 0
        %1092 = vmatpush1.bf16.msra.mxu0 %v1041
        %1093 = vmatprep.subr.bf16.mxu0 0
        %1094 = vmatpush1.bf16.msra.mxu0 %v1042
        %1095 = vmatprep.subr.bf16.mxu0 0
        %1096 = vmatpush1.bf16.msra.mxu0 %v1043
        %1097 = vmatprep.subr.bf16.mxu0 0
        %1098 = vmatpush1.bf16.msra.mxu0 %v1044
        %1099 = vmatprep.subr.bf16.mxu0 0
        %1100 = vmatpush1.bf16.msra.mxu0 %v1045
        %1101 = vmatprep.subr.bf16.mxu0 0
        %1102 = vmatpush1.bf16.msra.mxu0 %v1046
        %1103 = vmatprep.subr.bf16.mxu0 0
        %1104 = vmatpush1.bf16.msra.mxu0 %v1047
        %1105 = vmatprep.subr.bf16.mxu0 0
        %1106 = vmatpush1.bf16.msra.mxu0 %v1048
        %1107 = vmatprep.subr.bf16.mxu0 0
        %1108 = vmatpush1.bf16.msra.mxu0 %v1049
        %1109 = vmatprep.subr.bf16.mxu0 0
        %1110 = vmatpush1.bf16.msra.mxu0 %v1050
        %1111 = vmatprep.subr.bf16.mxu0 0
        %1112 = vmatpush1.bf16.msra.mxu0 %v1051
        %1113 = vmatprep.subr.bf16.mxu0 0
        %1114 = vmatpush1.bf16.msra.mxu0 %v1052
        %1115 = vmatprep.subr.bf16.mxu0 0
        %1116 = vmatpush1.bf16.msra.mxu0 %v1053
        %1117 = vmatprep.subr.bf16.mxu0 0
        %1118 = vmatpush1.bf16.msra.mxu0 %v1054
        %1119 = vmatprep.mubr.bf16.mxu0 %v571
        %1120 = vmatmul.mubr.bf16.gmra.mrb[0].mxu0 %v736
        %v1121 = vpop.f32.mrb[0].mxu0
        %v1122 = vadd.f32 0.0, %v1121
        %v1123 = vpop.f32.mrb[0].mxu0
        %v1124 = vpop.f32.mrb[0].mxu0
        %v1125 = vadd.f32 0.0, %v1124
        %v1126 = vpop.f32.mrb[0].mxu0
        %1127 = vmatprep.mubr.bf16.mxu0 %v572
        %1128 = vmatmul.mubr.bf16.gmra.mrb[0].mxu0 %v737
        %v1129 = vpop.f32.mrb[0].mxu0
        %v1130 = vadd.f32 0.0, %v1129
        %v1131 = vpop.f32.mrb[0].mxu0
        %v1132 = vpop.f32.mrb[0].mxu0
        %v1133 = vadd.f32 0.0, %v1132
        %v1134 = vpop.f32.mrb[0].mxu0
        %1135 = vmatprep.mubr.bf16.mxu0 %v573
        %1136 = vmatmul.mubr.bf16.gmra.mrb[0].mxu0 %v738
        %v1137 = vpop.f32.mrb[0].mxu0
        %v1138 = vadd.f32 0.0, %v1137
        %v1139 = vpop.f32.mrb[0].mxu0
        %v1140 = vpop.f32.mrb[0].mxu0
        %v1141 = vadd.f32 0.0, %v1140
        %v1142 = vpop.f32.mrb[0].mxu0
        %1143 = vmatprep.mubr.bf16.mxu0 %v574
        %1144 = vmatmul.mubr.bf16.gmra.mrb[0].mxu0 %v739
        %v1145 = vpop.f32.mrb[0].mxu0
        %v1146 = vadd.f32 0.0, %v1145
        %v1147 = vpop.f32.mrb[0].mxu0
        %v1148 = vpop.f32.mrb[0].mxu0
        %v1149 = vadd.f32 0.0, %v1148
        %v1150 = vpop.f32.mrb[0].mxu0
        %1151 = vmatprep.mubr.bf16.mxu0 %v575
        %1152 = vmatmul.mubr.bf16.gmra.mrb[0].mxu0 %v740
        %v1153 = vpop.f32.mrb[0].mxu0
        %v1154 = vadd.f32 0.0, %v1153
        %v1155 = vpop.f32.mrb[0].mxu0
        %v1156 = vpop.f32.mrb[0].mxu0
        %v1157 = vadd.f32 0.0, %v1156
        %v1158 = vpop.f32.mrb[0].mxu0
        %1159 = vmatprep.mubr.bf16.mxu0 %v576
        %1160 = vmatmul.mubr.bf16.gmra.mrb[0].mxu0 %v741
        %v1161 = vpop.f32.mrb[0].mxu0
        %v1162 = vadd.f32 0.0, %v1161
        %v1163 = vpop.f32.mrb[0].mxu0
        %v1164 = vpop.f32.mrb[0].mxu0
        %v1165 = vadd.f32 0.0, %v1164
        %v1166 = vpop.f32.mrb[0].mxu0
        %1167 = vmatprep.mubr.bf16.mxu0 %v577
        %1168 = vmatmul.mubr.bf16.gmra.mrb[0].mxu0 %v742
        %v1169 = vpop.f32.mrb[0].mxu0
        %v1170 = vadd.f32 0.0, %v1169
        %v1171 = vpop.f32.mrb[0].mxu0
        %v1172 = vpop.f32.mrb[0].mxu0
        %v1173 = vadd.f32 0.0, %v1172
        %v1174 = vpop.f32.mrb[0].mxu0
        %1175 = vmatprep.mubr.bf16.mxu0 %v578
        %1176 = vmatmul.mubr.bf16.gmra.mrb[0].mxu0 %v743
        %v1177 = vpop.f32.mrb[0].mxu0
        %v1178 = vadd.f32 0.0, %v1177
        %v1179 = vpop.f32.mrb[0].mxu0
        %v1180 = vpop.f32.mrb[0].mxu0
        %v1181 = vadd.f32 0.0, %v1180
        %v1182 = vpop.f32.mrb[0].mxu0
        %1183 = vmatprep.mubr.bf16.mxu0 %v579
        %1184 = vmatmul.mubr.bf16.gmra.mrb[0].mxu0 %v744
        %v1185 = vpop.f32.mrb[0].mxu0
        %v1186 = vadd.f32 0.0, %v1185
        %v1187 = vpop.f32.mrb[0].mxu0
        %v1188 = vpop.f32.mrb[0].mxu0
        %v1189 = vadd.f32 0.0, %v1188
        %v1190 = vpop.f32.mrb[0].mxu0
        %1191 = vmatprep.mubr.bf16.mxu0 %v580
        %1192 = vmatmul.mubr.bf16.gmra.mrb[0].mxu0 %v745
        %v1193 = vpop.f32.mrb[0].mxu0
        %v1194 = vadd.f32 0.0, %v1193
        %v1195 = vpop.f32.mrb[0].mxu0
        %v1196 = vpop.f32.mrb[0].mxu0
        %v1197 = vadd.f32 0.0, %v1196
        %v1198 = vpop.f32.mrb[0].mxu0
        %1199 = vmatprep.mubr.bf16.mxu0 %v581
        %1200 = vmatmul.mubr.bf16.gmra.mrb[0].mxu0 %v746
        %v1201 = vpop.f32.mrb[0].mxu0
        %v1202 = vadd.f32 0.0, %v1201
        %v1203 = vpop.f32.mrb[0].mxu0
        %v1204 = vpop.f32.mrb[0].mxu0
        %v1205 = vadd.f32 0.0, %v1204
        %v1206 = vpop.f32.mrb[0].mxu0
        %1207 = vmatprep.mubr.bf16.mxu0 %v582
        %1208 = vmatmul.mubr.bf16.gmra.mrb[0].mxu0 %v747
        %v1209 = vpop.f32.mrb[0].mxu0
        %v1210 = vadd.f32 0.0, %v1209
        %v1211 = vpop.f32.mrb[0].mxu0
        %v1212 = vpop.f32.mrb[0].mxu0
        %v1213 = vadd.f32 0.0, %v1212
        %v1214 = vpop.f32.mrb[0].mxu0
        %1215 = vmatprep.mubr.bf16.mxu0 %v583
        %1216 = vmatmul.mubr.bf16.gmra.mrb[0].mxu0 %v748
        %v1217 = vpop.f32.mrb[0].mxu0
        %v1218 = vadd.f32 0.0, %v1217
        %v1219 = vpop.f32.mrb[0].mxu0
        %v1220 = vpop.f32.mrb[0].mxu0
        %v1221 = vadd.f32 0.0, %v1220
        %v1222 = vpop.f32.mrb[0].mxu0
        %1223 = vmatprep.mubr.bf16.mxu0 %v584
        %1224 = vmatmul.mubr.bf16.gmra.mrb[0].mxu0 %v749
        %v1225 = vpop.f32.mrb[0].mxu0
        %v1226 = vadd.f32 0.0, %v1225
        %v1227 = vpop.f32.mrb[0].mxu0
        %v1228 = vpop.f32.mrb[0].mxu0
        %v1229 = vadd.f32 0.0, %v1228
        %v1230 = vpop.f32.mrb[0].mxu0
        %1231 = vmatprep.mubr.bf16.mxu0 %v585
        %1232 = vmatmul.mubr.bf16.gmra.mrb[0].mxu0 %v750
        %v1233 = vpop.f32.mrb[0].mxu0
        %v1234 = vadd.f32 0.0, %v1233
        %v1235 = vpop.f32.mrb[0].mxu0
        %v1236 = vpop.f32.mrb[0].mxu0
        %v1237 = vadd.f32 0.0, %v1236
        %v1238 = vpop.f32.mrb[0].mxu0
        %1239 = vmatprep.mubr.bf16.mxu0 %v586
        %1240 = vmatmul.mubr.bf16.gmra.mrb[0].mxu0 %v751
        %v1241 = vpop.f32.mrb[0].mxu0
        %v1242 = vadd.f32 0.0, %v1241
        %v1243 = vpop.f32.mrb[0].mxu0
        %v1244 = vpop.f32.mrb[0].mxu0
        %v1245 = vadd.f32 0.0, %v1244
        %v1246 = vpop.f32.mrb[0].mxu0
        %1247 = vdwg.mxu0
        %1248 = vmatprep.subr.bf16.mxu0 0
        %1249 = vmatpush1.bf16.msra.mxu0 %v1055
        %1250 = vmatprep.subr.bf16.mxu0 0
        %1251 = vmatpush1.bf16.msra.mxu0 %v1056
        %1252 = vmatprep.subr.bf16.mxu0 0
        %1253 = vmatpush1.bf16.msra.mxu0 %v1057
        %1254 = vmatprep.subr.bf16.mxu0 0
        %1255 = vmatpush1.bf16.msra.mxu0 %v1058
        %1256 = vmatprep.subr.bf16.mxu0 0
        %1257 = vmatpush1.bf16.msra.mxu0 %v1059
        %1258 = vmatprep.subr.bf16.mxu0 0
        %1259 = vmatpush1.bf16.msra.mxu0 %v1060
        %1260 = vmatprep.subr.bf16.mxu0 0
        %1261 = vmatpush1.bf16.msra.mxu0 %v1061
        %1262 = vmatprep.subr.bf16.mxu0 0
        %1263 = vmatpush1.bf16.msra.mxu0 %v1062
        %1264 = vmatprep.subr.bf16.mxu0 0
        %1265 = vmatpush1.bf16.msra.mxu0 0
        %1266 = vmatprep.subr.bf16.mxu0 0
        %1267 = vmatpush1.bf16.msra.mxu0 0
        %1268 = vmatprep.subr.bf16.mxu0 0
        %1269 = vmatpush1.bf16.msra.mxu0 0
        %1270 = vmatprep.subr.bf16.mxu0 0
        %1271 = vmatpush1.bf16.msra.mxu0 0
        %1272 = vmatprep.subr.bf16.mxu0 0
        %1273 = vmatpush1.bf16.msra.mxu0 0
        %1274 = vmatprep.subr.bf16.mxu0 0
        %1275 = vmatpush1.bf16.msra.mxu0 0
        %1276 = vmatprep.subr.bf16.mxu0 0
        %1277 = vmatpush1.bf16.msra.mxu0 0
        %1278 = vmatprep.subr.bf16.mxu0 0
        %1279 = vmatpush1.bf16.msra.mxu0 0
        %1280 = vmatprep.mubr.bf16.mxu0 0
        %1281 = vmatmul.mubr.bf16.gmra.mrb[0].mxu0 %v811
        %v1282 = vpop.f32.mrb[0].mxu0
        %v1283 = vadd.f32 %v1122, %v1282
        %v1284 = vpop.f32.mrb[0].mxu0
        %v1285 = vpop.f32.mrb[0].mxu0
        %v1286 = vadd.f32 %v1125, %v1285
        %v1287 = vpop.f32.mrb[0].mxu0
        %1288 = vmatprep.mubr.bf16.mxu0 0
        %1289 = vmatmul.mubr.bf16.gmra.mrb[0].mxu0 %v812
        %v1290 = vpop.f32.mrb[0].mxu0
        %v1291 = vadd.f32 %v1130, %v1290
        %v1292 = vpop.f32.mrb[0].mxu0
        %v1293 = vpop.f32.mrb[0].mxu0
        %v1294 = vadd.f32 %v1133, %v1293
        %v1295 = vpop.f32.mrb[0].mxu0
        %1296 = vmatprep.mubr.bf16.mxu0 0
        %1297 = vmatmul.mubr.bf16.gmra.mrb[0].mxu0 %v813
        %v1298 = vpop.f32.mrb[0].mxu0
        %v1299 = vadd.f32 %v1138, %v1298
        %v1300 = vpop.f32.mrb[0].mxu0
        %v1301 = vpop.f32.mrb[0].mxu0
        %v1302 = vadd.f32 %v1141, %v1301
        %v1303 = vpop.f32.mrb[0].mxu0
        %1304 = vmatprep.mubr.bf16.mxu0 0
        %1305 = vmatmul.mubr.bf16.gmra.mrb[0].mxu0 %v814
        %v1306 = vpop.f32.mrb[0].mxu0
        %v1307 = vadd.f32 %v1146, %v1306
        %v1308 = vpop.f32.mrb[0].mxu0
        %v1309 = vpop.f32.mrb[0].mxu0
        %v1310 = vadd.f32 %v1149, %v1309
        %v1311 = vpop.f32.mrb[0].mxu0
        %1312 = vmatprep.mubr.bf16.mxu0 0
        %1313 = vmatmul.mubr.bf16.gmra.mrb[0].mxu0 %v815
        %v1314 = vpop.f32.mrb[0].mxu0
        %v1315 = vadd.f32 %v1154, %v1314
        %v1316 = vpop.f32.mrb[0].mxu0
        %v1317 = vpop.f32.mrb[0].mxu0
        %v1318 = vadd.f32 %v1157, %v1317
        %v1319 = vpop.f32.mrb[0].mxu0
        %1320 = vmatprep.mubr.bf16.mxu0 0
        %1321 = vmatmul.mubr.bf16.gmra.mrb[0].mxu0 %v816
        %v1322 = vpop.f32.mrb[0].mxu0
        %v1323 = vadd.f32 %v1162, %v1322
        %v1324 = vpop.f32.mrb[0].mxu0
        %v1325 = vpop.f32.mrb[0].mxu0
        %v1326 = vadd.f32 %v1165, %v1325
        %v1327 = vpop.f32.mrb[0].mxu0
        %1328 = vmatprep.mubr.bf16.mxu0 0
        %1329 = vmatmul.mubr.bf16.gmra.mrb[0].mxu0 %v817
        %v1330 = vpop.f32.mrb[0].mxu0
        %v1331 = vadd.f32 %v1170, %v1330
        %v1332 = vpop.f32.mrb[0].mxu0
        %v1333 = vpop.f32.mrb[0].mxu0
        %v1334 = vadd.f32 %v1173, %v1333
        %v1335 = vpop.f32.mrb[0].mxu0
        %1336 = vmatprep.mubr.bf16.mxu0 0
        %1337 = vmatmul.mubr.bf16.gmra.mrb[0].mxu0 %v818
        %v1338 = vpop.f32.mrb[0].mxu0
        %v1339 = vadd.f32 %v1178, %v1338
        %v1340 = vpop.f32.mrb[0].mxu0
        %v1341 = vpop.f32.mrb[0].mxu0
        %v1342 = vadd.f32 %v1181, %v1341
        %v1343 = vpop.f32.mrb[0].mxu0
        %1344 = vmatprep.mubr.bf16.mxu0 0
        %1345 = vmatmul.mubr.bf16.gmra.mrb[0].mxu0 %v819
        %v1346 = vpop.f32.mrb[0].mxu0
        %v1347 = vadd.f32 %v1186, %v1346
        %v1348 = vpop.f32.mrb[0].mxu0
        %v1349 = vpop.f32.mrb[0].mxu0
        %v1350 = vadd.f32 %v1189, %v1349
        %v1351 = vpop.f32.mrb[0].mxu0
        %1352 = vmatprep.mubr.bf16.mxu0 0
        %1353 = vmatmul.mubr.bf16.gmra.mrb[0].mxu0 %v820
        %v1354 = vpop.f32.mrb[0].mxu0
        %v1355 = vadd.f32 %v1194, %v1354
        %v1356 = vpop.f32.mrb[0].mxu0
        %v1357 = vpop.f32.mrb[0].mxu0
        %v1358 = vadd.f32 %v1197, %v1357
        %v1359 = vpop.f32.mrb[0].mxu0
        %1360 = vmatprep.mubr.bf16.mxu0 0
        %1361 = vmatmul.mubr.bf16.gmra.mrb[0].mxu0 %v821
        %v1362 = vpop.f32.mrb[0].mxu0
        %v1363 = vadd.f32 %v1202, %v1362
        %v1364 = vpop.f32.mrb[0].mxu0
        %v1365 = vpop.f32.mrb[0].mxu0
        %v1366 = vadd.f32 %v1205, %v1365
        %v1367 = vpop.f32.mrb[0].mxu0
        %1368 = vmatprep.mubr.bf16.mxu0 0
        %1369 = vmatmul.mubr.bf16.gmra.mrb[0].mxu0 %v822
        %v1370 = vpop.f32.mrb[0].mxu0
        %v1371 = vadd.f32 %v1210, %v1370
        %v1372 = vpop.f32.mrb[0].mxu0
        %v1373 = vpop.f32.mrb[0].mxu0
        %v1374 = vadd.f32 %v1213, %v1373
        %v1375 = vpop.f32.mrb[0].mxu0
        %1376 = vmatprep.mubr.bf16.mxu0 0
        %1377 = vmatmul.mubr.bf16.gmra.mrb[0].mxu0 %v823
        %v1378 = vpop.f32.mrb[0].mxu0
        %v1379 = vadd.f32 %v1218, %v1378
        %v1380 = vpop.f32.mrb[0].mxu0
        %v1381 = vpop.f32.mrb[0].mxu0
        %v1382 = vadd.f32 %v1221, %v1381
        %v1383 = vpop.f32.mrb[0].mxu0
        %1384 = vmatprep.mubr.bf16.mxu0 0
        %1385 = vmatmul.mubr.bf16.gmra.mrb[0].mxu0 %v824
        %v1386 = vpop.f32.mrb[0].mxu0
        %v1387 = vadd.f32 %v1226, %v1386
        %v1388 = vpop.f32.mrb[0].mxu0
        %v1389 = vpop.f32.mrb[0].mxu0
        %v1390 = vadd.f32 %v1229, %v1389
        %v1391 = vpop.f32.mrb[0].mxu0
        %1392 = vmatprep.mubr.bf16.mxu0 0
        %1393 = vmatmul.mubr.bf16.gmra.mrb[0].mxu0 %v825
        %v1394 = vpop.f32.mrb[0].mxu0
        %v1395 = vadd.f32 %v1234, %v1394
        %v1396 = vpop.f32.mrb[0].mxu0
        %v1397 = vpop.f32.mrb[0].mxu0
        %v1398 = vadd.f32 %v1237, %v1397
        %v1399 = vpop.f32.mrb[0].mxu0
        %1400 = vmatprep.mubr.bf16.mxu0 0
        %1401 = vmatmul.mubr.bf16.gmra.mrb[0].mxu0 %v826
        %v1402 = vpop.f32.mrb[0].mxu0
        %v1403 = vadd.f32 %v1242, %v1402
        %v1404 = vpop.f32.mrb[0].mxu0
        %v1405 = vpop.f32.mrb[0].mxu0
        %v1406 = vadd.f32 %v1245, %v1405
        %v1407 = vpop.f32.mrb[0].mxu0
        %1408 = vdwg.mxu0
        %v1457 = vunpack.c.l.b16 %v846
        %v1458 = vunpack.c.l.b16 %v847
        %v1459 = vunpack.c.l.b16 %v848
        %v1460 = vunpack.c.l.b16 %v849
        %v1461 = vunpack.c.l.b16 %v850
        %v1462 = vunpack.c.l.b16 %v851
        %v1463 = vunpack.c.l.b16 %v852
        %v1464 = vunpack.c.l.b16 %v853
        %v1465 = vunpack.c.l.b16 %v854
        %v1466 = vunpack.c.l.b16 %v855
        %v1467 = vunpack.c.l.b16 %v856
        %v1468 = vunpack.c.l.b16 %v857
        %v1469 = vunpack.c.l.b16 %v858
        %v1470 = vunpack.c.l.b16 %v859
        %v1471 = vunpack.c.l.b16 %v860
        %v1472 = vunpack.c.l.b16 %v861
        %v1473 = vunpack.c.l.b16 %v862
        %v1474 = vunpack.c.l.b16 %v863
        %v1475 = vunpack.c.l.b16 %v864
        %v1476 = vunpack.c.l.b16 %v865
        %v1477 = vunpack.c.l.b16 %v866
        %v1478 = vunpack.c.l.b16 %v867
        %v1479 = vunpack.c.l.b16 %v868
        %v1480 = vunpack.c.l.b16 %v869
        %v1481 = vunpack.c.l.b16 %v870
        %v1482 = vunpack.c.l.b16 %v871
        %v1483 = vunpack.c.l.b16 %v872
        %v1484 = vunpack.c.l.b16 %v873
        %v1485 = vunpack.c.l.b16 %v874
        %v1486 = vunpack.c.l.b16 %v875
        %v1487 = vunpack.c.l.b16 %v876
        %v1488 = vunpack.c.l.b16 %v877
        %v1489 = vunpack.c.l.b16 %v878
        %v1490 = vunpack.c.l.b16 %v879
        %v1491 = vunpack.c.l.b16 %v880
        %v1492 = vunpack.c.l.b16 %v881
        %v1493 = vunpack.c.l.b16 %v882
        %v1494 = vunpack.c.l.b16 %v883
        %v1495 = vunpack.c.l.b16 %v884
        %v1496 = vunpack.c.l.b16 %v885
        %v1497 = vunpack.c.l.b16 %v886
        %v1498 = vunpack.c.l.b16 %v887
        %v1499 = vunpack.c.l.b16 %v888
        %v1500 = vunpack.c.l.b16 %v889
        %v1501 = vunpack.c.l.b16 %v890
        %v1502 = vunpack.c.l.b16 %v891
        %v1503 = vunpack.c.l.b16 %v892
        %v1504 = vunpack.c.l.b16 %v893
        %v1505 = vpack.c.b16 %v1458, %v1457
        %v1506 = vpack.c.b16 %v1460, %v1459
        %v1507 = vpack.c.b16 %v1462, %v1461
        %v1508 = vpack.c.b16 %v1464, %v1463
        %v1509 = vpack.c.b16 %v1466, %v1465
        %v1510 = vpack.c.b16 %v1468, %v1467
        %v1511 = vpack.c.b16 %v1470, %v1469
        %v1512 = vpack.c.b16 %v1472, %v1471
        %v1513 = vpack.c.b16 %v1474, %v1473
        %v1514 = vpack.c.b16 %v1476, %v1475
        %v1515 = vpack.c.b16 %v1478, %v1477
        %v1516 = vpack.c.b16 %v1480, %v1479
        %v1517 = vpack.c.b16 %v1482, %v1481
        %v1518 = vpack.c.b16 %v1484, %v1483
        %v1519 = vpack.c.b16 %v1486, %v1485
        %v1520 = vpack.c.b16 %v1488, %v1487
        %v1521 = vpack.c.b16 %v1490, %v1489
        %v1522 = vpack.c.b16 %v1492, %v1491
        %v1523 = vpack.c.b16 %v1494, %v1493
        %v1524 = vpack.c.b16 %v1496, %v1495
        %v1525 = vpack.c.b16 %v1498, %v1497
        %v1526 = vpack.c.b16 %v1500, %v1499
        %v1527 = vpack.c.b16 %v1502, %v1501
        %v1528 = vpack.c.b16 %v1504, %v1503
        %1553 = vmatprep.subr.bf16.mxu0 0
        %1554 = vmatpush1.bf16.msra.mxu0 %v1505
        %1555 = vmatprep.subr.bf16.mxu0 0
        %1556 = vmatpush1.bf16.msra.mxu0 %v1506
        %1557 = vmatprep.subr.bf16.mxu0 0
        %1558 = vmatpush1.bf16.msra.mxu0 %v1507
        %1559 = vmatprep.subr.bf16.mxu0 0
        %1560 = vmatpush1.bf16.msra.mxu0 %v1508
        %1561 = vmatprep.subr.bf16.mxu0 0
        %1562 = vmatpush1.bf16.msra.mxu0 %v1509
        %1563 = vmatprep.subr.bf16.mxu0 0
        %1564 = vmatpush1.bf16.msra.mxu0 %v1510
        %1565 = vmatprep.subr.bf16.mxu0 0
        %1566 = vmatpush1.bf16.msra.mxu0 %v1511
        %1567 = vmatprep.subr.bf16.mxu0 0
        %1568 = vmatpush1.bf16.msra.mxu0 %v1512
        %1569 = vmatprep.subr.bf16.mxu0 0
        %1570 = vmatpush1.bf16.msra.mxu0 %v1513
        %1571 = vmatprep.subr.bf16.mxu0 0
        %1572 = vmatpush1.bf16.msra.mxu0 %v1514
        %1573 = vmatprep.subr.bf16.mxu0 0
        %1574 = vmatpush1.bf16.msra.mxu0 %v1515
        %1575 = vmatprep.subr.bf16.mxu0 0
        %1576 = vmatpush1.bf16.msra.mxu0 %v1516
        %1577 = vmatprep.subr.bf16.mxu0 0
        %1578 = vmatpush1.bf16.msra.mxu0 %v1517
        %1579 = vmatprep.subr.bf16.mxu0 0
        %1580 = vmatpush1.bf16.msra.mxu0 %v1518
        %1581 = vmatprep.subr.bf16.mxu0 0
        %1582 = vmatpush1.bf16.msra.mxu0 %v1519
        %1583 = vmatprep.subr.bf16.mxu0 0
        %1584 = vmatpush1.bf16.msra.mxu0 %v1520
        %1585 = vmatprep.mubr.bf16.mxu0 %v570
        %1586 = vmatmul.mubr.bf16.gmra.mrb[0].mxu0 %v735
        %v1587 = vpop.f32.mrb[0].mxu0
        %v1588 = vadd.f32 %v1283, %v1587
        %v1589 = vpop.f32.mrb[0].mxu0
        %v1590 = vpop.f32.mrb[0].mxu0
        %v1591 = vadd.f32 %v1286, %v1590
        %v1592 = vpop.f32.mrb[0].mxu0
        %1593 = vmatprep.mubr.bf16.mxu0 %v571
        %1594 = vmatmul.mubr.bf16.gmra.mrb[0].mxu0 %v736
        %v1595 = vpop.f32.mrb[0].mxu0
        %v1596 = vadd.f32 %v1291, %v1595
        %v1597 = vpop.f32.mrb[0].mxu0
        %v1598 = vpop.f32.mrb[0].mxu0
        %v1599 = vadd.f32 %v1294, %v1598
        %v1600 = vpop.f32.mrb[0].mxu0
        %1601 = vmatprep.mubr.bf16.mxu0 %v572
        %1602 = vmatmul.mubr.bf16.gmra.mrb[0].mxu0 %v737
        %v1603 = vpop.f32.mrb[0].mxu0
        %v1604 = vadd.f32 %v1299, %v1603
        %v1605 = vpop.f32.mrb[0].mxu0
        %v1606 = vpop.f32.mrb[0].mxu0
        %v1607 = vadd.f32 %v1302, %v1606
        %v1608 = vpop.f32.mrb[0].mxu0
        %1609 = vmatprep.mubr.bf16.mxu0 %v573
        %1610 = vmatmul.mubr.bf16.gmra.mrb[0].mxu0 %v738
        %v1611 = vpop.f32.mrb[0].mxu0
        %v1612 = vadd.f32 %v1307, %v1611
        %v1613 = vpop.f32.mrb[0].mxu0
        %v1614 = vpop.f32.mrb[0].mxu0
        %v1615 = vadd.f32 %v1310, %v1614
        %v1616 = vpop.f32.mrb[0].mxu0
        %1617 = vmatprep.mubr.bf16.mxu0 %v574
        %1618 = vmatmul.mubr.bf16.gmra.mrb[0].mxu0 %v739
        %v1619 = vpop.f32.mrb[0].mxu0
        %v1620 = vadd.f32 %v1315, %v1619
        %v1621 = vpop.f32.mrb[0].mxu0
        %v1622 = vpop.f32.mrb[0].mxu0
        %v1623 = vadd.f32 %v1318, %v1622
        %v1624 = vpop.f32.mrb[0].mxu0
        %1625 = vmatprep.mubr.bf16.mxu0 %v575
        %1626 = vmatmul.mubr.bf16.gmra.mrb[0].mxu0 %v740
        %v1627 = vpop.f32.mrb[0].mxu0
        %v1628 = vadd.f32 %v1323, %v1627
        %v1629 = vpop.f32.mrb[0].mxu0
        %v1630 = vpop.f32.mrb[0].mxu0
        %v1631 = vadd.f32 %v1326, %v1630
        %v1632 = vpop.f32.mrb[0].mxu0
        %1633 = vmatprep.mubr.bf16.mxu0 %v576
        %1634 = vmatmul.mubr.bf16.gmra.mrb[0].mxu0 %v741
        %v1635 = vpop.f32.mrb[0].mxu0
        %v1636 = vadd.f32 %v1331, %v1635
        %v1637 = vpop.f32.mrb[0].mxu0
        %v1638 = vpop.f32.mrb[0].mxu0
        %v1639 = vadd.f32 %v1334, %v1638
        %v1640 = vpop.f32.mrb[0].mxu0
        %1641 = vmatprep.mubr.bf16.mxu0 %v577
        %1642 = vmatmul.mubr.bf16.gmra.mrb[0].mxu0 %v742
        %v1643 = vpop.f32.mrb[0].mxu0
        %v1644 = vadd.f32 %v1339, %v1643
        %v1645 = vpop.f32.mrb[0].mxu0
        %v1646 = vpop.f32.mrb[0].mxu0
        %v1647 = vadd.f32 %v1342, %v1646
        %v1648 = vpop.f32.mrb[0].mxu0
        %1649 = vmatprep.mubr.bf16.mxu0 %v578
        %1650 = vmatmul.mubr.bf16.gmra.mrb[0].mxu0 %v743
        %v1651 = vpop.f32.mrb[0].mxu0
        %v1652 = vadd.f32 %v1347, %v1651
        %v1653 = vpop.f32.mrb[0].mxu0
        %v1654 = vpop.f32.mrb[0].mxu0
        %v1655 = vadd.f32 %v1350, %v1654
        %v1656 = vpop.f32.mrb[0].mxu0
        %1657 = vmatprep.mubr.bf16.mxu0 %v579
        %1658 = vmatmul.mubr.bf16.gmra.mrb[0].mxu0 %v744
        %v1659 = vpop.f32.mrb[0].mxu0
        %v1660 = vadd.f32 %v1355, %v1659
        %v1661 = vpop.f32.mrb[0].mxu0
        %v1662 = vpop.f32.mrb[0].mxu0
        %v1663 = vadd.f32 %v1358, %v1662
        %v1664 = vpop.f32.mrb[0].mxu0
        %1665 = vmatprep.mubr.bf16.mxu0 %v580
        %1666 = vmatmul.mubr.bf16.gmra.mrb[0].mxu0 %v745
        %v1667 = vpop.f32.mrb[0].mxu0
        %v1668 = vadd.f32 %v1363, %v1667
        %v1669 = vpop.f32.mrb[0].mxu0
        %v1670 = vpop.f32.mrb[0].mxu0
        %v1671 = vadd.f32 %v1366, %v1670
        %v1672 = vpop.f32.mrb[0].mxu0
        %1673 = vmatprep.mubr.bf16.mxu0 %v581
        %1674 = vmatmul.mubr.bf16.gmra.mrb[0].mxu0 %v746
        %v1675 = vpop.f32.mrb[0].mxu0
        %v1676 = vadd.f32 %v1371, %v1675
        %v1677 = vpop.f32.mrb[0].mxu0
        %v1678 = vpop.f32.mrb[0].mxu0
        %v1679 = vadd.f32 %v1374, %v1678
        %v1680 = vpop.f32.mrb[0].mxu0
        %1681 = vmatprep.mubr.bf16.mxu0 %v582
        %1682 = vmatmul.mubr.bf16.gmra.mrb[0].mxu0 %v747
        %v1683 = vpop.f32.mrb[0].mxu0
        %v1684 = vadd.f32 %v1379, %v1683
        %v1685 = vpop.f32.mrb[0].mxu0
        %v1686 = vpop.f32.mrb[0].mxu0
        %v1687 = vadd.f32 %v1382, %v1686
        %v1688 = vpop.f32.mrb[0].mxu0
        %1689 = vmatprep.mubr.bf16.mxu0 %v583
        %1690 = vmatmul.mubr.bf16.gmra.mrb[0].mxu0 %v748
        %v1691 = vpop.f32.mrb[0].mxu0
        %v1692 = vadd.f32 %v1387, %v1691
        %v1693 = vpop.f32.mrb[0].mxu0
        %v1694 = vpop.f32.mrb[0].mxu0
        %v1695 = vadd.f32 %v1390, %v1694
        %v1696 = vpop.f32.mrb[0].mxu0
        %1697 = vmatprep.mubr.bf16.mxu0 %v584
        %1698 = vmatmul.mubr.bf16.gmra.mrb[0].mxu0 %v749
        %v1699 = vpop.f32.mrb[0].mxu0
        %v1700 = vadd.f32 %v1395, %v1699
        %v1701 = vpop.f32.mrb[0].mxu0
        %v1702 = vpop.f32.mrb[0].mxu0
        %v1703 = vadd.f32 %v1398, %v1702
        %v1704 = vpop.f32.mrb[0].mxu0
        %1705 = vmatprep.mubr.bf16.mxu0 %v585
        %1706 = vmatmul.mubr.bf16.gmra.mrb[0].mxu0 %v750
        %v1707 = vpop.f32.mrb[0].mxu0
        %v1708 = vadd.f32 %v1403, %v1707
        %v1709 = vpop.f32.mrb[0].mxu0
        %v1710 = vpop.f32.mrb[0].mxu0
        %v1711 = vadd.f32 %v1406, %v1710
        %v1712 = vpop.f32.mrb[0].mxu0
        %1713 = vdwg.mxu0
        %1714 = vmatprep.subr.bf16.mxu0 0
        %1715 = vmatpush1.bf16.msra.mxu0 %v1521
        %1716 = vmatprep.subr.bf16.mxu0 0
        %1717 = vmatpush1.bf16.msra.mxu0 %v1522
        %1718 = vmatprep.subr.bf16.mxu0 0
        %1719 = vmatpush1.bf16.msra.mxu0 %v1523
        %1720 = vmatprep.subr.bf16.mxu0 0
        %1721 = vmatpush1.bf16.msra.mxu0 %v1524
        %1722 = vmatprep.subr.bf16.mxu0 0
        %1723 = vmatpush1.bf16.msra.mxu0 %v1525
        %1724 = vmatprep.subr.bf16.mxu0 0
        %1725 = vmatpush1.bf16.msra.mxu0 %v1526
        %1726 = vmatprep.subr.bf16.mxu0 0
        %1727 = vmatpush1.bf16.msra.mxu0 %v1527
        %1728 = vmatprep.subr.bf16.mxu0 0
        %1729 = vmatpush1.bf16.msra.mxu0 %v1528
        %1730 = vmatprep.subr.bf16.mxu0 0
        %1731 = vmatpush1.bf16.msra.mxu0 0
        %1732 = vmatprep.subr.bf16.mxu0 0
        %1733 = vmatpush1.bf16.msra.mxu0 0
        %1734 = vmatprep.subr.bf16.mxu0 0
        %1735 = vmatpush1.bf16.msra.mxu0 0
        %1736 = vmatprep.subr.bf16.mxu0 0
        %1737 = vmatpush1.bf16.msra.mxu0 0
        %1738 = vmatprep.subr.bf16.mxu0 0
        %1739 = vmatpush1.bf16.msra.mxu0 0
        %1740 = vmatprep.subr.bf16.mxu0 0
        %1741 = vmatpush1.bf16.msra.mxu0 0
        %1742 = vmatprep.subr.bf16.mxu0 0
        %1743 = vmatpush1.bf16.msra.mxu0 0
        %1744 = vmatprep.subr.bf16.mxu0 0
        %1745 = vmatpush1.bf16.msra.mxu0 0
        %1746 = vmatprep.mubr.bf16.mxu0 0
        %1747 = vmatmul.mubr.bf16.gmra.mrb[0].mxu0 %v810
        %v1748 = vpop.f32.mrb[0].mxu0
        %v1749 = vadd.f32 %v1588, %v1748
        %v1750 = vpop.f32.mrb[0].mxu0
        %v1751 = vpop.f32.mrb[0].mxu0
        %v1752 = vadd.f32 %v1591, %v1751
        %v1753 = vpop.f32.mrb[0].mxu0
        %1754 = vmatprep.mubr.bf16.mxu0 0
        %1755 = vmatmul.mubr.bf16.gmra.mrb[0].mxu0 %v811
        %v1756 = vpop.f32.mrb[0].mxu0
        %v1757 = vadd.f32 %v1596, %v1756
        %v1758 = vpop.f32.mrb[0].mxu0
        %v1759 = vpop.f32.mrb[0].mxu0
        %v1760 = vadd.f32 %v1599, %v1759
        %v1761 = vpop.f32.mrb[0].mxu0
        %1762 = vmatprep.mubr.bf16.mxu0 0
        %1763 = vmatmul.mubr.bf16.gmra.mrb[0].mxu0 %v812
        %v1764 = vpop.f32.mrb[0].mxu0
        %v1765 = vadd.f32 %v1604, %v1764
        %v1766 = vpop.f32.mrb[0].mxu0
        %v1767 = vpop.f32.mrb[0].mxu0
        %v1768 = vadd.f32 %v1607, %v1767
        %v1769 = vpop.f32.mrb[0].mxu0
        %1770 = vmatprep.mubr.bf16.mxu0 0
        %1771 = vmatmul.mubr.bf16.gmra.mrb[0].mxu0 %v813
        %v1772 = vpop.f32.mrb[0].mxu0
        %v1773 = vadd.f32 %v1612, %v1772
        %v1774 = vpop.f32.mrb[0].mxu0
        %v1775 = vpop.f32.mrb[0].mxu0
        %v1776 = vadd.f32 %v1615, %v1775
        %v1777 = vpop.f32.mrb[0].mxu0
        %1778 = vmatprep.mubr.bf16.mxu0 0
        %1779 = vmatmul.mubr.bf16.gmra.mrb[0].mxu0 %v814
        %v1780 = vpop.f32.mrb[0].mxu0
        %v1781 = vadd.f32 %v1620, %v1780
        %v1782 = vpop.f32.mrb[0].mxu0
        %v1783 = vpop.f32.mrb[0].mxu0
        %v1784 = vadd.f32 %v1623, %v1783
        %v1785 = vpop.f32.mrb[0].mxu0
        %1786 = vmatprep.mubr.bf16.mxu0 0
        %1787 = vmatmul.mubr.bf16.gmra.mrb[0].mxu0 %v815
        %v1788 = vpop.f32.mrb[0].mxu0
        %v1789 = vadd.f32 %v1628, %v1788
        %v1790 = vpop.f32.mrb[0].mxu0
        %v1791 = vpop.f32.mrb[0].mxu0
        %v1792 = vadd.f32 %v1631, %v1791
        %v1793 = vpop.f32.mrb[0].mxu0
        %1794 = vmatprep.mubr.bf16.mxu0 0
        %1795 = vmatmul.mubr.bf16.gmra.mrb[0].mxu0 %v816
        %v1796 = vpop.f32.mrb[0].mxu0
        %v1797 = vadd.f32 %v1636, %v1796
        %v1798 = vpop.f32.mrb[0].mxu0
        %v1799 = vpop.f32.mrb[0].mxu0
        %v1800 = vadd.f32 %v1639, %v1799
        %v1801 = vpop.f32.mrb[0].mxu0
        %1802 = vmatprep.mubr.bf16.mxu0 0
        %1803 = vmatmul.mubr.bf16.gmra.mrb[0].mxu0 %v817
        %v1804 = vpop.f32.mrb[0].mxu0
        %v1805 = vadd.f32 %v1644, %v1804
        %v1806 = vpop.f32.mrb[0].mxu0
        %v1807 = vpop.f32.mrb[0].mxu0
        %v1808 = vadd.f32 %v1647, %v1807
        %v1809 = vpop.f32.mrb[0].mxu0
        %1810 = vmatprep.mubr.bf16.mxu0 0
        %1811 = vmatmul.mubr.bf16.gmra.mrb[0].mxu0 %v818
        %v1812 = vpop.f32.mrb[0].mxu0
        %v1813 = vadd.f32 %v1652, %v1812
        %v1814 = vpop.f32.mrb[0].mxu0
        %v1815 = vpop.f32.mrb[0].mxu0
        %v1816 = vadd.f32 %v1655, %v1815
        %v1817 = vpop.f32.mrb[0].mxu0
        %1818 = vmatprep.mubr.bf16.mxu0 0
        %1819 = vmatmul.mubr.bf16.gmra.mrb[0].mxu0 %v819
        %v1820 = vpop.f32.mrb[0].mxu0
        %v1821 = vadd.f32 %v1660, %v1820
        %v1822 = vpop.f32.mrb[0].mxu0
        %v1823 = vpop.f32.mrb[0].mxu0
        %v1824 = vadd.f32 %v1663, %v1823
        %v1825 = vpop.f32.mrb[0].mxu0
        %1826 = vmatprep.mubr.bf16.mxu0 0
        %1827 = vmatmul.mubr.bf16.gmra.mrb[0].mxu0 %v820
        %v1828 = vpop.f32.mrb[0].mxu0
        %v1829 = vadd.f32 %v1668, %v1828
        %v1830 = vpop.f32.mrb[0].mxu0
        %v1831 = vpop.f32.mrb[0].mxu0
        %v1832 = vadd.f32 %v1671, %v1831
        %v1833 = vpop.f32.mrb[0].mxu0
        %1834 = vmatprep.mubr.bf16.mxu0 0
        %1835 = vmatmul.mubr.bf16.gmra.mrb[0].mxu0 %v821
        %v1836 = vpop.f32.mrb[0].mxu0
        %v1837 = vadd.f32 %v1676, %v1836
        %v1838 = vpop.f32.mrb[0].mxu0
        %v1839 = vpop.f32.mrb[0].mxu0
        %v1840 = vadd.f32 %v1679, %v1839
        %v1841 = vpop.f32.mrb[0].mxu0
        %1842 = vmatprep.mubr.bf16.mxu0 0
        %1843 = vmatmul.mubr.bf16.gmra.mrb[0].mxu0 %v822
        %v1844 = vpop.f32.mrb[0].mxu0
        %v1845 = vadd.f32 %v1684, %v1844
        %v1846 = vpop.f32.mrb[0].mxu0
        %v1847 = vpop.f32.mrb[0].mxu0
        %v1848 = vadd.f32 %v1687, %v1847
        %v1849 = vpop.f32.mrb[0].mxu0
        %1850 = vmatprep.mubr.bf16.mxu0 0
        %1851 = vmatmul.mubr.bf16.gmra.mrb[0].mxu0 %v823
        %v1852 = vpop.f32.mrb[0].mxu0
        %v1853 = vadd.f32 %v1692, %v1852
        %v1854 = vpop.f32.mrb[0].mxu0
        %v1855 = vpop.f32.mrb[0].mxu0
        %v1856 = vadd.f32 %v1695, %v1855
        %v1857 = vpop.f32.mrb[0].mxu0
        %1858 = vmatprep.mubr.bf16.mxu0 0
        %1859 = vmatmul.mubr.bf16.gmra.mrb[0].mxu0 %v824
        %v1860 = vpop.f32.mrb[0].mxu0
        %v1861 = vadd.f32 %v1700, %v1860
        %v1862 = vpop.f32.mrb[0].mxu0
        %v1863 = vpop.f32.mrb[0].mxu0
        %v1864 = vadd.f32 %v1703, %v1863
        %v1865 = vpop.f32.mrb[0].mxu0
        %1866 = vmatprep.mubr.bf16.mxu0 0
        %1867 = vmatmul.mubr.bf16.gmra.mrb[0].mxu0 %v825
        %v1868 = vpop.f32.mrb[0].mxu0
        %v1869 = vadd.f32 %v1708, %v1868
        %v1870 = vpop.f32.mrb[0].mxu0
        %v1871 = vpop.f32.mrb[0].mxu0
        %v1872 = vadd.f32 %v1711, %v1871
        %v1873 = vpop.f32.mrb[0].mxu0
        %1874 = vdwg.mxu0
        %s1875 = scalar_lea.vmem [#allocation7], 384
        %v1876 = vld [vmem:[%s1875] sm:$0xf]
        %v1877 = vld [vmem:[%s1875 + $0x4] sm:$0xf]
        %v1878 = vld [vmem:[%s1875 + $0x8] sm:$0xf]
        %v1879 = vld [vmem:[%s1875 + $0xc] sm:$0xf]
        %v1880 = vld [vmem:[%s1875 + $0x10] sm:$0xf]
        %v1881 = vld [vmem:[%s1875 + $0x14] sm:$0xf]
        %v1882 = vld [vmem:[%s1875 + $0x18] sm:$0xf]
        %v1883 = vld [vmem:[%s1875 + $0x1c] sm:$0xf]
        %v1884 = vld [vmem:[%s1875 + $0x20] sm:$0xf]
        %v1885 = vld [vmem:[%s1875 + $0x24] sm:$0xf]
        %v1886 = vld [vmem:[%s1875 + $0x28] sm:$0xf]
        %v1887 = vld [vmem:[%s1875 + $0x2c] sm:$0xf]
        %v1888 = vld [vmem:[%s1875 + $0x30] sm:$0xf]
        %v1889 = vld [vmem:[%s1875 + $0x34] sm:$0xf]
        %v1890 = vld [vmem:[%s1875 + $0x38] sm:$0xf]
        %v1891 = vld [vmem:[%s1875 + $0x3c] sm:$0xf]
        %v1892 = vld [vmem:[%s1875 + $0x40] sm:$0xf]
        %v1893 = vld [vmem:[%s1875 + $0x44] sm:$0xf]
        %v1894 = vld [vmem:[%s1875 + $0x48] sm:$0xf]
        %v1895 = vld [vmem:[%s1875 + $0x4c] sm:$0xf]
        %v1896 = vld [vmem:[%s1875 + $0x50] sm:$0xf]
        %v1897 = vld [vmem:[%s1875 + $0x54] sm:$0xf]
        %v1898 = vld [vmem:[%s1875 + $0x58] sm:$0xf]
        %v1899 = vld [vmem:[%s1875 + $0x5c] sm:$0xf]
        %v1900 = vld [vmem:[%s1875 + $0x60] sm:$0xf]
        %v1901 = vld [vmem:[%s1875 + $0x64] sm:$0xf]
        %v1902 = vld [vmem:[%s1875 + $0x68] sm:$0xf]
        %v1903 = vld [vmem:[%s1875 + $0x6c] sm:$0xf]
        %v1904 = vld [vmem:[%s1875 + $0x70] sm:$0xf]
        %v1905 = vld [vmem:[%s1875 + $0x74] sm:$0xf]
        %v1906 = vld [vmem:[%s1875 + $0x78] sm:$0xf]
        %v1907 = vld [vmem:[%s1875 + $0x7c] sm:$0xf]
        %v1908 = vld [vmem:[%s1875 + $0x80] sm:$0xf]
        %v1909 = vld [vmem:[%s1875 + $0x84] sm:$0xf]
        %v1910 = vld [vmem:[%s1875 + $0x88] sm:$0xf]
        %v1911 = vld [vmem:[%s1875 + $0x8c] sm:$0xf]
        %v1912 = vld [vmem:[%s1875 + $0x90] sm:$0xf]
        %v1913 = vld [vmem:[%s1875 + $0x94] sm:$0xf]
        %v1914 = vld [vmem:[%s1875 + $0x98] sm:$0xf]
        %v1915 = vld [vmem:[%s1875 + $0x9c] sm:$0xf]
        %v1916 = vld [vmem:[%s1875 + $0xa0] sm:$0xf]
        %v1917 = vld [vmem:[%s1875 + $0xa4] sm:$0xf]
        %v1918 = vld [vmem:[%s1875 + $0xa8] sm:$0xf]
        %v1919 = vld [vmem:[%s1875 + $0xac] sm:$0xf]
        %v1920 = vld [vmem:[%s1875 + $0xb0] sm:$0xf]
        %v1921 = vld [vmem:[%s1875 + $0xb4] sm:$0xf]
        %v1922 = vld [vmem:[%s1875 + $0xb8] sm:$0xf]
        %v1923 = vld [vmem:[%s1875 + $0xbc] sm:$0xf]
        %v1972 = vunpack.c.l.b16 %v1876
        %v1973 = vunpack.c.l.b16 %v1877
        %v1974 = vunpack.c.l.b16 %v1878
        %v1975 = vunpack.c.l.b16 %v1879
        %v1976 = vunpack.c.l.b16 %v1880
        %v1977 = vunpack.c.l.b16 %v1881
        %v1978 = vunpack.c.l.b16 %v1882
        %v1979 = vunpack.c.l.b16 %v1883
        %v1980 = vunpack.c.l.b16 %v1884
        %v1981 = vunpack.c.l.b16 %v1885
        %v1982 = vunpack.c.l.b16 %v1886
        %v1983 = vunpack.c.l.b16 %v1887
        %v1984 = vunpack.c.l.b16 %v1888
        %v1985 = vunpack.c.l.b16 %v1889
        %v1986 = vunpack.c.l.b16 %v1890
        %v1987 = vunpack.c.l.b16 %v1891
        %v1988 = vunpack.c.l.b16 %v1892
        %v1989 = vunpack.c.l.b16 %v1893
        %v1990 = vunpack.c.l.b16 %v1894
        %v1991 = vunpack.c.l.b16 %v1895
        %v1992 = vunpack.c.l.b16 %v1896
        %v1993 = vunpack.c.l.b16 %v1897
        %v1994 = vunpack.c.l.b16 %v1898
        %v1995 = vunpack.c.l.b16 %v1899
        %v1996 = vunpack.c.l.b16 %v1900
        %v1997 = vunpack.c.l.b16 %v1901
        %v1998 = vunpack.c.l.b16 %v1902
        %v1999 = vunpack.c.l.b16 %v1903
        %v2000 = vunpack.c.l.b16 %v1904
        %v2001 = vunpack.c.l.b16 %v1905
        %v2002 = vunpack.c.l.b16 %v1906
        %v2003 = vunpack.c.l.b16 %v1907
        %v2004 = vunpack.c.l.b16 %v1908
        %v2005 = vunpack.c.l.b16 %v1909
        %v2006 = vunpack.c.l.b16 %v1910
        %v2007 = vunpack.c.l.b16 %v1911
        %v2008 = vunpack.c.l.b16 %v1912
        %v2009 = vunpack.c.l.b16 %v1913
        %v2010 = vunpack.c.l.b16 %v1914
        %v2011 = vunpack.c.l.b16 %v1915
        %v2012 = vunpack.c.l.b16 %v1916
        %v2013 = vunpack.c.l.b16 %v1917
        %v2014 = vunpack.c.l.b16 %v1918
        %v2015 = vunpack.c.l.b16 %v1919
        %v2016 = vunpack.c.l.b16 %v1920
        %v2017 = vunpack.c.l.b16 %v1921
        %v2018 = vunpack.c.l.b16 %v1922
        %v2019 = vunpack.c.l.b16 %v1923
        %v2020 = vpack.c.b16 %v1973, %v1972
        %v2021 = vpack.c.b16 %v1975, %v1974
        %v2022 = vpack.c.b16 %v1977, %v1976
        %v2023 = vpack.c.b16 %v1979, %v1978
        %v2024 = vpack.c.b16 %v1981, %v1980
        %v2025 = vpack.c.b16 %v1983, %v1982
        %v2026 = vpack.c.b16 %v1985, %v1984
        %v2027 = vpack.c.b16 %v1987, %v1986
        %v2028 = vpack.c.b16 %v1989, %v1988
        %v2029 = vpack.c.b16 %v1991, %v1990
        %v2030 = vpack.c.b16 %v1993, %v1992
        %v2031 = vpack.c.b16 %v1995, %v1994
        %v2032 = vpack.c.b16 %v1997, %v1996
        %v2033 = vpack.c.b16 %v1999, %v1998
        %v2034 = vpack.c.b16 %v2001, %v2000
        %v2035 = vpack.c.b16 %v2003, %v2002
        %v2036 = vpack.c.b16 %v2005, %v2004
        %v2037 = vpack.c.b16 %v2007, %v2006
        %v2038 = vpack.c.b16 %v2009, %v2008
        %v2039 = vpack.c.b16 %v2011, %v2010
        %v2040 = vpack.c.b16 %v2013, %v2012
        %v2041 = vpack.c.b16 %v2015, %v2014
        %v2042 = vpack.c.b16 %v2017, %v2016
        %v2043 = vpack.c.b16 %v2019, %v2018
        %2068 = vmatprep.subr.bf16.mxu0 0
        %2069 = vmatpush1.bf16.msra.mxu0 %v2020
        %2070 = vmatprep.subr.bf16.mxu0 0
        %2071 = vmatpush1.bf16.msra.mxu0 %v2021
        %2072 = vmatprep.subr.bf16.mxu0 0
        %2073 = vmatpush1.bf16.msra.mxu0 %v2022
        %2074 = vmatprep.subr.bf16.mxu0 0
        %2075 = vmatpush1.bf16.msra.mxu0 %v2023
        %2076 = vmatprep.subr.bf16.mxu0 0
        %2077 = vmatpush1.bf16.msra.mxu0 %v2024
        %2078 = vmatprep.subr.bf16.mxu0 0
        %2079 = vmatpush1.bf16.msra.mxu0 %v2025
        %2080 = vmatprep.subr.bf16.mxu0 0
        %2081 = vmatpush1.bf16.msra.mxu0 %v2026
        %2082 = vmatprep.subr.bf16.mxu0 0
        %2083 = vmatpush1.bf16.msra.mxu0 %v2027
        %2084 = vmatprep.subr.bf16.mxu0 0
        %2085 = vmatpush1.bf16.msra.mxu0 %v2028
        %2086 = vmatprep.subr.bf16.mxu0 0
        %2087 = vmatpush1.bf16.msra.mxu0 %v2029
        %2088 = vmatprep.subr.bf16.mxu0 0
        %2089 = vmatpush1.bf16.msra.mxu0 %v2030
        %2090 = vmatprep.subr.bf16.mxu0 0
        %2091 = vmatpush1.bf16.msra.mxu0 %v2031
        %2092 = vmatprep.subr.bf16.mxu0 0
        %2093 = vmatpush1.bf16.msra.mxu0 %v2032
        %2094 = vmatprep.subr.bf16.mxu0 0
        %2095 = vmatpush1.bf16.msra.mxu0 %v2033
        %2096 = vmatprep.subr.bf16.mxu0 0
        %2097 = vmatpush1.bf16.msra.mxu0 %v2034
        %2098 = vmatprep.subr.bf16.mxu0 0
        %2099 = vmatpush1.bf16.msra.mxu0 %v2035
        %2100 = vmatprep.mubr.bf16.mxu0 %v572
        %2101 = vmatmul.mubr.bf16.gmra.mrb[0].mxu0 %v737
        %v2102 = vpop.f32.mrb[0].mxu0
        %v2103 = vadd.f32 0.0, %v2102
        %v2104 = vpop.f32.mrb[0].mxu0
        %v2105 = vpop.f32.mrb[0].mxu0
        %v2106 = vadd.f32 0.0, %v2105
        %v2107 = vpop.f32.mrb[0].mxu0
        %2108 = vmatprep.mubr.bf16.mxu0 %v573
        %2109 = vmatmul.mubr.bf16.gmra.mrb[0].mxu0 %v738
        %v2110 = vpop.f32.mrb[0].mxu0
        %v2111 = vadd.f32 0.0, %v2110
        %v2112 = vpop.f32.mrb[0].mxu0
        %v2113 = vpop.f32.mrb[0].mxu0
        %v2114 = vadd.f32 0.0, %v2113
        %v2115 = vpop.f32.mrb[0].mxu0
        %2116 = vmatprep.mubr.bf16.mxu0 %v574
        %2117 = vmatmul.mubr.bf16.gmra.mrb[0].mxu0 %v739
        %v2118 = vpop.f32.mrb[0].mxu0
        %v2119 = vadd.f32 0.0, %v2118
        %v2120 = vpop.f32.mrb[0].mxu0
        %v2121 = vpop.f32.mrb[0].mxu0
        %v2122 = vadd.f32 0.0, %v2121
        %v2123 = vpop.f32.mrb[0].mxu0
        %2124 = vmatprep.mubr.bf16.mxu0 %v575
        %2125 = vmatmul.mubr.bf16.gmra.mrb[0].mxu0 %v740
        %v2126 = vpop.f32.mrb[0].mxu0
        %v2127 = vadd.f32 0.0, %v2126
        %v2128 = vpop.f32.mrb[0].mxu0
        %v2129 = vpop.f32.mrb[0].mxu0
        %v2130 = vadd.f32 0.0, %v2129
        %v2131 = vpop.f32.mrb[0].mxu0
        %2132 = vmatprep.mubr.bf16.mxu0 %v576
        %2133 = vmatmul.mubr.bf16.gmra.mrb[0].mxu0 %v741
        %v2134 = vpop.f32.mrb[0].mxu0
        %v2135 = vadd.f32 0.0, %v2134
        %v2136 = vpop.f32.mrb[0].mxu0
        %v2137 = vpop.f32.mrb[0].mxu0
        %v2138 = vadd.f32 0.0, %v2137
        %v2139 = vpop.f32.mrb[0].mxu0
        %2140 = vmatprep.mubr.bf16.mxu0 %v577
        %2141 = vmatmul.mubr.bf16.gmra.mrb[0].mxu0 %v742
        %v2142 = vpop.f32.mrb[0].mxu0
        %v2143 = vadd.f32 0.0, %v2142
        %v2144 = vpop.f32.mrb[0].mxu0
        %v2145 = vpop.f32.mrb[0].mxu0
        %v2146 = vadd.f32 0.0, %v2145
        %v2147 = vpop.f32.mrb[0].mxu0
        %2148 = vmatprep.mubr.bf16.mxu0 %v578
        %2149 = vmatmul.mubr.bf16.gmra.mrb[0].mxu0 %v743
        %v2150 = vpop.f32.mrb[0].mxu0
        %v2151 = vadd.f32 0.0, %v2150
        %v2152 = vpop.f32.mrb[0].mxu0
        %v2153 = vpop.f32.mrb[0].mxu0
        %v2154 = vadd.f32 0.0, %v2153
        %v2155 = vpop.f32.mrb[0].mxu0
        %2156 = vmatprep.mubr.bf16.mxu0 %v579
        %2157 = vmatmul.mubr.bf16.gmra.mrb[0].mxu0 %v744
        %v2158 = vpop.f32.mrb[0].mxu0
        %v2159 = vadd.f32 0.0, %v2158
        %v2160 = vpop.f32.mrb[0].mxu0
        %v2161 = vpop.f32.mrb[0].mxu0
        %v2162 = vadd.f32 0.0, %v2161
        %v2163 = vpop.f32.mrb[0].mxu0
        %2164 = vmatprep.mubr.bf16.mxu0 %v580
        %2165 = vmatmul.mubr.bf16.gmra.mrb[0].mxu0 %v745
        %v2166 = vpop.f32.mrb[0].mxu0
        %v2167 = vadd.f32 0.0, %v2166
        %v2168 = vpop.f32.mrb[0].mxu0
        %v2169 = vpop.f32.mrb[0].mxu0
        %v2170 = vadd.f32 0.0, %v2169
        %v2171 = vpop.f32.mrb[0].mxu0
        %2172 = vmatprep.mubr.bf16.mxu0 %v581
        %2173 = vmatmul.mubr.bf16.gmra.mrb[0].mxu0 %v746
        %v2174 = vpop.f32.mrb[0].mxu0
        %v2175 = vadd.f32 0.0, %v2174
        %v2176 = vpop.f32.mrb[0].mxu0
        %v2177 = vpop.f32.mrb[0].mxu0
        %v2178 = vadd.f32 0.0, %v2177
        %v2179 = vpop.f32.mrb[0].mxu0
        %2180 = vmatprep.mubr.bf16.mxu0 %v582
        %2181 = vmatmul.mubr.bf16.gmra.mrb[0].mxu0 %v747
        %v2182 = vpop.f32.mrb[0].mxu0
        %v2183 = vadd.f32 0.0, %v2182
        %v2184 = vpop.f32.mrb[0].mxu0
        %v2185 = vpop.f32.mrb[0].mxu0
        %v2186 = vadd.f32 0.0, %v2185
        %v2187 = vpop.f32.mrb[0].mxu0
        %2188 = vmatprep.mubr.bf16.mxu0 %v583
        %2189 = vmatmul.mubr.bf16.gmra.mrb[0].mxu0 %v748
        %v2190 = vpop.f32.mrb[0].mxu0
        %v2191 = vadd.f32 0.0, %v2190
        %v2192 = vpop.f32.mrb[0].mxu0
        %v2193 = vpop.f32.mrb[0].mxu0
        %v2194 = vadd.f32 0.0, %v2193
        %v2195 = vpop.f32.mrb[0].mxu0
        %2196 = vmatprep.mubr.bf16.mxu0 %v584
        %2197 = vmatmul.mubr.bf16.gmra.mrb[0].mxu0 %v749
        %v2198 = vpop.f32.mrb[0].mxu0
        %v2199 = vadd.f32 0.0, %v2198
        %v2200 = vpop.f32.mrb[0].mxu0
        %v2201 = vpop.f32.mrb[0].mxu0
        %v2202 = vadd.f32 0.0, %v2201
        %v2203 = vpop.f32.mrb[0].mxu0
        %2204 = vmatprep.mubr.bf16.mxu0 %v585
        %2205 = vmatmul.mubr.bf16.gmra.mrb[0].mxu0 %v750
        %v2206 = vpop.f32.mrb[0].mxu0
        %v2207 = vadd.f32 0.0, %v2206
        %v2208 = vpop.f32.mrb[0].mxu0
        %v2209 = vpop.f32.mrb[0].mxu0
        %v2210 = vadd.f32 0.0, %v2209
        %v2211 = vpop.f32.mrb[0].mxu0
        %2212 = vmatprep.mubr.bf16.mxu0 %v586
        %2213 = vmatmul.mubr.bf16.gmra.mrb[0].mxu0 %v751
        %v2214 = vpop.f32.mrb[0].mxu0
        %v2215 = vadd.f32 0.0, %v2214
        %v2216 = vpop.f32.mrb[0].mxu0
        %v2217 = vpop.f32.mrb[0].mxu0
        %v2218 = vadd.f32 0.0, %v2217
        %v2219 = vpop.f32.mrb[0].mxu0
        %2220 = vmatprep.mubr.bf16.mxu0 %v587
        %2221 = vmatmul.mubr.bf16.gmra.mrb[0].mxu0 %v752
        %v2222 = vpop.f32.mrb[0].mxu0
        %v2223 = vadd.f32 0.0, %v2222
        %v2224 = vpop.f32.mrb[0].mxu0
        %v2225 = vpop.f32.mrb[0].mxu0
        %v2226 = vadd.f32 0.0, %v2225
        %v2227 = vpop.f32.mrb[0].mxu0
        %2228 = vdwg.mxu0
        %2229 = vmatprep.subr.bf16.mxu0 0
        %2230 = vmatpush1.bf16.msra.mxu0 %v2036
        %2231 = vmatprep.subr.bf16.mxu0 0
        %2232 = vmatpush1.bf16.msra.mxu0 %v2037
        %2233 = vmatprep.subr.bf16.mxu0 0
        %2234 = vmatpush1.bf16.msra.mxu0 %v2038
        %2235 = vmatprep.subr.bf16.mxu0 0
        %2236 = vmatpush1.bf16.msra.mxu0 %v2039
        %2237 = vmatprep.subr.bf16.mxu0 0
        %2238 = vmatpush1.bf16.msra.mxu0 %v2040
        %2239 = vmatprep.subr.bf16.mxu0 0
        %2240 = vmatpush1.bf16.msra.mxu0 %v2041
        %2241 = vmatprep.subr.bf16.mxu0 0
        %2242 = vmatpush1.bf16.msra.mxu0 %v2042
        %2243 = vmatprep.subr.bf16.mxu0 0
        %2244 = vmatpush1.bf16.msra.mxu0 %v2043
        %2245 = vmatprep.subr.bf16.mxu0 0
        %2246 = vmatpush1.bf16.msra.mxu0 0
        %2247 = vmatprep.subr.bf16.mxu0 0
        %2248 = vmatpush1.bf16.msra.mxu0 0
        %2249 = vmatprep.subr.bf16.mxu0 0
        %2250 = vmatpush1.bf16.msra.mxu0 0
        %2251 = vmatprep.subr.bf16.mxu0 0
        %2252 = vmatpush1.bf16.msra.mxu0 0
        %2253 = vmatprep.subr.bf16.mxu0 0
        %2254 = vmatpush1.bf16.msra.mxu0 0
        %2255 = vmatprep.subr.bf16.mxu0 0
        %2256 = vmatpush1.bf16.msra.mxu0 0
        %2257 = vmatprep.subr.bf16.mxu0 0
        %2258 = vmatpush1.bf16.msra.mxu0 0
        %2259 = vmatprep.subr.bf16.mxu0 0
        %2260 = vmatpush1.bf16.msra.mxu0 0
        %2261 = vmatprep.mubr.bf16.mxu0 0
        %2262 = vmatmul.mubr.bf16.gmra.mrb[0].mxu0 %v812
        %v2263 = vpop.f32.mrb[0].mxu0
        %v2264 = vadd.f32 %v2103, %v2263
        %v2265 = vpop.f32.mrb[0].mxu0
        %v2266 = vpop.f32.mrb[0].mxu0
        %v2267 = vadd.f32 %v2106, %v2266
        %v2268 = vpop.f32.mrb[0].mxu0
        %2269 = vmatprep.mubr.bf16.mxu0 0
        %2270 = vmatmul.mubr.bf16.gmra.mrb[0].mxu0 %v813
        %v2271 = vpop.f32.mrb[0].mxu0
        %v2272 = vadd.f32 %v2111, %v2271
        %v2273 = vpop.f32.mrb[0].mxu0
        %v2274 = vpop.f32.mrb[0].mxu0
        %v2275 = vadd.f32 %v2114, %v2274
        %v2276 = vpop.f32.mrb[0].mxu0
        %2277 = vmatprep.mubr.bf16.mxu0 0
        %2278 = vmatmul.mubr.bf16.gmra.mrb[0].mxu0 %v814
        %v2279 = vpop.f32.mrb[0].mxu0
        %v2280 = vadd.f32 %v2119, %v2279
        %v2281 = vpop.f32.mrb[0].mxu0
        %v2282 = vpop.f32.mrb[0].mxu0
        %v2283 = vadd.f32 %v2122, %v2282
        %v2284 = vpop.f32.mrb[0].mxu0
        %2285 = vmatprep.mubr.bf16.mxu0 0
        %2286 = vmatmul.mubr.bf16.gmra.mrb[0].mxu0 %v815
        %v2287 = vpop.f32.mrb[0].mxu0
        %v2288 = vadd.f32 %v2127, %v2287
        %v2289 = vpop.f32.mrb[0].mxu0
        %v2290 = vpop.f32.mrb[0].mxu0
        %v2291 = vadd.f32 %v2130, %v2290
        %v2292 = vpop.f32.mrb[0].mxu0
        %2293 = vmatprep.mubr.bf16.mxu0 0
        %2294 = vmatmul.mubr.bf16.gmra.mrb[0].mxu0 %v816
        %v2295 = vpop.f32.mrb[0].mxu0
        %v2296 = vadd.f32 %v2135, %v2295
        %v2297 = vpop.f32.mrb[0].mxu0
        %v2298 = vpop.f32.mrb[0].mxu0
        %v2299 = vadd.f32 %v2138, %v2298
        %v2300 = vpop.f32.mrb[0].mxu0
        %2301 = vmatprep.mubr.bf16.mxu0 0
        %2302 = vmatmul.mubr.bf16.gmra.mrb[0].mxu0 %v817
        %v2303 = vpop.f32.mrb[0].mxu0
        %v2304 = vadd.f32 %v2143, %v2303
        %v2305 = vpop.f32.mrb[0].mxu0
        %v2306 = vpop.f32.mrb[0].mxu0
        %v2307 = vadd.f32 %v2146, %v2306
        %v2308 = vpop.f32.mrb[0].mxu0
        %2309 = vmatprep.mubr.bf16.mxu0 0
        %2310 = vmatmul.mubr.bf16.gmra.mrb[0].mxu0 %v818
        %v2311 = vpop.f32.mrb[0].mxu0
        %v2312 = vadd.f32 %v2151, %v2311
        %v2313 = vpop.f32.mrb[0].mxu0
        %v2314 = vpop.f32.mrb[0].mxu0
        %v2315 = vadd.f32 %v2154, %v2314
        %v2316 = vpop.f32.mrb[0].mxu0
        %2317 = vmatprep.mubr.bf16.mxu0 0
        %2318 = vmatmul.mubr.bf16.gmra.mrb[0].mxu0 %v819
        %v2319 = vpop.f32.mrb[0].mxu0
        %v2320 = vadd.f32 %v2159, %v2319
        %v2321 = vpop.f32.mrb[0].mxu0
        %v2322 = vpop.f32.mrb[0].mxu0
        %v2323 = vadd.f32 %v2162, %v2322
        %v2324 = vpop.f32.mrb[0].mxu0
        %2325 = vmatprep.mubr.bf16.mxu0 0
        %2326 = vmatmul.mubr.bf16.gmra.mrb[0].mxu0 %v820
        %v2327 = vpop.f32.mrb[0].mxu0
        %v2328 = vadd.f32 %v2167, %v2327
        %v2329 = vpop.f32.mrb[0].mxu0
        %v2330 = vpop.f32.mrb[0].mxu0
        %v2331 = vadd.f32 %v2170, %v2330
        %v2332 = vpop.f32.mrb[0].mxu0
        %2333 = vmatprep.mubr.bf16.mxu0 0
        %2334 = vmatmul.mubr.bf16.gmra.mrb[0].mxu0 %v821
        %v2335 = vpop.f32.mrb[0].mxu0
        %v2336 = vadd.f32 %v2175, %v2335
        %v2337 = vpop.f32.mrb[0].mxu0
        %v2338 = vpop.f32.mrb[0].mxu0
        %v2339 = vadd.f32 %v2178, %v2338
        %v2340 = vpop.f32.mrb[0].mxu0
        %2341 = vmatprep.mubr.bf16.mxu0 0
        %2342 = vmatmul.mubr.bf16.gmra.mrb[0].mxu0 %v822
        %v2343 = vpop.f32.mrb[0].mxu0
        %v2344 = vadd.f32 %v2183, %v2343
        %v2345 = vpop.f32.mrb[0].mxu0
        %v2346 = vpop.f32.mrb[0].mxu0
        %v2347 = vadd.f32 %v2186, %v2346
        %v2348 = vpop.f32.mrb[0].mxu0
        %2349 = vmatprep.mubr.bf16.mxu0 0
        %2350 = vmatmul.mubr.bf16.gmra.mrb[0].mxu0 %v823
        %v2351 = vpop.f32.mrb[0].mxu0
        %v2352 = vadd.f32 %v2191, %v2351
        %v2353 = vpop.f32.mrb[0].mxu0
        %v2354 = vpop.f32.mrb[0].mxu0
        %v2355 = vadd.f32 %v2194, %v2354
        %v2356 = vpop.f32.mrb[0].mxu0
        %2357 = vmatprep.mubr.bf16.mxu0 0
        %2358 = vmatmul.mubr.bf16.gmra.mrb[0].mxu0 %v824
        %v2359 = vpop.f32.mrb[0].mxu0
        %v2360 = vadd.f32 %v2199, %v2359
        %v2361 = vpop.f32.mrb[0].mxu0
        %v2362 = vpop.f32.mrb[0].mxu0
        %v2363 = vadd.f32 %v2202, %v2362
        %v2364 = vpop.f32.mrb[0].mxu0
        %2365 = vmatprep.mubr.bf16.mxu0 0
        %2366 = vmatmul.mubr.bf16.gmra.mrb[0].mxu0 %v825
        %v2367 = vpop.f32.mrb[0].mxu0
        %v2368 = vadd.f32 %v2207, %v2367
        %v2369 = vpop.f32.mrb[0].mxu0
        %v2370 = vpop.f32.mrb[0].mxu0
        %v2371 = vadd.f32 %v2210, %v2370
        %v2372 = vpop.f32.mrb[0].mxu0
        %2373 = vmatprep.mubr.bf16.mxu0 0
        %2374 = vmatmul.mubr.bf16.gmra.mrb[0].mxu0 %v826
        %v2375 = vpop.f32.mrb[0].mxu0
        %v2376 = vadd.f32 %v2215, %v2375
        %v2377 = vpop.f32.mrb[0].mxu0
        %v2378 = vpop.f32.mrb[0].mxu0
        %v2379 = vadd.f32 %v2218, %v2378
        %v2380 = vpop.f32.mrb[0].mxu0
        %2381 = vmatprep.mubr.bf16.mxu0 0
        %2382 = vmatmul.mubr.bf16.gmra.mrb[0].mxu0 %v827
        %v2383 = vpop.f32.mrb[0].mxu0
        %v2384 = vadd.f32 %v2223, %v2383
        %v2385 = vpop.f32.mrb[0].mxu0
        %v2386 = vpop.f32.mrb[0].mxu0
        %v2387 = vadd.f32 %v2226, %v2386
        %v2388 = vpop.f32.mrb[0].mxu0
        %2389 = vdwg.mxu0
        %v2390 = vadd.f32 %v1749, %v2264
        %v2391 = vadd.f32 %v1752, %v2267
        %v2392 = vadd.f32 %v1757, %v2272
        %v2393 = vadd.f32 %v1760, %v2275
        %v2394 = vadd.f32 %v1765, %v2280
        %v2395 = vadd.f32 %v1768, %v2283
        %v2396 = vadd.f32 %v1773, %v2288
        %v2397 = vadd.f32 %v1776, %v2291
        %v2398 = vadd.f32 %v1781, %v2296
        %v2399 = vadd.f32 %v1784, %v2299
        %v2400 = vadd.f32 %v1789, %v2304
        %v2401 = vadd.f32 %v1792, %v2307
        %v2402 = vadd.f32 %v1797, %v2312
        %v2403 = vadd.f32 %v1800, %v2315
        %v2404 = vadd.f32 %v1805, %v2320
        %v2405 = vadd.f32 %v1808, %v2323
        %v2406 = vadd.f32 %v1813, %v2328
        %v2407 = vadd.f32 %v1816, %v2331
        %v2408 = vadd.f32 %v1821, %v2336
        %v2409 = vadd.f32 %v1824, %v2339
        %v2410 = vadd.f32 %v1829, %v2344
        %v2411 = vadd.f32 %v1832, %v2347
        %v2412 = vadd.f32 %v1837, %v2352
        %v2413 = vadd.f32 %v1840, %v2355
        %v2414 = vadd.f32 %v1845, %v2360
        %v2415 = vadd.f32 %v1848, %v2363
        %v2416 = vadd.f32 %v1853, %v2368
        %v2417 = vadd.f32 %v1856, %v2371
        %v2418 = vadd.f32 %v1861, %v2376
        %v2419 = vadd.f32 %v1864, %v2379
        %v2420 = vadd.f32 %v1869, %v2384
        %v2421 = vadd.f32 %v1872, %v2387
        %v2422 = vld [vmem:[%s3] sm:$0x1]
        %v2424 = vlaneseq
        %v2425 = vshrl.u32 %v2424, 7
        %v2426 = vsub.s32 0, %v2425
        %v2427 = vrot.slane %v2422, %v2426
        %v2429 = vadd.f32 %v2390, %v2427
        %v2430 = vadd.f32 %v2391, %v2427
        %v2431 = vadd.f32 %v2392, %v2427
        %v2432 = vadd.f32 %v2393, %v2427
        %v2433 = vadd.f32 %v2394, %v2427
        %v2434 = vadd.f32 %v2395, %v2427
        %v2435 = vadd.f32 %v2396, %v2427
        %v2436 = vadd.f32 %v2397, %v2427
        %v2437 = vadd.f32 %v2398, %v2427
        %v2438 = vadd.f32 %v2399, %v2427
        %v2439 = vadd.f32 %v2400, %v2427
        %v2440 = vadd.f32 %v2401, %v2427
        %v2441 = vadd.f32 %v2402, %v2427
        %v2442 = vadd.f32 %v2403, %v2427
        %v2443 = vadd.f32 %v2404, %v2427
        %v2444 = vadd.f32 %v2405, %v2427
        %v2445 = vadd.f32 %v2406, %v2427
        %v2446 = vadd.f32 %v2407, %v2427
        %v2447 = vadd.f32 %v2408, %v2427
        %v2448 = vadd.f32 %v2409, %v2427
        %v2449 = vadd.f32 %v2410, %v2427
        %v2450 = vadd.f32 %v2411, %v2427
        %v2451 = vadd.f32 %v2412, %v2427
        %v2452 = vadd.f32 %v2413, %v2427
        %v2453 = vadd.f32 %v2414, %v2427
        %v2454 = vadd.f32 %v2415, %v2427
        %v2455 = vadd.f32 %v2416, %v2427
        %v2456 = vadd.f32 %v2417, %v2427
        %v2457 = vadd.f32 %v2418, %v2427
        %v2458 = vadd.f32 %v2419, %v2427
        %v2459 = vadd.f32 %v2420, %v2427
        %v2460 = vadd.f32 %v2421, %v2427
        %v2461 = vmul.f32 %v2429, %v2429
        %v2462 = vmul.f32 %v2430, %v2430
        %v2463 = vmul.f32 %v2431, %v2431
        %v2464 = vmul.f32 %v2432, %v2432
        %v2465 = vmul.f32 %v2433, %v2433
        %v2466 = vmul.f32 %v2434, %v2434
        %v2467 = vmul.f32 %v2435, %v2435
        %v2468 = vmul.f32 %v2436, %v2436
        %v2469 = vmul.f32 %v2437, %v2437
        %v2470 = vmul.f32 %v2438, %v2438
        %v2471 = vmul.f32 %v2439, %v2439
        %v2472 = vmul.f32 %v2440, %v2440
        %v2473 = vmul.f32 %v2441, %v2441
        %v2474 = vmul.f32 %v2442, %v2442
        %v2475 = vmul.f32 %v2443, %v2443
        %v2476 = vmul.f32 %v2444, %v2444
        %v2477 = vmul.f32 %v2445, %v2445
        %v2478 = vmul.f32 %v2446, %v2446
        %v2479 = vmul.f32 %v2447, %v2447
        %v2480 = vmul.f32 %v2448, %v2448
        %v2481 = vmul.f32 %v2449, %v2449
        %v2482 = vmul.f32 %v2450, %v2450
        %v2483 = vmul.f32 %v2451, %v2451
        %v2484 = vmul.f32 %v2452, %v2452
        %v2485 = vmul.f32 %v2453, %v2453
        %v2486 = vmul.f32 %v2454, %v2454
        %v2487 = vmul.f32 %v2455, %v2455
        %v2488 = vmul.f32 %v2456, %v2456
        %v2489 = vmul.f32 %v2457, %v2457
        %v2490 = vmul.f32 %v2458, %v2458
        %v2491 = vmul.f32 %v2459, %v2459
        %v2492 = vmul.f32 %v2460, %v2460
        %2493 = vadd.xlane.f32.xlu0 %v2461
        %v2494 = vpop.xlane.xlu0 %2493
        %2495 = vadd.xlane.f32.xlu0 %v2462
        %v2496 = vpop.xlane.xlu0 %2495
        %2497 = vadd.xlane.f32.xlu0 %v2463
        %v2498 = vpop.xlane.xlu0 %2497
        %2499 = vadd.xlane.f32.xlu0 %v2464
        %v2500 = vpop.xlane.xlu0 %2499
        %2501 = vadd.xlane.f32.xlu0 %v2465
        %v2502 = vpop.xlane.xlu0 %2501
        %2503 = vadd.xlane.f32.xlu0 %v2466
        %v2504 = vpop.xlane.xlu0 %2503
        %2505 = vadd.xlane.f32.xlu0 %v2467
        %v2506 = vpop.xlane.xlu0 %2505
        %2507 = vadd.xlane.f32.xlu0 %v2468
        %v2508 = vpop.xlane.xlu0 %2507
        %2509 = vadd.xlane.f32.xlu0 %v2469
        %v2510 = vpop.xlane.xlu0 %2509
        %2511 = vadd.xlane.f32.xlu0 %v2470
        %v2512 = vpop.xlane.xlu0 %2511
        %2513 = vadd.xlane.f32.xlu0 %v2471
        %v2514 = vpop.xlane.xlu0 %2513
        %2515 = vadd.xlane.f32.xlu0 %v2472
        %v2516 = vpop.xlane.xlu0 %2515
        %2517 = vadd.xlane.f32.xlu0 %v2473
        %v2518 = vpop.xlane.xlu0 %2517
        %2519 = vadd.xlane.f32.xlu0 %v2474
        %v2520 = vpop.xlane.xlu0 %2519
        %2521 = vadd.xlane.f32.xlu0 %v2475
        %v2522 = vpop.xlane.xlu0 %2521
        %2523 = vadd.xlane.f32.xlu0 %v2476
        %v2524 = vpop.xlane.xlu0 %2523
        %2525 = vadd.xlane.f32.xlu0 %v2477
        %v2526 = vpop.xlane.xlu0 %2525
        %2527 = vadd.xlane.f32.xlu0 %v2478
        %v2528 = vpop.xlane.xlu0 %2527
        %2529 = vadd.xlane.f32.xlu0 %v2479
        %v2530 = vpop.xlane.xlu0 %2529
        %2531 = vadd.xlane.f32.xlu0 %v2480
        %v2532 = vpop.xlane.xlu0 %2531
        %2533 = vadd.xlane.f32.xlu0 %v2481
        %v2534 = vpop.xlane.xlu0 %2533
        %2535 = vadd.xlane.f32.xlu0 %v2482
        %v2536 = vpop.xlane.xlu0 %2535
        %2537 = vadd.xlane.f32.xlu0 %v2483
        %v2538 = vpop.xlane.xlu0 %2537
        %2539 = vadd.xlane.f32.xlu0 %v2484
        %v2540 = vpop.xlane.xlu0 %2539
        %2541 = vadd.xlane.f32.xlu0 %v2485
        %v2542 = vpop.xlane.xlu0 %2541
        %2543 = vadd.xlane.f32.xlu0 %v2486
        %v2544 = vpop.xlane.xlu0 %2543
        %2545 = vadd.xlane.f32.xlu0 %v2487
        %v2546 = vpop.xlane.xlu0 %2545
        %2547 = vadd.xlane.f32.xlu0 %v2488
        %v2548 = vpop.xlane.xlu0 %2547
        %2549 = vadd.xlane.f32.xlu0 %v2489
        %v2550 = vpop.xlane.xlu0 %2549
        %2551 = vadd.xlane.f32.xlu0 %v2490
        %v2552 = vpop.xlane.xlu0 %2551
        %2553 = vadd.xlane.f32.xlu0 %v2491
        %v2554 = vpop.xlane.xlu0 %2553
        %2555 = vadd.xlane.f32.xlu0 %v2492
        %v2556 = vpop.xlane.xlu0 %2555
        %v2557 = vmax.f32 %v2494, 1e-24
        %v2558 = vmax.f32 %v2496, 1e-24
        %v2559 = vmax.f32 %v2498, 1e-24
        %v2560 = vmax.f32 %v2500, 1e-24
        %v2561 = vmax.f32 %v2502, 1e-24
        %v2562 = vmax.f32 %v2504, 1e-24
        %v2563 = vmax.f32 %v2506, 1e-24
        %v2564 = vmax.f32 %v2508, 1e-24
        %v2565 = vmax.f32 %v2510, 1e-24
        %v2566 = vmax.f32 %v2512, 1e-24
        %v2567 = vmax.f32 %v2514, 1e-24
        %v2568 = vmax.f32 %v2516, 1e-24
        %v2569 = vmax.f32 %v2518, 1e-24
        %v2570 = vmax.f32 %v2520, 1e-24
        %v2571 = vmax.f32 %v2522, 1e-24
        %v2572 = vmax.f32 %v2524, 1e-24
        %v2573 = vmax.f32 %v2526, 1e-24
        %v2574 = vmax.f32 %v2528, 1e-24
        %v2575 = vmax.f32 %v2530, 1e-24
        %v2576 = vmax.f32 %v2532, 1e-24
        %v2577 = vmax.f32 %v2534, 1e-24
        %v2578 = vmax.f32 %v2536, 1e-24
        %v2579 = vmax.f32 %v2538, 1e-24
        %v2580 = vmax.f32 %v2540, 1e-24
        %v2581 = vmax.f32 %v2542, 1e-24
        %v2582 = vmax.f32 %v2544, 1e-24
        %v2583 = vmax.f32 %v2546, 1e-24
        %v2584 = vmax.f32 %v2548, 1e-24
        %v2585 = vmax.f32 %v2550, 1e-24
        %v2586 = vmax.f32 %v2552, 1e-24
        %v2587 = vmax.f32 %v2554, 1e-24
        %v2588 = vmax.f32 %v2556, 1e-24
        %v2589 = vrsqrt.pop %v2557
        %v2590 = vrsqrt.pop %v2558
        %v2591 = vrsqrt.pop %v2559
        %v2592 = vrsqrt.pop %v2560
        %v2593 = vrsqrt.pop %v2561
        %v2594 = vrsqrt.pop %v2562
        %v2595 = vrsqrt.pop %v2563
        %v2596 = vrsqrt.pop %v2564
        %v2597 = vrsqrt.pop %v2565
        %v2598 = vrsqrt.pop %v2566
        %v2599 = vrsqrt.pop %v2567
        %v2600 = vrsqrt.pop %v2568
        %v2601 = vrsqrt.pop %v2569
        %v2602 = vrsqrt.pop %v2570
        %v2603 = vrsqrt.pop %v2571
        %v2604 = vrsqrt.pop %v2572
        %v2605 = vrsqrt.pop %v2573
        %v2606 = vrsqrt.pop %v2574
        %v2607 = vrsqrt.pop %v2575
        %v2608 = vrsqrt.pop %v2576
        %v2609 = vrsqrt.pop %v2577
        %v2610 = vrsqrt.pop %v2578
        %v2611 = vrsqrt.pop %v2579
        %v2612 = vrsqrt.pop %v2580
        %v2613 = vrsqrt.pop %v2581
        %v2614 = vrsqrt.pop %v2582
        %v2615 = vrsqrt.pop %v2583
        %v2616 = vrsqrt.pop %v2584
        %v2617 = vrsqrt.pop %v2585
        %v2618 = vrsqrt.pop %v2586
        %v2619 = vrsqrt.pop %v2587
        %v2620 = vrsqrt.pop %v2588
        %v2621 = vmul.f32 %v2429, %v2589
        %v2622 = vmul.f32 %v2430, %v2590
        %v2623 = vmul.f32 %v2431, %v2591
        %v2624 = vmul.f32 %v2432, %v2592
        %v2625 = vmul.f32 %v2433, %v2593
        %v2626 = vmul.f32 %v2434, %v2594
        %v2627 = vmul.f32 %v2435, %v2595
        %v2628 = vmul.f32 %v2436, %v2596
        %v2629 = vmul.f32 %v2437, %v2597
        %v2630 = vmul.f32 %v2438, %v2598
        %v2631 = vmul.f32 %v2439, %v2599
        %v2632 = vmul.f32 %v2440, %v2600
        %v2633 = vmul.f32 %v2441, %v2601
        %v2634 = vmul.f32 %v2442, %v2602
        %v2635 = vmul.f32 %v2443, %v2603
        %v2636 = vmul.f32 %v2444, %v2604
        %v2637 = vmul.f32 %v2445, %v2605
        %v2638 = vmul.f32 %v2446, %v2606
        %v2639 = vmul.f32 %v2447, %v2607
        %v2640 = vmul.f32 %v2448, %v2608
        %v2641 = vmul.f32 %v2449, %v2609
        %v2642 = vmul.f32 %v2450, %v2610
        %v2643 = vmul.f32 %v2451, %v2611
        %v2644 = vmul.f32 %v2452, %v2612
        %v2645 = vmul.f32 %v2453, %v2613
        %v2646 = vmul.f32 %v2454, %v2614
        %v2647 = vmul.f32 %v2455, %v2615
        %v2648 = vmul.f32 %v2456, %v2616
        %v2649 = vmul.f32 %v2457, %v2617
        %v2650 = vmul.f32 %v2458, %v2618
        %v2651 = vmul.f32 %v2459, %v2619
        %v2652 = vmul.f32 %v2460, %v2620
        %v2653 = vld [vmem:[%s4] sm:$0x1]
        %v2655 = vlaneseq
        %v2656 = vshrl.u32 %v2655, 7
        %v2657 = vsub.s32 0, %v2656
        %v2658 = vrot.slane %v2653, %v2657
        %v2660 = vmul.f32 %v2621, %v2658
        %v2661 = vmul.f32 %v2622, %v2658
        %v2662 = vmul.f32 %v2623, %v2658
        %v2663 = vmul.f32 %v2624, %v2658
        %v2664 = vmul.f32 %v2625, %v2658
        %v2665 = vmul.f32 %v2626, %v2658
        %v2666 = vmul.f32 %v2627, %v2658
        %v2667 = vmul.f32 %v2628, %v2658
        %v2668 = vmul.f32 %v2629, %v2658
        %v2669 = vmul.f32 %v2630, %v2658
        %v2670 = vmul.f32 %v2631, %v2658
        %v2671 = vmul.f32 %v2632, %v2658
        %v2672 = vmul.f32 %v2633, %v2658
        %v2673 = vmul.f32 %v2634, %v2658
        %v2674 = vmul.f32 %v2635, %v2658
        %v2675 = vmul.f32 %v2636, %v2658
        %v2676 = vmul.f32 %v2637, %v2658
        %v2677 = vmul.f32 %v2638, %v2658
        %v2678 = vmul.f32 %v2639, %v2658
        %v2679 = vmul.f32 %v2640, %v2658
        %v2680 = vmul.f32 %v2641, %v2658
        %v2681 = vmul.f32 %v2642, %v2658
        %v2682 = vmul.f32 %v2643, %v2658
        %v2683 = vmul.f32 %v2644, %v2658
        %v2684 = vmul.f32 %v2645, %v2658
        %v2685 = vmul.f32 %v2646, %v2658
        %v2686 = vmul.f32 %v2647, %v2658
        %v2687 = vmul.f32 %v2648, %v2658
        %v2688 = vmul.f32 %v2649, %v2658
        %v2689 = vmul.f32 %v2650, %v2658
        %v2690 = vmul.f32 %v2651, %v2658
        %v2691 = vmul.f32 %v2652, %v2658
        %v2692 = vadd.f32 %v496, 1.0
        %v2694 = vlaneseq
        %v2695 = vshrl.u32 %v2694, 7
        %v2696 = vsub.s32 0, %v2695
        %v2697 = vrot.slane %v2692, %v2696
        %v2699 = vmul.f32 %v2660, %v2697
        %v2700 = vmul.f32 %v2661, %v2697
        %v2701 = vmul.f32 %v2662, %v2697
        %v2702 = vmul.f32 %v2663, %v2697
        %v2703 = vmul.f32 %v2664, %v2697
        %v2704 = vmul.f32 %v2665, %v2697
        %v2705 = vmul.f32 %v2666, %v2697
        %v2706 = vmul.f32 %v2667, %v2697
        %v2707 = vmul.f32 %v2668, %v2697
        %v2708 = vmul.f32 %v2669, %v2697
        %v2709 = vmul.f32 %v2670, %v2697
        %v2710 = vmul.f32 %v2671, %v2697
        %v2711 = vmul.f32 %v2672, %v2697
        %v2712 = vmul.f32 %v2673, %v2697
        %v2713 = vmul.f32 %v2674, %v2697
        %v2714 = vmul.f32 %v2675, %v2697
        %v2715 = vmul.f32 %v2676, %v2697
        %v2716 = vmul.f32 %v2677, %v2697
        %v2717 = vmul.f32 %v2678, %v2697
        %v2718 = vmul.f32 %v2679, %v2697
        %v2719 = vmul.f32 %v2680, %v2697
        %v2720 = vmul.f32 %v2681, %v2697
        %v2721 = vmul.f32 %v2682, %v2697
        %v2722 = vmul.f32 %v2683, %v2697
        %v2723 = vmul.f32 %v2684, %v2697
        %v2724 = vmul.f32 %v2685, %v2697
        %v2725 = vmul.f32 %v2686, %v2697
        %v2726 = vmul.f32 %v2687, %v2697
        %v2727 = vmul.f32 %v2688, %v2697
        %v2728 = vmul.f32 %v2689, %v2697
        %v2729 = vmul.f32 %v2690, %v2697
        %v2730 = vmul.f32 %v2691, %v2697
        %v2732 = vlaneseq
        %v2733 = vshrl.u32 %v2732, 7
        %v2734 = vsub.s32 0, %v2733
        %v2735 = vrot.slane %v497, %v2734
        %v2737 = vadd.f32 %v2699, %v2735
        %v2738 = vadd.f32 %v2700, %v2735
        %v2739 = vadd.f32 %v2701, %v2735
        %v2740 = vadd.f32 %v2702, %v2735
        %v2741 = vadd.f32 %v2703, %v2735
        %v2742 = vadd.f32 %v2704, %v2735
        %v2743 = vadd.f32 %v2705, %v2735
        %v2744 = vadd.f32 %v2706, %v2735
        %v2745 = vadd.f32 %v2707, %v2735
        %v2746 = vadd.f32 %v2708, %v2735
        %v2747 = vadd.f32 %v2709, %v2735
        %v2748 = vadd.f32 %v2710, %v2735
        %v2749 = vadd.f32 %v2711, %v2735
        %v2750 = vadd.f32 %v2712, %v2735
        %v2751 = vadd.f32 %v2713, %v2735
        %v2752 = vadd.f32 %v2714, %v2735
        %v2753 = vadd.f32 %v2715, %v2735
        %v2754 = vadd.f32 %v2716, %v2735
        %v2755 = vadd.f32 %v2717, %v2735
        %v2756 = vadd.f32 %v2718, %v2735
        %v2757 = vadd.f32 %v2719, %v2735
        %v2758 = vadd.f32 %v2720, %v2735
        %v2759 = vadd.f32 %v2721, %v2735
        %v2760 = vadd.f32 %v2722, %v2735
        %v2761 = vadd.f32 %v2723, %v2735
        %v2762 = vadd.f32 %v2724, %v2735
        %v2763 = vadd.f32 %v2725, %v2735
        %v2764 = vadd.f32 %v2726, %v2735
        %v2765 = vadd.f32 %v2727, %v2735
        %v2766 = vadd.f32 %v2728, %v2735
        %v2767 = vadd.f32 %v2729, %v2735
        %v2768 = vadd.f32 %v2730, %v2735
        %v2769 = vxor.u32 %v2737, 2147483648
        %v2770 = vxor.u32 %v2738, 2147483648
        %v2771 = vxor.u32 %v2739, 2147483648
        %v2772 = vxor.u32 %v2740, 2147483648
        %v2773 = vxor.u32 %v2741, 2147483648
        %v2774 = vxor.u32 %v2742, 2147483648
        %v2775 = vxor.u32 %v2743, 2147483648
        %v2776 = vxor.u32 %v2744, 2147483648
        %v2777 = vxor.u32 %v2745, 2147483648
        %v2778 = vxor.u32 %v2746, 2147483648
        %v2779 = vxor.u32 %v2747, 2147483648
        %v2780 = vxor.u32 %v2748, 2147483648
        %v2781 = vxor.u32 %v2749, 2147483648
        %v2782 = vxor.u32 %v2750, 2147483648
        %v2783 = vxor.u32 %v2751, 2147483648
        %v2784 = vxor.u32 %v2752, 2147483648
        %v2785 = vxor.u32 %v2753, 2147483648
        %v2786 = vxor.u32 %v2754, 2147483648
        %v2787 = vxor.u32 %v2755, 2147483648
        %v2788 = vxor.u32 %v2756, 2147483648
        %v2789 = vxor.u32 %v2757, 2147483648
        %v2790 = vxor.u32 %v2758, 2147483648
        %v2791 = vxor.u32 %v2759, 2147483648
        %v2792 = vxor.u32 %v2760, 2147483648
        %v2793 = vxor.u32 %v2761, 2147483648
        %v2794 = vxor.u32 %v2762, 2147483648
        %v2795 = vxor.u32 %v2763, 2147483648
        %v2796 = vxor.u32 %v2764, 2147483648
        %v2797 = vxor.u32 %v2765, 2147483648
        %v2798 = vxor.u32 %v2766, 2147483648
        %v2799 = vxor.u32 %v2767, 2147483648
        %v2800 = vxor.u32 %v2768, 2147483648
        %v2801 = vmul.f32 %v2769, 1.442695
        %v2802 = vpow.pop %v2801
        %v2803 = vmul.f32 %v2770, 1.442695
        %v2804 = vpow.pop %v2803
        %v2805 = vmul.f32 %v2771, 1.442695
        %v2806 = vpow.pop %v2805
        %v2807 = vmul.f32 %v2772, 1.442695
        %v2808 = vpow.pop %v2807
        %v2809 = vmul.f32 %v2773, 1.442695
        %v2810 = vpow.pop %v2809
        %v2811 = vmul.f32 %v2774, 1.442695
        %v2812 = vpow.pop %v2811
        %v2813 = vmul.f32 %v2775, 1.442695
        %v2814 = vpow.pop %v2813
        %v2815 = vmul.f32 %v2776, 1.442695
        %v2816 = vpow.pop %v2815
        %v2817 = vmul.f32 %v2777, 1.442695
        %v2818 = vpow.pop %v2817
        %v2819 = vmul.f32 %v2778, 1.442695
        %v2820 = vpow.pop %v2819
        %v2821 = vmul.f32 %v2779, 1.442695
        %v2822 = vpow.pop %v2821
        %v2823 = vmul.f32 %v2780, 1.442695
        %v2824 = vpow.pop %v2823
        %v2825 = vmul.f32 %v2781, 1.442695
        %v2826 = vpow.pop %v2825
        %v2827 = vmul.f32 %v2782, 1.442695
        %v2828 = vpow.pop %v2827
        %v2829 = vmul.f32 %v2783, 1.442695
        %v2830 = vpow.pop %v2829
        %v2831 = vmul.f32 %v2784, 1.442695
        %v2832 = vpow.pop %v2831
        %v2833 = vmul.f32 %v2785, 1.442695
        %v2834 = vpow.pop %v2833
        %v2835 = vmul.f32 %v2786, 1.442695
        %v2836 = vpow.pop %v2835
        %v2837 = vmul.f32 %v2787, 1.442695
        %v2838 = vpow.pop %v2837
        %v2839 = vmul.f32 %v2788, 1.442695
        %v2840 = vpow.pop %v2839
        %v2841 = vmul.f32 %v2789, 1.442695
        %v2842 = vpow.pop %v2841
        %v2843 = vmul.f32 %v2790, 1.442695
        %v2844 = vpow.pop %v2843
        %v2845 = vmul.f32 %v2791, 1.442695
        %v2846 = vpow.pop %v2845
        %v2847 = vmul.f32 %v2792, 1.442695
        %v2848 = vpow.pop %v2847
        %v2849 = vmul.f32 %v2793, 1.442695
        %v2850 = vpow.pop %v2849
        %v2851 = vmul.f32 %v2794, 1.442695
        %v2852 = vpow.pop %v2851
        %v2853 = vmul.f32 %v2795, 1.442695
        %v2854 = vpow.pop %v2853
        %v2855 = vmul.f32 %v2796, 1.442695
        %v2856 = vpow.pop %v2855
        %v2857 = vmul.f32 %v2797, 1.442695
        %v2858 = vpow.pop %v2857
        %v2859 = vmul.f32 %v2798, 1.442695
        %v2860 = vpow.pop %v2859
        %v2861 = vmul.f32 %v2799, 1.442695
        %v2862 = vpow.pop %v2861
        %v2863 = vmul.f32 %v2800, 1.442695
        %v2864 = vpow.pop %v2863
        %v2865 = vadd.f32 %v2802, 1.0
        %v2866 = vadd.f32 %v2804, 1.0
        %v2867 = vadd.f32 %v2806, 1.0
        %v2868 = vadd.f32 %v2808, 1.0
        %v2869 = vadd.f32 %v2810, 1.0
        %v2870 = vadd.f32 %v2812, 1.0
        %v2871 = vadd.f32 %v2814, 1.0
        %v2872 = vadd.f32 %v2816, 1.0
        %v2873 = vadd.f32 %v2818, 1.0
        %v2874 = vadd.f32 %v2820, 1.0
        %v2875 = vadd.f32 %v2822, 1.0
        %v2876 = vadd.f32 %v2824, 1.0
        %v2877 = vadd.f32 %v2826, 1.0
        %v2878 = vadd.f32 %v2828, 1.0
        %v2879 = vadd.f32 %v2830, 1.0
        %v2880 = vadd.f32 %v2832, 1.0
        %v2881 = vadd.f32 %v2834, 1.0
        %v2882 = vadd.f32 %v2836, 1.0
        %v2883 = vadd.f32 %v2838, 1.0
        %v2884 = vadd.f32 %v2840, 1.0
        %v2885 = vadd.f32 %v2842, 1.0
        %v2886 = vadd.f32 %v2844, 1.0
        %v2887 = vadd.f32 %v2846, 1.0
        %v2888 = vadd.f32 %v2848, 1.0
        %v2889 = vadd.f32 %v2850, 1.0
        %v2890 = vadd.f32 %v2852, 1.0
        %v2891 = vadd.f32 %v2854, 1.0
        %v2892 = vadd.f32 %v2856, 1.0
        %v2893 = vadd.f32 %v2858, 1.0
        %v2894 = vadd.f32 %v2860, 1.0
        %v2895 = vadd.f32 %v2862, 1.0
        %v2896 = vadd.f32 %v2864, 1.0
        %v2897 = vrcp.pop %v2865
        %v2898 = vmul.f32 1.0, %v2897
        %v2899 = vrcp.pop %v2866
        %v2900 = vmul.f32 1.0, %v2899
        %v2901 = vrcp.pop %v2867
        %v2902 = vmul.f32 1.0, %v2901
        %v2903 = vrcp.pop %v2868
        %v2904 = vmul.f32 1.0, %v2903
        %v2905 = vrcp.pop %v2869
        %v2906 = vmul.f32 1.0, %v2905
        %v2907 = vrcp.pop %v2870
        %v2908 = vmul.f32 1.0, %v2907
        %v2909 = vrcp.pop %v2871
        %v2910 = vmul.f32 1.0, %v2909
        %v2911 = vrcp.pop %v2872
        %v2912 = vmul.f32 1.0, %v2911
        %v2913 = vrcp.pop %v2873
        %v2914 = vmul.f32 1.0, %v2913
        %v2915 = vrcp.pop %v2874
        %v2916 = vmul.f32 1.0, %v2915
        %v2917 = vrcp.pop %v2875
        %v2918 = vmul.f32 1.0, %v2917
        %v2919 = vrcp.pop %v2876
        %v2920 = vmul.f32 1.0, %v2919
        %v2921 = vrcp.pop %v2877
        %v2922 = vmul.f32 1.0, %v2921
        %v2923 = vrcp.pop %v2878
        %v2924 = vmul.f32 1.0, %v2923
        %v2925 = vrcp.pop %v2879
        %v2926 = vmul.f32 1.0, %v2925
        %v2927 = vrcp.pop %v2880
        %v2928 = vmul.f32 1.0, %v2927
        %v2929 = vrcp.pop %v2881
        %v2930 = vmul.f32 1.0, %v2929
        %v2931 = vrcp.pop %v2882
        %v2932 = vmul.f32 1.0, %v2931
        %v2933 = vrcp.pop %v2883
        %v2934 = vmul.f32 1.0, %v2933
        %v2935 = vrcp.pop %v2884
        %v2936 = vmul.f32 1.0, %v2935
        %v2937 = vrcp.pop %v2885
        %v2938 = vmul.f32 1.0, %v2937
        %v2939 = vrcp.pop %v2886
        %v2940 = vmul.f32 1.0, %v2939
        %v2941 = vrcp.pop %v2887
        %v2942 = vmul.f32 1.0, %v2941
        %v2943 = vrcp.pop %v2888
        %v2944 = vmul.f32 1.0, %v2943
        %v2945 = vrcp.pop %v2889
        %v2946 = vmul.f32 1.0, %v2945
        %v2947 = vrcp.pop %v2890
        %v2948 = vmul.f32 1.0, %v2947
        %v2949 = vrcp.pop %v2891
        %v2950 = vmul.f32 1.0, %v2949
        %v2951 = vrcp.pop %v2892
        %v2952 = vmul.f32 1.0, %v2951
        %v2953 = vrcp.pop %v2893
        %v2954 = vmul.f32 1.0, %v2953
        %v2955 = vrcp.pop %v2894
        %v2956 = vmul.f32 1.0, %v2955
        %v2957 = vrcp.pop %v2895
        %v2958 = vmul.f32 1.0, %v2957
        %v2959 = vrcp.pop %v2896
        %v2960 = vmul.f32 1.0, %v2959
        %v2961 = vmul.f32 %v2737, %v2898
        %v2962 = vmul.f32 %v2738, %v2900
        %v2963 = vmul.f32 %v2739, %v2902
        %v2964 = vmul.f32 %v2740, %v2904
        %v2965 = vmul.f32 %v2741, %v2906
        %v2966 = vmul.f32 %v2742, %v2908
        %v2967 = vmul.f32 %v2743, %v2910
        %v2968 = vmul.f32 %v2744, %v2912
        %v2969 = vmul.f32 %v2745, %v2914
        %v2970 = vmul.f32 %v2746, %v2916
        %v2971 = vmul.f32 %v2747, %v2918
        %v2972 = vmul.f32 %v2748, %v2920
        %v2973 = vmul.f32 %v2749, %v2922
        %v2974 = vmul.f32 %v2750, %v2924
        %v2975 = vmul.f32 %v2751, %v2926
        %v2976 = vmul.f32 %v2752, %v2928
        %v2977 = vmul.f32 %v2753, %v2930
        %v2978 = vmul.f32 %v2754, %v2932
        %v2979 = vmul.f32 %v2755, %v2934
        %v2980 = vmul.f32 %v2756, %v2936
        %v2981 = vmul.f32 %v2757, %v2938
        %v2982 = vmul.f32 %v2758, %v2940
        %v2983 = vmul.f32 %v2759, %v2942
        %v2984 = vmul.f32 %v2760, %v2944
        %v2985 = vmul.f32 %v2761, %v2946
        %v2986 = vmul.f32 %v2762, %v2948
        %v2987 = vmul.f32 %v2763, %v2950
        %v2988 = vmul.f32 %v2764, %v2952
        %v2989 = vmul.f32 %v2765, %v2954
        %v2990 = vmul.f32 %v2766, %v2956
        %v2991 = vmul.f32 %v2767, %v2958
        %v2992 = vmul.f32 %v2768, %v2960
        %v2993 = vpack.c.bf16 %v2962, %v2961
        %v2994 = vpack.c.bf16 %v2964, %v2963
        %v2995 = vpack.c.bf16 %v2966, %v2965
        %v2996 = vpack.c.bf16 %v2968, %v2967
        %v2997 = vpack.c.bf16 %v2970, %v2969
        %v2998 = vpack.c.bf16 %v2972, %v2971
        %v2999 = vpack.c.bf16 %v2974, %v2973
        %v3000 = vpack.c.bf16 %v2976, %v2975
        %v3001 = vpack.c.bf16 %v2978, %v2977
        %v3002 = vpack.c.bf16 %v2980, %v2979
        %v3003 = vpack.c.bf16 %v2982, %v2981
        %v3004 = vpack.c.bf16 %v2984, %v2983
        %v3005 = vpack.c.bf16 %v2986, %v2985
        %v3006 = vpack.c.bf16 %v2988, %v2987
        %v3007 = vpack.c.bf16 %v2990, %v2989
        %v3008 = vpack.c.bf16 %v2992, %v2991
        %v3010 = vshrl.u32 0, 16
        %v3012 = vrot.slane %v3010, 7
        %v3013 = vshll.u32 0, 16
        %v3015 = vor.u32 %v3012, %v3013
        %v3017 = vshrl.u32 %v2993, 16
        %v3019 = vrot.slane %v3017, 7
        %v3020 = vshll.u32 %v2993, 16
        %v3022 = vor.u32 %v3019, %v3020
        %v3024 = vshrl.u32 %v2994, 16
        %v3026 = vrot.slane %v3024, 7
        %v3027 = vshll.u32 %v2994, 16
        %v3029 = vor.u32 %v3026, %v3027
        %v3031 = vshrl.u32 %v2995, 16
        %v3033 = vrot.slane %v3031, 7
        %v3034 = vshll.u32 %v2995, 16
        %v3036 = vor.u32 %v3033, %v3034
        %v3038 = vshrl.u32 %v2996, 16
        %v3040 = vrot.slane %v3038, 7
        %v3041 = vshll.u32 %v2996, 16
        %v3043 = vor.u32 %v3040, %v3041
        %v3045 = vshrl.u32 %v2997, 16
        %v3047 = vrot.slane %v3045, 7
        %v3048 = vshll.u32 %v2997, 16
        %v3050 = vor.u32 %v3047, %v3048
        %v3052 = vshrl.u32 %v2998, 16
        %v3054 = vrot.slane %v3052, 7
        %v3055 = vshll.u32 %v2998, 16
        %v3057 = vor.u32 %v3054, %v3055
        %v3059 = vshrl.u32 %v2999, 16
        %v3061 = vrot.slane %v3059, 7
        %v3062 = vshll.u32 %v2999, 16
        %v3064 = vor.u32 %v3061, %v3062
        %v3066 = vshrl.u32 %v3000, 16
        %v3068 = vrot.slane %v3066, 7
        %v3069 = vshll.u32 %v3000, 16
        %v3071 = vor.u32 %v3068, %v3069
        %v3073 = vshrl.u32 %v3001, 16
        %v3075 = vrot.slane %v3073, 7
        %v3076 = vshll.u32 %v3001, 16
        %v3078 = vor.u32 %v3075, %v3076
        %v3080 = vshrl.u32 %v3002, 16
        %v3082 = vrot.slane %v3080, 7
        %v3083 = vshll.u32 %v3002, 16
        %v3085 = vor.u32 %v3082, %v3083
        %v3087 = vshrl.u32 %v3003, 16
        %v3089 = vrot.slane %v3087, 7
        %v3090 = vshll.u32 %v3003, 16
        %v3092 = vor.u32 %v3089, %v3090
        %v3094 = vshrl.u32 %v3004, 16
        %v3096 = vrot.slane %v3094, 7
        %v3097 = vshll.u32 %v3004, 16
        %v3099 = vor.u32 %v3096, %v3097
        %v3101 = vshrl.u32 %v3005, 16
        %v3103 = vrot.slane %v3101, 7
        %v3104 = vshll.u32 %v3005, 16
        %v3106 = vor.u32 %v3103, %v3104
        %v3108 = vshrl.u32 %v3006, 16
        %v3110 = vrot.slane %v3108, 7
        %v3111 = vshll.u32 %v3006, 16
        %v3113 = vor.u32 %v3110, %v3111
        %v3115 = vshrl.u32 %v3007, 16
        %v3117 = vrot.slane %v3115, 7
        %v3118 = vshll.u32 %v3007, 16
        %v3120 = vor.u32 %v3117, %v3118
        %v3122 = vshrl.u32 %v3008, 16
        %v3124 = vrot.slane %v3122, 7
        %v3125 = vshll.u32 %v3008, 16
        %v3127 = vor.u32 %v3124, %v3125
        %v3145 = vsel %vm734, 0, %v3015
        %v3146 = vsel %vm734, 0, %v3022
        %v3147 = vsel %vm734, 0, %v3029
        %v3148 = vsel %vm734, 0, %v3036
        %v3149 = vsel %vm734, 0, %v3043
        %v3150 = vsel %vm734, 0, %v3050
        %v3151 = vsel %vm734, 0, %v3057
        %v3152 = vsel %vm734, 0, %v3064
        %v3153 = vsel %vm734, 0, %v3071
        %v3154 = vsel %vm734, 0, %v3078
        %v3155 = vsel %vm734, 0, %v3085
        %v3156 = vsel %vm734, 0, %v3092
        %v3157 = vsel %vm734, 0, %v3099
        %v3158 = vsel %vm734, 0, %v3106
        %v3159 = vsel %vm734, 0, %v3113
        %v3160 = vsel %vm734, 0, %v3120
        %v3161 = vsel %vm734, 0, %v3127
        %v3162 = vrot.slane %v3013, 1
        %v3163 = vor.u32 %v3010, %v3162
        %v3164 = vrot.slane %v3020, 1
        %v3165 = vor.u32 %v3017, %v3164
        %v3166 = vrot.slane %v3027, 1
        %v3167 = vor.u32 %v3024, %v3166
        %v3168 = vrot.slane %v3034, 1
        %v3169 = vor.u32 %v3031, %v3168
        %v3170 = vrot.slane %v3041, 1
        %v3171 = vor.u32 %v3038, %v3170
        %v3172 = vrot.slane %v3048, 1
        %v3173 = vor.u32 %v3045, %v3172
        %v3174 = vrot.slane %v3055, 1
        %v3175 = vor.u32 %v3052, %v3174
        %v3176 = vrot.slane %v3062, 1
        %v3177 = vor.u32 %v3059, %v3176
        %v3178 = vrot.slane %v3069, 1
        %v3179 = vor.u32 %v3066, %v3178
        %v3180 = vrot.slane %v3076, 1
        %v3181 = vor.u32 %v3073, %v3180
        %v3182 = vrot.slane %v3083, 1
        %v3183 = vor.u32 %v3080, %v3182
        %v3184 = vrot.slane %v3090, 1
        %v3185 = vor.u32 %v3087, %v3184
        %v3186 = vrot.slane %v3097, 1
        %v3187 = vor.u32 %v3094, %v3186
        %v3188 = vrot.slane %v3104, 1
        %v3189 = vor.u32 %v3101, %v3188
        %v3190 = vrot.slane %v3111, 1
        %v3191 = vor.u32 %v3108, %v3190
        %v3192 = vrot.slane %v3118, 1
        %v3193 = vor.u32 %v3115, %v3192
        %v3194 = vrot.slane %v3125, 1
        %v3195 = vor.u32 %v3122, %v3194
        %v3213 = vsel %vm809, %v3163, 0
        %v3214 = vsel %vm809, %v3165, 0
        %v3215 = vsel %vm809, %v3167, 0
        %v3216 = vsel %vm809, %v3169, 0
        %v3217 = vsel %vm809, %v3171, 0
        %v3218 = vsel %vm809, %v3173, 0
        %v3219 = vsel %vm809, %v3175, 0
        %v3220 = vsel %vm809, %v3177, 0
        %v3221 = vsel %vm809, %v3179, 0
        %v3222 = vsel %vm809, %v3181, 0
        %v3223 = vsel %vm809, %v3183, 0
        %v3224 = vsel %vm809, %v3185, 0
        %v3225 = vsel %vm809, %v3187, 0
        %v3226 = vsel %vm809, %v3189, 0
        %v3227 = vsel %vm809, %v3191, 0
        %v3228 = vsel %vm809, %v3193, 0
        %v3229 = vsel %vm809, %v3195, 0
        %v3230 = vld [vmem:[#allocation8] sm:$0xf]
        %v3231 = vld [vmem:[#allocation8 + $0x4] sm:$0xf]
        %v3232 = vld [vmem:[#allocation8 + $0x8] sm:$0xf]
        %v3233 = vld [vmem:[#allocation8 + $0xc] sm:$0xf]
        %v3234 = vld [vmem:[#allocation8 + $0x10] sm:$0xf]
        %v3235 = vld [vmem:[#allocation8 + $0x14] sm:$0xf]
        %v3236 = vld [vmem:[#allocation8 + $0x18] sm:$0xf]
        %v3237 = vld [vmem:[#allocation8 + $0x1c] sm:$0xf]
        %v3238 = vld [vmem:[#allocation8 + $0x20] sm:$0xf]
        %v3239 = vld [vmem:[#allocation8 + $0x24] sm:$0xf]
        %v3240 = vld [vmem:[#allocation8 + $0x28] sm:$0xf]
        %v3241 = vld [vmem:[#allocation8 + $0x2c] sm:$0xf]
        %v3242 = vld [vmem:[#allocation8 + $0x30] sm:$0xf]
        %v3243 = vld [vmem:[#allocation8 + $0x34] sm:$0xf]
        %v3244 = vld [vmem:[#allocation8 + $0x38] sm:$0xf]
        %v3245 = vld [vmem:[#allocation8 + $0x3c] sm:$0xf]
        %v3246 = vld [vmem:[#allocation8 + $0x40] sm:$0xf]
        %v3247 = vld [vmem:[#allocation8 + $0x44] sm:$0xf]
        %v3248 = vld [vmem:[#allocation8 + $0x48] sm:$0xf]
        %v3249 = vld [vmem:[#allocation8 + $0x4c] sm:$0xf]
        %v3250 = vld [vmem:[#allocation8 + $0x50] sm:$0xf]
        %v3251 = vld [vmem:[#allocation8 + $0x54] sm:$0xf]
        %v3252 = vld [vmem:[#allocation8 + $0x58] sm:$0xf]
        %v3253 = vld [vmem:[#allocation8 + $0x5c] sm:$0xf]
        %v3254 = vld [vmem:[#allocation8 + $0x60] sm:$0xf]
        %v3255 = vld [vmem:[#allocation8 + $0x64] sm:$0xf]
        %v3256 = vld [vmem:[#allocation8 + $0x68] sm:$0xf]
        %v3257 = vld [vmem:[#allocation8 + $0x6c] sm:$0xf]
        %v3258 = vld [vmem:[#allocation8 + $0x70] sm:$0xf]
        %v3259 = vld [vmem:[#allocation8 + $0x74] sm:$0xf]
        %v3260 = vld [vmem:[#allocation8 + $0x78] sm:$0xf]
        %v3261 = vld [vmem:[#allocation8 + $0x7c] sm:$0xf]
        %v3262 = vld [vmem:[#allocation8 + $0x80] sm:$0xf]
        %v3263 = vld [vmem:[#allocation8 + $0x84] sm:$0xf]
        %v3264 = vld [vmem:[#allocation8 + $0x88] sm:$0xf]
        %v3265 = vld [vmem:[#allocation8 + $0x8c] sm:$0xf]
        %v3266 = vld [vmem:[#allocation8 + $0x90] sm:$0xf]
        %v3267 = vld [vmem:[#allocation8 + $0x94] sm:$0xf]
        %v3268 = vld [vmem:[#allocation8 + $0x98] sm:$0xf]
        %v3269 = vld [vmem:[#allocation8 + $0x9c] sm:$0xf]
        %v3270 = vld [vmem:[#allocation8 + $0xa0] sm:$0xf]
        %v3271 = vld [vmem:[#allocation8 + $0xa4] sm:$0xf]
        %v3272 = vld [vmem:[#allocation8 + $0xa8] sm:$0xf]
        %v3273 = vld [vmem:[#allocation8 + $0xac] sm:$0xf]
        %v3274 = vld [vmem:[#allocation8 + $0xb0] sm:$0xf]
        %v3275 = vld [vmem:[#allocation8 + $0xb4] sm:$0xf]
        %v3276 = vld [vmem:[#allocation8 + $0xb8] sm:$0xf]
        %v3277 = vld [vmem:[#allocation8 + $0xbc] sm:$0xf]
        %s3278 = scalar_lea.vmem [#allocation8], 192
        %v3279 = vld [vmem:[%s3278] sm:$0xf]
        %v3280 = vld [vmem:[%s3278 + $0x4] sm:$0xf]
        %v3281 = vld [vmem:[%s3278 + $0x8] sm:$0xf]
        %v3282 = vld [vmem:[%s3278 + $0xc] sm:$0xf]
        %v3283 = vld [vmem:[%s3278 + $0x10] sm:$0xf]
        %v3284 = vld [vmem:[%s3278 + $0x14] sm:$0xf]
        %v3285 = vld [vmem:[%s3278 + $0x18] sm:$0xf]
        %v3286 = vld [vmem:[%s3278 + $0x1c] sm:$0xf]
        %v3287 = vld [vmem:[%s3278 + $0x20] sm:$0xf]
        %v3288 = vld [vmem:[%s3278 + $0x24] sm:$0xf]
        %v3289 = vld [vmem:[%s3278 + $0x28] sm:$0xf]
        %v3290 = vld [vmem:[%s3278 + $0x2c] sm:$0xf]
        %v3291 = vld [vmem:[%s3278 + $0x30] sm:$0xf]
        %v3292 = vld [vmem:[%s3278 + $0x34] sm:$0xf]
        %v3293 = vld [vmem:[%s3278 + $0x38] sm:$0xf]
        %v3294 = vld [vmem:[%s3278 + $0x3c] sm:$0xf]
        %v3295 = vld [vmem:[%s3278 + $0x40] sm:$0xf]
        %v3296 = vld [vmem:[%s3278 + $0x44] sm:$0xf]
        %v3297 = vld [vmem:[%s3278 + $0x48] sm:$0xf]
        %v3298 = vld [vmem:[%s3278 + $0x4c] sm:$0xf]
        %v3299 = vld [vmem:[%s3278 + $0x50] sm:$0xf]
        %v3300 = vld [vmem:[%s3278 + $0x54] sm:$0xf]
        %v3301 = vld [vmem:[%s3278 + $0x58] sm:$0xf]
        %v3302 = vld [vmem:[%s3278 + $0x5c] sm:$0xf]
        %v3303 = vld [vmem:[%s3278 + $0x60] sm:$0xf]
        %v3304 = vld [vmem:[%s3278 + $0x64] sm:$0xf]
        %v3305 = vld [vmem:[%s3278 + $0x68] sm:$0xf]
        %v3306 = vld [vmem:[%s3278 + $0x6c] sm:$0xf]
        %v3307 = vld [vmem:[%s3278 + $0x70] sm:$0xf]
        %v3308 = vld [vmem:[%s3278 + $0x74] sm:$0xf]
        %v3309 = vld [vmem:[%s3278 + $0x78] sm:$0xf]
        %v3310 = vld [vmem:[%s3278 + $0x7c] sm:$0xf]
        %v3311 = vld [vmem:[%s3278 + $0x80] sm:$0xf]
        %v3312 = vld [vmem:[%s3278 + $0x84] sm:$0xf]
        %v3313 = vld [vmem:[%s3278 + $0x88] sm:$0xf]
        %v3314 = vld [vmem:[%s3278 + $0x8c] sm:$0xf]
        %v3315 = vld [vmem:[%s3278 + $0x90] sm:$0xf]
        %v3316 = vld [vmem:[%s3278 + $0x94] sm:$0xf]
        %v3317 = vld [vmem:[%s3278 + $0x98] sm:$0xf]
        %v3318 = vld [vmem:[%s3278 + $0x9c] sm:$0xf]
        %v3319 = vld [vmem:[%s3278 + $0xa0] sm:$0xf]
        %v3320 = vld [vmem:[%s3278 + $0xa4] sm:$0xf]
        %v3321 = vld [vmem:[%s3278 + $0xa8] sm:$0xf]
        %v3322 = vld [vmem:[%s3278 + $0xac] sm:$0xf]
        %v3323 = vld [vmem:[%s3278 + $0xb0] sm:$0xf]
        %v3324 = vld [vmem:[%s3278 + $0xb4] sm:$0xf]
        %v3325 = vld [vmem:[%s3278 + $0xb8] sm:$0xf]
        %v3326 = vld [vmem:[%s3278 + $0xbc] sm:$0xf]
        %v3375 = vunpack.c.l.b16 %v3279
        %v3376 = vunpack.c.l.b16 %v3280
        %v3377 = vunpack.c.l.b16 %v3281
        %v3378 = vunpack.c.l.b16 %v3282
        %v3379 = vunpack.c.l.b16 %v3283
        %v3380 = vunpack.c.l.b16 %v3284
        %v3381 = vunpack.c.l.b16 %v3285
        %v3382 = vunpack.c.l.b16 %v3286
        %v3383 = vunpack.c.l.b16 %v3287
        %v3384 = vunpack.c.l.b16 %v3288
        %v3385 = vunpack.c.l.b16 %v3289
        %v3386 = vunpack.c.l.b16 %v3290
        %v3387 = vunpack.c.l.b16 %v3291
        %v3388 = vunpack.c.l.b16 %v3292
        %v3389 = vunpack.c.l.b16 %v3293
        %v3390 = vunpack.c.l.b16 %v3294
        %v3391 = vunpack.c.l.b16 %v3295
        %v3392 = vunpack.c.l.b16 %v3296
        %v3393 = vunpack.c.l.b16 %v3297
        %v3394 = vunpack.c.l.b16 %v3298
        %v3395 = vunpack.c.l.b16 %v3299
        %v3396 = vunpack.c.l.b16 %v3300
        %v3397 = vunpack.c.l.b16 %v3301
        %v3398 = vunpack.c.l.b16 %v3302
        %v3399 = vunpack.c.l.b16 %v3303
        %v3400 = vunpack.c.l.b16 %v3304
        %v3401 = vunpack.c.l.b16 %v3305
        %v3402 = vunpack.c.l.b16 %v3306
        %v3403 = vunpack.c.l.b16 %v3307
        %v3404 = vunpack.c.l.b16 %v3308
        %v3405 = vunpack.c.l.b16 %v3309
        %v3406 = vunpack.c.l.b16 %v3310
        %v3407 = vunpack.c.l.b16 %v3311
        %v3408 = vunpack.c.l.b16 %v3312
        %v3409 = vunpack.c.l.b16 %v3313
        %v3410 = vunpack.c.l.b16 %v3314
        %v3411 = vunpack.c.l.b16 %v3315
        %v3412 = vunpack.c.l.b16 %v3316
        %v3413 = vunpack.c.l.b16 %v3317
        %v3414 = vunpack.c.l.b16 %v3318
        %v3415 = vunpack.c.l.b16 %v3319
        %v3416 = vunpack.c.l.b16 %v3320
        %v3417 = vunpack.c.l.b16 %v3321
        %v3418 = vunpack.c.l.b16 %v3322
        %v3419 = vunpack.c.l.b16 %v3323
        %v3420 = vunpack.c.l.b16 %v3324
        %v3421 = vunpack.c.l.b16 %v3325
        %v3422 = vunpack.c.l.b16 %v3326
        %v3423 = vpack.c.b16 %v3376, %v3375
        %v3424 = vpack.c.b16 %v3378, %v3377
        %v3425 = vpack.c.b16 %v3380, %v3379
        %v3426 = vpack.c.b16 %v3382, %v3381
        %v3427 = vpack.c.b16 %v3384, %v3383
        %v3428 = vpack.c.b16 %v3386, %v3385
        %v3429 = vpack.c.b16 %v3388, %v3387
        %v3430 = vpack.c.b16 %v3390, %v3389
        %v3431 = vpack.c.b16 %v3392, %v3391
        %v3432 = vpack.c.b16 %v3394, %v3393
        %v3433 = vpack.c.b16 %v3396, %v3395
        %v3434 = vpack.c.b16 %v3398, %v3397
        %v3435 = vpack.c.b16 %v3400, %v3399
        %v3436 = vpack.c.b16 %v3402, %v3401
        %v3437 = vpack.c.b16 %v3404, %v3403
        %v3438 = vpack.c.b16 %v3406, %v3405
        %v3439 = vpack.c.b16 %v3408, %v3407
        %v3440 = vpack.c.b16 %v3410, %v3409
        %v3441 = vpack.c.b16 %v3412, %v3411
        %v3442 = vpack.c.b16 %v3414, %v3413
        %v3443 = vpack.c.b16 %v3416, %v3415
        %v3444 = vpack.c.b16 %v3418, %v3417
        %v3445 = vpack.c.b16 %v3420, %v3419
        %v3446 = vpack.c.b16 %v3422, %v3421
        %3471 = vmatprep.subr.bf16.mxu0 0
        %3472 = vmatpush1.bf16.msra.mxu0 %v3423
        %3473 = vmatprep.subr.bf16.mxu0 0
        %3474 = vmatpush1.bf16.msra.mxu0 %v3424
        %3475 = vmatprep.subr.bf16.mxu0 0
        %3476 = vmatpush1.bf16.msra.mxu0 %v3425
        %3477 = vmatprep.subr.bf16.mxu0 0
        %3478 = vmatpush1.bf16.msra.mxu0 %v3426
        %3479 = vmatprep.subr.bf16.mxu0 0
        %3480 = vmatpush1.bf16.msra.mxu0 %v3427
        %3481 = vmatprep.subr.bf16.mxu0 0
        %3482 = vmatpush1.bf16.msra.mxu0 %v3428
        %3483 = vmatprep.subr.bf16.mxu0 0
        %3484 = vmatpush1.bf16.msra.mxu0 %v3429
        %3485 = vmatprep.subr.bf16.mxu0 0
        %3486 = vmatpush1.bf16.msra.mxu0 %v3430
        %3487 = vmatprep.subr.bf16.mxu0 0
        %3488 = vmatpush1.bf16.msra.mxu0 %v3431
        %3489 = vmatprep.subr.bf16.mxu0 0
        %3490 = vmatpush1.bf16.msra.mxu0 %v3432
        %3491 = vmatprep.subr.bf16.mxu0 0
        %3492 = vmatpush1.bf16.msra.mxu0 %v3433
        %3493 = vmatprep.subr.bf16.mxu0 0
        %3494 = vmatpush1.bf16.msra.mxu0 %v3434
        %3495 = vmatprep.subr.bf16.mxu0 0
        %3496 = vmatpush1.bf16.msra.mxu0 %v3435
        %3497 = vmatprep.subr.bf16.mxu0 0
        %3498 = vmatpush1.bf16.msra.mxu0 %v3436
        %3499 = vmatprep.subr.bf16.mxu0 0
        %3500 = vmatpush1.bf16.msra.mxu0 %v3437
        %3501 = vmatprep.subr.bf16.mxu0 0
        %3502 = vmatpush1.bf16.msra.mxu0 %v3438
        %3503 = vmatprep.mubr.bf16.mxu0 %v2993
        %3504 = vmatmul.mubr.bf16.gmra.mrb[0].mxu0 %v3146
        %v3505 = vpop.f32.mrb[0].mxu0
        %v3506 = vadd.f32 0.0, %v3505
        %v3507 = vpop.f32.mrb[0].mxu0
        %v3508 = vpop.f32.mrb[0].mxu0
        %v3509 = vadd.f32 0.0, %v3508
        %v3510 = vpop.f32.mrb[0].mxu0
        %3511 = vmatprep.mubr.bf16.mxu0 %v2994
        %3512 = vmatmul.mubr.bf16.gmra.mrb[0].mxu0 %v3147
        %v3513 = vpop.f32.mrb[0].mxu0
        %v3514 = vadd.f32 0.0, %v3513
        %v3515 = vpop.f32.mrb[0].mxu0
        %v3516 = vpop.f32.mrb[0].mxu0
        %v3517 = vadd.f32 0.0, %v3516
        %v3518 = vpop.f32.mrb[0].mxu0
        %3519 = vmatprep.mubr.bf16.mxu0 %v2995
        %3520 = vmatmul.mubr.bf16.gmra.mrb[0].mxu0 %v3148
        %v3521 = vpop.f32.mrb[0].mxu0
        %v3522 = vadd.f32 0.0, %v3521
        %v3523 = vpop.f32.mrb[0].mxu0
        %v3524 = vpop.f32.mrb[0].mxu0
        %v3525 = vadd.f32 0.0, %v3524
        %v3526 = vpop.f32.mrb[0].mxu0
        %3527 = vmatprep.mubr.bf16.mxu0 %v2996
        %3528 = vmatmul.mubr.bf16.gmra.mrb[0].mxu0 %v3149
        %v3529 = vpop.f32.mrb[0].mxu0
        %v3530 = vadd.f32 0.0, %v3529
        %v3531 = vpop.f32.mrb[0].mxu0
        %v3532 = vpop.f32.mrb[0].mxu0
        %v3533 = vadd.f32 0.0, %v3532
        %v3534 = vpop.f32.mrb[0].mxu0
        %3535 = vmatprep.mubr.bf16.mxu0 %v2997
        %3536 = vmatmul.mubr.bf16.gmra.mrb[0].mxu0 %v3150
        %v3537 = vpop.f32.mrb[0].mxu0
        %v3538 = vadd.f32 0.0, %v3537
        %v3539 = vpop.f32.mrb[0].mxu0
        %v3540 = vpop.f32.mrb[0].mxu0
        %v3541 = vadd.f32 0.0, %v3540
        %v3542 = vpop.f32.mrb[0].mxu0
        %3543 = vmatprep.mubr.bf16.mxu0 %v2998
        %3544 = vmatmul.mubr.bf16.gmra.mrb[0].mxu0 %v3151
        %v3545 = vpop.f32.mrb[0].mxu0
        %v3546 = vadd.f32 0.0, %v3545
        %v3547 = vpop.f32.mrb[0].mxu0
        %v3548 = vpop.f32.mrb[0].mxu0
        %v3549 = vadd.f32 0.0, %v3548
        %v3550 = vpop.f32.mrb[0].mxu0
        %3551 = vmatprep.mubr.bf16.mxu0 %v2999
        %3552 = vmatmul.mubr.bf16.gmra.mrb[0].mxu0 %v3152
        %v3553 = vpop.f32.mrb[0].mxu0
        %v3554 = vadd.f32 0.0, %v3553
        %v3555 = vpop.f32.mrb[0].mxu0
        %v3556 = vpop.f32.mrb[0].mxu0
        %v3557 = vadd.f32 0.0, %v3556
        %v3558 = vpop.f32.mrb[0].mxu0
        %3559 = vmatprep.mubr.bf16.mxu0 %v3000
        %3560 = vmatmul.mubr.bf16.gmra.mrb[0].mxu0 %v3153
        %v3561 = vpop.f32.mrb[0].mxu0
        %v3562 = vadd.f32 0.0, %v3561
        %v3563 = vpop.f32.mrb[0].mxu0
        %v3564 = vpop.f32.mrb[0].mxu0
        %v3565 = vadd.f32 0.0, %v3564
        %v3566 = vpop.f32.mrb[0].mxu0
        %3567 = vmatprep.mubr.bf16.mxu0 %v3001
        %3568 = vmatmul.mubr.bf16.gmra.mrb[0].mxu0 %v3154
        %v3569 = vpop.f32.mrb[0].mxu0
        %v3570 = vadd.f32 0.0, %v3569
        %v3571 = vpop.f32.mrb[0].mxu0
        %v3572 = vpop.f32.mrb[0].mxu0
        %v3573 = vadd.f32 0.0, %v3572
        %v3574 = vpop.f32.mrb[0].mxu0
        %3575 = vmatprep.mubr.bf16.mxu0 %v3002
        %3576 = vmatmul.mubr.bf16.gmra.mrb[0].mxu0 %v3155
        %v3577 = vpop.f32.mrb[0].mxu0
        %v3578 = vadd.f32 0.0, %v3577
        %v3579 = vpop.f32.mrb[0].mxu0
        %v3580 = vpop.f32.mrb[0].mxu0
        %v3581 = vadd.f32 0.0, %v3580
        %v3582 = vpop.f32.mrb[0].mxu0
        %3583 = vmatprep.mubr.bf16.mxu0 %v3003
        %3584 = vmatmul.mubr.bf16.gmra.mrb[0].mxu0 %v3156
        %v3585 = vpop.f32.mrb[0].mxu0
        %v3586 = vadd.f32 0.0, %v3585
        %v3587 = vpop.f32.mrb[0].mxu0
        %v3588 = vpop.f32.mrb[0].mxu0
        %v3589 = vadd.f32 0.0, %v3588
        %v3590 = vpop.f32.mrb[0].mxu0
        %3591 = vmatprep.mubr.bf16.mxu0 %v3004
        %3592 = vmatmul.mubr.bf16.gmra.mrb[0].mxu0 %v3157
        %v3593 = vpop.f32.mrb[0].mxu0
        %v3594 = vadd.f32 0.0, %v3593
        %v3595 = vpop.f32.mrb[0].mxu0
        %v3596 = vpop.f32.mrb[0].mxu0
        %v3597 = vadd.f32 0.0, %v3596
        %v3598 = vpop.f32.mrb[0].mxu0
        %3599 = vmatprep.mubr.bf16.mxu0 %v3005
        %3600 = vmatmul.mubr.bf16.gmra.mrb[0].mxu0 %v3158
        %v3601 = vpop.f32.mrb[0].mxu0
        %v3602 = vadd.f32 0.0, %v3601
        %v3603 = vpop.f32.mrb[0].mxu0
        %v3604 = vpop.f32.mrb[0].mxu0
        %v3605 = vadd.f32 0.0, %v3604
        %v3606 = vpop.f32.mrb[0].mxu0
        %3607 = vmatprep.mubr.bf16.mxu0 %v3006
        %3608 = vmatmul.mubr.bf16.gmra.mrb[0].mxu0 %v3159
        %v3609 = vpop.f32.mrb[0].mxu0
        %v3610 = vadd.f32 0.0, %v3609
        %v3611 = vpop.f32.mrb[0].mxu0
        %v3612 = vpop.f32.mrb[0].mxu0
        %v3613 = vadd.f32 0.0, %v3612
        %v3614 = vpop.f32.mrb[0].mxu0
        %3615 = vmatprep.mubr.bf16.mxu0 %v3007
        %3616 = vmatmul.mubr.bf16.gmra.mrb[0].mxu0 %v3160
        %v3617 = vpop.f32.mrb[0].mxu0
        %v3618 = vadd.f32 0.0, %v3617
        %v3619 = vpop.f32.mrb[0].mxu0
        %v3620 = vpop.f32.mrb[0].mxu0
        %v3621 = vadd.f32 0.0, %v3620
        %v3622 = vpop.f32.mrb[0].mxu0
        %3623 = vmatprep.mubr.bf16.mxu0 %v3008
        %3624 = vmatmul.mubr.bf16.gmra.mrb[0].mxu0 %v3161
        %v3625 = vpop.f32.mrb[0].mxu0
        %v3626 = vadd.f32 0.0, %v3625
        %v3627 = vpop.f32.mrb[0].mxu0
        %v3628 = vpop.f32.mrb[0].mxu0
        %v3629 = vadd.f32 0.0, %v3628
        %v3630 = vpop.f32.mrb[0].mxu0
        %3631 = vdwg.mxu0
        %3632 = vmatprep.subr.bf16.mxu0 0
        %3633 = vmatpush1.bf16.msra.mxu0 %v3439
        %3634 = vmatprep.subr.bf16.mxu0 0
        %3635 = vmatpush1.bf16.msra.mxu0 %v3440
        %3636 = vmatprep.subr.bf16.mxu0 0
        %3637 = vmatpush1.bf16.msra.mxu0 %v3441
        %3638 = vmatprep.subr.bf16.mxu0 0
        %3639 = vmatpush1.bf16.msra.mxu0 %v3442
        %3640 = vmatprep.subr.bf16.mxu0 0
        %3641 = vmatpush1.bf16.msra.mxu0 %v3443
        %3642 = vmatprep.subr.bf16.mxu0 0
        %3643 = vmatpush1.bf16.msra.mxu0 %v3444
        %3644 = vmatprep.subr.bf16.mxu0 0
        %3645 = vmatpush1.bf16.msra.mxu0 %v3445
        %3646 = vmatprep.subr.bf16.mxu0 0
        %3647 = vmatpush1.bf16.msra.mxu0 %v3446
        %3648 = vmatprep.subr.bf16.mxu0 0
        %3649 = vmatpush1.bf16.msra.mxu0 0
        %3650 = vmatprep.subr.bf16.mxu0 0
        %3651 = vmatpush1.bf16.msra.mxu0 0
        %3652 = vmatprep.subr.bf16.mxu0 0
        %3653 = vmatpush1.bf16.msra.mxu0 0
        %3654 = vmatprep.subr.bf16.mxu0 0
        %3655 = vmatpush1.bf16.msra.mxu0 0
        %3656 = vmatprep.subr.bf16.mxu0 0
        %3657 = vmatpush1.bf16.msra.mxu0 0
        %3658 = vmatprep.subr.bf16.mxu0 0
        %3659 = vmatpush1.bf16.msra.mxu0 0
        %3660 = vmatprep.subr.bf16.mxu0 0
        %3661 = vmatpush1.bf16.msra.mxu0 0
        %3662 = vmatprep.subr.bf16.mxu0 0
        %3663 = vmatpush1.bf16.msra.mxu0 0
        %3664 = vmatprep.mubr.bf16.mxu0 0
        %3665 = vmatmul.mubr.bf16.gmra.mrb[0].mxu0 %v3214
        %v3666 = vpop.f32.mrb[0].mxu0
        %v3667 = vadd.f32 %v3506, %v3666
        %v3668 = vpop.f32.mrb[0].mxu0
        %v3669 = vpop.f32.mrb[0].mxu0
        %v3670 = vadd.f32 %v3509, %v3669
        %v3671 = vpop.f32.mrb[0].mxu0
        %3672 = vmatprep.mubr.bf16.mxu0 0
        %3673 = vmatmul.mubr.bf16.gmra.mrb[0].mxu0 %v3215
        %v3674 = vpop.f32.mrb[0].mxu0
        %v3675 = vadd.f32 %v3514, %v3674
        %v3676 = vpop.f32.mrb[0].mxu0
        %v3677 = vpop.f32.mrb[0].mxu0
        %v3678 = vadd.f32 %v3517, %v3677
        %v3679 = vpop.f32.mrb[0].mxu0
        %3680 = vmatprep.mubr.bf16.mxu0 0
        %3681 = vmatmul.mubr.bf16.gmra.mrb[0].mxu0 %v3216
        %v3682 = vpop.f32.mrb[0].mxu0
        %v3683 = vadd.f32 %v3522, %v3682
        %v3684 = vpop.f32.mrb[0].mxu0
        %v3685 = vpop.f32.mrb[0].mxu0
        %v3686 = vadd.f32 %v3525, %v3685
        %v3687 = vpop.f32.mrb[0].mxu0
        %3688 = vmatprep.mubr.bf16.mxu0 0
        %3689 = vmatmul.mubr.bf16.gmra.mrb[0].mxu0 %v3217
        %v3690 = vpop.f32.mrb[0].mxu0
        %v3691 = vadd.f32 %v3530, %v3690
        %v3692 = vpop.f32.mrb[0].mxu0
        %v3693 = vpop.f32.mrb[0].mxu0
        %v3694 = vadd.f32 %v3533, %v3693
        %v3695 = vpop.f32.mrb[0].mxu0
        %3696 = vmatprep.mubr.bf16.mxu0 0
        %3697 = vmatmul.mubr.bf16.gmra.mrb[0].mxu0 %v3218
        %v3698 = vpop.f32.mrb[0].mxu0
        %v3699 = vadd.f32 %v3538, %v3698
        %v3700 = vpop.f32.mrb[0].mxu0
        %v3701 = vpop.f32.mrb[0].mxu0
        %v3702 = vadd.f32 %v3541, %v3701
        %v3703 = vpop.f32.mrb[0].mxu0
        %3704 = vmatprep.mubr.bf16.mxu0 0
        %3705 = vmatmul.mubr.bf16.gmra.mrb[0].mxu0 %v3219
        %v3706 = vpop.f32.mrb[0].mxu0
        %v3707 = vadd.f32 %v3546, %v3706
        %v3708 = vpop.f32.mrb[0].mxu0
        %v3709 = vpop.f32.mrb[0].mxu0
        %v3710 = vadd.f32 %v3549, %v3709
        %v3711 = vpop.f32.mrb[0].mxu0
        %3712 = vmatprep.mubr.bf16.mxu0 0
        %3713 = vmatmul.mubr.bf16.gmra.mrb[0].mxu0 %v3220
        %v3714 = vpop.f32.mrb[0].mxu0
        %v3715 = vadd.f32 %v3554, %v3714
        %v3716 = vpop.f32.mrb[0].mxu0
        %v3717 = vpop.f32.mrb[0].mxu0
        %v3718 = vadd.f32 %v3557, %v3717
        %v3719 = vpop.f32.mrb[0].mxu0
        %3720 = vmatprep.mubr.bf16.mxu0 0
        %3721 = vmatmul.mubr.bf16.gmra.mrb[0].mxu0 %v3221
        %v3722 = vpop.f32.mrb[0].mxu0
        %v3723 = vadd.f32 %v3562, %v3722
        %v3724 = vpop.f32.mrb[0].mxu0
        %v3725 = vpop.f32.mrb[0].mxu0
        %v3726 = vadd.f32 %v3565, %v3725
        %v3727 = vpop.f32.mrb[0].mxu0
        %3728 = vmatprep.mubr.bf16.mxu0 0
        %3729 = vmatmul.mubr.bf16.gmra.mrb[0].mxu0 %v3222
        %v3730 = vpop.f32.mrb[0].mxu0
        %v3731 = vadd.f32 %v3570, %v3730
        %v3732 = vpop.f32.mrb[0].mxu0
        %v3733 = vpop.f32.mrb[0].mxu0
        %v3734 = vadd.f32 %v3573, %v3733
        %v3735 = vpop.f32.mrb[0].mxu0
        %3736 = vmatprep.mubr.bf16.mxu0 0
        %3737 = vmatmul.mubr.bf16.gmra.mrb[0].mxu0 %v3223
        %v3738 = vpop.f32.mrb[0].mxu0
        %v3739 = vadd.f32 %v3578, %v3738
        %v3740 = vpop.f32.mrb[0].mxu0
        %v3741 = vpop.f32.mrb[0].mxu0
        %v3742 = vadd.f32 %v3581, %v3741
        %v3743 = vpop.f32.mrb[0].mxu0
        %3744 = vmatprep.mubr.bf16.mxu0 0
        %3745 = vmatmul.mubr.bf16.gmra.mrb[0].mxu0 %v3224
        %v3746 = vpop.f32.mrb[0].mxu0
        %v3747 = vadd.f32 %v3586, %v3746
        %v3748 = vpop.f32.mrb[0].mxu0
        %v3749 = vpop.f32.mrb[0].mxu0
        %v3750 = vadd.f32 %v3589, %v3749
        %v3751 = vpop.f32.mrb[0].mxu0
        %3752 = vmatprep.mubr.bf16.mxu0 0
        %3753 = vmatmul.mubr.bf16.gmra.mrb[0].mxu0 %v3225
        %v3754 = vpop.f32.mrb[0].mxu0
        %v3755 = vadd.f32 %v3594, %v3754
        %v3756 = vpop.f32.mrb[0].mxu0
        %v3757 = vpop.f32.mrb[0].mxu0
        %v3758 = vadd.f32 %v3597, %v3757
        %v3759 = vpop.f32.mrb[0].mxu0
        %3760 = vmatprep.mubr.bf16.mxu0 0
        %3761 = vmatmul.mubr.bf16.gmra.mrb[0].mxu0 %v3226
        %v3762 = vpop.f32.mrb[0].mxu0
        %v3763 = vadd.f32 %v3602, %v3762
        %v3764 = vpop.f32.mrb[0].mxu0
        %v3765 = vpop.f32.mrb[0].mxu0
        %v3766 = vadd.f32 %v3605, %v3765
        %v3767 = vpop.f32.mrb[0].mxu0
        %3768 = vmatprep.mubr.bf16.mxu0 0
        %3769 = vmatmul.mubr.bf16.gmra.mrb[0].mxu0 %v3227
        %v3770 = vpop.f32.mrb[0].mxu0
        %v3771 = vadd.f32 %v3610, %v3770
        %v3772 = vpop.f32.mrb[0].mxu0
        %v3773 = vpop.f32.mrb[0].mxu0
        %v3774 = vadd.f32 %v3613, %v3773
        %v3775 = vpop.f32.mrb[0].mxu0
        %3776 = vmatprep.mubr.bf16.mxu0 0
        %3777 = vmatmul.mubr.bf16.gmra.mrb[0].mxu0 %v3228
        %v3778 = vpop.f32.mrb[0].mxu0
        %v3779 = vadd.f32 %v3618, %v3778
        %v3780 = vpop.f32.mrb[0].mxu0
        %v3781 = vpop.f32.mrb[0].mxu0
        %v3782 = vadd.f32 %v3621, %v3781
        %v3783 = vpop.f32.mrb[0].mxu0
        %3784 = vmatprep.mubr.bf16.mxu0 0
        %3785 = vmatmul.mubr.bf16.gmra.mrb[0].mxu0 %v3229
        %v3786 = vpop.f32.mrb[0].mxu0
        %v3787 = vadd.f32 %v3626, %v3786
        %v3788 = vpop.f32.mrb[0].mxu0
        %v3789 = vpop.f32.mrb[0].mxu0
        %v3790 = vadd.f32 %v3629, %v3789
        %v3791 = vpop.f32.mrb[0].mxu0
        %3792 = vdwg.mxu0
        %v3841 = vunpack.c.l.b16 %v3230
        %v3842 = vunpack.c.l.b16 %v3231
        %v3843 = vunpack.c.l.b16 %v3232
        %v3844 = vunpack.c.l.b16 %v3233
        %v3845 = vunpack.c.l.b16 %v3234
        %v3846 = vunpack.c.l.b16 %v3235
        %v3847 = vunpack.c.l.b16 %v3236
        %v3848 = vunpack.c.l.b16 %v3237
        %v3849 = vunpack.c.l.b16 %v3238
        %v3850 = vunpack.c.l.b16 %v3239
        %v3851 = vunpack.c.l.b16 %v3240
        %v3852 = vunpack.c.l.b16 %v3241
        %v3853 = vunpack.c.l.b16 %v3242
        %v3854 = vunpack.c.l.b16 %v3243
        %v3855 = vunpack.c.l.b16 %v3244
        %v3856 = vunpack.c.l.b16 %v3245
        %v3857 = vunpack.c.l.b16 %v3246
        %v3858 = vunpack.c.l.b16 %v3247
        %v3859 = vunpack.c.l.b16 %v3248
        %v3860 = vunpack.c.l.b16 %v3249
        %v3861 = vunpack.c.l.b16 %v3250
        %v3862 = vunpack.c.l.b16 %v3251
        %v3863 = vunpack.c.l.b16 %v3252
        %v3864 = vunpack.c.l.b16 %v3253
        %v3865 = vunpack.c.l.b16 %v3254
        %v3866 = vunpack.c.l.b16 %v3255
        %v3867 = vunpack.c.l.b16 %v3256
        %v3868 = vunpack.c.l.b16 %v3257
        %v3869 = vunpack.c.l.b16 %v3258
        %v3870 = vunpack.c.l.b16 %v3259
        %v3871 = vunpack.c.l.b16 %v3260
        %v3872 = vunpack.c.l.b16 %v3261
        %v3873 = vunpack.c.l.b16 %v3262
        %v3874 = vunpack.c.l.b16 %v3263
        %v3875 = vunpack.c.l.b16 %v3264
        %v3876 = vunpack.c.l.b16 %v3265
        %v3877 = vunpack.c.l.b16 %v3266
        %v3878 = vunpack.c.l.b16 %v3267
        %v3879 = vunpack.c.l.b16 %v3268
        %v3880 = vunpack.c.l.b16 %v3269
        %v3881 = vunpack.c.l.b16 %v3270
        %v3882 = vunpack.c.l.b16 %v3271
        %v3883 = vunpack.c.l.b16 %v3272
        %v3884 = vunpack.c.l.b16 %v3273
        %v3885 = vunpack.c.l.b16 %v3274
        %v3886 = vunpack.c.l.b16 %v3275
        %v3887 = vunpack.c.l.b16 %v3276
        %v3888 = vunpack.c.l.b16 %v3277
        %v3889 = vpack.c.b16 %v3842, %v3841
        %v3890 = vpack.c.b16 %v3844, %v3843
        %v3891 = vpack.c.b16 %v3846, %v3845
        %v3892 = vpack.c.b16 %v3848, %v3847
        %v3893 = vpack.c.b16 %v3850, %v3849
        %v3894 = vpack.c.b16 %v3852, %v3851
        %v3895 = vpack.c.b16 %v3854, %v3853
        %v3896 = vpack.c.b16 %v3856, %v3855
        %v3897 = vpack.c.b16 %v3858, %v3857
        %v3898 = vpack.c.b16 %v3860, %v3859
        %v3899 = vpack.c.b16 %v3862, %v3861
        %v3900 = vpack.c.b16 %v3864, %v3863
        %v3901 = vpack.c.b16 %v3866, %v3865
        %v3902 = vpack.c.b16 %v3868, %v3867
        %v3903 = vpack.c.b16 %v3870, %v3869
        %v3904 = vpack.c.b16 %v3872, %v3871
        %v3905 = vpack.c.b16 %v3874, %v3873
        %v3906 = vpack.c.b16 %v3876, %v3875
        %v3907 = vpack.c.b16 %v3878, %v3877
        %v3908 = vpack.c.b16 %v3880, %v3879
        %v3909 = vpack.c.b16 %v3882, %v3881
        %v3910 = vpack.c.b16 %v3884, %v3883
        %v3911 = vpack.c.b16 %v3886, %v3885
        %v3912 = vpack.c.b16 %v3888, %v3887
        %3937 = vmatprep.subr.bf16.mxu0 0
        %3938 = vmatpush1.bf16.msra.mxu0 %v3889
        %3939 = vmatprep.subr.bf16.mxu0 0
        %3940 = vmatpush1.bf16.msra.mxu0 %v3890
        %3941 = vmatprep.subr.bf16.mxu0 0
        %3942 = vmatpush1.bf16.msra.mxu0 %v3891
        %3943 = vmatprep.subr.bf16.mxu0 0
        %3944 = vmatpush1.bf16.msra.mxu0 %v3892
        %3945 = vmatprep.subr.bf16.mxu0 0
        %3946 = vmatpush1.bf16.msra.mxu0 %v3893
        %3947 = vmatprep.subr.bf16.mxu0 0
        %3948 = vmatpush1.bf16.msra.mxu0 %v3894
        %3949 = vmatprep.subr.bf16.mxu0 0
        %3950 = vmatpush1.bf16.msra.mxu0 %v3895
        %3951 = vmatprep.subr.bf16.mxu0 0
        %3952 = vmatpush1.bf16.msra.mxu0 %v3896
        %3953 = vmatprep.subr.bf16.mxu0 0
        %3954 = vmatpush1.bf16.msra.mxu0 %v3897
        %3955 = vmatprep.subr.bf16.mxu0 0
        %3956 = vmatpush1.bf16.msra.mxu0 %v3898
        %3957 = vmatprep.subr.bf16.mxu0 0
        %3958 = vmatpush1.bf16.msra.mxu0 %v3899
        %3959 = vmatprep.subr.bf16.mxu0 0
        %3960 = vmatpush1.bf16.msra.mxu0 %v3900
        %3961 = vmatprep.subr.bf16.mxu0 0
        %3962 = vmatpush1.bf16.msra.mxu0 %v3901
        %3963 = vmatprep.subr.bf16.mxu0 0
        %3964 = vmatpush1.bf16.msra.mxu0 %v3902
        %3965 = vmatprep.subr.bf16.mxu0 0
        %3966 = vmatpush1.bf16.msra.mxu0 %v3903
        %3967 = vmatprep.subr.bf16.mxu0 0
        %3968 = vmatpush1.bf16.msra.mxu0 %v3904
        %3969 = vmatprep.mubr.bf16.mxu0 0
        %3970 = vmatmul.mubr.bf16.gmra.mrb[0].mxu0 %v3145
        %v3971 = vpop.f32.mrb[0].mxu0
        %v3972 = vadd.f32 %v3667, %v3971
        %v3973 = vpop.f32.mrb[0].mxu0
        %v3974 = vpop.f32.mrb[0].mxu0
        %v3975 = vadd.f32 %v3670, %v3974
        %v3976 = vpop.f32.mrb[0].mxu0
        %3977 = vmatprep.mubr.bf16.mxu0 %v2993
        %3978 = vmatmul.mubr.bf16.gmra.mrb[0].mxu0 %v3146
        %v3979 = vpop.f32.mrb[0].mxu0
        %v3980 = vadd.f32 %v3675, %v3979
        %v3981 = vpop.f32.mrb[0].mxu0
        %v3982 = vpop.f32.mrb[0].mxu0
        %v3983 = vadd.f32 %v3678, %v3982
        %v3984 = vpop.f32.mrb[0].mxu0
        %3985 = vmatprep.mubr.bf16.mxu0 %v2994
        %3986 = vmatmul.mubr.bf16.gmra.mrb[0].mxu0 %v3147
        %v3987 = vpop.f32.mrb[0].mxu0
        %v3988 = vadd.f32 %v3683, %v3987
        %v3989 = vpop.f32.mrb[0].mxu0
        %v3990 = vpop.f32.mrb[0].mxu0
        %v3991 = vadd.f32 %v3686, %v3990
        %v3992 = vpop.f32.mrb[0].mxu0
        %3993 = vmatprep.mubr.bf16.mxu0 %v2995
        %3994 = vmatmul.mubr.bf16.gmra.mrb[0].mxu0 %v3148
        %v3995 = vpop.f32.mrb[0].mxu0
        %v3996 = vadd.f32 %v3691, %v3995
        %v3997 = vpop.f32.mrb[0].mxu0
        %v3998 = vpop.f32.mrb[0].mxu0
        %v3999 = vadd.f32 %v3694, %v3998
        %v4000 = vpop.f32.mrb[0].mxu0
        %4001 = vmatprep.mubr.bf16.mxu0 %v2996
        %4002 = vmatmul.mubr.bf16.gmra.mrb[0].mxu0 %v3149
        %v4003 = vpop.f32.mrb[0].mxu0
        %v4004 = vadd.f32 %v3699, %v4003
        %v4005 = vpop.f32.mrb[0].mxu0
        %v4006 = vpop.f32.mrb[0].mxu0
        %v4007 = vadd.f32 %v3702, %v4006
        %v4008 = vpop.f32.mrb[0].mxu0
        %4009 = vmatprep.mubr.bf16.mxu0 %v2997
        %4010 = vmatmul.mubr.bf16.gmra.mrb[0].mxu0 %v3150
        %v4011 = vpop.f32.mrb[0].mxu0
        %v4012 = vadd.f32 %v3707, %v4011
        %v4013 = vpop.f32.mrb[0].mxu0
        %v4014 = vpop.f32.mrb[0].mxu0
        %v4015 = vadd.f32 %v3710, %v4014
        %v4016 = vpop.f32.mrb[0].mxu0
        %4017 = vmatprep.mubr.bf16.mxu0 %v2998
        %4018 = vmatmul.mubr.bf16.gmra.mrb[0].mxu0 %v3151
        %v4019 = vpop.f32.mrb[0].mxu0
        %v4020 = vadd.f32 %v3715, %v4019
        %v4021 = vpop.f32.mrb[0].mxu0
        %v4022 = vpop.f32.mrb[0].mxu0
        %v4023 = vadd.f32 %v3718, %v4022
        %v4024 = vpop.f32.mrb[0].mxu0
        %4025 = vmatprep.mubr.bf16.mxu0 %v2999
        %4026 = vmatmul.mubr.bf16.gmra.mrb[0].mxu0 %v3152
        %v4027 = vpop.f32.mrb[0].mxu0
        %v4028 = vadd.f32 %v3723, %v4027
        %v4029 = vpop.f32.mrb[0].mxu0
        %v4030 = vpop.f32.mrb[0].mxu0
        %v4031 = vadd.f32 %v3726, %v4030
        %v4032 = vpop.f32.mrb[0].mxu0
        %4033 = vmatprep.mubr.bf16.mxu0 %v3000
        %4034 = vmatmul.mubr.bf16.gmra.mrb[0].mxu0 %v3153
        %v4035 = vpop.f32.mrb[0].mxu0
        %v4036 = vadd.f32 %v3731, %v4035
        %v4037 = vpop.f32.mrb[0].mxu0
        %v4038 = vpop.f32.mrb[0].mxu0
        %v4039 = vadd.f32 %v3734, %v4038
        %v4040 = vpop.f32.mrb[0].mxu0
        %4041 = vmatprep.mubr.bf16.mxu0 %v3001
        %4042 = vmatmul.mubr.bf16.gmra.mrb[0].mxu0 %v3154
        %v4043 = vpop.f32.mrb[0].mxu0
        %v4044 = vadd.f32 %v3739, %v4043
        %v4045 = vpop.f32.mrb[0].mxu0
        %v4046 = vpop.f32.mrb[0].mxu0
        %v4047 = vadd.f32 %v3742, %v4046
        %v4048 = vpop.f32.mrb[0].mxu0
        %4049 = vmatprep.mubr.bf16.mxu0 %v3002
        %4050 = vmatmul.mubr.bf16.gmra.mrb[0].mxu0 %v3155
        %v4051 = vpop.f32.mrb[0].mxu0
        %v4052 = vadd.f32 %v3747, %v4051
        %v4053 = vpop.f32.mrb[0].mxu0
        %v4054 = vpop.f32.mrb[0].mxu0
        %v4055 = vadd.f32 %v3750, %v4054
        %v4056 = vpop.f32.mrb[0].mxu0
        %4057 = vmatprep.mubr.bf16.mxu0 %v3003
        %4058 = vmatmul.mubr.bf16.gmra.mrb[0].mxu0 %v3156
        %v4059 = vpop.f32.mrb[0].mxu0
        %v4060 = vadd.f32 %v3755, %v4059
        %v4061 = vpop.f32.mrb[0].mxu0
        %v4062 = vpop.f32.mrb[0].mxu0
        %v4063 = vadd.f32 %v3758, %v4062
        %v4064 = vpop.f32.mrb[0].mxu0
        %4065 = vmatprep.mubr.bf16.mxu0 %v3004
        %4066 = vmatmul.mubr.bf16.gmra.mrb[0].mxu0 %v3157
        %v4067 = vpop.f32.mrb[0].mxu0
        %v4068 = vadd.f32 %v3763, %v4067
        %v4069 = vpop.f32.mrb[0].mxu0
        %v4070 = vpop.f32.mrb[0].mxu0
        %v4071 = vadd.f32 %v3766, %v4070
        %v4072 = vpop.f32.mrb[0].mxu0
        %4073 = vmatprep.mubr.bf16.mxu0 %v3005
        %4074 = vmatmul.mubr.bf16.gmra.mrb[0].mxu0 %v3158
        %v4075 = vpop.f32.mrb[0].mxu0
        %v4076 = vadd.f32 %v3771, %v4075
        %v4077 = vpop.f32.mrb[0].mxu0
        %v4078 = vpop.f32.mrb[0].mxu0
        %v4079 = vadd.f32 %v3774, %v4078
        %v4080 = vpop.f32.mrb[0].mxu0
        %4081 = vmatprep.mubr.bf16.mxu0 %v3006
        %4082 = vmatmul.mubr.bf16.gmra.mrb[0].mxu0 %v3159
        %v4083 = vpop.f32.mrb[0].mxu0
        %v4084 = vadd.f32 %v3779, %v4083
        %v4085 = vpop.f32.mrb[0].mxu0
        %v4086 = vpop.f32.mrb[0].mxu0
        %v4087 = vadd.f32 %v3782, %v4086
        %v4088 = vpop.f32.mrb[0].mxu0
        %4089 = vmatprep.mubr.bf16.mxu0 %v3007
        %4090 = vmatmul.mubr.bf16.gmra.mrb[0].mxu0 %v3160
        %v4091 = vpop.f32.mrb[0].mxu0
        %v4092 = vadd.f32 %v3787, %v4091
        %v4093 = vpop.f32.mrb[0].mxu0
        %v4094 = vpop.f32.mrb[0].mxu0
        %v4095 = vadd.f32 %v3790, %v4094
        %v4096 = vpop.f32.mrb[0].mxu0
        %4097 = vdwg.mxu0
        %4098 = vmatprep.subr.bf16.mxu0 0
        %4099 = vmatpush1.bf16.msra.mxu0 %v3905
        %4100 = vmatprep.subr.bf16.mxu0 0
        %4101 = vmatpush1.bf16.msra.mxu0 %v3906
        %4102 = vmatprep.subr.bf16.mxu0 0
        %4103 = vmatpush1.bf16.msra.mxu0 %v3907
        %4104 = vmatprep.subr.bf16.mxu0 0
        %4105 = vmatpush1.bf16.msra.mxu0 %v3908
        %4106 = vmatprep.subr.bf16.mxu0 0
        %4107 = vmatpush1.bf16.msra.mxu0 %v3909
        %4108 = vmatprep.subr.bf16.mxu0 0
        %4109 = vmatpush1.bf16.msra.mxu0 %v3910
        %4110 = vmatprep.subr.bf16.mxu0 0
        %4111 = vmatpush1.bf16.msra.mxu0 %v3911
        %4112 = vmatprep.subr.bf16.mxu0 0
        %4113 = vmatpush1.bf16.msra.mxu0 %v3912
        %4114 = vmatprep.subr.bf16.mxu0 0
        %4115 = vmatpush1.bf16.msra.mxu0 0
        %4116 = vmatprep.subr.bf16.mxu0 0
        %4117 = vmatpush1.bf16.msra.mxu0 0
        %4118 = vmatprep.subr.bf16.mxu0 0
        %4119 = vmatpush1.bf16.msra.mxu0 0
        %4120 = vmatprep.subr.bf16.mxu0 0
        %4121 = vmatpush1.bf16.msra.mxu0 0
        %4122 = vmatprep.subr.bf16.mxu0 0
        %4123 = vmatpush1.bf16.msra.mxu0 0
        %4124 = vmatprep.subr.bf16.mxu0 0
        %4125 = vmatpush1.bf16.msra.mxu0 0
        %4126 = vmatprep.subr.bf16.mxu0 0
        %4127 = vmatpush1.bf16.msra.mxu0 0
        %4128 = vmatprep.subr.bf16.mxu0 0
        %4129 = vmatpush1.bf16.msra.mxu0 0
        %4130 = vmatprep.mubr.bf16.mxu0 0
        %4131 = vmatmul.mubr.bf16.gmra.mrb[0].mxu0 %v3213
        %v4132 = vpop.f32.mrb[0].mxu0
        %v4133 = vadd.f32 %v3972, %v4132
        %v4134 = vpop.f32.mrb[0].mxu0
        %v4135 = vpop.f32.mrb[0].mxu0
        %v4136 = vadd.f32 %v3975, %v4135
        %v4137 = vpop.f32.mrb[0].mxu0
        %4138 = vmatprep.mubr.bf16.mxu0 0
        %4139 = vmatmul.mubr.bf16.gmra.mrb[0].mxu0 %v3214
        %v4140 = vpop.f32.mrb[0].mxu0
        %v4141 = vadd.f32 %v3980, %v4140
        %v4142 = vpop.f32.mrb[0].mxu0
        %v4143 = vpop.f32.mrb[0].mxu0
        %v4144 = vadd.f32 %v3983, %v4143
        %v4145 = vpop.f32.mrb[0].mxu0
        %4146 = vmatprep.mubr.bf16.mxu0 0
        %4147 = vmatmul.mubr.bf16.gmra.mrb[0].mxu0 %v3215
        %v4148 = vpop.f32.mrb[0].mxu0
        %v4149 = vadd.f32 %v3988, %v4148
        %v4150 = vpop.f32.mrb[0].mxu0
        %v4151 = vpop.f32.mrb[0].mxu0
        %v4152 = vadd.f32 %v3991, %v4151
        %v4153 = vpop.f32.mrb[0].mxu0
        %4154 = vmatprep.mubr.bf16.mxu0 0
        %4155 = vmatmul.mubr.bf16.gmra.mrb[0].mxu0 %v3216
        %v4156 = vpop.f32.mrb[0].mxu0
        %v4157 = vadd.f32 %v3996, %v4156
        %v4158 = vpop.f32.mrb[0].mxu0
        %v4159 = vpop.f32.mrb[0].mxu0
        %v4160 = vadd.f32 %v3999, %v4159
        %v4161 = vpop.f32.mrb[0].mxu0
        %4162 = vmatprep.mubr.bf16.mxu0 0
        %4163 = vmatmul.mubr.bf16.gmra.mrb[0].mxu0 %v3217
        %v4164 = vpop.f32.mrb[0].mxu0
        %v4165 = vadd.f32 %v4004, %v4164
        %v4166 = vpop.f32.mrb[0].mxu0
        %v4167 = vpop.f32.mrb[0].mxu0
        %v4168 = vadd.f32 %v4007, %v4167
        %v4169 = vpop.f32.mrb[0].mxu0
        %4170 = vmatprep.mubr.bf16.mxu0 0
        %4171 = vmatmul.mubr.bf16.gmra.mrb[0].mxu0 %v3218
        %v4172 = vpop.f32.mrb[0].mxu0
        %v4173 = vadd.f32 %v4012, %v4172
        %v4174 = vpop.f32.mrb[0].mxu0
        %v4175 = vpop.f32.mrb[0].mxu0
        %v4176 = vadd.f32 %v4015, %v4175
        %v4177 = vpop.f32.mrb[0].mxu0
        %4178 = vmatprep.mubr.bf16.mxu0 0
        %4179 = vmatmul.mubr.bf16.gmra.mrb[0].mxu0 %v3219
        %v4180 = vpop.f32.mrb[0].mxu0
        %v4181 = vadd.f32 %v4020, %v4180
        %v4182 = vpop.f32.mrb[0].mxu0
        %v4183 = vpop.f32.mrb[0].mxu0
        %v4184 = vadd.f32 %v4023, %v4183
        %v4185 = vpop.f32.mrb[0].mxu0
        %4186 = vmatprep.mubr.bf16.mxu0 0
        %4187 = vmatmul.mubr.bf16.gmra.mrb[0].mxu0 %v3220
        %v4188 = vpop.f32.mrb[0].mxu0
        %v4189 = vadd.f32 %v4028, %v4188
        %v4190 = vpop.f32.mrb[0].mxu0
        %v4191 = vpop.f32.mrb[0].mxu0
        %v4192 = vadd.f32 %v4031, %v4191
        %v4193 = vpop.f32.mrb[0].mxu0
        %4194 = vmatprep.mubr.bf16.mxu0 0
        %4195 = vmatmul.mubr.bf16.gmra.mrb[0].mxu0 %v3221
        %v4196 = vpop.f32.mrb[0].mxu0
        %v4197 = vadd.f32 %v4036, %v4196
        %v4198 = vpop.f32.mrb[0].mxu0
        %v4199 = vpop.f32.mrb[0].mxu0
        %v4200 = vadd.f32 %v4039, %v4199
        %v4201 = vpop.f32.mrb[0].mxu0
        %4202 = vmatprep.mubr.bf16.mxu0 0
        %4203 = vmatmul.mubr.bf16.gmra.mrb[0].mxu0 %v3222
        %v4204 = vpop.f32.mrb[0].mxu0
        %v4205 = vadd.f32 %v4044, %v4204
        %v4206 = vpop.f32.mrb[0].mxu0
        %v4207 = vpop.f32.mrb[0].mxu0
        %v4208 = vadd.f32 %v4047, %v4207
        %v4209 = vpop.f32.mrb[0].mxu0
        %4210 = vmatprep.mubr.bf16.mxu0 0
        %4211 = vmatmul.mubr.bf16.gmra.mrb[0].mxu0 %v3223
        %v4212 = vpop.f32.mrb[0].mxu0
        %v4213 = vadd.f32 %v4052, %v4212
        %v4214 = vpop.f32.mrb[0].mxu0
        %v4215 = vpop.f32.mrb[0].mxu0
        %v4216 = vadd.f32 %v4055, %v4215
        %v4217 = vpop.f32.mrb[0].mxu0
        %4218 = vmatprep.mubr.bf16.mxu0 0
        %4219 = vmatmul.mubr.bf16.gmra.mrb[0].mxu0 %v3224
        %v4220 = vpop.f32.mrb[0].mxu0
        %v4221 = vadd.f32 %v4060, %v4220
        %v4222 = vpop.f32.mrb[0].mxu0
        %v4223 = vpop.f32.mrb[0].mxu0
        %v4224 = vadd.f32 %v4063, %v4223
        %v4225 = vpop.f32.mrb[0].mxu0
        %4226 = vmatprep.mubr.bf16.mxu0 0
        %4227 = vmatmul.mubr.bf16.gmra.mrb[0].mxu0 %v3225
        %v4228 = vpop.f32.mrb[0].mxu0
        %v4229 = vadd.f32 %v4068, %v4228
        %v4230 = vpop.f32.mrb[0].mxu0
        %v4231 = vpop.f32.mrb[0].mxu0
        %v4232 = vadd.f32 %v4071, %v4231
        %v4233 = vpop.f32.mrb[0].mxu0
        %4234 = vmatprep.mubr.bf16.mxu0 0
        %4235 = vmatmul.mubr.bf16.gmra.mrb[0].mxu0 %v3226
        %v4236 = vpop.f32.mrb[0].mxu0
        %v4237 = vadd.f32 %v4076, %v4236
        %v4238 = vpop.f32.mrb[0].mxu0
        %v4239 = vpop.f32.mrb[0].mxu0
        %v4240 = vadd.f32 %v4079, %v4239
        %v4241 = vpop.f32.mrb[0].mxu0
        %4242 = vmatprep.mubr.bf16.mxu0 0
        %4243 = vmatmul.mubr.bf16.gmra.mrb[0].mxu0 %v3227
        %v4244 = vpop.f32.mrb[0].mxu0
        %v4245 = vadd.f32 %v4084, %v4244
        %v4246 = vpop.f32.mrb[0].mxu0
        %v4247 = vpop.f32.mrb[0].mxu0
        %v4248 = vadd.f32 %v4087, %v4247
        %v4249 = vpop.f32.mrb[0].mxu0
        %4250 = vmatprep.mubr.bf16.mxu0 0
        %4251 = vmatmul.mubr.bf16.gmra.mrb[0].mxu0 %v3228
        %v4252 = vpop.f32.mrb[0].mxu0
        %v4253 = vadd.f32 %v4092, %v4252
        %v4254 = vpop.f32.mrb[0].mxu0
        %v4255 = vpop.f32.mrb[0].mxu0
        %v4256 = vadd.f32 %v4095, %v4255
        %v4257 = vpop.f32.mrb[0].mxu0
        %4258 = vdwg.mxu0
        %s4259 = scalar_lea.vmem [#allocation8], 384
        %v4260 = vld [vmem:[%s4259] sm:$0xf]
        %v4261 = vld [vmem:[%s4259 + $0x4] sm:$0xf]
        %v4262 = vld [vmem:[%s4259 + $0x8] sm:$0xf]
        %v4263 = vld [vmem:[%s4259 + $0xc] sm:$0xf]
        %v4264 = vld [vmem:[%s4259 + $0x10] sm:$0xf]
        %v4265 = vld [vmem:[%s4259 + $0x14] sm:$0xf]
        %v4266 = vld [vmem:[%s4259 + $0x18] sm:$0xf]
        %v4267 = vld [vmem:[%s4259 + $0x1c] sm:$0xf]
        %v4268 = vld [vmem:[%s4259 + $0x20] sm:$0xf]
        %v4269 = vld [vmem:[%s4259 + $0x24] sm:$0xf]
        %v4270 = vld [vmem:[%s4259 + $0x28] sm:$0xf]
        %v4271 = vld [vmem:[%s4259 + $0x2c] sm:$0xf]
        %v4272 = vld [vmem:[%s4259 + $0x30] sm:$0xf]
        %v4273 = vld [vmem:[%s4259 + $0x34] sm:$0xf]
        %v4274 = vld [vmem:[%s4259 + $0x38] sm:$0xf]
        %v4275 = vld [vmem:[%s4259 + $0x3c] sm:$0xf]
        %v4276 = vld [vmem:[%s4259 + $0x40] sm:$0xf]
        %v4277 = vld [vmem:[%s4259 + $0x44] sm:$0xf]
        %v4278 = vld [vmem:[%s4259 + $0x48] sm:$0xf]
        %v4279 = vld [vmem:[%s4259 + $0x4c] sm:$0xf]
        %v4280 = vld [vmem:[%s4259 + $0x50] sm:$0xf]
        %v4281 = vld [vmem:[%s4259 + $0x54] sm:$0xf]
        %v4282 = vld [vmem:[%s4259 + $0x58] sm:$0xf]
        %v4283 = vld [vmem:[%s4259 + $0x5c] sm:$0xf]
        %v4284 = vld [vmem:[%s4259 + $0x60] sm:$0xf]
        %v4285 = vld [vmem:[%s4259 + $0x64] sm:$0xf]
        %v4286 = vld [vmem:[%s4259 + $0x68] sm:$0xf]
        %v4287 = vld [vmem:[%s4259 + $0x6c] sm:$0xf]
        %v4288 = vld [vmem:[%s4259 + $0x70] sm:$0xf]
        %v4289 = vld [vmem:[%s4259 + $0x74] sm:$0xf]
        %v4290 = vld [vmem:[%s4259 + $0x78] sm:$0xf]
        %v4291 = vld [vmem:[%s4259 + $0x7c] sm:$0xf]
        %v4292 = vld [vmem:[%s4259 + $0x80] sm:$0xf]
        %v4293 = vld [vmem:[%s4259 + $0x84] sm:$0xf]
        %v4294 = vld [vmem:[%s4259 + $0x88] sm:$0xf]
        %v4295 = vld [vmem:[%s4259 + $0x8c] sm:$0xf]
        %v4296 = vld [vmem:[%s4259 + $0x90] sm:$0xf]
        %v4297 = vld [vmem:[%s4259 + $0x94] sm:$0xf]
        %v4298 = vld [vmem:[%s4259 + $0x98] sm:$0xf]
        %v4299 = vld [vmem:[%s4259 + $0x9c] sm:$0xf]
        %v4300 = vld [vmem:[%s4259 + $0xa0] sm:$0xf]
        %v4301 = vld [vmem:[%s4259 + $0xa4] sm:$0xf]
        %v4302 = vld [vmem:[%s4259 + $0xa8] sm:$0xf]
        %v4303 = vld [vmem:[%s4259 + $0xac] sm:$0xf]
        %v4304 = vld [vmem:[%s4259 + $0xb0] sm:$0xf]
        %v4305 = vld [vmem:[%s4259 + $0xb4] sm:$0xf]
        %v4306 = vld [vmem:[%s4259 + $0xb8] sm:$0xf]
        %v4307 = vld [vmem:[%s4259 + $0xbc] sm:$0xf]
        %v4356 = vunpack.c.l.b16 %v4260
        %v4357 = vunpack.c.l.b16 %v4261
        %v4358 = vunpack.c.l.b16 %v4262
        %v4359 = vunpack.c.l.b16 %v4263
        %v4360 = vunpack.c.l.b16 %v4264
        %v4361 = vunpack.c.l.b16 %v4265
        %v4362 = vunpack.c.l.b16 %v4266
        %v4363 = vunpack.c.l.b16 %v4267
        %v4364 = vunpack.c.l.b16 %v4268
        %v4365 = vunpack.c.l.b16 %v4269
        %v4366 = vunpack.c.l.b16 %v4270
        %v4367 = vunpack.c.l.b16 %v4271
        %v4368 = vunpack.c.l.b16 %v4272
        %v4369 = vunpack.c.l.b16 %v4273
        %v4370 = vunpack.c.l.b16 %v4274
        %v4371 = vunpack.c.l.b16 %v4275
        %v4372 = vunpack.c.l.b16 %v4276
        %v4373 = vunpack.c.l.b16 %v4277
        %v4374 = vunpack.c.l.b16 %v4278
        %v4375 = vunpack.c.l.b16 %v4279
        %v4376 = vunpack.c.l.b16 %v4280
        %v4377 = vunpack.c.l.b16 %v4281
        %v4378 = vunpack.c.l.b16 %v4282
        %v4379 = vunpack.c.l.b16 %v4283
        %v4380 = vunpack.c.l.b16 %v4284
        %v4381 = vunpack.c.l.b16 %v4285
        %v4382 = vunpack.c.l.b16 %v4286
        %v4383 = vunpack.c.l.b16 %v4287
        %v4384 = vunpack.c.l.b16 %v4288
        %v4385 = vunpack.c.l.b16 %v4289
        %v4386 = vunpack.c.l.b16 %v4290
        %v4387 = vunpack.c.l.b16 %v4291
        %v4388 = vunpack.c.l.b16 %v4292
        %v4389 = vunpack.c.l.b16 %v4293
        %v4390 = vunpack.c.l.b16 %v4294
        %v4391 = vunpack.c.l.b16 %v4295
        %v4392 = vunpack.c.l.b16 %v4296
        %v4393 = vunpack.c.l.b16 %v4297
        %v4394 = vunpack.c.l.b16 %v4298
        %v4395 = vunpack.c.l.b16 %v4299
        %v4396 = vunpack.c.l.b16 %v4300
        %v4397 = vunpack.c.l.b16 %v4301
        %v4398 = vunpack.c.l.b16 %v4302
        %v4399 = vunpack.c.l.b16 %v4303
        %v4400 = vunpack.c.l.b16 %v4304
        %v4401 = vunpack.c.l.b16 %v4305
        %v4402 = vunpack.c.l.b16 %v4306
        %v4403 = vunpack.c.l.b16 %v4307
        %v4404 = vpack.c.b16 %v4357, %v4356
        %v4405 = vpack.c.b16 %v4359, %v4358
        %v4406 = vpack.c.b16 %v4361, %v4360
        %v4407 = vpack.c.b16 %v4363, %v4362
        %v4408 = vpack.c.b16 %v4365, %v4364
        %v4409 = vpack.c.b16 %v4367, %v4366
        %v4410 = vpack.c.b16 %v4369, %v4368
        %v4411 = vpack.c.b16 %v4371, %v4370
        %v4412 = vpack.c.b16 %v4373, %v4372
        %v4413 = vpack.c.b16 %v4375, %v4374
        %v4414 = vpack.c.b16 %v4377, %v4376
        %v4415 = vpack.c.b16 %v4379, %v4378
        %v4416 = vpack.c.b16 %v4381, %v4380
        %v4417 = vpack.c.b16 %v4383, %v4382
        %v4418 = vpack.c.b16 %v4385, %v4384
        %v4419 = vpack.c.b16 %v4387, %v4386
        %v4420 = vpack.c.b16 %v4389, %v4388
        %v4421 = vpack.c.b16 %v4391, %v4390
        %v4422 = vpack.c.b16 %v4393, %v4392
        %v4423 = vpack.c.b16 %v4395, %v4394
        %v4424 = vpack.c.b16 %v4397, %v4396
        %v4425 = vpack.c.b16 %v4399, %v4398
        %v4426 = vpack.c.b16 %v4401, %v4400
        %v4427 = vpack.c.b16 %v4403, %v4402
        %4452 = vmatprep.subr.bf16.mxu0 0
        %4453 = vmatpush1.bf16.msra.mxu0 %v4404
        %4454 = vmatprep.subr.bf16.mxu0 0
        %4455 = vmatpush1.bf16.msra.mxu0 %v4405
        %4456 = vmatprep.subr.bf16.mxu0 0
        %4457 = vmatpush1.bf16.msra.mxu0 %v4406
        %4458 = vmatprep.subr.bf16.mxu0 0
        %4459 = vmatpush1.bf16.msra.mxu0 %v4407
        %4460 = vmatprep.subr.bf16.mxu0 0
        %4461 = vmatpush1.bf16.msra.mxu0 %v4408
        %4462 = vmatprep.subr.bf16.mxu0 0
        %4463 = vmatpush1.bf16.msra.mxu0 %v4409
        %4464 = vmatprep.subr.bf16.mxu0 0
        %4465 = vmatpush1.bf16.msra.mxu0 %v4410
        %4466 = vmatprep.subr.bf16.mxu0 0
        %4467 = vmatpush1.bf16.msra.mxu0 %v4411
        %4468 = vmatprep.subr.bf16.mxu0 0
        %4469 = vmatpush1.bf16.msra.mxu0 %v4412
        %4470 = vmatprep.subr.bf16.mxu0 0
        %4471 = vmatpush1.bf16.msra.mxu0 %v4413
        %4472 = vmatprep.subr.bf16.mxu0 0
        %4473 = vmatpush1.bf16.msra.mxu0 %v4414
        %4474 = vmatprep.subr.bf16.mxu0 0
        %4475 = vmatpush1.bf16.msra.mxu0 %v4415
        %4476 = vmatprep.subr.bf16.mxu0 0
        %4477 = vmatpush1.bf16.msra.mxu0 %v4416
        %4478 = vmatprep.subr.bf16.mxu0 0
        %4479 = vmatpush1.bf16.msra.mxu0 %v4417
        %4480 = vmatprep.subr.bf16.mxu0 0
        %4481 = vmatpush1.bf16.msra.mxu0 %v4418
        %4482 = vmatprep.subr.bf16.mxu0 0
        %4483 = vmatpush1.bf16.msra.mxu0 %v4419
        %4484 = vmatprep.mubr.bf16.mxu0 %v2994
        %4485 = vmatmul.mubr.bf16.gmra.mrb[0].mxu0 %v3147
        %v4486 = vpop.f32.mrb[0].mxu0
        %v4487 = vadd.f32 0.0, %v4486
        %v4488 = vpop.f32.mrb[0].mxu0
        %v4489 = vpop.f32.mrb[0].mxu0
        %v4490 = vadd.f32 0.0, %v4489
        %v4491 = vpop.f32.mrb[0].mxu0
        %4492 = vmatprep.mubr.bf16.mxu0 %v2995
        %4493 = vmatmul.mubr.bf16.gmra.mrb[0].mxu0 %v3148
        %v4494 = vpop.f32.mrb[0].mxu0
        %v4495 = vadd.f32 0.0, %v4494
        %v4496 = vpop.f32.mrb[0].mxu0
        %v4497 = vpop.f32.mrb[0].mxu0
        %v4498 = vadd.f32 0.0, %v4497
        %v4499 = vpop.f32.mrb[0].mxu0
        %4500 = vmatprep.mubr.bf16.mxu0 %v2996
        %4501 = vmatmul.mubr.bf16.gmra.mrb[0].mxu0 %v3149
        %v4502 = vpop.f32.mrb[0].mxu0
        %v4503 = vadd.f32 0.0, %v4502
        %v4504 = vpop.f32.mrb[0].mxu0
        %v4505 = vpop.f32.mrb[0].mxu0
        %v4506 = vadd.f32 0.0, %v4505
        %v4507 = vpop.f32.mrb[0].mxu0
        %4508 = vmatprep.mubr.bf16.mxu0 %v2997
        %4509 = vmatmul.mubr.bf16.gmra.mrb[0].mxu0 %v3150
        %v4510 = vpop.f32.mrb[0].mxu0
        %v4511 = vadd.f32 0.0, %v4510
        %v4512 = vpop.f32.mrb[0].mxu0
        %v4513 = vpop.f32.mrb[0].mxu0
        %v4514 = vadd.f32 0.0, %v4513
        %v4515 = vpop.f32.mrb[0].mxu0
        %4516 = vmatprep.mubr.bf16.mxu0 %v2998
        %4517 = vmatmul.mubr.bf16.gmra.mrb[0].mxu0 %v3151
        %v4518 = vpop.f32.mrb[0].mxu0
        %v4519 = vadd.f32 0.0, %v4518
        %v4520 = vpop.f32.mrb[0].mxu0
        %v4521 = vpop.f32.mrb[0].mxu0
        %v4522 = vadd.f32 0.0, %v4521
        %v4523 = vpop.f32.mrb[0].mxu0
        %4524 = vmatprep.mubr.bf16.mxu0 %v2999
        %4525 = vmatmul.mubr.bf16.gmra.mrb[0].mxu0 %v3152
        %v4526 = vpop.f32.mrb[0].mxu0
        %v4527 = vadd.f32 0.0, %v4526
        %v4528 = vpop.f32.mrb[0].mxu0
        %v4529 = vpop.f32.mrb[0].mxu0
        %v4530 = vadd.f32 0.0, %v4529
        %v4531 = vpop.f32.mrb[0].mxu0
        %4532 = vmatprep.mubr.bf16.mxu0 %v3000
        %4533 = vmatmul.mubr.bf16.gmra.mrb[0].mxu0 %v3153
        %v4534 = vpop.f32.mrb[0].mxu0
        %v4535 = vadd.f32 0.0, %v4534
        %v4536 = vpop.f32.mrb[0].mxu0
        %v4537 = vpop.f32.mrb[0].mxu0
        %v4538 = vadd.f32 0.0, %v4537
        %v4539 = vpop.f32.mrb[0].mxu0
        %4540 = vmatprep.mubr.bf16.mxu0 %v3001
        %4541 = vmatmul.mubr.bf16.gmra.mrb[0].mxu0 %v3154
        %v4542 = vpop.f32.mrb[0].mxu0
        %v4543 = vadd.f32 0.0, %v4542
        %v4544 = vpop.f32.mrb[0].mxu0
        %v4545 = vpop.f32.mrb[0].mxu0
        %v4546 = vadd.f32 0.0, %v4545
        %v4547 = vpop.f32.mrb[0].mxu0
        %4548 = vmatprep.mubr.bf16.mxu0 %v3002
        %4549 = vmatmul.mubr.bf16.gmra.mrb[0].mxu0 %v3155
        %v4550 = vpop.f32.mrb[0].mxu0
        %v4551 = vadd.f32 0.0, %v4550
        %v4552 = vpop.f32.mrb[0].mxu0
        %v4553 = vpop.f32.mrb[0].mxu0
        %v4554 = vadd.f32 0.0, %v4553
        %v4555 = vpop.f32.mrb[0].mxu0
        %4556 = vmatprep.mubr.bf16.mxu0 %v3003
        %4557 = vmatmul.mubr.bf16.gmra.mrb[0].mxu0 %v3156
        %v4558 = vpop.f32.mrb[0].mxu0
        %v4559 = vadd.f32 0.0, %v4558
        %v4560 = vpop.f32.mrb[0].mxu0
        %v4561 = vpop.f32.mrb[0].mxu0
        %v4562 = vadd.f32 0.0, %v4561
        %v4563 = vpop.f32.mrb[0].mxu0
        %4564 = vmatprep.mubr.bf16.mxu0 %v3004
        %4565 = vmatmul.mubr.bf16.gmra.mrb[0].mxu0 %v3157
        %v4566 = vpop.f32.mrb[0].mxu0
        %v4567 = vadd.f32 0.0, %v4566
        %v4568 = vpop.f32.mrb[0].mxu0
        %v4569 = vpop.f32.mrb[0].mxu0
        %v4570 = vadd.f32 0.0, %v4569
        %v4571 = vpop.f32.mrb[0].mxu0
        %4572 = vmatprep.mubr.bf16.mxu0 %v3005
        %4573 = vmatmul.mubr.bf16.gmra.mrb[0].mxu0 %v3158
        %v4574 = vpop.f32.mrb[0].mxu0
        %v4575 = vadd.f32 0.0, %v4574
        %v4576 = vpop.f32.mrb[0].mxu0
        %v4577 = vpop.f32.mrb[0].mxu0
        %v4578 = vadd.f32 0.0, %v4577
        %v4579 = vpop.f32.mrb[0].mxu0
        %4580 = vmatprep.mubr.bf16.mxu0 %v3006
        %4581 = vmatmul.mubr.bf16.gmra.mrb[0].mxu0 %v3159
        %v4582 = vpop.f32.mrb[0].mxu0
        %v4583 = vadd.f32 0.0, %v4582
        %v4584 = vpop.f32.mrb[0].mxu0
        %v4585 = vpop.f32.mrb[0].mxu0
        %v4586 = vadd.f32 0.0, %v4585
        %v4587 = vpop.f32.mrb[0].mxu0
        %4588 = vmatprep.mubr.bf16.mxu0 %v3007
        %4589 = vmatmul.mubr.bf16.gmra.mrb[0].mxu0 %v3160
        %v4590 = vpop.f32.mrb[0].mxu0
        %v4591 = vadd.f32 0.0, %v4590
        %v4592 = vpop.f32.mrb[0].mxu0
        %v4593 = vpop.f32.mrb[0].mxu0
        %v4594 = vadd.f32 0.0, %v4593
        %v4595 = vpop.f32.mrb[0].mxu0
        %4596 = vmatprep.mubr.bf16.mxu0 %v3008
        %4597 = vmatmul.mubr.bf16.gmra.mrb[0].mxu0 %v3161
        %v4598 = vpop.f32.mrb[0].mxu0
        %v4599 = vadd.f32 0.0, %v4598
        %v4600 = vpop.f32.mrb[0].mxu0
        %v4601 = vpop.f32.mrb[0].mxu0
        %v4602 = vadd.f32 0.0, %v4601
        %v4603 = vpop.f32.mrb[0].mxu0
        %4604 = vmatprep.mubr.bf16.mxu0 0
        %4605 = vmatmul.mubr.bf16.gmra.mrb[0].mxu0 %v3145
        %v4606 = vpop.f32.mrb[0].mxu0
        %v4607 = vadd.f32 0.0, %v4606
        %v4608 = vpop.f32.mrb[0].mxu0
        %v4609 = vpop.f32.mrb[0].mxu0
        %v4610 = vadd.f32 0.0, %v4609
        %v4611 = vpop.f32.mrb[0].mxu0
        %4612 = vdwg.mxu0
        %4613 = vmatprep.subr.bf16.mxu0 0
        %4614 = vmatpush1.bf16.msra.mxu0 %v4420
        %4615 = vmatprep.subr.bf16.mxu0 0
        %4616 = vmatpush1.bf16.msra.mxu0 %v4421
        %4617 = vmatprep.subr.bf16.mxu0 0
        %4618 = vmatpush1.bf16.msra.mxu0 %v4422
        %4619 = vmatprep.subr.bf16.mxu0 0
        %4620 = vmatpush1.bf16.msra.mxu0 %v4423
        %4621 = vmatprep.subr.bf16.mxu0 0
        %4622 = vmatpush1.bf16.msra.mxu0 %v4424
        %4623 = vmatprep.subr.bf16.mxu0 0
        %4624 = vmatpush1.bf16.msra.mxu0 %v4425
        %4625 = vmatprep.subr.bf16.mxu0 0
        %4626 = vmatpush1.bf16.msra.mxu0 %v4426
        %4627 = vmatprep.subr.bf16.mxu0 0
        %4628 = vmatpush1.bf16.msra.mxu0 %v4427
        %4629 = vmatprep.subr.bf16.mxu0 0
        %4630 = vmatpush1.bf16.msra.mxu0 0
        %4631 = vmatprep.subr.bf16.mxu0 0
        %4632 = vmatpush1.bf16.msra.mxu0 0
        %4633 = vmatprep.subr.bf16.mxu0 0
        %4634 = vmatpush1.bf16.msra.mxu0 0
        %4635 = vmatprep.subr.bf16.mxu0 0
        %4636 = vmatpush1.bf16.msra.mxu0 0
        %4637 = vmatprep.subr.bf16.mxu0 0
        %4638 = vmatpush1.bf16.msra.mxu0 0
        %4639 = vmatprep.subr.bf16.mxu0 0
        %4640 = vmatpush1.bf16.msra.mxu0 0
        %4641 = vmatprep.subr.bf16.mxu0 0
        %4642 = vmatpush1.bf16.msra.mxu0 0
        %4643 = vmatprep.subr.bf16.mxu0 0
        %4644 = vmatpush1.bf16.msra.mxu0 0
        %4645 = vmatprep.mubr.bf16.mxu0 0
        %4646 = vmatmul.mubr.bf16.gmra.mrb[0].mxu0 %v3215
        %v4647 = vpop.f32.mrb[0].mxu0
        %v4648 = vadd.f32 %v4487, %v4647
        %v4649 = vpop.f32.mrb[0].mxu0
        %v4650 = vpop.f32.mrb[0].mxu0
        %v4651 = vadd.f32 %v4490, %v4650
        %v4652 = vpop.f32.mrb[0].mxu0
        %4653 = vmatprep.mubr.bf16.mxu0 0
        %4654 = vmatmul.mubr.bf16.gmra.mrb[0].mxu0 %v3216
        %v4655 = vpop.f32.mrb[0].mxu0
        %v4656 = vadd.f32 %v4495, %v4655
        %v4657 = vpop.f32.mrb[0].mxu0
        %v4658 = vpop.f32.mrb[0].mxu0
        %v4659 = vadd.f32 %v4498, %v4658
        %v4660 = vpop.f32.mrb[0].mxu0
        %4661 = vmatprep.mubr.bf16.mxu0 0
        %4662 = vmatmul.mubr.bf16.gmra.mrb[0].mxu0 %v3217
        %v4663 = vpop.f32.mrb[0].mxu0
        %v4664 = vadd.f32 %v4503, %v4663
        %v4665 = vpop.f32.mrb[0].mxu0
        %v4666 = vpop.f32.mrb[0].mxu0
        %v4667 = vadd.f32 %v4506, %v4666
        %v4668 = vpop.f32.mrb[0].mxu0
        %4669 = vmatprep.mubr.bf16.mxu0 0
        %4670 = vmatmul.mubr.bf16.gmra.mrb[0].mxu0 %v3218
        %v4671 = vpop.f32.mrb[0].mxu0
        %v4672 = vadd.f32 %v4511, %v4671
        %v4673 = vpop.f32.mrb[0].mxu0
        %v4674 = vpop.f32.mrb[0].mxu0
        %v4675 = vadd.f32 %v4514, %v4674
        %v4676 = vpop.f32.mrb[0].mxu0
        %4677 = vmatprep.mubr.bf16.mxu0 0
        %4678 = vmatmul.mubr.bf16.gmra.mrb[0].mxu0 %v3219
        %v4679 = vpop.f32.mrb[0].mxu0
        %v4680 = vadd.f32 %v4519, %v4679
        %v4681 = vpop.f32.mrb[0].mxu0
        %v4682 = vpop.f32.mrb[0].mxu0
        %v4683 = vadd.f32 %v4522, %v4682
        %v4684 = vpop.f32.mrb[0].mxu0
        %4685 = vmatprep.mubr.bf16.mxu0 0
        %4686 = vmatmul.mubr.bf16.gmra.mrb[0].mxu0 %v3220
        %v4687 = vpop.f32.mrb[0].mxu0
        %v4688 = vadd.f32 %v4527, %v4687
        %v4689 = vpop.f32.mrb[0].mxu0
        %v4690 = vpop.f32.mrb[0].mxu0
        %v4691 = vadd.f32 %v4530, %v4690
        %v4692 = vpop.f32.mrb[0].mxu0
        %4693 = vmatprep.mubr.bf16.mxu0 0
        %4694 = vmatmul.mubr.bf16.gmra.mrb[0].mxu0 %v3221
        %v4695 = vpop.f32.mrb[0].mxu0
        %v4696 = vadd.f32 %v4535, %v4695
        %v4697 = vpop.f32.mrb[0].mxu0
        %v4698 = vpop.f32.mrb[0].mxu0
        %v4699 = vadd.f32 %v4538, %v4698
        %v4700 = vpop.f32.mrb[0].mxu0
        %4701 = vmatprep.mubr.bf16.mxu0 0
        %4702 = vmatmul.mubr.bf16.gmra.mrb[0].mxu0 %v3222
        %v4703 = vpop.f32.mrb[0].mxu0
        %v4704 = vadd.f32 %v4543, %v4703
        %v4705 = vpop.f32.mrb[0].mxu0
        %v4706 = vpop.f32.mrb[0].mxu0
        %v4707 = vadd.f32 %v4546, %v4706
        %v4708 = vpop.f32.mrb[0].mxu0
        %4709 = vmatprep.mubr.bf16.mxu0 0
        %4710 = vmatmul.mubr.bf16.gmra.mrb[0].mxu0 %v3223
        %v4711 = vpop.f32.mrb[0].mxu0
        %v4712 = vadd.f32 %v4551, %v4711
        %v4713 = vpop.f32.mrb[0].mxu0
        %v4714 = vpop.f32.mrb[0].mxu0
        %v4715 = vadd.f32 %v4554, %v4714
        %v4716 = vpop.f32.mrb[0].mxu0
        %4717 = vmatprep.mubr.bf16.mxu0 0
        %4718 = vmatmul.mubr.bf16.gmra.mrb[0].mxu0 %v3224
        %v4719 = vpop.f32.mrb[0].mxu0
        %v4720 = vadd.f32 %v4559, %v4719
        %v4721 = vpop.f32.mrb[0].mxu0
        %v4722 = vpop.f32.mrb[0].mxu0
        %v4723 = vadd.f32 %v4562, %v4722
        %v4724 = vpop.f32.mrb[0].mxu0
        %4725 = vmatprep.mubr.bf16.mxu0 0
        %4726 = vmatmul.mubr.bf16.gmra.mrb[0].mxu0 %v3225
        %v4727 = vpop.f32.mrb[0].mxu0
        %v4728 = vadd.f32 %v4567, %v4727
        %v4729 = vpop.f32.mrb[0].mxu0
        %v4730 = vpop.f32.mrb[0].mxu0
        %v4731 = vadd.f32 %v4570, %v4730
        %v4732 = vpop.f32.mrb[0].mxu0
        %4733 = vmatprep.mubr.bf16.mxu0 0
        %4734 = vmatmul.mubr.bf16.gmra.mrb[0].mxu0 %v3226
        %v4735 = vpop.f32.mrb[0].mxu0
        %v4736 = vadd.f32 %v4575, %v4735
        %v4737 = vpop.f32.mrb[0].mxu0
        %v4738 = vpop.f32.mrb[0].mxu0
        %v4739 = vadd.f32 %v4578, %v4738
        %v4740 = vpop.f32.mrb[0].mxu0
        %4741 = vmatprep.mubr.bf16.mxu0 0
        %4742 = vmatmul.mubr.bf16.gmra.mrb[0].mxu0 %v3227
        %v4743 = vpop.f32.mrb[0].mxu0
        %v4744 = vadd.f32 %v4583, %v4743
        %v4745 = vpop.f32.mrb[0].mxu0
        %v4746 = vpop.f32.mrb[0].mxu0
        %v4747 = vadd.f32 %v4586, %v4746
        %v4748 = vpop.f32.mrb[0].mxu0
        %4749 = vmatprep.mubr.bf16.mxu0 0
        %4750 = vmatmul.mubr.bf16.gmra.mrb[0].mxu0 %v3228
        %v4751 = vpop.f32.mrb[0].mxu0
        %v4752 = vadd.f32 %v4591, %v4751
        %v4753 = vpop.f32.mrb[0].mxu0
        %v4754 = vpop.f32.mrb[0].mxu0
        %v4755 = vadd.f32 %v4594, %v4754
        %v4756 = vpop.f32.mrb[0].mxu0
        %4757 = vmatprep.mubr.bf16.mxu0 0
        %4758 = vmatmul.mubr.bf16.gmra.mrb[0].mxu0 %v3229
        %v4759 = vpop.f32.mrb[0].mxu0
        %v4760 = vadd.f32 %v4599, %v4759
        %v4761 = vpop.f32.mrb[0].mxu0
        %v4762 = vpop.f32.mrb[0].mxu0
        %v4763 = vadd.f32 %v4602, %v4762
        %v4764 = vpop.f32.mrb[0].mxu0
        %4765 = vmatprep.mubr.bf16.mxu0 0
        %4766 = vmatmul.mubr.bf16.gmra.mrb[0].mxu0 %v3213
        %v4767 = vpop.f32.mrb[0].mxu0
        %v4768 = vadd.f32 %v4607, %v4767
        %v4769 = vpop.f32.mrb[0].mxu0
        %v4770 = vpop.f32.mrb[0].mxu0
        %v4771 = vadd.f32 %v4610, %v4770
        %v4772 = vpop.f32.mrb[0].mxu0
        %4773 = vdwg.mxu0
        %v4774 = vadd.f32 %v4133, %v4648
        %v4775 = vadd.f32 %v4136, %v4651
        %v4776 = vadd.f32 %v4141, %v4656
        %v4777 = vadd.f32 %v4144, %v4659
        %v4778 = vadd.f32 %v4149, %v4664
        %v4779 = vadd.f32 %v4152, %v4667
        %v4780 = vadd.f32 %v4157, %v4672
        %v4781 = vadd.f32 %v4160, %v4675
        %v4782 = vadd.f32 %v4165, %v4680
        %v4783 = vadd.f32 %v4168, %v4683
        %v4784 = vadd.f32 %v4173, %v4688
        %v4785 = vadd.f32 %v4176, %v4691
        %v4786 = vadd.f32 %v4181, %v4696
        %v4787 = vadd.f32 %v4184, %v4699
        %v4788 = vadd.f32 %v4189, %v4704
        %v4789 = vadd.f32 %v4192, %v4707
        %v4790 = vadd.f32 %v4197, %v4712
        %v4791 = vadd.f32 %v4200, %v4715
        %v4792 = vadd.f32 %v4205, %v4720
        %v4793 = vadd.f32 %v4208, %v4723
        %v4794 = vadd.f32 %v4213, %v4728
        %v4795 = vadd.f32 %v4216, %v4731
        %v4796 = vadd.f32 %v4221, %v4736
        %v4797 = vadd.f32 %v4224, %v4739
        %v4798 = vadd.f32 %v4229, %v4744
        %v4799 = vadd.f32 %v4232, %v4747
        %v4800 = vadd.f32 %v4237, %v4752
        %v4801 = vadd.f32 %v4240, %v4755
        %v4802 = vadd.f32 %v4245, %v4760
        %v4803 = vadd.f32 %v4248, %v4763
        %v4804 = vadd.f32 %v4253, %v4768
        %v4805 = vadd.f32 %v4256, %v4771
        %v4806 = vld [vmem:[%s6] sm:$0x1]
        %v4808 = vlaneseq
        %v4809 = vshrl.u32 %v4808, 7
        %v4810 = vsub.s32 0, %v4809
        %v4811 = vrot.slane %v4806, %v4810
        %v4813 = vadd.f32 %v4774, %v4811
        %v4814 = vadd.f32 %v4775, %v4811
        %v4815 = vadd.f32 %v4776, %v4811
        %v4816 = vadd.f32 %v4777, %v4811
        %v4817 = vadd.f32 %v4778, %v4811
        %v4818 = vadd.f32 %v4779, %v4811
        %v4819 = vadd.f32 %v4780, %v4811
        %v4820 = vadd.f32 %v4781, %v4811
        %v4821 = vadd.f32 %v4782, %v4811
        %v4822 = vadd.f32 %v4783, %v4811
        %v4823 = vadd.f32 %v4784, %v4811
        %v4824 = vadd.f32 %v4785, %v4811
        %v4825 = vadd.f32 %v4786, %v4811
        %v4826 = vadd.f32 %v4787, %v4811
        %v4827 = vadd.f32 %v4788, %v4811
        %v4828 = vadd.f32 %v4789, %v4811
        %v4829 = vadd.f32 %v4790, %v4811
        %v4830 = vadd.f32 %v4791, %v4811
        %v4831 = vadd.f32 %v4792, %v4811
        %v4832 = vadd.f32 %v4793, %v4811
        %v4833 = vadd.f32 %v4794, %v4811
        %v4834 = vadd.f32 %v4795, %v4811
        %v4835 = vadd.f32 %v4796, %v4811
        %v4836 = vadd.f32 %v4797, %v4811
        %v4837 = vadd.f32 %v4798, %v4811
        %v4838 = vadd.f32 %v4799, %v4811
        %v4839 = vadd.f32 %v4800, %v4811
        %v4840 = vadd.f32 %v4801, %v4811
        %v4841 = vadd.f32 %v4802, %v4811
        %v4842 = vadd.f32 %v4803, %v4811
        %v4843 = vadd.f32 %v4804, %v4811
        %v4844 = vadd.f32 %v4805, %v4811
        %v4845 = vmul.f32 %v4813, %v4813
        %v4846 = vmul.f32 %v4814, %v4814
        %v4847 = vmul.f32 %v4815, %v4815
        %v4848 = vmul.f32 %v4816, %v4816
        %v4849 = vmul.f32 %v4817, %v4817
        %v4850 = vmul.f32 %v4818, %v4818
        %v4851 = vmul.f32 %v4819, %v4819
        %v4852 = vmul.f32 %v4820, %v4820
        %v4853 = vmul.f32 %v4821, %v4821
        %v4854 = vmul.f32 %v4822, %v4822
        %v4855 = vmul.f32 %v4823, %v4823
        %v4856 = vmul.f32 %v4824, %v4824
        %v4857 = vmul.f32 %v4825, %v4825
        %v4858 = vmul.f32 %v4826, %v4826
        %v4859 = vmul.f32 %v4827, %v4827
        %v4860 = vmul.f32 %v4828, %v4828
        %v4861 = vmul.f32 %v4829, %v4829
        %v4862 = vmul.f32 %v4830, %v4830
        %v4863 = vmul.f32 %v4831, %v4831
        %v4864 = vmul.f32 %v4832, %v4832
        %v4865 = vmul.f32 %v4833, %v4833
        %v4866 = vmul.f32 %v4834, %v4834
        %v4867 = vmul.f32 %v4835, %v4835
        %v4868 = vmul.f32 %v4836, %v4836
        %v4869 = vmul.f32 %v4837, %v4837
        %v4870 = vmul.f32 %v4838, %v4838
        %v4871 = vmul.f32 %v4839, %v4839
        %v4872 = vmul.f32 %v4840, %v4840
        %v4873 = vmul.f32 %v4841, %v4841
        %v4874 = vmul.f32 %v4842, %v4842
        %v4875 = vmul.f32 %v4843, %v4843
        %v4876 = vmul.f32 %v4844, %v4844
        %4877 = vadd.xlane.f32.xlu0 %v4845
        %v4878 = vpop.xlane.xlu0 %4877
        %4879 = vadd.xlane.f32.xlu0 %v4846
        %v4880 = vpop.xlane.xlu0 %4879
        %4881 = vadd.xlane.f32.xlu0 %v4847
        %v4882 = vpop.xlane.xlu0 %4881
        %4883 = vadd.xlane.f32.xlu0 %v4848
        %v4884 = vpop.xlane.xlu0 %4883
        %4885 = vadd.xlane.f32.xlu0 %v4849
        %v4886 = vpop.xlane.xlu0 %4885
        %4887 = vadd.xlane.f32.xlu0 %v4850
        %v4888 = vpop.xlane.xlu0 %4887
        %4889 = vadd.xlane.f32.xlu0 %v4851
        %v4890 = vpop.xlane.xlu0 %4889
        %4891 = vadd.xlane.f32.xlu0 %v4852
        %v4892 = vpop.xlane.xlu0 %4891
        %4893 = vadd.xlane.f32.xlu0 %v4853
        %v4894 = vpop.xlane.xlu0 %4893
        %4895 = vadd.xlane.f32.xlu0 %v4854
        %v4896 = vpop.xlane.xlu0 %4895
        %4897 = vadd.xlane.f32.xlu0 %v4855
        %v4898 = vpop.xlane.xlu0 %4897
        %4899 = vadd.xlane.f32.xlu0 %v4856
        %v4900 = vpop.xlane.xlu0 %4899
        %4901 = vadd.xlane.f32.xlu0 %v4857
        %v4902 = vpop.xlane.xlu0 %4901
        %4903 = vadd.xlane.f32.xlu0 %v4858
        %v4904 = vpop.xlane.xlu0 %4903
        %4905 = vadd.xlane.f32.xlu0 %v4859
        %v4906 = vpop.xlane.xlu0 %4905
        %4907 = vadd.xlane.f32.xlu0 %v4860
        %v4908 = vpop.xlane.xlu0 %4907
        %4909 = vadd.xlane.f32.xlu0 %v4861
        %v4910 = vpop.xlane.xlu0 %4909
        %4911 = vadd.xlane.f32.xlu0 %v4862
        %v4912 = vpop.xlane.xlu0 %4911
        %4913 = vadd.xlane.f32.xlu0 %v4863
        %v4914 = vpop.xlane.xlu0 %4913
        %4915 = vadd.xlane.f32.xlu0 %v4864
        %v4916 = vpop.xlane.xlu0 %4915
        %4917 = vadd.xlane.f32.xlu0 %v4865
        %v4918 = vpop.xlane.xlu0 %4917
        %4919 = vadd.xlane.f32.xlu0 %v4866
        %v4920 = vpop.xlane.xlu0 %4919
        %4921 = vadd.xlane.f32.xlu0 %v4867
        %v4922 = vpop.xlane.xlu0 %4921
        %4923 = vadd.xlane.f32.xlu0 %v4868
        %v4924 = vpop.xlane.xlu0 %4923
        %4925 = vadd.xlane.f32.xlu0 %v4869
        %v4926 = vpop.xlane.xlu0 %4925
        %4927 = vadd.xlane.f32.xlu0 %v4870
        %v4928 = vpop.xlane.xlu0 %4927
        %4929 = vadd.xlane.f32.xlu0 %v4871
        %v4930 = vpop.xlane.xlu0 %4929
        %4931 = vadd.xlane.f32.xlu0 %v4872
        %v4932 = vpop.xlane.xlu0 %4931
        %4933 = vadd.xlane.f32.xlu0 %v4873
        %v4934 = vpop.xlane.xlu0 %4933
        %4935 = vadd.xlane.f32.xlu0 %v4874
        %v4936 = vpop.xlane.xlu0 %4935
        %4937 = vadd.xlane.f32.xlu0 %v4875
        %v4938 = vpop.xlane.xlu0 %4937
        %4939 = vadd.xlane.f32.xlu0 %v4876
        %v4940 = vpop.xlane.xlu0 %4939
        %v4941 = vmax.f32 %v4878, 1e-24
        %v4942 = vmax.f32 %v4880, 1e-24
        %v4943 = vmax.f32 %v4882, 1e-24
        %v4944 = vmax.f32 %v4884, 1e-24
        %v4945 = vmax.f32 %v4886, 1e-24
        %v4946 = vmax.f32 %v4888, 1e-24
        %v4947 = vmax.f32 %v4890, 1e-24
        %v4948 = vmax.f32 %v4892, 1e-24
        %v4949 = vmax.f32 %v4894, 1e-24
        %v4950 = vmax.f32 %v4896, 1e-24
        %v4951 = vmax.f32 %v4898, 1e-24
        %v4952 = vmax.f32 %v4900, 1e-24
        %v4953 = vmax.f32 %v4902, 1e-24
        %v4954 = vmax.f32 %v4904, 1e-24
        %v4955 = vmax.f32 %v4906, 1e-24
        %v4956 = vmax.f32 %v4908, 1e-24
        %v4957 = vmax.f32 %v4910, 1e-24
        %v4958 = vmax.f32 %v4912, 1e-24
        %v4959 = vmax.f32 %v4914, 1e-24
        %v4960 = vmax.f32 %v4916, 1e-24
        %v4961 = vmax.f32 %v4918, 1e-24
        %v4962 = vmax.f32 %v4920, 1e-24
        %v4963 = vmax.f32 %v4922, 1e-24
        %v4964 = vmax.f32 %v4924, 1e-24
        %v4965 = vmax.f32 %v4926, 1e-24
        %v4966 = vmax.f32 %v4928, 1e-24
        %v4967 = vmax.f32 %v4930, 1e-24
        %v4968 = vmax.f32 %v4932, 1e-24
        %v4969 = vmax.f32 %v4934, 1e-24
        %v4970 = vmax.f32 %v4936, 1e-24
        %v4971 = vmax.f32 %v4938, 1e-24
        %v4972 = vmax.f32 %v4940, 1e-24
        %v4973 = vrsqrt.pop %v4941
        %v4974 = vrsqrt.pop %v4942
        %v4975 = vrsqrt.pop %v4943
        %v4976 = vrsqrt.pop %v4944
        %v4977 = vrsqrt.pop %v4945
        %v4978 = vrsqrt.pop %v4946
        %v4979 = vrsqrt.pop %v4947
        %v4980 = vrsqrt.pop %v4948
        %v4981 = vrsqrt.pop %v4949
        %v4982 = vrsqrt.pop %v4950
        %v4983 = vrsqrt.pop %v4951
        %v4984 = vrsqrt.pop %v4952
        %v4985 = vrsqrt.pop %v4953
        %v4986 = vrsqrt.pop %v4954
        %v4987 = vrsqrt.pop %v4955
        %v4988 = vrsqrt.pop %v4956
        %v4989 = vrsqrt.pop %v4957
        %v4990 = vrsqrt.pop %v4958
        %v4991 = vrsqrt.pop %v4959
        %v4992 = vrsqrt.pop %v4960
        %v4993 = vrsqrt.pop %v4961
        %v4994 = vrsqrt.pop %v4962
        %v4995 = vrsqrt.pop %v4963
        %v4996 = vrsqrt.pop %v4964
        %v4997 = vrsqrt.pop %v4965
        %v4998 = vrsqrt.pop %v4966
        %v4999 = vrsqrt.pop %v4967
        %v5000 = vrsqrt.pop %v4968
        %v5001 = vrsqrt.pop %v4969
        %v5002 = vrsqrt.pop %v4970
        %v5003 = vrsqrt.pop %v4971
        %v5004 = vrsqrt.pop %v4972
        %v5005 = vmul.f32 %v4813, %v4973
        %v5006 = vmul.f32 %v4814, %v4974
        %v5007 = vmul.f32 %v4815, %v4975
        %v5008 = vmul.f32 %v4816, %v4976
        %v5009 = vmul.f32 %v4817, %v4977
        %v5010 = vmul.f32 %v4818, %v4978
        %v5011 = vmul.f32 %v4819, %v4979
        %v5012 = vmul.f32 %v4820, %v4980
        %v5013 = vmul.f32 %v4821, %v4981
        %v5014 = vmul.f32 %v4822, %v4982
        %v5015 = vmul.f32 %v4823, %v4983
        %v5016 = vmul.f32 %v4824, %v4984
        %v5017 = vmul.f32 %v4825, %v4985
        %v5018 = vmul.f32 %v4826, %v4986
        %v5019 = vmul.f32 %v4827, %v4987
        %v5020 = vmul.f32 %v4828, %v4988
        %v5021 = vmul.f32 %v4829, %v4989
        %v5022 = vmul.f32 %v4830, %v4990
        %v5023 = vmul.f32 %v4831, %v4991
        %v5024 = vmul.f32 %v4832, %v4992
        %v5025 = vmul.f32 %v4833, %v4993
        %v5026 = vmul.f32 %v4834, %v4994
        %v5027 = vmul.f32 %v4835, %v4995
        %v5028 = vmul.f32 %v4836, %v4996
        %v5029 = vmul.f32 %v4837, %v4997
        %v5030 = vmul.f32 %v4838, %v4998
        %v5031 = vmul.f32 %v4839, %v4999
        %v5032 = vmul.f32 %v4840, %v5000
        %v5033 = vmul.f32 %v4841, %v5001
        %v5034 = vmul.f32 %v4842, %v5002
        %v5035 = vmul.f32 %v4843, %v5003
        %v5036 = vmul.f32 %v4844, %v5004
        %v5037 = vld [vmem:[%s7] sm:$0x1]
        %v5039 = vlaneseq
        %v5040 = vshrl.u32 %v5039, 7
        %v5041 = vsub.s32 0, %v5040
        %v5042 = vrot.slane %v5037, %v5041
        %v5044 = vmul.f32 %v5005, %v5042
        %v5045 = vmul.f32 %v5006, %v5042
        %v5046 = vmul.f32 %v5007, %v5042
        %v5047 = vmul.f32 %v5008, %v5042
        %v5048 = vmul.f32 %v5009, %v5042
        %v5049 = vmul.f32 %v5010, %v5042
        %v5050 = vmul.f32 %v5011, %v5042
        %v5051 = vmul.f32 %v5012, %v5042
        %v5052 = vmul.f32 %v5013, %v5042
        %v5053 = vmul.f32 %v5014, %v5042
        %v5054 = vmul.f32 %v5015, %v5042
        %v5055 = vmul.f32 %v5016, %v5042
        %v5056 = vmul.f32 %v5017, %v5042
        %v5057 = vmul.f32 %v5018, %v5042
        %v5058 = vmul.f32 %v5019, %v5042
        %v5059 = vmul.f32 %v5020, %v5042
        %v5060 = vmul.f32 %v5021, %v5042
        %v5061 = vmul.f32 %v5022, %v5042
        %v5062 = vmul.f32 %v5023, %v5042
        %v5063 = vmul.f32 %v5024, %v5042
        %v5064 = vmul.f32 %v5025, %v5042
        %v5065 = vmul.f32 %v5026, %v5042
        %v5066 = vmul.f32 %v5027, %v5042
        %v5067 = vmul.f32 %v5028, %v5042
        %v5068 = vmul.f32 %v5029, %v5042
        %v5069 = vmul.f32 %v5030, %v5042
        %v5070 = vmul.f32 %v5031, %v5042
        %v5071 = vmul.f32 %v5032, %v5042
        %v5072 = vmul.f32 %v5033, %v5042
        %v5073 = vmul.f32 %v5034, %v5042
        %v5074 = vmul.f32 %v5035, %v5042
        %v5075 = vmul.f32 %v5036, %v5042
        %v5076 = vxor.u32 %v5044, 2147483648
        %v5077 = vxor.u32 %v5045, 2147483648
        %v5078 = vxor.u32 %v5046, 2147483648
        %v5079 = vxor.u32 %v5047, 2147483648
        %v5080 = vxor.u32 %v5048, 2147483648
        %v5081 = vxor.u32 %v5049, 2147483648
        %v5082 = vxor.u32 %v5050, 2147483648
        %v5083 = vxor.u32 %v5051, 2147483648
        %v5084 = vxor.u32 %v5052, 2147483648
        %v5085 = vxor.u32 %v5053, 2147483648
        %v5086 = vxor.u32 %v5054, 2147483648
        %v5087 = vxor.u32 %v5055, 2147483648
        %v5088 = vxor.u32 %v5056, 2147483648
        %v5089 = vxor.u32 %v5057, 2147483648
        %v5090 = vxor.u32 %v5058, 2147483648
        %v5091 = vxor.u32 %v5059, 2147483648
        %v5092 = vxor.u32 %v5060, 2147483648
        %v5093 = vxor.u32 %v5061, 2147483648
        %v5094 = vxor.u32 %v5062, 2147483648
        %v5095 = vxor.u32 %v5063, 2147483648
        %v5096 = vxor.u32 %v5064, 2147483648
        %v5097 = vxor.u32 %v5065, 2147483648
        %v5098 = vxor.u32 %v5066, 2147483648
        %v5099 = vxor.u32 %v5067, 2147483648
        %v5100 = vxor.u32 %v5068, 2147483648
        %v5101 = vxor.u32 %v5069, 2147483648
        %v5102 = vxor.u32 %v5070, 2147483648
        %v5103 = vxor.u32 %v5071, 2147483648
        %v5104 = vxor.u32 %v5072, 2147483648
        %v5105 = vxor.u32 %v5073, 2147483648
        %v5106 = vxor.u32 %v5074, 2147483648
        %v5107 = vxor.u32 %v5075, 2147483648
        %v5108 = vmul.f32 %v5076, 1.442695
        %v5109 = vpow.pop %v5108
        %v5110 = vmul.f32 %v5077, 1.442695
        %v5111 = vpow.pop %v5110
        %v5112 = vmul.f32 %v5078, 1.442695
        %v5113 = vpow.pop %v5112
        %v5114 = vmul.f32 %v5079, 1.442695
        %v5115 = vpow.pop %v5114
        %v5116 = vmul.f32 %v5080, 1.442695
        %v5117 = vpow.pop %v5116
        %v5118 = vmul.f32 %v5081, 1.442695
        %v5119 = vpow.pop %v5118
        %v5120 = vmul.f32 %v5082, 1.442695
        %v5121 = vpow.pop %v5120
        %v5122 = vmul.f32 %v5083, 1.442695
        %v5123 = vpow.pop %v5122
        %v5124 = vmul.f32 %v5084, 1.442695
        %v5125 = vpow.pop %v5124
        %v5126 = vmul.f32 %v5085, 1.442695
        %v5127 = vpow.pop %v5126
        %v5128 = vmul.f32 %v5086, 1.442695
        %v5129 = vpow.pop %v5128
        %v5130 = vmul.f32 %v5087, 1.442695
        %v5131 = vpow.pop %v5130
        %v5132 = vmul.f32 %v5088, 1.442695
        %v5133 = vpow.pop %v5132
        %v5134 = vmul.f32 %v5089, 1.442695
        %v5135 = vpow.pop %v5134
        %v5136 = vmul.f32 %v5090, 1.442695
        %v5137 = vpow.pop %v5136
        %v5138 = vmul.f32 %v5091, 1.442695
        %v5139 = vpow.pop %v5138
        %v5140 = vmul.f32 %v5092, 1.442695
        %v5141 = vpow.pop %v5140
        %v5142 = vmul.f32 %v5093, 1.442695
        %v5143 = vpow.pop %v5142
        %v5144 = vmul.f32 %v5094, 1.442695
        %v5145 = vpow.pop %v5144
        %v5146 = vmul.f32 %v5095, 1.442695
        %v5147 = vpow.pop %v5146
        %v5148 = vmul.f32 %v5096, 1.442695
        %v5149 = vpow.pop %v5148
        %v5150 = vmul.f32 %v5097, 1.442695
        %v5151 = vpow.pop %v5150
        %v5152 = vmul.f32 %v5098, 1.442695
        %v5153 = vpow.pop %v5152
        %v5154 = vmul.f32 %v5099, 1.442695
        %v5155 = vpow.pop %v5154
        %v5156 = vmul.f32 %v5100, 1.442695
        %v5157 = vpow.pop %v5156
        %v5158 = vmul.f32 %v5101, 1.442695
        %v5159 = vpow.pop %v5158
        %v5160 = vmul.f32 %v5102, 1.442695
        %v5161 = vpow.pop %v5160
        %v5162 = vmul.f32 %v5103, 1.442695
        %v5163 = vpow.pop %v5162
        %v5164 = vmul.f32 %v5104, 1.442695
        %v5165 = vpow.pop %v5164
        %v5166 = vmul.f32 %v5105, 1.442695
        %v5167 = vpow.pop %v5166
        %v5168 = vmul.f32 %v5106, 1.442695
        %v5169 = vpow.pop %v5168
        %v5170 = vmul.f32 %v5107, 1.442695
        %v5171 = vpow.pop %v5170
        %v5172 = vadd.f32 %v5109, 1.0
        %v5173 = vadd.f32 %v5111, 1.0
        %v5174 = vadd.f32 %v5113, 1.0
        %v5175 = vadd.f32 %v5115, 1.0
        %v5176 = vadd.f32 %v5117, 1.0
        %v5177 = vadd.f32 %v5119, 1.0
        %v5178 = vadd.f32 %v5121, 1.0
        %v5179 = vadd.f32 %v5123, 1.0
        %v5180 = vadd.f32 %v5125, 1.0
        %v5181 = vadd.f32 %v5127, 1.0
        %v5182 = vadd.f32 %v5129, 1.0
        %v5183 = vadd.f32 %v5131, 1.0
        %v5184 = vadd.f32 %v5133, 1.0
        %v5185 = vadd.f32 %v5135, 1.0
        %v5186 = vadd.f32 %v5137, 1.0
        %v5187 = vadd.f32 %v5139, 1.0
        %v5188 = vadd.f32 %v5141, 1.0
        %v5189 = vadd.f32 %v5143, 1.0
        %v5190 = vadd.f32 %v5145, 1.0
        %v5191 = vadd.f32 %v5147, 1.0
        %v5192 = vadd.f32 %v5149, 1.0
        %v5193 = vadd.f32 %v5151, 1.0
        %v5194 = vadd.f32 %v5153, 1.0
        %v5195 = vadd.f32 %v5155, 1.0
        %v5196 = vadd.f32 %v5157, 1.0
        %v5197 = vadd.f32 %v5159, 1.0
        %v5198 = vadd.f32 %v5161, 1.0
        %v5199 = vadd.f32 %v5163, 1.0
        %v5200 = vadd.f32 %v5165, 1.0
        %v5201 = vadd.f32 %v5167, 1.0
        %v5202 = vadd.f32 %v5169, 1.0
        %v5203 = vadd.f32 %v5171, 1.0
        %v5204 = vrcp.pop %v5172
        %v5205 = vmul.f32 1.0, %v5204
        %v5206 = vrcp.pop %v5173
        %v5207 = vmul.f32 1.0, %v5206
        %v5208 = vrcp.pop %v5174
        %v5209 = vmul.f32 1.0, %v5208
        %v5210 = vrcp.pop %v5175
        %v5211 = vmul.f32 1.0, %v5210
        %v5212 = vrcp.pop %v5176
        %v5213 = vmul.f32 1.0, %v5212
        %v5214 = vrcp.pop %v5177
        %v5215 = vmul.f32 1.0, %v5214
        %v5216 = vrcp.pop %v5178
        %v5217 = vmul.f32 1.0, %v5216
        %v5218 = vrcp.pop %v5179
        %v5219 = vmul.f32 1.0, %v5218
        %v5220 = vrcp.pop %v5180
        %v5221 = vmul.f32 1.0, %v5220
        %v5222 = vrcp.pop %v5181
        %v5223 = vmul.f32 1.0, %v5222
        %v5224 = vrcp.pop %v5182
        %v5225 = vmul.f32 1.0, %v5224
        %v5226 = vrcp.pop %v5183
        %v5227 = vmul.f32 1.0, %v5226
        %v5228 = vrcp.pop %v5184
        %v5229 = vmul.f32 1.0, %v5228
        %v5230 = vrcp.pop %v5185
        %v5231 = vmul.f32 1.0, %v5230
        %v5232 = vrcp.pop %v5186
        %v5233 = vmul.f32 1.0, %v5232
        %v5234 = vrcp.pop %v5187
        %v5235 = vmul.f32 1.0, %v5234
        %v5236 = vrcp.pop %v5188
        %v5237 = vmul.f32 1.0, %v5236
        %v5238 = vrcp.pop %v5189
        %v5239 = vmul.f32 1.0, %v5238
        %v5240 = vrcp.pop %v5190
        %v5241 = vmul.f32 1.0, %v5240
        %v5242 = vrcp.pop %v5191
        %v5243 = vmul.f32 1.0, %v5242
        %v5244 = vrcp.pop %v5192
        %v5245 = vmul.f32 1.0, %v5244
        %v5246 = vrcp.pop %v5193
        %v5247 = vmul.f32 1.0, %v5246
        %v5248 = vrcp.pop %v5194
        %v5249 = vmul.f32 1.0, %v5248
        %v5250 = vrcp.pop %v5195
        %v5251 = vmul.f32 1.0, %v5250
        %v5252 = vrcp.pop %v5196
        %v5253 = vmul.f32 1.0, %v5252
        %v5254 = vrcp.pop %v5197
        %v5255 = vmul.f32 1.0, %v5254
        %v5256 = vrcp.pop %v5198
        %v5257 = vmul.f32 1.0, %v5256
        %v5258 = vrcp.pop %v5199
        %v5259 = vmul.f32 1.0, %v5258
        %v5260 = vrcp.pop %v5200
        %v5261 = vmul.f32 1.0, %v5260
        %v5262 = vrcp.pop %v5201
        %v5263 = vmul.f32 1.0, %v5262
        %v5264 = vrcp.pop %v5202
        %v5265 = vmul.f32 1.0, %v5264
        %v5266 = vrcp.pop %v5203
        %v5267 = vmul.f32 1.0, %v5266
        %v5268 = vmul.f32 %v5044, %v5205
        %v5269 = vmul.f32 %v5045, %v5207
        %v5270 = vmul.f32 %v5046, %v5209
        %v5271 = vmul.f32 %v5047, %v5211
        %v5272 = vmul.f32 %v5048, %v5213
        %v5273 = vmul.f32 %v5049, %v5215
        %v5274 = vmul.f32 %v5050, %v5217
        %v5275 = vmul.f32 %v5051, %v5219
        %v5276 = vmul.f32 %v5052, %v5221
        %v5277 = vmul.f32 %v5053, %v5223
        %v5278 = vmul.f32 %v5054, %v5225
        %v5279 = vmul.f32 %v5055, %v5227
        %v5280 = vmul.f32 %v5056, %v5229
        %v5281 = vmul.f32 %v5057, %v5231
        %v5282 = vmul.f32 %v5058, %v5233
        %v5283 = vmul.f32 %v5059, %v5235
        %v5284 = vmul.f32 %v5060, %v5237
        %v5285 = vmul.f32 %v5061, %v5239
        %v5286 = vmul.f32 %v5062, %v5241
        %v5287 = vmul.f32 %v5063, %v5243
        %v5288 = vmul.f32 %v5064, %v5245
        %v5289 = vmul.f32 %v5065, %v5247
        %v5290 = vmul.f32 %v5066, %v5249
        %v5291 = vmul.f32 %v5067, %v5251
        %v5292 = vmul.f32 %v5068, %v5253
        %v5293 = vmul.f32 %v5069, %v5255
        %v5294 = vmul.f32 %v5070, %v5257
        %v5295 = vmul.f32 %v5071, %v5259
        %v5296 = vmul.f32 %v5072, %v5261
        %v5297 = vmul.f32 %v5073, %v5263
        %v5298 = vmul.f32 %v5074, %v5265
        %v5299 = vmul.f32 %v5075, %v5267
        %v5300 = vld [vmem:[#allocation10] sm:$0xf]
        %v5301 = vld [vmem:[#allocation10 + $0x4] sm:$0xf]
        %v5302 = vld [vmem:[#allocation10 + $0x8] sm:$0xf]
        %v5303 = vld [vmem:[#allocation10 + $0xc] sm:$0xf]
        %v5304 = vld [vmem:[#allocation10 + $0x10] sm:$0xf]
        %v5305 = vld [vmem:[#allocation10 + $0x14] sm:$0xf]
        %v5306 = vld [vmem:[#allocation10 + $0x18] sm:$0xf]
        %v5307 = vld [vmem:[#allocation10 + $0x1c] sm:$0xf]
        %v5308 = vld [vmem:[#allocation10 + $0x20] sm:$0xf]
        %v5309 = vld [vmem:[#allocation10 + $0x24] sm:$0xf]
        %v5310 = vld [vmem:[#allocation10 + $0x28] sm:$0xf]
        %v5311 = vld [vmem:[#allocation10 + $0x2c] sm:$0xf]
        %v5312 = vld [vmem:[#allocation10 + $0x30] sm:$0xf]
        %v5313 = vld [vmem:[#allocation10 + $0x34] sm:$0xf]
        %v5314 = vld [vmem:[#allocation10 + $0x38] sm:$0xf]
        %v5315 = vld [vmem:[#allocation10 + $0x3c] sm:$0xf]
        %v5316 = vld [vmem:[%s9] sm:$0x1]
        %v5318 = vlaneseq
        %v5319 = vshrl.u32 %v5318, 7
        %v5320 = vsub.s32 0, %v5319
        %v5321 = vrot.slane %v5316, %v5320
        %v5339 = vunpack.c.l.b16 %v5300
        %v5340 = vunpack.c.l.b16 %v5301
        %v5341 = vunpack.c.l.b16 %v5302
        %v5342 = vunpack.c.l.b16 %v5303
        %v5343 = vunpack.c.l.b16 %v5304
        %v5344 = vunpack.c.l.b16 %v5305
        %v5345 = vunpack.c.l.b16 %v5306
        %v5346 = vunpack.c.l.b16 %v5307
        %v5347 = vunpack.c.l.b16 %v5308
        %v5348 = vunpack.c.l.b16 %v5309
        %v5349 = vunpack.c.l.b16 %v5310
        %v5350 = vunpack.c.l.b16 %v5311
        %v5351 = vunpack.c.l.b16 %v5312
        %v5352 = vunpack.c.l.b16 %v5313
        %v5353 = vunpack.c.l.b16 %v5314
        %v5354 = vunpack.c.l.b16 %v5315
        %v5355 = vpack.c.b16 %v5340, %v5339
        %v5356 = vpack.c.b16 %v5342, %v5341
        %v5357 = vpack.c.b16 %v5344, %v5343
        %v5358 = vpack.c.b16 %v5346, %v5345
        %v5359 = vpack.c.b16 %v5348, %v5347
        %v5360 = vpack.c.b16 %v5350, %v5349
        %v5361 = vpack.c.b16 %v5352, %v5351
        %v5362 = vpack.c.b16 %v5354, %v5353
        %5371 = vmatprep.subr.bf16.mxu0 0
        %5372 = vmatpush1.bf16.msra.mxu0 %v5355
        %5373 = vmatprep.subr.bf16.mxu0 0
        %5374 = vmatpush1.bf16.msra.mxu0 %v5356
        %5375 = vmatprep.subr.bf16.mxu0 0
        %5376 = vmatpush1.bf16.msra.mxu0 %v5357
        %5377 = vmatprep.subr.bf16.mxu0 0
        %5378 = vmatpush1.bf16.msra.mxu0 %v5358
        %5379 = vmatprep.subr.bf16.mxu0 0
        %5380 = vmatpush1.bf16.msra.mxu0 %v5359
        %5381 = vmatprep.subr.bf16.mxu0 0
        %5382 = vmatpush1.bf16.msra.mxu0 %v5360
        %5383 = vmatprep.subr.bf16.mxu0 0
        %5384 = vmatpush1.bf16.msra.mxu0 %v5361
        %5385 = vmatprep.subr.bf16.mxu0 0
        %5386 = vmatpush1.bf16.msra.mxu0 %v5362
        %5387 = vmatprep.subr.bf16.mxu0 0
        %5388 = vmatpush1.bf16.msra.mxu0 0
        %5389 = vmatprep.subr.bf16.mxu0 0
        %5390 = vmatpush1.bf16.msra.mxu0 0
        %5391 = vmatprep.subr.bf16.mxu0 0
        %5392 = vmatpush1.bf16.msra.mxu0 0
        %5393 = vmatprep.subr.bf16.mxu0 0
        %5394 = vmatpush1.bf16.msra.mxu0 0
        %5395 = vmatprep.subr.bf16.mxu0 0
        %5396 = vmatpush1.bf16.msra.mxu0 0
        %5397 = vmatprep.subr.bf16.mxu0 0
        %5398 = vmatpush1.bf16.msra.mxu0 0
        %5399 = vmatprep.subr.bf16.mxu0 0
        %5400 = vmatpush1.bf16.msra.mxu0 0
        %5401 = vmatprep.subr.bf16.mxu0 0
        %5402 = vmatpush1.bf16.msra.mxu0 0
        %5403 = vmatprep.mubr.bf16.mxu0 0
        %5404 = vmatmul.mubr.bf16.gmra.mrb[0].mxu0 %v571
        %v5405 = vpop.f32.mrb[0].mxu0
        %v5406 = vadd.f32 %v5321, %v5405
        %v5407 = vpop.f32.mrb[0].mxu0
        %v5408 = vpop.f32.mrb[0].mxu0
        %v5409 = vadd.f32 %v5321, %v5408
        %v5410 = vpop.f32.mrb[0].mxu0
        %5411 = vmatprep.mubr.bf16.mxu0 0
        %5412 = vmatmul.mubr.bf16.gmra.mrb[0].mxu0 %v572
        %v5413 = vpop.f32.mrb[0].mxu0
        %v5414 = vadd.f32 %v5321, %v5413
        %v5415 = vpop.f32.mrb[0].mxu0
        %v5416 = vpop.f32.mrb[0].mxu0
        %v5417 = vadd.f32 %v5321, %v5416
        %v5418 = vpop.f32.mrb[0].mxu0
        %5419 = vmatprep.mubr.bf16.mxu0 0
        %5420 = vmatmul.mubr.bf16.gmra.mrb[0].mxu0 %v573
        %v5421 = vpop.f32.mrb[0].mxu0
        %v5422 = vadd.f32 %v5321, %v5421
        %v5423 = vpop.f32.mrb[0].mxu0
        %v5424 = vpop.f32.mrb[0].mxu0
        %v5425 = vadd.f32 %v5321, %v5424
        %v5426 = vpop.f32.mrb[0].mxu0
        %5427 = vmatprep.mubr.bf16.mxu0 0
        %5428 = vmatmul.mubr.bf16.gmra.mrb[0].mxu0 %v574
        %v5429 = vpop.f32.mrb[0].mxu0
        %v5430 = vadd.f32 %v5321, %v5429
        %v5431 = vpop.f32.mrb[0].mxu0
        %v5432 = vpop.f32.mrb[0].mxu0
        %v5433 = vadd.f32 %v5321, %v5432
        %v5434 = vpop.f32.mrb[0].mxu0
        %5435 = vmatprep.mubr.bf16.mxu0 0
        %5436 = vmatmul.mubr.bf16.gmra.mrb[0].mxu0 %v575
        %v5437 = vpop.f32.mrb[0].mxu0
        %v5438 = vadd.f32 %v5321, %v5437
        %v5439 = vpop.f32.mrb[0].mxu0
        %v5440 = vpop.f32.mrb[0].mxu0
        %v5441 = vadd.f32 %v5321, %v5440
        %v5442 = vpop.f32.mrb[0].mxu0
        %5443 = vmatprep.mubr.bf16.mxu0 0
        %5444 = vmatmul.mubr.bf16.gmra.mrb[0].mxu0 %v576
        %v5445 = vpop.f32.mrb[0].mxu0
        %v5446 = vadd.f32 %v5321, %v5445
        %v5447 = vpop.f32.mrb[0].mxu0
        %v5448 = vpop.f32.mrb[0].mxu0
        %v5449 = vadd.f32 %v5321, %v5448
        %v5450 = vpop.f32.mrb[0].mxu0
        %5451 = vmatprep.mubr.bf16.mxu0 0
        %5452 = vmatmul.mubr.bf16.gmra.mrb[0].mxu0 %v577
        %v5453 = vpop.f32.mrb[0].mxu0
        %v5454 = vadd.f32 %v5321, %v5453
        %v5455 = vpop.f32.mrb[0].mxu0
        %v5456 = vpop.f32.mrb[0].mxu0
        %v5457 = vadd.f32 %v5321, %v5456
        %v5458 = vpop.f32.mrb[0].mxu0
        %5459 = vmatprep.mubr.bf16.mxu0 0
        %5460 = vmatmul.mubr.bf16.gmra.mrb[0].mxu0 %v578
        %v5461 = vpop.f32.mrb[0].mxu0
        %v5462 = vadd.f32 %v5321, %v5461
        %v5463 = vpop.f32.mrb[0].mxu0
        %v5464 = vpop.f32.mrb[0].mxu0
        %v5465 = vadd.f32 %v5321, %v5464
        %v5466 = vpop.f32.mrb[0].mxu0
        %5467 = vmatprep.mubr.bf16.mxu0 0
        %5468 = vmatmul.mubr.bf16.gmra.mrb[0].mxu0 %v579
        %v5469 = vpop.f32.mrb[0].mxu0
        %v5470 = vadd.f32 %v5321, %v5469
        %v5471 = vpop.f32.mrb[0].mxu0
        %v5472 = vpop.f32.mrb[0].mxu0
        %v5473 = vadd.f32 %v5321, %v5472
        %v5474 = vpop.f32.mrb[0].mxu0
        %5475 = vmatprep.mubr.bf16.mxu0 0
        %5476 = vmatmul.mubr.bf16.gmra.mrb[0].mxu0 %v580
        %v5477 = vpop.f32.mrb[0].mxu0
        %v5478 = vadd.f32 %v5321, %v5477
        %v5479 = vpop.f32.mrb[0].mxu0
        %v5480 = vpop.f32.mrb[0].mxu0
        %v5481 = vadd.f32 %v5321, %v5480
        %v5482 = vpop.f32.mrb[0].mxu0
        %5483 = vmatprep.mubr.bf16.mxu0 0
        %5484 = vmatmul.mubr.bf16.gmra.mrb[0].mxu0 %v581
        %v5485 = vpop.f32.mrb[0].mxu0
        %v5486 = vadd.f32 %v5321, %v5485
        %v5487 = vpop.f32.mrb[0].mxu0
        %v5488 = vpop.f32.mrb[0].mxu0
        %v5489 = vadd.f32 %v5321, %v5488
        %v5490 = vpop.f32.mrb[0].mxu0
        %5491 = vmatprep.mubr.bf16.mxu0 0
        %5492 = vmatmul.mubr.bf16.gmra.mrb[0].mxu0 %v582
        %v5493 = vpop.f32.mrb[0].mxu0
        %v5494 = vadd.f32 %v5321, %v5493
        %v5495 = vpop.f32.mrb[0].mxu0
        %v5496 = vpop.f32.mrb[0].mxu0
        %v5497 = vadd.f32 %v5321, %v5496
        %v5498 = vpop.f32.mrb[0].mxu0
        %5499 = vmatprep.mubr.bf16.mxu0 0
        %5500 = vmatmul.mubr.bf16.gmra.mrb[0].mxu0 %v583
        %v5501 = vpop.f32.mrb[0].mxu0
        %v5502 = vadd.f32 %v5321, %v5501
        %v5503 = vpop.f32.mrb[0].mxu0
        %v5504 = vpop.f32.mrb[0].mxu0
        %v5505 = vadd.f32 %v5321, %v5504
        %v5506 = vpop.f32.mrb[0].mxu0
        %5507 = vmatprep.mubr.bf16.mxu0 0
        %5508 = vmatmul.mubr.bf16.gmra.mrb[0].mxu0 %v584
        %v5509 = vpop.f32.mrb[0].mxu0
        %v5510 = vadd.f32 %v5321, %v5509
        %v5511 = vpop.f32.mrb[0].mxu0
        %v5512 = vpop.f32.mrb[0].mxu0
        %v5513 = vadd.f32 %v5321, %v5512
        %v5514 = vpop.f32.mrb[0].mxu0
        %5515 = vmatprep.mubr.bf16.mxu0 0
        %5516 = vmatmul.mubr.bf16.gmra.mrb[0].mxu0 %v585
        %v5517 = vpop.f32.mrb[0].mxu0
        %v5518 = vadd.f32 %v5321, %v5517
        %v5519 = vpop.f32.mrb[0].mxu0
        %v5520 = vpop.f32.mrb[0].mxu0
        %v5521 = vadd.f32 %v5321, %v5520
        %v5522 = vpop.f32.mrb[0].mxu0
        %5523 = vmatprep.mubr.bf16.mxu0 0
        %5524 = vmatmul.mubr.bf16.gmra.mrb[0].mxu0 %v586
        %v5525 = vpop.f32.mrb[0].mxu0
        %v5526 = vadd.f32 %v5321, %v5525
        %v5527 = vpop.f32.mrb[0].mxu0
        %v5528 = vpop.f32.mrb[0].mxu0
        %v5529 = vadd.f32 %v5321, %v5528
        %v5530 = vpop.f32.mrb[0].mxu0
        %5531 = vdwg.mxu0
        %v5532 = vadd.f32 %v5268, %v5406
        %v5533 = vadd.f32 %v5269, %v5409
        %v5534 = vadd.f32 %v5270, %v5414
        %v5535 = vadd.f32 %v5271, %v5417
        %v5536 = vadd.f32 %v5272, %v5422
        %v5537 = vadd.f32 %v5273, %v5425
        %v5538 = vadd.f32 %v5274, %v5430
        %v5539 = vadd.f32 %v5275, %v5433
        %v5540 = vadd.f32 %v5276, %v5438
        %v5541 = vadd.f32 %v5277, %v5441
        %v5542 = vadd.f32 %v5278, %v5446
        %v5543 = vadd.f32 %v5279, %v5449
        %v5544 = vadd.f32 %v5280, %v5454
        %v5545 = vadd.f32 %v5281, %v5457
        %v5546 = vadd.f32 %v5282, %v5462
        %v5547 = vadd.f32 %v5283, %v5465
        %v5548 = vadd.f32 %v5284, %v5470
        %v5549 = vadd.f32 %v5285, %v5473
        %v5550 = vadd.f32 %v5286, %v5478
        %v5551 = vadd.f32 %v5287, %v5481
        %v5552 = vadd.f32 %v5288, %v5486
        %v5553 = vadd.f32 %v5289, %v5489
        %v5554 = vadd.f32 %v5290, %v5494
        %v5555 = vadd.f32 %v5291, %v5497
        %v5556 = vadd.f32 %v5292, %v5502
        %v5557 = vadd.f32 %v5293, %v5505
        %v5558 = vadd.f32 %v5294, %v5510
        %v5559 = vadd.f32 %v5295, %v5513
        %v5560 = vadd.f32 %v5296, %v5518
        %v5561 = vadd.f32 %v5297, %v5521
        %v5562 = vadd.f32 %v5298, %v5526
        %v5563 = vadd.f32 %v5299, %v5529
        %5564 = vst [vmem:[%s458] sm:$0xff] %v5532
        %5565 = vst [vmem:[%s458 + $0x8] sm:$0xff] %v5533
        %5566 = vst [vmem:[%s458 + $0x10] sm:$0xff] %v5534
        %5567 = vst [vmem:[%s458 + $0x18] sm:$0xff] %v5535
        %5568 = vst [vmem:[%s458 + $0x20] sm:$0xff] %v5536
        %5569 = vst [vmem:[%s458 + $0x28] sm:$0xff] %v5537
        %5570 = vst [vmem:[%s458 + $0x30] sm:$0xff] %v5538
        %5571 = vst [vmem:[%s458 + $0x38] sm:$0xff] %v5539
        %5572 = vst [vmem:[%s458 + $0x40] sm:$0xff] %v5540
        %5573 = vst [vmem:[%s458 + $0x48] sm:$0xff] %v5541
        %5574 = vst [vmem:[%s458 + $0x50] sm:$0xff] %v5542
        %5575 = vst [vmem:[%s458 + $0x58] sm:$0xff] %v5543
        %5576 = vst [vmem:[%s458 + $0x60] sm:$0xff] %v5544
        %5577 = vst [vmem:[%s458 + $0x68] sm:$0xff] %v5545
        %5578 = vst [vmem:[%s458 + $0x70] sm:$0xff] %v5546
        %5579 = vst [vmem:[%s458 + $0x78] sm:$0xff] %v5547
        %5580 = vst [vmem:[%s458 + $0x80] sm:$0xff] %v5548
        %5581 = vst [vmem:[%s458 + $0x88] sm:$0xff] %v5549
        %5582 = vst [vmem:[%s458 + $0x90] sm:$0xff] %v5550
        %5583 = vst [vmem:[%s458 + $0x98] sm:$0xff] %v5551
        %5584 = vst [vmem:[%s458 + $0xa0] sm:$0xff] %v5552
        %5585 = vst [vmem:[%s458 + $0xa8] sm:$0xff] %v5553
        %5586 = vst [vmem:[%s458 + $0xb0] sm:$0xff] %v5554
        %5587 = vst [vmem:[%s458 + $0xb8] sm:$0xff] %v5555
        %5588 = vst [vmem:[%s458 + $0xc0] sm:$0xff] %v5556
        %5589 = vst [vmem:[%s458 + $0xc8] sm:$0xff] %v5557
        %5590 = vst [vmem:[%s458 + $0xd0] sm:$0xff] %v5558
        %5591 = vst [vmem:[%s458 + $0xd8] sm:$0xff] %v5559
        %5592 = vst [vmem:[%s458 + $0xe0] sm:$0xff] %v5560
        %5593 = vst [vmem:[%s458 + $0xe8] sm:$0xff] %v5561
        %5594 = vst [vmem:[%s458 + $0xf0] sm:$0xff] %v5562
        %5595 = vst [vmem:[%s458 + $0xf8] sm:$0xff] %v5563
        %s5596 = sand.u32 %s259, 1
        %s5597 = scalar_lea.sflag [#allocation4], %s5596
        %s5598 = sand.u32 %s259, 1
        %s5599 = smul.addr %s5598, 256
        %s5600 = scalar_lea.vmem [#allocation11], %s5599
        // Predicated region
        $region81: #{tpu_custom_call.1} parent=59 // pred_check
          %p5601 = pneg %p269
        $region82: #{tpu_custom_call.1} parent=59 // pred_check_branch
          %5603 = sbr.rel (%p5601) target = $region84
        $region83: #{tpu_custom_call.1} parent=59 // pred_region
          %s5605 = ssub.s32 4096, 4096
          %5606 = vsyncadd %s5597, %s5605
          %s5607 = smul.addr %s31, 32
          %s5608 = smul.addr %s5607, 128
          %s5609 = scalar_lea.hbm %s10, %s5608
          %s5610 = sshll.u32 %s5600, 4
          %s5611 = int_to_ptr.vmem [resolvable:$true] %s5610
          %5616 = dma.vmem_to_hbm [thread:$0]  %s5611, 4096, %s5609, %s5597, 128, 128, 8
        $region84: #{tpu_custom_call.1} parent=59 // pred_fallthru
          _
      $region60: #{tpu_custom_call.1} parent=5 // pred_fallthru
        _
      %p5617 = scmp.le.s32.totalorder 2, %s26
      // Predicated region
      $region85: #{tpu_custom_call.1} parent=5 // pred_check
        %p5618 = pneg %p5617
      $region86: #{tpu_custom_call.1} parent=5 // pred_check_branch
        %5620 = sbr.rel (%p5618) target = $region88
      $region87: #{tpu_custom_call.1} parent=5 // pred_region
        %s5621 = ssub.s32 %s26, 2
        // Predicated region
        $region89: #{tpu_custom_call.1} parent=87 // pred_check
          %p5622 = pneg %p275
        $region90: #{tpu_custom_call.1} parent=87 // pred_check_branch
          %5624 = sbr.rel (%p5622) target = $region92
        $region91: #{tpu_custom_call.1} parent=87 // pred_region
          %s5625 = sand.u32 %s260, 1
          %s5626 = scalar_lea.sflag [#allocation4], %s5625
          %s5627 = sand.u32 %s260, 1
          %s5628 = smul.addr %s5627, 256
          %s5629 = scalar_lea.vmem [#allocation11], %s5628
          %5630 = dma.done %s5626, 4096
        $region92: #{tpu_custom_call.1} parent=87 // pred_fallthru
          _
      $region88: #{tpu_custom_call.1} parent=5 // pred_fallthru
        _
    $region6: #{tpu_custom_call.1} parent=1 // loop_footer
      %s30 = sadd.s32 1, %s26
    $region7: #{tpu_custom_call.1} parent=1 // loop_footer_branch
      %25 = sbr.rel target = $region3
    $region8: #{tpu_custom_call.1} parent=1 // loop_exit
      _
    %5631 = vsyncpa [#allocation3], 1
    %s5632 = scalar_lea.sflag [#allocation3], 1
    %5633 = vsyncpa %s5632, 1
    %5634 = vsyncpa [#allocation6], 1
    %s5635 = scalar_lea.sflag [#allocation6], 1
    %5636 = vsyncpa %s5635, 1
    %5637 = vsyncpa [#allocation9], 1
    %5638 = vsyncpa [#allocation4], 1
    %s5639 = scalar_lea.sflag [#allocation4], 1
    %5640 = vsyncpa %s5639, 1

</llo_original>
